<compile_context>
chip_gen: v7x
topology: tpu7x:2x2x1
jax: 0.10.0
libtpu: 0.0.40
codegen_flags: <defaults>
</compile_context>

<pallas_src>
import numpy as np
import jax
import jax.numpy as jnp
from jax.experimental import pallas as pl
from jax.experimental.pallas import tpu as pltpu


def _round_up(x, m):
    return ((x + m - 1) // m) * m


def _vmem_capacity_bytes():
    """Per-core VMEM capacity; conservative fallback (v7x per-TC) if query fails."""
    try:
        return int(pltpu.get_tpu_info().vmem_capacity_bytes)
    except Exception:
        return 64 * 1024 * 1024


def make_pinn_kernel(n_hidden_layers, n_output):
    def kernel(x_ref, e_ref, w_ref, b_ref, o_ref):
        x = x_ref[...]                                     # (tile, n_input) f32
        # Place x into lanes [0:n_input) of the fused state: e_ref = [I | 0],
        # so state = [x | 0 ... 0] exactly (zero columns -> exact zeros).
        state = jnp.dot(x, e_ref[...], preferred_element_type=jnp.float32)
        for i in range(n_hidden_layers):
            pre = jnp.dot(state, w_ref[i],
                          preferred_element_type=jnp.float32) + b_ref[i]
            # W_i's nonzero columns are exactly layer i's state slice; every other
            # pre-activation column is exactly 0 (zero weight cols + zero bias),
            # so sin(pre) equals y_i in that slice and 0 elsewhere: the add fills
            # the slice and preserves all previously filled lanes exactly.
            state = state + jnp.sin(pre)
        out = jnp.dot(state, w_ref[n_hidden_layers],
                      preferred_element_type=jnp.float32) + b_ref[n_hidden_layers]
        o_ref[...] = out[:, :n_output].astype(o_ref.dtype)

    return kernel


def prepare_params(params, n_input, n_hidden, width):
    """Pack dense-skip Linear params into fused, lane-padded stacks.

    params: list of (W (fan_in, fan_out), b (1, fan_out)); hidden layers then output.
    Hidden layer i: fan_in = n_input + i*n_hidden; the concat order
    [x, y_0, ..., y_{i-1}] occupies state lanes [0:fan_in).  Its output columns
    are placed at the layer's state slice [n_input + i*n_hidden : + n_hidden).
    Output layer columns go to [0:n_output).  Everything else stays exactly zero
    (required for the additive-state update: sin(0)=0 and 0-weight rows/cols).
    """
    n_hidden_layers = len(params) - 1
    n_output = np.asarray(params[-1][0]).shape[1]

    w_stack = np.zeros((n_hidden_layers + 1, width, width), np.float32)
    b_stack = np.zeros((n_hidden_layers + 1, 1, width), np.float32)

    for i in range(n_hidden_layers):
        w, b = params[i]
        w = np.asarray(w, np.float32)
        b = np.asarray(b, np.float32).reshape(1, -1)
        fan_in = n_input + i * n_hidden
        col0 = n_input + i * n_hidden
        assert w.shape == (fan_in, n_hidden) and b.shape == (1, n_hidden)
        assert col0 + n_hidden <= width
        w_stack[i, :fan_in, col0:col0 + n_hidden] = w
        b_stack[i, :, col0:col0 + n_hidden] = b

    w, b = params[-1]
    w = np.asarray(w, np.float32)
    b = np.asarray(b, np.float32).reshape(1, -1)
    fan_in = n_input + n_hidden_layers * n_hidden
    assert w.shape == (fan_in, n_output) and b.shape == (1, n_output)
    assert fan_in <= width and n_output <= width
    w_stack[n_hidden_layers, :fan_in, :n_output] = w
    b_stack[n_hidden_layers, :, :n_output] = b

    # x-placement matrix: [I | 0]  (n_input, width)
    emb = np.zeros((n_input, width), np.float32)
    emb[:n_input, :n_input] = np.eye(n_input, dtype=np.float32)

    return jnp.asarray(emb), jnp.asarray(w_stack), jnp.asarray(b_stack)


def pinn_forward_pallas(x, params, *, n_hidden, tile_n=None):
    """x: (n_points, n_input) float32. params: list of (W (in,out), b (1,out))."""
    n_points, n_input = x.shape
    n_hidden_layers = len(params) - 1
    n_output = params[-1][0].shape[1]

    concat_width = n_input + n_hidden_layers * n_hidden
    width = _round_up(concat_width, 128)      # fused-state lane width

    emb, w_stack, b_stack = prepare_params(params, n_input, n_hidden, width)

    cap = _vmem_capacity_bytes()
    if tile_n is None:
        # Bigger row tiles on 128 MiB parts (v5e/v6e); conservative on 64 MiB v7x.
        tile_n = 16384 if cap >= 100 * 1024 * 1024 else 8192
    tile = max(8, min(tile_n, _round_up(n_points, 8)))
    tile = (tile // 8) * 8
    grid = (pl.cdiv(n_points, tile),)         # ragged last block handled by Pallas

    # VMEM footprint with lane padding: a (tile, n) f32 block occupies
    # tile * round_up(n, 128) * 4 bytes in VMEM; inputs/outputs are double-buffered.
    io_row = _round_up(max(n_input, n_output, 1), 128) * 4
    io_bytes = 2 * 2 * tile * io_row                                   # x + out
    param_bytes = 2 * 4 * ((n_hidden_layers + 1) * width * width
                           + (n_hidden_layers + 1) * 8 * width
                           + 8 * width)                                # stacks + emb
    live_bytes = (n_hidden_layers + 3) * tile * width * 4              # state/pre/sin
    vmem_limit = io_bytes + param_bytes + live_bytes + 4 * 1024 * 1024
    vmem_limit = int(max(32 * 1024 * 1024, min(vmem_limit, int(0.85 * cap))))

    kernel = make_pinn_kernel(n_hidden_layers, n_output)

    out = pl.pallas_call(
        kernel,
        out_shape=jax.ShapeDtypeStruct((n_points, n_output), jnp.float32),
        grid=grid,
        in_specs=[
            # NOTE: if DMA ever shows up exposed on very short grids, this spec can
            # take pipeline_mode=pl.Buffered(3) at negligible VMEM cost.
            pl.BlockSpec((tile, n_input), lambda i: (i, 0)),
            pl.BlockSpec(emb.shape, lambda i: (0, 0)),       # VMEM-resident
            pl.BlockSpec(w_stack.shape, lambda i: (0, 0, 0)),  # VMEM-resident
            pl.BlockSpec(b_stack.shape, lambda i: (0, 0, 0)),  # VMEM-resident
        ],
        out_specs=pl.BlockSpec((tile, n_output), lambda i: (i, 0)),
        compiler_params=pltpu.CompilerParams(
            dimension_semantics=("parallel",),
            vmem_limit_bytes=vmem_limit,
        ),
    )(x, emb, w_stack, b_stack)

    return out


def init_pinn_params(key, n_input, n_output, n_layers, n_hidden, dense=True, c=6.0):
    """Deterministic SIREN-style init mirroring PINN.__init__ / init_weights.

    Returns list of (W_transposed (in, out), bias (1, out)) for each Linear, in order:
    hidden0, ..., hidden_{n_layers-2}, output.
    """
    params = []
    fan_in = n_input
    layer_idx = 0
    for _ in range(n_layers - 1):
        key, kw, kb = jax.random.split(key, 3)
        if layer_idx == 0:
            w_std = 1.0 / fan_in
        else:
            w_std = float(np.sqrt(c / fan_in))
        w = jax.random.uniform(kw, (fan_in, n_hidden), jnp.float32, -w_std, w_std)
        b_std = 1.0 / float(np.sqrt(fan_in))
        b = jax.random.uniform(kb, (1, n_hidden), jnp.float32, -b_std, b_std)
        params.append((w, b))
        fan_in = fan_in + n_hidden if dense else n_hidden
        layer_idx += 1

    key, kw, kb = jax.random.split(key, 3)
    if layer_idx == 0:
        w_std = 1.0 / fan_in
    else:
        w_std = float(np.sqrt(c / fan_in))
    w = jax.random.uniform(kw, (fan_in, n_output), jnp.float32, -w_std, w_std)
    b_std = 1.0 / float(np.sqrt(fan_in))
    b = jax.random.uniform(kb, (1, n_output), jnp.float32, -b_std, b_std)
    params.append((w, b))
    return params


def pinn_forward_ref(x, params):
    """Pure-JAX reference (concat formulation) for correctness check."""
    n_hidden_layers = len(params) - 1
    h = x
    for i in range(n_hidden_layers):
        w, b = params[i]
        y = jnp.sin(h @ w + b)
        h = jnp.concatenate([h, y], axis=-1)
    w, b = params[-1]
    return h @ w + b


if __name__ == "__main__":
    # Small PINN: 4 input coords, 2 outputs, 3 layers (2 hidden + output), 32 hidden.
    n_input, n_output, n_layers, n_hidden = 4, 2, 3, 32
    n_points = 256

    key = jax.random.PRNGKey(0)
    key, kx = jax.random.split(key)
    x = jax.random.normal(kx, (n_points, n_input), dtype=jnp.float32)

    params = init_pinn_params(key, n_input, n_output, n_layers, n_hidden, dense=True)

    out = pinn_forward_pallas(x, params, n_hidden=n_hidden)
    out = jax.block_until_ready(out)
    assert out.shape == (n_points, n_output)

    ref = jax.block_until_ready(pinn_forward_ref(x, params))
    np.testing.assert_allclose(np.asarray(out), np.asarray(ref), rtol=2e-3, atol=2e-3)

    print("KERNEL_OK")
</pallas_src>

<mosaic_0001>
module attributes {stable_mosaic.version = 11 : i64} {
  func.func @kernel(%arg0: i32, %arg1: memref<256x4xf32, #tpu.memory_space<vmem>>, %arg2: memref<4x128xf32, #tpu.memory_space<vmem>>, %arg3: memref<3x128x128xf32, #tpu.memory_space<vmem>>, %arg4: memref<3x1x128xf32, #tpu.memory_space<vmem>>, %arg5: memref<256x2xf32, #tpu.memory_space<vmem>>) attributes {dimension_semantics = [#tpu.dimension_semantics<parallel>], iteration_bounds = array<i64: 1>, scalar_prefetch = 0 : i64, scratch_operands = 0 : i64, tpu.core_type = #tpu.core_type<tc>, window_params = [{transform_indices = @transform_0, window_bounds = array<i64: 256, 4>}, {pipeline_mode = #tpu.pipeline_mode<synchronous>, transform_indices = @transform_1, window_bounds = array<i64: 4, 128>}, {pipeline_mode = #tpu.pipeline_mode<synchronous>, transform_indices = @transform_2, window_bounds = array<i64: 3, 128, 128>}, {pipeline_mode = #tpu.pipeline_mode<synchronous>, transform_indices = @transform_3, window_bounds = array<i64: 3, 1, 128>}, {transform_indices = @transform_4, window_bounds = array<i64: 256, 2>}]} {
    %c0 = arith.constant 0 : index
    %c0_0 = arith.constant 0 : index
    %0 = vector.load %arg1[%c0, %c0_0] : memref<256x4xf32, #tpu.memory_space<vmem>>, vector<256x4xf32>
    %c0_1 = arith.constant 0 : index
    %c0_2 = arith.constant 0 : index
    %1 = vector.load %arg2[%c0_1, %c0_2] : memref<4x128xf32, #tpu.memory_space<vmem>>, vector<4x128xf32>
    %cst = arith.constant dense<0.000000e+00> : vector<256x128xf32>
    %2 = tpu.matmul %0, %1, %cst {dimension_numbers = #tpu.dot_dimension_numbers<[1], [0], [0], [1], [0, 0, 1, 1], [], []>} : vector<256x4xf32>, vector<4x128xf32>, vector<256x128xf32> -> vector<256x128xf32>
    %c0_3 = arith.constant 0 : index
    %c0_4 = arith.constant 0 : index
    %c0_5 = arith.constant 0 : index
    %3 = vector.load %arg3[%c0_3, %c0_4, %c0_5] : memref<3x128x128xf32, #tpu.memory_space<vmem>>, vector<1x128x128xf32>
    %4 = vector.shape_cast %3 : vector<1x128x128xf32> to vector<128x128xf32>
    %cst_6 = arith.constant dense<0.000000e+00> : vector<256x128xf32>
    %5 = tpu.matmul %2, %4, %cst_6 {dimension_numbers = #tpu.dot_dimension_numbers<[1], [0], [0], [1], [0, 0, 1, 1], [], []>} : vector<256x128xf32>, vector<128x128xf32>, vector<256x128xf32> -> vector<256x128xf32>
    %c0_7 = arith.constant 0 : index
    %c0_8 = arith.constant 0 : index
    %c0_9 = arith.constant 0 : index
    %6 = vector.load %arg4[%c0_7, %c0_8, %c0_9] : memref<3x1x128xf32, #tpu.memory_space<vmem>>, vector<1x1x128xf32>
    %7 = vector.shape_cast %6 : vector<1x1x128xf32> to vector<1x128xf32>
    %8 = vector.broadcast %7 : vector<1x128xf32> to vector<256x128xf32>
    %9 = arith.addf %5, %8 : vector<256x128xf32>
    %10 = math.sin %9 : vector<256x128xf32>
    %11 = arith.addf %2, %10 : vector<256x128xf32>
    %c1 = arith.constant 1 : index
    %c0_10 = arith.constant 0 : index
    %c0_11 = arith.constant 0 : index
    %12 = vector.load %arg3[%c1, %c0_10, %c0_11] : memref<3x128x128xf32, #tpu.memory_space<vmem>>, vector<1x128x128xf32>
    %13 = vector.shape_cast %12 : vector<1x128x128xf32> to vector<128x128xf32>
    %cst_12 = arith.constant dense<0.000000e+00> : vector<256x128xf32>
    %14 = tpu.matmul %11, %13, %cst_12 {dimension_numbers = #tpu.dot_dimension_numbers<[1], [0], [0], [1], [0, 0, 1, 1], [], []>} : vector<256x128xf32>, vector<128x128xf32>, vector<256x128xf32> -> vector<256x128xf32>
    %c1_13 = arith.constant 1 : index
    %c0_14 = arith.constant 0 : index
    %c0_15 = arith.constant 0 : index
    %15 = vector.load %arg4[%c1_13, %c0_14, %c0_15] : memref<3x1x128xf32, #tpu.memory_space<vmem>>, vector<1x1x128xf32>
    %16 = vector.shape_cast %15 : vector<1x1x128xf32> to vector<1x128xf32>
    %17 = vector.broadcast %16 : vector<1x128xf32> to vector<256x128xf32>
    %18 = arith.addf %14, %17 : vector<256x128xf32>
    %19 = math.sin %18 : vector<256x128xf32>
    %20 = arith.addf %11, %19 : vector<256x128xf32>
    %c2 = arith.constant 2 : index
    %c0_16 = arith.constant 0 : index
    %c0_17 = arith.constant 0 : index
    %21 = vector.load %arg3[%c2, %c0_16, %c0_17] : memref<3x128x128xf32, #tpu.memory_space<vmem>>, vector<1x128x128xf32>
    %22 = vector.shape_cast %21 : vector<1x128x128xf32> to vector<128x128xf32>
    %cst_18 = arith.constant dense<0.000000e+00> : vector<256x128xf32>
    %23 = tpu.matmul %20, %22, %cst_18 {dimension_numbers = #tpu.dot_dimension_numbers<[1], [0], [0], [1], [0, 0, 1, 1], [], []>} : vector<256x128xf32>, vector<128x128xf32>, vector<256x128xf32> -> vector<256x128xf32>
    %c2_19 = arith.constant 2 : index
    %c0_20 = arith.constant 0 : index
    %c0_21 = arith.constant 0 : index
    %24 = vector.load %arg4[%c2_19, %c0_20, %c0_21] : memref<3x1x128xf32, #tpu.memory_space<vmem>>, vector<1x1x128xf32>
    %25 = vector.shape_cast %24 : vector<1x1x128xf32> to vector<1x128xf32>
    %26 = vector.broadcast %25 : vector<1x128xf32> to vector<256x128xf32>
    %27 = arith.addf %23, %26 : vector<256x128xf32>
    %28 = vector.extract_strided_slice %27 {offsets = [0, 0], sizes = [256, 2], strides = [1, 1]} : vector<256x128xf32> to vector<256x2xf32>
    %c0_22 = arith.constant 0 : index
    %c0_23 = arith.constant 0 : index
    %29 = vector.load %arg5[%c0_22, %c0_23] : memref<256x2xf32, #tpu.memory_space<vmem>>, vector<256x2xf32>
    tpu.vector_store %arg5[%c0_22, %c0_23], %28 {strides = array<i32>} : memref<256x2xf32, #tpu.memory_space<vmem>>, vector<256x2xf32>,
    return
  }
  func.func @transform_0(%arg0: i32) -> (i32, i32) {
    %c0_i32 = arith.constant 0 : i32
    %c0_i32_0 = arith.constant 0 : i32
    return %arg0, %c0_i32 : i32, i32
  }
  func.func @transform_1(%arg0: i32) -> (i32, i32) {
    %c0_i32 = arith.constant 0 : i32
    %c0_i32_0 = arith.constant 0 : i32
    %c0_i32_1 = arith.constant 0 : i32
    return %c0_i32, %c0_i32_0 : i32, i32
  }
  func.func @transform_2(%arg0: i32) -> (i32, i32, i32) {
    %c0_i32 = arith.constant 0 : i32
    %c0_i32_0 = arith.constant 0 : i32
    %c0_i32_1 = arith.constant 0 : i32
    %c0_i32_2 = arith.constant 0 : i32
    return %c0_i32, %c0_i32_0, %c0_i32_1 : i32, i32, i32
  }
  func.func @transform_3(%arg0: i32) -> (i32, i32, i32) {
    %c0_i32 = arith.constant 0 : i32
    %c0_i32_0 = arith.constant 0 : i32
    %c0_i32_1 = arith.constant 0 : i32
    %c0_i32_2 = arith.constant 0 : i32
    return %c0_i32, %c0_i32_0, %c0_i32_1 : i32, i32, i32
  }
  func.func @transform_4(%arg0: i32) -> (i32, i32) {
    %c0_i32 = arith.constant 0 : i32
    %c0_i32_0 = arith.constant 0 : i32
    return %arg0, %c0_i32 : i32, i32
  }
}

</mosaic_0001>

<llo_original>
// kernel: tpu_custom_call.1
$region0: #{tpu_custom_call.1}
  #allocation0 [shape = 'u32[]', space=smem, size = 0x4, offset = 0x4, fixed_abs, tag = 'smem constant byte address 0x4 - core index']
  #allocation1 [shape = 'u32[144,128]{1,0:T(1,128)}', space=vmem, size = 0x12000, scoped, tag = 'internal scratch']
  %s0 = inlined_call_operand.vmem [shape: f32[256,4], index: 0, kind: input, shape index: {}]
  %s1 = inlined_call_operand.vmem [shape: f32[4,128], index: 1, kind: input, shape index: {}]
  %s2 = inlined_call_operand.hbm [shape: f32[3,128,128], index: 2, kind: input, shape index: {}]
  %s3 = inlined_call_operand.vmem [shape: f32[3,1,128], index: 3, kind: input, shape index: {}]
  %s4 = inlined_call_operand.vmem [shape: f32[256,2], index: 4, kind: output, shape index: {}]
  %s5 = sld [smem:[#allocation0]]
  $region30: #{tpu_custom_call.1} parent=0
    _
  %s7 = ssub.s32 1, %s5
  %s8 = scalar_select 0, %s7, %s5
  $region1: #{tpu_custom_call.1} parent=0
    #allocation2 [shape = 'u8[196608]{0}', space=vmem, size = 0x30000, scoped, tag = 'input window, operand 2, single buffered']
    #allocation3 [shape = 's32[1]{0}', space=sflag, size = 0x4, scoped, tag = 'scoped memory for tpu_custom_call.1']
    %9 = vsyncpa [#allocation3], 0
    // Predicated region
    $region2: #{tpu_custom_call.1} parent=1 // pred_check
      _
    $region3: #{tpu_custom_call.1} parent=1 // pred_check_branch
      %11 = sbr.rel (0) target = $region5
    $region4: #{tpu_custom_call.1} parent=1 // pred_region
      _
    $region5: #{tpu_custom_call.1} parent=1 // pred_fallthru
      _
    // Predicated region
    $region6: #{tpu_custom_call.1} parent=1 // pred_check
      _
    $region7: #{tpu_custom_call.1} parent=1 // pred_check_branch
      %13 = sbr.rel (0) target = $region9
    $region8: #{tpu_custom_call.1} parent=1 // pred_region
      _
    $region9: #{tpu_custom_call.1} parent=1 // pred_fallthru
      _
    // Predicated region
    $region10: #{tpu_custom_call.1} parent=1 // pred_check
      _
    $region11: #{tpu_custom_call.1} parent=1 // pred_check_branch
      %15 = sbr.rel (0) target = $region13
    $region12: #{tpu_custom_call.1} parent=1 // pred_region
      %s17 = ssub.s32 6144, 6144
      %18 = vsyncadd [#allocation3], %s17
      %s19 = sshll.u32 [#allocation2], 4
      %s20 = int_to_ptr.vmem [resolvable:$true] %s19
      %25 = dma.hbm_to_vmem [thread:$0]  %s2, 6144, %s20, [#allocation3], 128, 128, 8
    $region13: #{tpu_custom_call.1} parent=1 // pred_fallthru
      _
    // Predicated region
    $region14: #{tpu_custom_call.1} parent=1 // pred_check
      _
    $region15: #{tpu_custom_call.1} parent=1 // pred_check_branch
      %27 = sbr.rel (0) target = $region17
    $region16: #{tpu_custom_call.1} parent=1 // pred_region
      _
    $region17: #{tpu_custom_call.1} parent=1 // pred_fallthru
      _
    // Predicated region
    $region18: #{tpu_custom_call.1} parent=1 // pred_check
      _
    $region19: #{tpu_custom_call.1} parent=1 // pred_check_branch
      %29 = sbr.rel (0) target = $region21
    $region20: #{tpu_custom_call.1} parent=1 // pred_region
      %30 = dma.done [#allocation3], 6144
    $region21: #{tpu_custom_call.1} parent=1 // pred_fallthru
      _
    %v31 = vld [vmem:[%s0] sm:$0xff]
    %v32 = vld [vmem:[%s0 + $0x8] sm:$0xff]
    %v33 = vld [vmem:[%s0 + $0x10] sm:$0xff]
    %v34 = vld [vmem:[%s0 + $0x18] sm:$0xff]
    %v35 = vld [vmem:[%s0 + $0x20] sm:$0xff]
    %v36 = vld [vmem:[%s0 + $0x28] sm:$0xff]
    %v37 = vld [vmem:[%s0 + $0x30] sm:$0xff]
    %v38 = vld [vmem:[%s0 + $0x38] sm:$0xff]
    %v39 = vld [vmem:[%s0 + $0x40] sm:$0xff]
    %v40 = vld [vmem:[%s0 + $0x48] sm:$0xff]
    %v41 = vld [vmem:[%s0 + $0x50] sm:$0xff]
    %v42 = vld [vmem:[%s0 + $0x58] sm:$0xff]
    %v43 = vld [vmem:[%s0 + $0x60] sm:$0xff]
    %v44 = vld [vmem:[%s0 + $0x68] sm:$0xff]
    %v45 = vld [vmem:[%s0 + $0x70] sm:$0xff]
    %v46 = vld [vmem:[%s0 + $0x78] sm:$0xff]
    %v47 = vld [vmem:[%s0 + $0x80] sm:$0xff]
    %v48 = vld [vmem:[%s0 + $0x88] sm:$0xff]
    %v49 = vld [vmem:[%s0 + $0x90] sm:$0xff]
    %v50 = vld [vmem:[%s0 + $0x98] sm:$0xff]
    %v51 = vld [vmem:[%s0 + $0xa0] sm:$0xff]
    %v52 = vld [vmem:[%s0 + $0xa8] sm:$0xff]
    %v53 = vld [vmem:[%s0 + $0xb0] sm:$0xff]
    %v54 = vld [vmem:[%s0 + $0xb8] sm:$0xff]
    %v55 = vld [vmem:[%s0 + $0xc0] sm:$0xff]
    %v56 = vld [vmem:[%s0 + $0xc8] sm:$0xff]
    %v57 = vld [vmem:[%s0 + $0xd0] sm:$0xff]
    %v58 = vld [vmem:[%s0 + $0xd8] sm:$0xff]
    %v59 = vld [vmem:[%s0 + $0xe0] sm:$0xff]
    %v60 = vld [vmem:[%s0 + $0xe8] sm:$0xff]
    %v61 = vld [vmem:[%s0 + $0xf0] sm:$0xff]
    %v62 = vld [vmem:[%s0 + $0xf8] sm:$0xff]
    %v63 = vld [vmem:[%s1] sm:$0xf]
    %vm64 = vcmask 31744
    %v66 = vsel %vm64, %v31, 0
    %v69 = vsel %vm64, %v32, 0
    %v72 = vsel %vm64, %v33, 0
    %v75 = vsel %vm64, %v34, 0
    %v78 = vsel %vm64, %v35, 0
    %v81 = vsel %vm64, %v36, 0
    %v84 = vsel %vm64, %v37, 0
    %v87 = vsel %vm64, %v38, 0
    %v90 = vsel %vm64, %v39, 0
    %v93 = vsel %vm64, %v40, 0
    %v96 = vsel %vm64, %v41, 0
    %v99 = vsel %vm64, %v42, 0
    %v102 = vsel %vm64, %v43, 0
    %v105 = vsel %vm64, %v44, 0
    %v108 = vsel %vm64, %v45, 0
    %v111 = vsel %vm64, %v46, 0
    %v114 = vsel %vm64, %v47, 0
    %v117 = vsel %vm64, %v48, 0
    %v120 = vsel %vm64, %v49, 0
    %v123 = vsel %vm64, %v50, 0
    %v126 = vsel %vm64, %v51, 0
    %v129 = vsel %vm64, %v52, 0
    %v132 = vsel %vm64, %v53, 0
    %v135 = vsel %vm64, %v54, 0
    %v138 = vsel %vm64, %v55, 0
    %v141 = vsel %vm64, %v56, 0
    %v144 = vsel %vm64, %v57, 0
    %v147 = vsel %vm64, %v58, 0
    %v150 = vsel %vm64, %v59, 0
    %v153 = vsel %vm64, %v60, 0
    %v156 = vsel %vm64, %v61, 0
    %v159 = vsel %vm64, %v62, 0
    %vm161 = vcmask 1043456
    %v163 = vsel %vm161, %v63, 0
    %165 = vmatprep.subr.mxu0 0.0
    %166 = vmatpush1.msra.mxu0 %v163
    %167 = vmatprep.subr.mxu0 0.0
    %168 = vmatpush1.msra.mxu0 0.0
    %169 = vmatprep.subr.mxu0 0.0
    %170 = vmatpush1.msra.mxu0 0.0
    %171 = vmatprep.subr.mxu0 0.0
    %172 = vmatpush1.msra.mxu0 0.0
    %173 = vmatprep.subr.mxu0 0.0
    %174 = vmatpush1.msra.mxu0 0.0
    %175 = vmatprep.subr.mxu0 0.0
    %176 = vmatpush1.msra.mxu0 0.0
    %177 = vmatprep.subr.mxu0 0.0
    %178 = vmatpush1.msra.mxu0 0.0
    %179 = vmatprep.subr.mxu0 0.0
    %180 = vmatpush1.msra.mxu0 0.0
    %181 = vmatprep.subr.mxu0 0.0
    %182 = vmatpush1.msra.mxu0 0.0
    %183 = vmatprep.subr.mxu0 0.0
    %184 = vmatpush1.msra.mxu0 0.0
    %185 = vmatprep.subr.mxu0 0.0
    %186 = vmatpush1.msra.mxu0 0.0
    %187 = vmatprep.subr.mxu0 0.0
    %188 = vmatpush1.msra.mxu0 0.0
    %189 = vmatprep.subr.mxu0 0.0
    %190 = vmatpush1.msra.mxu0 0.0
    %191 = vmatprep.subr.mxu0 0.0
    %192 = vmatpush1.msra.mxu0 0.0
    %193 = vmatprep.subr.mxu0 0.0
    %194 = vmatpush1.msra.mxu0 0.0
    %195 = vmatprep.subr.mxu0 0.0
    %196 = vmatpush1.msra.mxu0 0.0
    %197 = vmatprep.subr.mxu0 0.0
    %198 = vmatpush1.msra.mxu0 0.0
    %199 = vmatprep.subr.mxu0 0.0
    %200 = vmatpush1.msra.mxu0 0.0
    %201 = vmatprep.subr.mxu0 0.0
    %202 = vmatpush1.msra.mxu0 0.0
    %203 = vmatprep.subr.mxu0 0.0
    %204 = vmatpush1.msra.mxu0 0.0
    %205 = vmatprep.subr.mxu0 0.0
    %206 = vmatpush1.msra.mxu0 0.0
    %207 = vmatprep.subr.mxu0 0.0
    %208 = vmatpush1.msra.mxu0 0.0
    %209 = vmatprep.subr.mxu0 0.0
    %210 = vmatpush1.msra.mxu0 0.0
    %211 = vmatprep.subr.mxu0 0.0
    %212 = vmatpush1.msra.mxu0 0.0
    %213 = vmatprep.subr.mxu0 0.0
    %214 = vmatpush1.msra.mxu0 0.0
    %215 = vmatprep.subr.mxu0 0.0
    %216 = vmatpush1.msra.mxu0 0.0
    %217 = vmatprep.subr.mxu0 0.0
    %218 = vmatpush1.msra.mxu0 0.0
    %219 = vmatprep.subr.mxu0 0.0
    %220 = vmatpush1.msra.mxu0 0.0
    %221 = vmatprep.subr.mxu0 0.0
    %222 = vmatpush1.msra.mxu0 0.0
    %223 = vmatprep.subr.mxu0 0.0
    %224 = vmatpush1.msra.mxu0 0.0
    %225 = vmatprep.subr.mxu0 0.0
    %226 = vmatpush1.msra.mxu0 0.0
    %227 = vmatprep.subr.mxu0 0.0
    %228 = vmatpush1.msra.mxu0 0.0
    %229 = vmatprep.mubr.f32.mxu0 0.0
    %230 = vmatmul.mubr.f32.gmra.mrb[0].mxu0 %v66
    %v231 = vpop.f32.mrb[0].mxu0
    %v232 = vadd.f32 0.0, %v231
    %v233 = vpop.f32.mrb[0].mxu0
    %234 = vmatprep.mubr.f32.mxu0 0.0
    %235 = vmatmul.mubr.f32.gmra.mrb[0].mxu0 %v69
    %v236 = vpop.f32.mrb[0].mxu0
    %v237 = vadd.f32 0.0, %v236
    %v238 = vpop.f32.mrb[0].mxu0
    %239 = vmatprep.mubr.f32.mxu0 0.0
    %240 = vmatmul.mubr.f32.gmra.mrb[0].mxu0 %v72
    %v241 = vpop.f32.mrb[0].mxu0
    %v242 = vadd.f32 0.0, %v241
    %v243 = vpop.f32.mrb[0].mxu0
    %244 = vmatprep.mubr.f32.mxu0 0.0
    %245 = vmatmul.mubr.f32.gmra.mrb[0].mxu0 %v75
    %v246 = vpop.f32.mrb[0].mxu0
    %v247 = vadd.f32 0.0, %v246
    %v248 = vpop.f32.mrb[0].mxu0
    %249 = vmatprep.mubr.f32.mxu0 0.0
    %250 = vmatmul.mubr.f32.gmra.mrb[0].mxu0 %v78
    %v251 = vpop.f32.mrb[0].mxu0
    %v252 = vadd.f32 0.0, %v251
    %v253 = vpop.f32.mrb[0].mxu0
    %254 = vmatprep.mubr.f32.mxu0 0.0
    %255 = vmatmul.mubr.f32.gmra.mrb[0].mxu0 %v81
    %v256 = vpop.f32.mrb[0].mxu0
    %v257 = vadd.f32 0.0, %v256
    %v258 = vpop.f32.mrb[0].mxu0
    %259 = vmatprep.mubr.f32.mxu0 0.0
    %260 = vmatmul.mubr.f32.gmra.mrb[0].mxu0 %v84
    %v261 = vpop.f32.mrb[0].mxu0
    %v262 = vadd.f32 0.0, %v261
    %v263 = vpop.f32.mrb[0].mxu0
    %264 = vmatprep.mubr.f32.mxu0 0.0
    %265 = vmatmul.mubr.f32.gmra.mrb[0].mxu0 %v87
    %v266 = vpop.f32.mrb[0].mxu0
    %v267 = vadd.f32 0.0, %v266
    %v268 = vpop.f32.mrb[0].mxu0
    %269 = vmatprep.mubr.f32.mxu0 0.0
    %270 = vmatmul.mubr.f32.gmra.mrb[0].mxu0 %v90
    %v271 = vpop.f32.mrb[0].mxu0
    %v272 = vadd.f32 0.0, %v271
    %v273 = vpop.f32.mrb[0].mxu0
    %274 = vmatprep.mubr.f32.mxu0 0.0
    %275 = vmatmul.mubr.f32.gmra.mrb[0].mxu0 %v93
    %v276 = vpop.f32.mrb[0].mxu0
    %v277 = vadd.f32 0.0, %v276
    %v278 = vpop.f32.mrb[0].mxu0
    %279 = vmatprep.mubr.f32.mxu0 0.0
    %280 = vmatmul.mubr.f32.gmra.mrb[0].mxu0 %v96
    %v281 = vpop.f32.mrb[0].mxu0
    %v282 = vadd.f32 0.0, %v281
    %v283 = vpop.f32.mrb[0].mxu0
    %284 = vmatprep.mubr.f32.mxu0 0.0
    %285 = vmatmul.mubr.f32.gmra.mrb[0].mxu0 %v99
    %v286 = vpop.f32.mrb[0].mxu0
    %v287 = vadd.f32 0.0, %v286
    %v288 = vpop.f32.mrb[0].mxu0
    %289 = vmatprep.mubr.f32.mxu0 0.0
    %290 = vmatmul.mubr.f32.gmra.mrb[0].mxu0 %v102
    %v291 = vpop.f32.mrb[0].mxu0
    %v292 = vadd.f32 0.0, %v291
    %v293 = vpop.f32.mrb[0].mxu0
    %294 = vmatprep.mubr.f32.mxu0 0.0
    %295 = vmatmul.mubr.f32.gmra.mrb[0].mxu0 %v105
    %v296 = vpop.f32.mrb[0].mxu0
    %v297 = vadd.f32 0.0, %v296
    %v298 = vpop.f32.mrb[0].mxu0
    %299 = vmatprep.mubr.f32.mxu0 0.0
    %300 = vmatmul.mubr.f32.gmra.mrb[0].mxu0 %v108
    %v301 = vpop.f32.mrb[0].mxu0
    %v302 = vadd.f32 0.0, %v301
    %v303 = vpop.f32.mrb[0].mxu0
    %304 = vmatprep.mubr.f32.mxu0 0.0
    %305 = vmatmul.mubr.f32.gmra.mrb[0].mxu0 %v111
    %v306 = vpop.f32.mrb[0].mxu0
    %v307 = vadd.f32 0.0, %v306
    %v308 = vpop.f32.mrb[0].mxu0
    %309 = vmatprep.mubr.f32.mxu0 0.0
    %310 = vmatmul.mubr.f32.gmra.mrb[0].mxu0 %v114
    %v311 = vpop.f32.mrb[0].mxu0
    %v312 = vadd.f32 0.0, %v311
    %v313 = vpop.f32.mrb[0].mxu0
    %314 = vmatprep.mubr.f32.mxu0 0.0
    %315 = vmatmul.mubr.f32.gmra.mrb[0].mxu0 %v117
    %v316 = vpop.f32.mrb[0].mxu0
    %v317 = vadd.f32 0.0, %v316
    %v318 = vpop.f32.mrb[0].mxu0
    %319 = vmatprep.mubr.f32.mxu0 0.0
    %320 = vmatmul.mubr.f32.gmra.mrb[0].mxu0 %v120
    %v321 = vpop.f32.mrb[0].mxu0
    %v322 = vadd.f32 0.0, %v321
    %v323 = vpop.f32.mrb[0].mxu0
    %324 = vmatprep.mubr.f32.mxu0 0.0
    %325 = vmatmul.mubr.f32.gmra.mrb[0].mxu0 %v123
    %v326 = vpop.f32.mrb[0].mxu0
    %v327 = vadd.f32 0.0, %v326
    %v328 = vpop.f32.mrb[0].mxu0
    %329 = vmatprep.mubr.f32.mxu0 0.0
    %330 = vmatmul.mubr.f32.gmra.mrb[0].mxu0 %v126
    %v331 = vpop.f32.mrb[0].mxu0
    %v332 = vadd.f32 0.0, %v331
    %v333 = vpop.f32.mrb[0].mxu0
    %334 = vmatprep.mubr.f32.mxu0 0.0
    %335 = vmatmul.mubr.f32.gmra.mrb[0].mxu0 %v129
    %v336 = vpop.f32.mrb[0].mxu0
    %v337 = vadd.f32 0.0, %v336
    %v338 = vpop.f32.mrb[0].mxu0
    %339 = vmatprep.mubr.f32.mxu0 0.0
    %340 = vmatmul.mubr.f32.gmra.mrb[0].mxu0 %v132
    %v341 = vpop.f32.mrb[0].mxu0
    %v342 = vadd.f32 0.0, %v341
    %v343 = vpop.f32.mrb[0].mxu0
    %344 = vmatprep.mubr.f32.mxu0 0.0
    %345 = vmatmul.mubr.f32.gmra.mrb[0].mxu0 %v135
    %v346 = vpop.f32.mrb[0].mxu0
    %v347 = vadd.f32 0.0, %v346
    %v348 = vpop.f32.mrb[0].mxu0
    %349 = vmatprep.mubr.f32.mxu0 0.0
    %350 = vmatmul.mubr.f32.gmra.mrb[0].mxu0 %v138
    %v351 = vpop.f32.mrb[0].mxu0
    %v352 = vadd.f32 0.0, %v351
    %v353 = vpop.f32.mrb[0].mxu0
    %354 = vmatprep.mubr.f32.mxu0 0.0
    %355 = vmatmul.mubr.f32.gmra.mrb[0].mxu0 %v141
    %v356 = vpop.f32.mrb[0].mxu0
    %v357 = vadd.f32 0.0, %v356
    %v358 = vpop.f32.mrb[0].mxu0
    %359 = vmatprep.mubr.f32.mxu0 0.0
    %360 = vmatmul.mubr.f32.gmra.mrb[0].mxu0 %v144
    %v361 = vpop.f32.mrb[0].mxu0
    %v362 = vadd.f32 0.0, %v361
    %v363 = vpop.f32.mrb[0].mxu0
    %364 = vmatprep.mubr.f32.mxu0 0.0
    %365 = vmatmul.mubr.f32.gmra.mrb[0].mxu0 %v147
    %v366 = vpop.f32.mrb[0].mxu0
    %v367 = vadd.f32 0.0, %v366
    %v368 = vpop.f32.mrb[0].mxu0
    %369 = vmatprep.mubr.f32.mxu0 0.0
    %370 = vmatmul.mubr.f32.gmra.mrb[0].mxu0 %v150
    %v371 = vpop.f32.mrb[0].mxu0
    %v372 = vadd.f32 0.0, %v371
    %v373 = vpop.f32.mrb[0].mxu0
    %374 = vmatprep.mubr.f32.mxu0 0.0
    %375 = vmatmul.mubr.f32.gmra.mrb[0].mxu0 %v153
    %v376 = vpop.f32.mrb[0].mxu0
    %v377 = vadd.f32 0.0, %v376
    %v378 = vpop.f32.mrb[0].mxu0
    %379 = vmatprep.mubr.f32.mxu0 0.0
    %380 = vmatmul.mubr.f32.gmra.mrb[0].mxu0 %v156
    %v381 = vpop.f32.mrb[0].mxu0
    %v382 = vadd.f32 0.0, %v381
    %v383 = vpop.f32.mrb[0].mxu0
    %384 = vmatprep.mubr.f32.mxu0 0.0
    %385 = vmatmul.mubr.f32.gmra.mrb[0].mxu0 %v159
    %v386 = vpop.f32.mrb[0].mxu0
    %v387 = vadd.f32 0.0, %v386
    %v388 = vpop.f32.mrb[0].mxu0
    %389 = vdwg.mxu0
    %v390 = vld [vmem:[#allocation2] sm:$0xff]
    %v391 = vld [vmem:[#allocation2 + $0x8] sm:$0xff]
    %v392 = vld [vmem:[#allocation2 + $0x10] sm:$0xff]
    %v393 = vld [vmem:[#allocation2 + $0x18] sm:$0xff]
    %v394 = vld [vmem:[#allocation2 + $0x20] sm:$0xff]
    %v395 = vld [vmem:[#allocation2 + $0x28] sm:$0xff]
    %v396 = vld [vmem:[#allocation2 + $0x30] sm:$0xff]
    %v397 = vld [vmem:[#allocation2 + $0x38] sm:$0xff]
    %v398 = vld [vmem:[#allocation2 + $0x40] sm:$0xff]
    %v399 = vld [vmem:[#allocation2 + $0x48] sm:$0xff]
    %v400 = vld [vmem:[#allocation2 + $0x50] sm:$0xff]
    %v401 = vld [vmem:[#allocation2 + $0x58] sm:$0xff]
    %v402 = vld [vmem:[#allocation2 + $0x60] sm:$0xff]
    %v403 = vld [vmem:[#allocation2 + $0x68] sm:$0xff]
    %v404 = vld [vmem:[#allocation2 + $0x70] sm:$0xff]
    %v405 = vld [vmem:[#allocation2 + $0x78] sm:$0xff]
    %v406 = vld [vmem:[%s3] sm:$0x1]
    %v408 = vlaneseq
    %v409 = vshrl.u32 %v408, 7
    %v410 = vsub.s32 0, %v409
    %v411 = vrot.slane %v406, %v410
    %413 = vmatprep.subr.mxu0 0.0
    %414 = vmatpush1.msra.mxu0 %v390
    %415 = vmatprep.subr.mxu0 0.0
    %416 = vmatpush1.msra.mxu0 %v391
    %417 = vmatprep.subr.mxu0 0.0
    %418 = vmatpush1.msra.mxu0 %v392
    %419 = vmatprep.subr.mxu0 0.0
    %420 = vmatpush1.msra.mxu0 %v393
    %421 = vmatprep.subr.mxu0 0.0
    %422 = vmatpush1.msra.mxu0 %v394
    %423 = vmatprep.subr.mxu0 0.0
    %424 = vmatpush1.msra.mxu0 %v395
    %425 = vmatprep.subr.mxu0 0.0
    %426 = vmatpush1.msra.mxu0 %v396
    %427 = vmatprep.subr.mxu0 0.0
    %428 = vmatpush1.msra.mxu0 %v397
    %429 = vmatprep.subr.mxu0 0.0
    %430 = vmatpush1.msra.mxu0 %v398
    %431 = vmatprep.subr.mxu0 0.0
    %432 = vmatpush1.msra.mxu0 %v399
    %433 = vmatprep.subr.mxu0 0.0
    %434 = vmatpush1.msra.mxu0 %v400
    %435 = vmatprep.subr.mxu0 0.0
    %436 = vmatpush1.msra.mxu0 %v401
    %437 = vmatprep.subr.mxu0 0.0
    %438 = vmatpush1.msra.mxu0 %v402
    %439 = vmatprep.subr.mxu0 0.0
    %440 = vmatpush1.msra.mxu0 %v403
    %441 = vmatprep.subr.mxu0 0.0
    %442 = vmatpush1.msra.mxu0 %v404
    %443 = vmatprep.subr.mxu0 0.0
    %444 = vmatpush1.msra.mxu0 %v405
    %445 = vmatprep.subr.mxu0 0.0
    %446 = vmatpush1.msra.mxu0 0.0
    %447 = vmatprep.subr.mxu0 0.0
    %448 = vmatpush1.msra.mxu0 0.0
    %449 = vmatprep.subr.mxu0 0.0
    %450 = vmatpush1.msra.mxu0 0.0
    %451 = vmatprep.subr.mxu0 0.0
    %452 = vmatpush1.msra.mxu0 0.0
    %453 = vmatprep.subr.mxu0 0.0
    %454 = vmatpush1.msra.mxu0 0.0
    %455 = vmatprep.subr.mxu0 0.0
    %456 = vmatpush1.msra.mxu0 0.0
    %457 = vmatprep.subr.mxu0 0.0
    %458 = vmatpush1.msra.mxu0 0.0
    %459 = vmatprep.subr.mxu0 0.0
    %460 = vmatpush1.msra.mxu0 0.0
    %461 = vmatprep.subr.mxu0 0.0
    %462 = vmatpush1.msra.mxu0 0.0
    %463 = vmatprep.subr.mxu0 0.0
    %464 = vmatpush1.msra.mxu0 0.0
    %465 = vmatprep.subr.mxu0 0.0
    %466 = vmatpush1.msra.mxu0 0.0
    %467 = vmatprep.subr.mxu0 0.0
    %468 = vmatpush1.msra.mxu0 0.0
    %469 = vmatprep.subr.mxu0 0.0
    %470 = vmatpush1.msra.mxu0 0.0
    %471 = vmatprep.subr.mxu0 0.0
    %472 = vmatpush1.msra.mxu0 0.0
    %473 = vmatprep.subr.mxu0 0.0
    %474 = vmatpush1.msra.mxu0 0.0
    %475 = vmatprep.subr.mxu0 0.0
    %476 = vmatpush1.msra.mxu0 0.0
    %477 = vmatprep.mubr.f32.mxu0 0.0
    %478 = vmatmul.mubr.f32.gmra.mrb[0].mxu0 %v232
    %v479 = vpop.f32.mrb[0].mxu0
    %v480 = vadd.f32 %v411, %v479
    %v481 = vpop.f32.mrb[0].mxu0
    %482 = vmatprep.mubr.f32.mxu0 0.0
    %483 = vmatmul.mubr.f32.gmra.mrb[0].mxu0 %v237
    %v484 = vpop.f32.mrb[0].mxu0
    %v485 = vadd.f32 %v411, %v484
    %v486 = vpop.f32.mrb[0].mxu0
    %487 = vmatprep.mubr.f32.mxu0 0.0
    %488 = vmatmul.mubr.f32.gmra.mrb[0].mxu0 %v242
    %v489 = vpop.f32.mrb[0].mxu0
    %v490 = vadd.f32 %v411, %v489
    %v491 = vpop.f32.mrb[0].mxu0
    %492 = vmatprep.mubr.f32.mxu0 0.0
    %493 = vmatmul.mubr.f32.gmra.mrb[0].mxu0 %v247
    %v494 = vpop.f32.mrb[0].mxu0
    %v495 = vadd.f32 %v411, %v494
    %v496 = vpop.f32.mrb[0].mxu0
    %497 = vmatprep.mubr.f32.mxu0 0.0
    %498 = vmatmul.mubr.f32.gmra.mrb[0].mxu0 %v252
    %v499 = vpop.f32.mrb[0].mxu0
    %v500 = vadd.f32 %v411, %v499
    %v501 = vpop.f32.mrb[0].mxu0
    %502 = vmatprep.mubr.f32.mxu0 0.0
    %503 = vmatmul.mubr.f32.gmra.mrb[0].mxu0 %v257
    %v504 = vpop.f32.mrb[0].mxu0
    %v505 = vadd.f32 %v411, %v504
    %v506 = vpop.f32.mrb[0].mxu0
    %507 = vmatprep.mubr.f32.mxu0 0.0
    %508 = vmatmul.mubr.f32.gmra.mrb[0].mxu0 %v262
    %v509 = vpop.f32.mrb[0].mxu0
    %v510 = vadd.f32 %v411, %v509
    %v511 = vpop.f32.mrb[0].mxu0
    %512 = vmatprep.mubr.f32.mxu0 0.0
    %513 = vmatmul.mubr.f32.gmra.mrb[0].mxu0 %v267
    %v514 = vpop.f32.mrb[0].mxu0
    %v515 = vadd.f32 %v411, %v514
    %v516 = vpop.f32.mrb[0].mxu0
    %517 = vmatprep.mubr.f32.mxu0 0.0
    %518 = vmatmul.mubr.f32.gmra.mrb[0].mxu0 %v272
    %v519 = vpop.f32.mrb[0].mxu0
    %v520 = vadd.f32 %v411, %v519
    %v521 = vpop.f32.mrb[0].mxu0
    %522 = vmatprep.mubr.f32.mxu0 0.0
    %523 = vmatmul.mubr.f32.gmra.mrb[0].mxu0 %v277
    %v524 = vpop.f32.mrb[0].mxu0
    %v525 = vadd.f32 %v411, %v524
    %v526 = vpop.f32.mrb[0].mxu0
    %527 = vmatprep.mubr.f32.mxu0 0.0
    %528 = vmatmul.mubr.f32.gmra.mrb[0].mxu0 %v282
    %v529 = vpop.f32.mrb[0].mxu0
    %v530 = vadd.f32 %v411, %v529
    %v531 = vpop.f32.mrb[0].mxu0
    %532 = vmatprep.mubr.f32.mxu0 0.0
    %533 = vmatmul.mubr.f32.gmra.mrb[0].mxu0 %v287
    %v534 = vpop.f32.mrb[0].mxu0
    %v535 = vadd.f32 %v411, %v534
    %v536 = vpop.f32.mrb[0].mxu0
    %537 = vmatprep.mubr.f32.mxu0 0.0
    %538 = vmatmul.mubr.f32.gmra.mrb[0].mxu0 %v292
    %v539 = vpop.f32.mrb[0].mxu0
    %v540 = vadd.f32 %v411, %v539
    %v541 = vpop.f32.mrb[0].mxu0
    %542 = vmatprep.mubr.f32.mxu0 0.0
    %543 = vmatmul.mubr.f32.gmra.mrb[0].mxu0 %v297
    %v544 = vpop.f32.mrb[0].mxu0
    %v545 = vadd.f32 %v411, %v544
    %v546 = vpop.f32.mrb[0].mxu0
    %547 = vmatprep.mubr.f32.mxu0 0.0
    %548 = vmatmul.mubr.f32.gmra.mrb[0].mxu0 %v302
    %v549 = vpop.f32.mrb[0].mxu0
    %v550 = vadd.f32 %v411, %v549
    %v551 = vpop.f32.mrb[0].mxu0
    %552 = vmatprep.mubr.f32.mxu0 0.0
    %553 = vmatmul.mubr.f32.gmra.mrb[0].mxu0 %v307
    %v554 = vpop.f32.mrb[0].mxu0
    %v555 = vadd.f32 %v411, %v554
    %v556 = vpop.f32.mrb[0].mxu0
    %557 = vmatprep.mubr.f32.mxu0 0.0
    %558 = vmatmul.mubr.f32.gmra.mrb[0].mxu0 %v312
    %v559 = vpop.f32.mrb[0].mxu0
    %v560 = vadd.f32 %v411, %v559
    %v561 = vpop.f32.mrb[0].mxu0
    %562 = vmatprep.mubr.f32.mxu0 0.0
    %563 = vmatmul.mubr.f32.gmra.mrb[0].mxu0 %v317
    %v564 = vpop.f32.mrb[0].mxu0
    %v565 = vadd.f32 %v411, %v564
    %v566 = vpop.f32.mrb[0].mxu0
    %567 = vmatprep.mubr.f32.mxu0 0.0
    %568 = vmatmul.mubr.f32.gmra.mrb[0].mxu0 %v322
    %v569 = vpop.f32.mrb[0].mxu0
    %v570 = vadd.f32 %v411, %v569
    %v571 = vpop.f32.mrb[0].mxu0
    %572 = vmatprep.mubr.f32.mxu0 0.0
    %573 = vmatmul.mubr.f32.gmra.mrb[0].mxu0 %v327
    %v574 = vpop.f32.mrb[0].mxu0
    %v575 = vadd.f32 %v411, %v574
    %v576 = vpop.f32.mrb[0].mxu0
    %577 = vmatprep.mubr.f32.mxu0 0.0
    %578 = vmatmul.mubr.f32.gmra.mrb[0].mxu0 %v332
    %v579 = vpop.f32.mrb[0].mxu0
    %v580 = vadd.f32 %v411, %v579
    %v581 = vpop.f32.mrb[0].mxu0
    %582 = vmatprep.mubr.f32.mxu0 0.0
    %583 = vmatmul.mubr.f32.gmra.mrb[0].mxu0 %v337
    %v584 = vpop.f32.mrb[0].mxu0
    %v585 = vadd.f32 %v411, %v584
    %v586 = vpop.f32.mrb[0].mxu0
    %587 = vmatprep.mubr.f32.mxu0 0.0
    %588 = vmatmul.mubr.f32.gmra.mrb[0].mxu0 %v342
    %v589 = vpop.f32.mrb[0].mxu0
    %v590 = vadd.f32 %v411, %v589
    %v591 = vpop.f32.mrb[0].mxu0
    %592 = vmatprep.mubr.f32.mxu0 0.0
    %593 = vmatmul.mubr.f32.gmra.mrb[0].mxu0 %v347
    %v594 = vpop.f32.mrb[0].mxu0
    %v595 = vadd.f32 %v411, %v594
    %v596 = vpop.f32.mrb[0].mxu0
    %597 = vmatprep.mubr.f32.mxu0 0.0
    %598 = vmatmul.mubr.f32.gmra.mrb[0].mxu0 %v352
    %v599 = vpop.f32.mrb[0].mxu0
    %v600 = vadd.f32 %v411, %v599
    %v601 = vpop.f32.mrb[0].mxu0
    %602 = vmatprep.mubr.f32.mxu0 0.0
    %603 = vmatmul.mubr.f32.gmra.mrb[0].mxu0 %v357
    %v604 = vpop.f32.mrb[0].mxu0
    %v605 = vadd.f32 %v411, %v604
    %v606 = vpop.f32.mrb[0].mxu0
    %607 = vmatprep.mubr.f32.mxu0 0.0
    %608 = vmatmul.mubr.f32.gmra.mrb[0].mxu0 %v362
    %v609 = vpop.f32.mrb[0].mxu0
    %v610 = vadd.f32 %v411, %v609
    %v611 = vpop.f32.mrb[0].mxu0
    %612 = vmatprep.mubr.f32.mxu0 0.0
    %613 = vmatmul.mubr.f32.gmra.mrb[0].mxu0 %v367
    %v614 = vpop.f32.mrb[0].mxu0
    %v615 = vadd.f32 %v411, %v614
    %v616 = vpop.f32.mrb[0].mxu0
    %617 = vmatprep.mubr.f32.mxu0 0.0
    %618 = vmatmul.mubr.f32.gmra.mrb[0].mxu0 %v372
    %v619 = vpop.f32.mrb[0].mxu0
    %v620 = vadd.f32 %v411, %v619
    %v621 = vpop.f32.mrb[0].mxu0
    %622 = vmatprep.mubr.f32.mxu0 0.0
    %623 = vmatmul.mubr.f32.gmra.mrb[0].mxu0 %v377
    %v624 = vpop.f32.mrb[0].mxu0
    %v625 = vadd.f32 %v411, %v624
    %v626 = vpop.f32.mrb[0].mxu0
    %627 = vmatprep.mubr.f32.mxu0 0.0
    %628 = vmatmul.mubr.f32.gmra.mrb[0].mxu0 %v382
    %v629 = vpop.f32.mrb[0].mxu0
    %v630 = vadd.f32 %v411, %v629
    %v631 = vpop.f32.mrb[0].mxu0
    %632 = vmatprep.mubr.f32.mxu0 0.0
    %633 = vmatmul.mubr.f32.gmra.mrb[0].mxu0 %v387
    %v634 = vpop.f32.mrb[0].mxu0
    %v635 = vadd.f32 %v411, %v634
    %v636 = vpop.f32.mrb[0].mxu0
    %637 = vdwg.mxu0
    %v638 = vand.u32 2147483647, %v480
    %vm639 = vcmp.le.f32.partialorder %v638, 0.7853982
    %vm640 = vcmp.lt.s32.totalorder %v480, 0
    %v641 = vand.u32 %v480, 2139095040
    %v642 = vshrl.u32 %v641, 23
    %v643 = vsub.s32 %v642, 127
    %v644 = vand.u32 2147483647, %v480
    %v645 = vand.u32 %v644, 8388607
    %v646 = vor.u32 %v645, 8388608
    %v647 = vsub.s32 0, %v646
    %v648 = vadd.s32 %v643, 1
    %vm649 = vcmp.gt.s32.totalorder %v648, 0
    %v650 = vsel %vm649, %v648, 0
    %v651 = vshrl.u32 %v650, 5
    %v652 = vand.u32 %v650, 31
    %v653 = vsub.s32 32, %v652
    %v654 = vshrl.u32 683565275, %v653
    %v655 = vshll.u32 683565275, %v652
    %v656 = vshrl.u32 2475754826, %v653
    %v657 = vor.u32 %v655, %v656
    %v658 = vshll.u32 2475754826, %v652
    %v659 = vshrl.u32 2131351028, %v653
    %v660 = vor.u32 %v658, %v659
    %v661 = vshll.u32 2131351028, %v652
    %v662 = vshrl.u32 2102212464, %v653
    %v663 = vor.u32 %v661, %v662
    %v664 = vshll.u32 2102212464, %v652
    %v665 = vshrl.u32 920167782, %v653
    %v666 = vor.u32 %v664, %v665
    %v667 = vshll.u32 920167782, %v652
    %v668 = vshrl.u32 1326507024, %v653
    %v669 = vor.u32 %v667, %v668
    %vm670 = vcmp.lt.s32.totalorder %v651, 1
    %vm671 = vcmp.lt.s32.totalorder %v651, 2
    %vm672 = vcmp.lt.s32.totalorder %v651, 3
    %vm673 = vcmp.lt.s32.totalorder %v651, 4
    %v674 = vsel %vm670, %v654, %v657
    %v675 = vsel %vm673, %v663, 2102212464
    %v676 = vsel %vm672, %v660, %v675
    %v677 = vsel %vm671, %v674, %v676
    %v678 = vsel %vm670, %v657, %v660
    %v679 = vsel %vm673, %v666, 920167782
    %v680 = vsel %vm672, %v663, %v679
    %v681 = vsel %vm671, %v678, %v680
    %v682 = vsel %vm670, %v660, %v663
    %v683 = vsel %vm673, %v669, 1326507024
    %v684 = vsel %vm672, %v666, %v683
    %v685 = vsel %vm671, %v682, %v684
    %v686 = vshll.u32 %v646, 8
    %v687 = vmul.u32.u64.compose %v686, %v685
    %v688 = vextract.low.u32 %v687
    %v689 = vextract.high.u32 %v687
    %v690 = vmul.u32.u64.compose %v686, %v681
    %v691 = vextract.low.u32 %v690
    %v692 = vextract.high.u32 %v690
    %v693 = vmul.u32 %v686, %v677
    %v694 = vadd.s32 %v689, %v691
    %vm695 = vc.u32 %v689, %v691
    %v696 = vadd.s32 %v692, 1
    %v697 = vsel %vm695, %v696, %v692
    %v698 = vadd.s32 %v693, %v697
    %v699 = vadd.s32 %v698, 536870912
    %v700 = vshrl.u32 %v699, 30
    %v701 = vshll.u32 %v700, 30
    %v702 = vsub.s32 %v698, %v701
    %vm703 = vcmp.lt.s32.totalorder %v702, 0
    %v704 = vsub.s32 0, %v702
    %v705 = vsel %vm703, %v704, %v702
    %v706 = vclz %v705
    %v707 = vsub.s32 %v706, 2
    %vm708 = vcmp.gt.s32.totalorder 0, %v707
    %v709 = vsel %vm708, 0, %v707
    %v710 = vsub.s32 32, %v709
    %v711 = vshll.u32 %v702, %v709
    %v712 = vshrl.u32 %v694, %v710
    %v713 = vor.u32 %v711, %v712
    %v714 = vsub.s32 4294967266, %v709
    %v715 = vadd.s32 %v714, 127
    %v716 = vshll.u32 %v715, 23
    %v717 = vor.u32 4788187, %v716
    %v718 = vand.u32 2147483647, %v717
    %v720 = vcvt.s32.f32 %v713
    %v721 = vmul.f32 %v720, %v718
    %v722 = vxor.u32 %v721, 2147483648
    %v723 = vsel %vm640, %v722, %v721
    %v724 = vsub.s32 4, %v700
    %v725 = vsel %vm640, %v724, %v700
    %v726 = vsel %vm639, %v480, %v723
    %v727 = vsel %vm639, 0, %v725
    %v728 = vcosq.f32.pop %v726
    %v729 = vsinq.f32.pop %v726
    %vm730 = vweird.f32 %v480
    %v731 = vadd.s32 %v727, 3
    %v732 = vand.u32 %v731, 3
    %vm733 = vcmp.lt.s32.totalorder %v732, 2
    %vm734 = vcmp.eq.s32.totalorder %v732, 0
    %v735 = vxor.u32 %v729, 2147483648
    %v736 = vsel %vm734, %v728, %v735
    %vm737 = vcmp.eq.s32.totalorder %v732, 2
    %v738 = vxor.u32 %v728, 2147483648
    %v739 = vsel %vm737, %v738, %v729
    %v740 = vsel %vm733, %v736, %v739
    %v741 = vsel %vm730, nan, %v740
    %v742 = vand.u32 2147483647, %v485
    %vm743 = vcmp.le.f32.partialorder %v742, 0.7853982
    %vm744 = vcmp.lt.s32.totalorder %v485, 0
    %v745 = vand.u32 %v485, 2139095040
    %v746 = vshrl.u32 %v745, 23
    %v747 = vsub.s32 %v746, 127
    %v748 = vand.u32 2147483647, %v485
    %v749 = vand.u32 %v748, 8388607
    %v750 = vor.u32 %v749, 8388608
    %v751 = vsub.s32 0, %v750
    %v752 = vadd.s32 %v747, 1
    %vm753 = vcmp.gt.s32.totalorder %v752, 0
    %v754 = vsel %vm753, %v752, 0
    %v755 = vshrl.u32 %v754, 5
    %v756 = vand.u32 %v754, 31
    %v757 = vsub.s32 32, %v756
    %v758 = vshrl.u32 683565275, %v757
    %v759 = vshll.u32 683565275, %v756
    %v760 = vshrl.u32 2475754826, %v757
    %v761 = vor.u32 %v759, %v760
    %v762 = vshll.u32 2475754826, %v756
    %v763 = vshrl.u32 2131351028, %v757
    %v764 = vor.u32 %v762, %v763
    %v765 = vshll.u32 2131351028, %v756
    %v766 = vshrl.u32 2102212464, %v757
    %v767 = vor.u32 %v765, %v766
    %v768 = vshll.u32 2102212464, %v756
    %v769 = vshrl.u32 920167782, %v757
    %v770 = vor.u32 %v768, %v769
    %v771 = vshll.u32 920167782, %v756
    %v772 = vshrl.u32 1326507024, %v757
    %v773 = vor.u32 %v771, %v772
    %vm774 = vcmp.lt.s32.totalorder %v755, 1
    %vm775 = vcmp.lt.s32.totalorder %v755, 2
    %vm776 = vcmp.lt.s32.totalorder %v755, 3
    %vm777 = vcmp.lt.s32.totalorder %v755, 4
    %v778 = vsel %vm774, %v758, %v761
    %v779 = vsel %vm777, %v767, 2102212464
    %v780 = vsel %vm776, %v764, %v779
    %v781 = vsel %vm775, %v778, %v780
    %v782 = vsel %vm774, %v761, %v764
    %v783 = vsel %vm777, %v770, 920167782
    %v784 = vsel %vm776, %v767, %v783
    %v785 = vsel %vm775, %v782, %v784
    %v786 = vsel %vm774, %v764, %v767
    %v787 = vsel %vm777, %v773, 1326507024
    %v788 = vsel %vm776, %v770, %v787
    %v789 = vsel %vm775, %v786, %v788
    %v790 = vshll.u32 %v750, 8
    %v791 = vmul.u32.u64.compose %v790, %v789
    %v792 = vextract.low.u32 %v791
    %v793 = vextract.high.u32 %v791
    %v794 = vmul.u32.u64.compose %v790, %v785
    %v795 = vextract.low.u32 %v794
    %v796 = vextract.high.u32 %v794
    %v797 = vmul.u32 %v790, %v781
    %v798 = vadd.s32 %v793, %v795
    %vm799 = vc.u32 %v793, %v795
    %v800 = vadd.s32 %v796, 1
    %v801 = vsel %vm799, %v800, %v796
    %v802 = vadd.s32 %v797, %v801
    %v803 = vadd.s32 %v802, 536870912
    %v804 = vshrl.u32 %v803, 30
    %v805 = vshll.u32 %v804, 30
    %v806 = vsub.s32 %v802, %v805
    %vm807 = vcmp.lt.s32.totalorder %v806, 0
    %v808 = vsub.s32 0, %v806
    %v809 = vsel %vm807, %v808, %v806
    %v810 = vclz %v809
    %v811 = vsub.s32 %v810, 2
    %vm812 = vcmp.gt.s32.totalorder 0, %v811
    %v813 = vsel %vm812, 0, %v811
    %v814 = vsub.s32 32, %v813
    %v815 = vshll.u32 %v806, %v813
    %v816 = vshrl.u32 %v798, %v814
    %v817 = vor.u32 %v815, %v816
    %v818 = vsub.s32 4294967266, %v813
    %v819 = vadd.s32 %v818, 127
    %v820 = vshll.u32 %v819, 23
    %v821 = vor.u32 4788187, %v820
    %v822 = vand.u32 2147483647, %v821
    %v824 = vcvt.s32.f32 %v817
    %v825 = vmul.f32 %v824, %v822
    %v826 = vxor.u32 %v825, 2147483648
    %v827 = vsel %vm744, %v826, %v825
    %v828 = vsub.s32 4, %v804
    %v829 = vsel %vm744, %v828, %v804
    %v830 = vsel %vm743, %v485, %v827
    %v831 = vsel %vm743, 0, %v829
    %v832 = vcosq.f32.pop %v830
    %v833 = vsinq.f32.pop %v830
    %vm834 = vweird.f32 %v485
    %v835 = vadd.s32 %v831, 3
    %v836 = vand.u32 %v835, 3
    %vm837 = vcmp.lt.s32.totalorder %v836, 2
    %vm838 = vcmp.eq.s32.totalorder %v836, 0
    %v839 = vxor.u32 %v833, 2147483648
    %v840 = vsel %vm838, %v832, %v839
    %vm841 = vcmp.eq.s32.totalorder %v836, 2
    %v842 = vxor.u32 %v832, 2147483648
    %v843 = vsel %vm841, %v842, %v833
    %v844 = vsel %vm837, %v840, %v843
    %v845 = vsel %vm834, nan, %v844
    %v846 = vand.u32 2147483647, %v490
    %vm847 = vcmp.le.f32.partialorder %v846, 0.7853982
    %vm848 = vcmp.lt.s32.totalorder %v490, 0
    %v849 = vand.u32 %v490, 2139095040
    %v850 = vshrl.u32 %v849, 23
    %v851 = vsub.s32 %v850, 127
    %v852 = vand.u32 2147483647, %v490
    %v853 = vand.u32 %v852, 8388607
    %v854 = vor.u32 %v853, 8388608
    %v855 = vsub.s32 0, %v854
    %v856 = vadd.s32 %v851, 1
    %vm857 = vcmp.gt.s32.totalorder %v856, 0
    %v858 = vsel %vm857, %v856, 0
    %v859 = vshrl.u32 %v858, 5
    %v860 = vand.u32 %v858, 31
    %v861 = vsub.s32 32, %v860
    %v862 = vshrl.u32 683565275, %v861
    %v863 = vshll.u32 683565275, %v860
    %v864 = vshrl.u32 2475754826, %v861
    %v865 = vor.u32 %v863, %v864
    %v866 = vshll.u32 2475754826, %v860
    %v867 = vshrl.u32 2131351028, %v861
    %v868 = vor.u32 %v866, %v867
    %v869 = vshll.u32 2131351028, %v860
    %v870 = vshrl.u32 2102212464, %v861
    %v871 = vor.u32 %v869, %v870
    %v872 = vshll.u32 2102212464, %v860
    %v873 = vshrl.u32 920167782, %v861
    %v874 = vor.u32 %v872, %v873
    %v875 = vshll.u32 920167782, %v860
    %v876 = vshrl.u32 1326507024, %v861
    %v877 = vor.u32 %v875, %v876
    %vm878 = vcmp.lt.s32.totalorder %v859, 1
    %vm879 = vcmp.lt.s32.totalorder %v859, 2
    %vm880 = vcmp.lt.s32.totalorder %v859, 3
    %vm881 = vcmp.lt.s32.totalorder %v859, 4
    %v882 = vsel %vm878, %v862, %v865
    %v883 = vsel %vm881, %v871, 2102212464
    %v884 = vsel %vm880, %v868, %v883
    %v885 = vsel %vm879, %v882, %v884
    %v886 = vsel %vm878, %v865, %v868
    %v887 = vsel %vm881, %v874, 920167782
    %v888 = vsel %vm880, %v871, %v887
    %v889 = vsel %vm879, %v886, %v888
    %v890 = vsel %vm878, %v868, %v871
    %v891 = vsel %vm881, %v877, 1326507024
    %v892 = vsel %vm880, %v874, %v891
    %v893 = vsel %vm879, %v890, %v892
    %v894 = vshll.u32 %v854, 8
    %v895 = vmul.u32.u64.compose %v894, %v893
    %v896 = vextract.low.u32 %v895
    %v897 = vextract.high.u32 %v895
    %v898 = vmul.u32.u64.compose %v894, %v889
    %v899 = vextract.low.u32 %v898
    %v900 = vextract.high.u32 %v898
    %v901 = vmul.u32 %v894, %v885
    %v902 = vadd.s32 %v897, %v899
    %vm903 = vc.u32 %v897, %v899
    %v904 = vadd.s32 %v900, 1
    %v905 = vsel %vm903, %v904, %v900
    %v906 = vadd.s32 %v901, %v905
    %v907 = vadd.s32 %v906, 536870912
    %v908 = vshrl.u32 %v907, 30
    %v909 = vshll.u32 %v908, 30
    %v910 = vsub.s32 %v906, %v909
    %vm911 = vcmp.lt.s32.totalorder %v910, 0
    %v912 = vsub.s32 0, %v910
    %v913 = vsel %vm911, %v912, %v910
    %v914 = vclz %v913
    %v915 = vsub.s32 %v914, 2
    %vm916 = vcmp.gt.s32.totalorder 0, %v915
    %v917 = vsel %vm916, 0, %v915
    %v918 = vsub.s32 32, %v917
    %v919 = vshll.u32 %v910, %v917
    %v920 = vshrl.u32 %v902, %v918
    %v921 = vor.u32 %v919, %v920
    %v922 = vsub.s32 4294967266, %v917
    %v923 = vadd.s32 %v922, 127
    %v924 = vshll.u32 %v923, 23
    %v925 = vor.u32 4788187, %v924
    %v926 = vand.u32 2147483647, %v925
    %v928 = vcvt.s32.f32 %v921
    %v929 = vmul.f32 %v928, %v926
    %v930 = vxor.u32 %v929, 2147483648
    %v931 = vsel %vm848, %v930, %v929
    %v932 = vsub.s32 4, %v908
    %v933 = vsel %vm848, %v932, %v908
    %v934 = vsel %vm847, %v490, %v931
    %v935 = vsel %vm847, 0, %v933
    %v936 = vcosq.f32.pop %v934
    %v937 = vsinq.f32.pop %v934
    %vm938 = vweird.f32 %v490
    %v939 = vadd.s32 %v935, 3
    %v940 = vand.u32 %v939, 3
    %vm941 = vcmp.lt.s32.totalorder %v940, 2
    %vm942 = vcmp.eq.s32.totalorder %v940, 0
    %v943 = vxor.u32 %v937, 2147483648
    %v944 = vsel %vm942, %v936, %v943
    %vm945 = vcmp.eq.s32.totalorder %v940, 2
    %v946 = vxor.u32 %v936, 2147483648
    %v947 = vsel %vm945, %v946, %v937
    %v948 = vsel %vm941, %v944, %v947
    %v949 = vsel %vm938, nan, %v948
    %v950 = vand.u32 2147483647, %v495
    %vm951 = vcmp.le.f32.partialorder %v950, 0.7853982
    %vm952 = vcmp.lt.s32.totalorder %v495, 0
    %v953 = vand.u32 %v495, 2139095040
    %v954 = vshrl.u32 %v953, 23
    %v955 = vsub.s32 %v954, 127
    %v956 = vand.u32 2147483647, %v495
    %v957 = vand.u32 %v956, 8388607
    %v958 = vor.u32 %v957, 8388608
    %v959 = vsub.s32 0, %v958
    %v960 = vadd.s32 %v955, 1
    %vm961 = vcmp.gt.s32.totalorder %v960, 0
    %v962 = vsel %vm961, %v960, 0
    %v963 = vshrl.u32 %v962, 5
    %v964 = vand.u32 %v962, 31
    %v965 = vsub.s32 32, %v964
    %v966 = vshrl.u32 683565275, %v965
    %v967 = vshll.u32 683565275, %v964
    %v968 = vshrl.u32 2475754826, %v965
    %v969 = vor.u32 %v967, %v968
    %v970 = vshll.u32 2475754826, %v964
    %v971 = vshrl.u32 2131351028, %v965
    %v972 = vor.u32 %v970, %v971
    %v973 = vshll.u32 2131351028, %v964
    %v974 = vshrl.u32 2102212464, %v965
    %v975 = vor.u32 %v973, %v974
    %v976 = vshll.u32 2102212464, %v964
    %v977 = vshrl.u32 920167782, %v965
    %v978 = vor.u32 %v976, %v977
    %v979 = vshll.u32 920167782, %v964
    %v980 = vshrl.u32 1326507024, %v965
    %v981 = vor.u32 %v979, %v980
    %vm982 = vcmp.lt.s32.totalorder %v963, 1
    %vm983 = vcmp.lt.s32.totalorder %v963, 2
    %vm984 = vcmp.lt.s32.totalorder %v963, 3
    %vm985 = vcmp.lt.s32.totalorder %v963, 4
    %v986 = vsel %vm982, %v966, %v969
    %v987 = vsel %vm985, %v975, 2102212464
    %v988 = vsel %vm984, %v972, %v987
    %v989 = vsel %vm983, %v986, %v988
    %v990 = vsel %vm982, %v969, %v972
    %v991 = vsel %vm985, %v978, 920167782
    %v992 = vsel %vm984, %v975, %v991
    %v993 = vsel %vm983, %v990, %v992
    %v994 = vsel %vm982, %v972, %v975
    %v995 = vsel %vm985, %v981, 1326507024
    %v996 = vsel %vm984, %v978, %v995
    %v997 = vsel %vm983, %v994, %v996
    %v998 = vshll.u32 %v958, 8
    %v999 = vmul.u32.u64.compose %v998, %v997
    %v1000 = vextract.low.u32 %v999
    %v1001 = vextract.high.u32 %v999
    %v1002 = vmul.u32.u64.compose %v998, %v993
    %v1003 = vextract.low.u32 %v1002
    %v1004 = vextract.high.u32 %v1002
    %v1005 = vmul.u32 %v998, %v989
    %v1006 = vadd.s32 %v1001, %v1003
    %vm1007 = vc.u32 %v1001, %v1003
    %v1008 = vadd.s32 %v1004, 1
    %v1009 = vsel %vm1007, %v1008, %v1004
    %v1010 = vadd.s32 %v1005, %v1009
    %v1011 = vadd.s32 %v1010, 536870912
    %v1012 = vshrl.u32 %v1011, 30
    %v1013 = vshll.u32 %v1012, 30
    %v1014 = vsub.s32 %v1010, %v1013
    %vm1015 = vcmp.lt.s32.totalorder %v1014, 0
    %v1016 = vsub.s32 0, %v1014
    %v1017 = vsel %vm1015, %v1016, %v1014
    %v1018 = vclz %v1017
    %v1019 = vsub.s32 %v1018, 2
    %vm1020 = vcmp.gt.s32.totalorder 0, %v1019
    %v1021 = vsel %vm1020, 0, %v1019
    %v1022 = vsub.s32 32, %v1021
    %v1023 = vshll.u32 %v1014, %v1021
    %v1024 = vshrl.u32 %v1006, %v1022
    %v1025 = vor.u32 %v1023, %v1024
    %v1026 = vsub.s32 4294967266, %v1021
    %v1027 = vadd.s32 %v1026, 127
    %v1028 = vshll.u32 %v1027, 23
    %v1029 = vor.u32 4788187, %v1028
    %v1030 = vand.u32 2147483647, %v1029
    %v1032 = vcvt.s32.f32 %v1025
    %v1033 = vmul.f32 %v1032, %v1030
    %v1034 = vxor.u32 %v1033, 2147483648
    %v1035 = vsel %vm952, %v1034, %v1033
    %v1036 = vsub.s32 4, %v1012
    %v1037 = vsel %vm952, %v1036, %v1012
    %v1038 = vsel %vm951, %v495, %v1035
    %v1039 = vsel %vm951, 0, %v1037
    %v1040 = vcosq.f32.pop %v1038
    %v1041 = vsinq.f32.pop %v1038
    %vm1042 = vweird.f32 %v495
    %v1043 = vadd.s32 %v1039, 3
    %v1044 = vand.u32 %v1043, 3
    %vm1045 = vcmp.lt.s32.totalorder %v1044, 2
    %vm1046 = vcmp.eq.s32.totalorder %v1044, 0
    %v1047 = vxor.u32 %v1041, 2147483648
    %v1048 = vsel %vm1046, %v1040, %v1047
    %vm1049 = vcmp.eq.s32.totalorder %v1044, 2
    %v1050 = vxor.u32 %v1040, 2147483648
    %v1051 = vsel %vm1049, %v1050, %v1041
    %v1052 = vsel %vm1045, %v1048, %v1051
    %v1053 = vsel %vm1042, nan, %v1052
    %v1054 = vand.u32 2147483647, %v500
    %vm1055 = vcmp.le.f32.partialorder %v1054, 0.7853982
    %vm1056 = vcmp.lt.s32.totalorder %v500, 0
    %v1057 = vand.u32 %v500, 2139095040
    %v1058 = vshrl.u32 %v1057, 23
    %v1059 = vsub.s32 %v1058, 127
    %v1060 = vand.u32 2147483647, %v500
    %v1061 = vand.u32 %v1060, 8388607
    %v1062 = vor.u32 %v1061, 8388608
    %v1063 = vsub.s32 0, %v1062
    %v1064 = vadd.s32 %v1059, 1
    %vm1065 = vcmp.gt.s32.totalorder %v1064, 0
    %v1066 = vsel %vm1065, %v1064, 0
    %v1067 = vshrl.u32 %v1066, 5
    %v1068 = vand.u32 %v1066, 31
    %v1069 = vsub.s32 32, %v1068
    %v1070 = vshrl.u32 683565275, %v1069
    %v1071 = vshll.u32 683565275, %v1068
    %v1072 = vshrl.u32 2475754826, %v1069
    %v1073 = vor.u32 %v1071, %v1072
    %v1074 = vshll.u32 2475754826, %v1068
    %v1075 = vshrl.u32 2131351028, %v1069
    %v1076 = vor.u32 %v1074, %v1075
    %v1077 = vshll.u32 2131351028, %v1068
    %v1078 = vshrl.u32 2102212464, %v1069
    %v1079 = vor.u32 %v1077, %v1078
    %v1080 = vshll.u32 2102212464, %v1068
    %v1081 = vshrl.u32 920167782, %v1069
    %v1082 = vor.u32 %v1080, %v1081
    %v1083 = vshll.u32 920167782, %v1068
    %v1084 = vshrl.u32 1326507024, %v1069
    %v1085 = vor.u32 %v1083, %v1084
    %vm1086 = vcmp.lt.s32.totalorder %v1067, 1
    %vm1087 = vcmp.lt.s32.totalorder %v1067, 2
    %vm1088 = vcmp.lt.s32.totalorder %v1067, 3
    %vm1089 = vcmp.lt.s32.totalorder %v1067, 4
    %v1090 = vsel %vm1086, %v1070, %v1073
    %v1091 = vsel %vm1089, %v1079, 2102212464
    %v1092 = vsel %vm1088, %v1076, %v1091
    %v1093 = vsel %vm1087, %v1090, %v1092
    %v1094 = vsel %vm1086, %v1073, %v1076
    %v1095 = vsel %vm1089, %v1082, 920167782
    %v1096 = vsel %vm1088, %v1079, %v1095
    %v1097 = vsel %vm1087, %v1094, %v1096
    %v1098 = vsel %vm1086, %v1076, %v1079
    %v1099 = vsel %vm1089, %v1085, 1326507024
    %v1100 = vsel %vm1088, %v1082, %v1099
    %v1101 = vsel %vm1087, %v1098, %v1100
    %v1102 = vshll.u32 %v1062, 8
    %v1103 = vmul.u32.u64.compose %v1102, %v1101
    %v1104 = vextract.low.u32 %v1103
    %v1105 = vextract.high.u32 %v1103
    %v1106 = vmul.u32.u64.compose %v1102, %v1097
    %v1107 = vextract.low.u32 %v1106
    %v1108 = vextract.high.u32 %v1106
    %v1109 = vmul.u32 %v1102, %v1093
    %v1110 = vadd.s32 %v1105, %v1107
    %vm1111 = vc.u32 %v1105, %v1107
    %v1112 = vadd.s32 %v1108, 1
    %v1113 = vsel %vm1111, %v1112, %v1108
    %v1114 = vadd.s32 %v1109, %v1113
    %v1115 = vadd.s32 %v1114, 536870912
    %v1116 = vshrl.u32 %v1115, 30
    %v1117 = vshll.u32 %v1116, 30
    %v1118 = vsub.s32 %v1114, %v1117
    %vm1119 = vcmp.lt.s32.totalorder %v1118, 0
    %v1120 = vsub.s32 0, %v1118
    %v1121 = vsel %vm1119, %v1120, %v1118
    %v1122 = vclz %v1121
    %v1123 = vsub.s32 %v1122, 2
    %vm1124 = vcmp.gt.s32.totalorder 0, %v1123
    %v1125 = vsel %vm1124, 0, %v1123
    %v1126 = vsub.s32 32, %v1125
    %v1127 = vshll.u32 %v1118, %v1125
    %v1128 = vshrl.u32 %v1110, %v1126
    %v1129 = vor.u32 %v1127, %v1128
    %v1130 = vsub.s32 4294967266, %v1125
    %v1131 = vadd.s32 %v1130, 127
    %v1132 = vshll.u32 %v1131, 23
    %v1133 = vor.u32 4788187, %v1132
    %v1134 = vand.u32 2147483647, %v1133
    %v1136 = vcvt.s32.f32 %v1129
    %v1137 = vmul.f32 %v1136, %v1134
    %v1138 = vxor.u32 %v1137, 2147483648
    %v1139 = vsel %vm1056, %v1138, %v1137
    %v1140 = vsub.s32 4, %v1116
    %v1141 = vsel %vm1056, %v1140, %v1116
    %v1142 = vsel %vm1055, %v500, %v1139
    %v1143 = vsel %vm1055, 0, %v1141
    %v1144 = vcosq.f32.pop %v1142
    %v1145 = vsinq.f32.pop %v1142
    %vm1146 = vweird.f32 %v500
    %v1147 = vadd.s32 %v1143, 3
    %v1148 = vand.u32 %v1147, 3
    %vm1149 = vcmp.lt.s32.totalorder %v1148, 2
    %vm1150 = vcmp.eq.s32.totalorder %v1148, 0
    %v1151 = vxor.u32 %v1145, 2147483648
    %v1152 = vsel %vm1150, %v1144, %v1151
    %vm1153 = vcmp.eq.s32.totalorder %v1148, 2
    %v1154 = vxor.u32 %v1144, 2147483648
    %v1155 = vsel %vm1153, %v1154, %v1145
    %v1156 = vsel %vm1149, %v1152, %v1155
    %v1157 = vsel %vm1146, nan, %v1156
    %v1158 = vand.u32 2147483647, %v505
    %vm1159 = vcmp.le.f32.partialorder %v1158, 0.7853982
    %vm1160 = vcmp.lt.s32.totalorder %v505, 0
    %v1161 = vand.u32 %v505, 2139095040
    %v1162 = vshrl.u32 %v1161, 23
    %v1163 = vsub.s32 %v1162, 127
    %v1164 = vand.u32 2147483647, %v505
    %v1165 = vand.u32 %v1164, 8388607
    %v1166 = vor.u32 %v1165, 8388608
    %v1167 = vsub.s32 0, %v1166
    %v1168 = vadd.s32 %v1163, 1
    %vm1169 = vcmp.gt.s32.totalorder %v1168, 0
    %v1170 = vsel %vm1169, %v1168, 0
    %v1171 = vshrl.u32 %v1170, 5
    %v1172 = vand.u32 %v1170, 31
    %v1173 = vsub.s32 32, %v1172
    %v1174 = vshrl.u32 683565275, %v1173
    %v1175 = vshll.u32 683565275, %v1172
    %v1176 = vshrl.u32 2475754826, %v1173
    %v1177 = vor.u32 %v1175, %v1176
    %v1178 = vshll.u32 2475754826, %v1172
    %v1179 = vshrl.u32 2131351028, %v1173
    %v1180 = vor.u32 %v1178, %v1179
    %v1181 = vshll.u32 2131351028, %v1172
    %v1182 = vshrl.u32 2102212464, %v1173
    %v1183 = vor.u32 %v1181, %v1182
    %v1184 = vshll.u32 2102212464, %v1172
    %v1185 = vshrl.u32 920167782, %v1173
    %v1186 = vor.u32 %v1184, %v1185
    %v1187 = vshll.u32 920167782, %v1172
    %v1188 = vshrl.u32 1326507024, %v1173
    %v1189 = vor.u32 %v1187, %v1188
    %vm1190 = vcmp.lt.s32.totalorder %v1171, 1
    %vm1191 = vcmp.lt.s32.totalorder %v1171, 2
    %vm1192 = vcmp.lt.s32.totalorder %v1171, 3
    %vm1193 = vcmp.lt.s32.totalorder %v1171, 4
    %v1194 = vsel %vm1190, %v1174, %v1177
    %v1195 = vsel %vm1193, %v1183, 2102212464
    %v1196 = vsel %vm1192, %v1180, %v1195
    %v1197 = vsel %vm1191, %v1194, %v1196
    %v1198 = vsel %vm1190, %v1177, %v1180
    %v1199 = vsel %vm1193, %v1186, 920167782
    %v1200 = vsel %vm1192, %v1183, %v1199
    %v1201 = vsel %vm1191, %v1198, %v1200
    %v1202 = vsel %vm1190, %v1180, %v1183
    %v1203 = vsel %vm1193, %v1189, 1326507024
    %v1204 = vsel %vm1192, %v1186, %v1203
    %v1205 = vsel %vm1191, %v1202, %v1204
    %v1206 = vshll.u32 %v1166, 8
    %v1207 = vmul.u32.u64.compose %v1206, %v1205
    %v1208 = vextract.low.u32 %v1207
    %v1209 = vextract.high.u32 %v1207
    %v1210 = vmul.u32.u64.compose %v1206, %v1201
    %v1211 = vextract.low.u32 %v1210
    %v1212 = vextract.high.u32 %v1210
    %v1213 = vmul.u32 %v1206, %v1197
    %v1214 = vadd.s32 %v1209, %v1211
    %vm1215 = vc.u32 %v1209, %v1211
    %v1216 = vadd.s32 %v1212, 1
    %v1217 = vsel %vm1215, %v1216, %v1212
    %v1218 = vadd.s32 %v1213, %v1217
    %v1219 = vadd.s32 %v1218, 536870912
    %v1220 = vshrl.u32 %v1219, 30
    %v1221 = vshll.u32 %v1220, 30
    %v1222 = vsub.s32 %v1218, %v1221
    %vm1223 = vcmp.lt.s32.totalorder %v1222, 0
    %v1224 = vsub.s32 0, %v1222
    %v1225 = vsel %vm1223, %v1224, %v1222
    %v1226 = vclz %v1225
    %v1227 = vsub.s32 %v1226, 2
    %vm1228 = vcmp.gt.s32.totalorder 0, %v1227
    %v1229 = vsel %vm1228, 0, %v1227
    %v1230 = vsub.s32 32, %v1229
    %v1231 = vshll.u32 %v1222, %v1229
    %v1232 = vshrl.u32 %v1214, %v1230
    %v1233 = vor.u32 %v1231, %v1232
    %v1234 = vsub.s32 4294967266, %v1229
    %v1235 = vadd.s32 %v1234, 127
    %v1236 = vshll.u32 %v1235, 23
    %v1237 = vor.u32 4788187, %v1236
    %v1238 = vand.u32 2147483647, %v1237
    %v1240 = vcvt.s32.f32 %v1233
    %v1241 = vmul.f32 %v1240, %v1238
    %v1242 = vxor.u32 %v1241, 2147483648
    %v1243 = vsel %vm1160, %v1242, %v1241
    %v1244 = vsub.s32 4, %v1220
    %v1245 = vsel %vm1160, %v1244, %v1220
    %v1246 = vsel %vm1159, %v505, %v1243
    %v1247 = vsel %vm1159, 0, %v1245
    %v1248 = vcosq.f32.pop %v1246
    %v1249 = vsinq.f32.pop %v1246
    %vm1250 = vweird.f32 %v505
    %v1251 = vadd.s32 %v1247, 3
    %v1252 = vand.u32 %v1251, 3
    %vm1253 = vcmp.lt.s32.totalorder %v1252, 2
    %vm1254 = vcmp.eq.s32.totalorder %v1252, 0
    %v1255 = vxor.u32 %v1249, 2147483648
    %v1256 = vsel %vm1254, %v1248, %v1255
    %vm1257 = vcmp.eq.s32.totalorder %v1252, 2
    %v1258 = vxor.u32 %v1248, 2147483648
    %v1259 = vsel %vm1257, %v1258, %v1249
    %v1260 = vsel %vm1253, %v1256, %v1259
    %v1261 = vsel %vm1250, nan, %v1260
    %v1262 = vand.u32 2147483647, %v510
    %vm1263 = vcmp.le.f32.partialorder %v1262, 0.7853982
    %vm1264 = vcmp.lt.s32.totalorder %v510, 0
    %v1265 = vand.u32 %v510, 2139095040
    %v1266 = vshrl.u32 %v1265, 23
    %v1267 = vsub.s32 %v1266, 127
    %v1268 = vand.u32 2147483647, %v510
    %v1269 = vand.u32 %v1268, 8388607
    %v1270 = vor.u32 %v1269, 8388608
    %v1271 = vsub.s32 0, %v1270
    %v1272 = vadd.s32 %v1267, 1
    %vm1273 = vcmp.gt.s32.totalorder %v1272, 0
    %v1274 = vsel %vm1273, %v1272, 0
    %v1275 = vshrl.u32 %v1274, 5
    %v1276 = vand.u32 %v1274, 31
    %v1277 = vsub.s32 32, %v1276
    %v1278 = vshrl.u32 683565275, %v1277
    %v1279 = vshll.u32 683565275, %v1276
    %v1280 = vshrl.u32 2475754826, %v1277
    %v1281 = vor.u32 %v1279, %v1280
    %v1282 = vshll.u32 2475754826, %v1276
    %v1283 = vshrl.u32 2131351028, %v1277
    %v1284 = vor.u32 %v1282, %v1283
    %v1285 = vshll.u32 2131351028, %v1276
    %v1286 = vshrl.u32 2102212464, %v1277
    %v1287 = vor.u32 %v1285, %v1286
    %v1288 = vshll.u32 2102212464, %v1276
    %v1289 = vshrl.u32 920167782, %v1277
    %v1290 = vor.u32 %v1288, %v1289
    %v1291 = vshll.u32 920167782, %v1276
    %v1292 = vshrl.u32 1326507024, %v1277
    %v1293 = vor.u32 %v1291, %v1292
    %vm1294 = vcmp.lt.s32.totalorder %v1275, 1
    %vm1295 = vcmp.lt.s32.totalorder %v1275, 2
    %vm1296 = vcmp.lt.s32.totalorder %v1275, 3
    %vm1297 = vcmp.lt.s32.totalorder %v1275, 4
    %v1298 = vsel %vm1294, %v1278, %v1281
    %v1299 = vsel %vm1297, %v1287, 2102212464
    %v1300 = vsel %vm1296, %v1284, %v1299
    %v1301 = vsel %vm1295, %v1298, %v1300
    %v1302 = vsel %vm1294, %v1281, %v1284
    %v1303 = vsel %vm1297, %v1290, 920167782
    %v1304 = vsel %vm1296, %v1287, %v1303
    %v1305 = vsel %vm1295, %v1302, %v1304
    %v1306 = vsel %vm1294, %v1284, %v1287
    %v1307 = vsel %vm1297, %v1293, 1326507024
    %v1308 = vsel %vm1296, %v1290, %v1307
    %v1309 = vsel %vm1295, %v1306, %v1308
    %v1310 = vshll.u32 %v1270, 8
    %v1311 = vmul.u32.u64.compose %v1310, %v1309
    %v1312 = vextract.low.u32 %v1311
    %v1313 = vextract.high.u32 %v1311
    %v1314 = vmul.u32.u64.compose %v1310, %v1305
    %v1315 = vextract.low.u32 %v1314
    %v1316 = vextract.high.u32 %v1314
    %v1317 = vmul.u32 %v1310, %v1301
    %v1318 = vadd.s32 %v1313, %v1315
    %vm1319 = vc.u32 %v1313, %v1315
    %v1320 = vadd.s32 %v1316, 1
    %v1321 = vsel %vm1319, %v1320, %v1316
    %v1322 = vadd.s32 %v1317, %v1321
    %v1323 = vadd.s32 %v1322, 536870912
    %v1324 = vshrl.u32 %v1323, 30
    %v1325 = vshll.u32 %v1324, 30
    %v1326 = vsub.s32 %v1322, %v1325
    %vm1327 = vcmp.lt.s32.totalorder %v1326, 0
    %v1328 = vsub.s32 0, %v1326
    %v1329 = vsel %vm1327, %v1328, %v1326
    %v1330 = vclz %v1329
    %v1331 = vsub.s32 %v1330, 2
    %vm1332 = vcmp.gt.s32.totalorder 0, %v1331
    %v1333 = vsel %vm1332, 0, %v1331
    %v1334 = vsub.s32 32, %v1333
    %v1335 = vshll.u32 %v1326, %v1333
    %v1336 = vshrl.u32 %v1318, %v1334
    %v1337 = vor.u32 %v1335, %v1336
    %v1338 = vsub.s32 4294967266, %v1333
    %v1339 = vadd.s32 %v1338, 127
    %v1340 = vshll.u32 %v1339, 23
    %v1341 = vor.u32 4788187, %v1340
    %v1342 = vand.u32 2147483647, %v1341
    %v1344 = vcvt.s32.f32 %v1337
    %v1345 = vmul.f32 %v1344, %v1342
    %v1346 = vxor.u32 %v1345, 2147483648
    %v1347 = vsel %vm1264, %v1346, %v1345
    %v1348 = vsub.s32 4, %v1324
    %v1349 = vsel %vm1264, %v1348, %v1324
    %v1350 = vsel %vm1263, %v510, %v1347
    %v1351 = vsel %vm1263, 0, %v1349
    %v1352 = vcosq.f32.pop %v1350
    %v1353 = vsinq.f32.pop %v1350
    %vm1354 = vweird.f32 %v510
    %v1355 = vadd.s32 %v1351, 3
    %v1356 = vand.u32 %v1355, 3
    %vm1357 = vcmp.lt.s32.totalorder %v1356, 2
    %vm1358 = vcmp.eq.s32.totalorder %v1356, 0
    %v1359 = vxor.u32 %v1353, 2147483648
    %v1360 = vsel %vm1358, %v1352, %v1359
    %vm1361 = vcmp.eq.s32.totalorder %v1356, 2
    %v1362 = vxor.u32 %v1352, 2147483648
    %v1363 = vsel %vm1361, %v1362, %v1353
    %v1364 = vsel %vm1357, %v1360, %v1363
    %v1365 = vsel %vm1354, nan, %v1364
    %v1366 = vand.u32 2147483647, %v515
    %vm1367 = vcmp.le.f32.partialorder %v1366, 0.7853982
    %vm1368 = vcmp.lt.s32.totalorder %v515, 0
    %v1369 = vand.u32 %v515, 2139095040
    %v1370 = vshrl.u32 %v1369, 23
    %v1371 = vsub.s32 %v1370, 127
    %v1372 = vand.u32 2147483647, %v515
    %v1373 = vand.u32 %v1372, 8388607
    %v1374 = vor.u32 %v1373, 8388608
    %v1375 = vsub.s32 0, %v1374
    %v1376 = vadd.s32 %v1371, 1
    %vm1377 = vcmp.gt.s32.totalorder %v1376, 0
    %v1378 = vsel %vm1377, %v1376, 0
    %v1379 = vshrl.u32 %v1378, 5
    %v1380 = vand.u32 %v1378, 31
    %v1381 = vsub.s32 32, %v1380
    %v1382 = vshrl.u32 683565275, %v1381
    %v1383 = vshll.u32 683565275, %v1380
    %v1384 = vshrl.u32 2475754826, %v1381
    %v1385 = vor.u32 %v1383, %v1384
    %v1386 = vshll.u32 2475754826, %v1380
    %v1387 = vshrl.u32 2131351028, %v1381
    %v1388 = vor.u32 %v1386, %v1387
    %v1389 = vshll.u32 2131351028, %v1380
    %v1390 = vshrl.u32 2102212464, %v1381
    %v1391 = vor.u32 %v1389, %v1390
    %v1392 = vshll.u32 2102212464, %v1380
    %v1393 = vshrl.u32 920167782, %v1381
    %v1394 = vor.u32 %v1392, %v1393
    %v1395 = vshll.u32 920167782, %v1380
    %v1396 = vshrl.u32 1326507024, %v1381
    %v1397 = vor.u32 %v1395, %v1396
    %vm1398 = vcmp.lt.s32.totalorder %v1379, 1
    %vm1399 = vcmp.lt.s32.totalorder %v1379, 2
    %vm1400 = vcmp.lt.s32.totalorder %v1379, 3
    %vm1401 = vcmp.lt.s32.totalorder %v1379, 4
    %v1402 = vsel %vm1398, %v1382, %v1385
    %v1403 = vsel %vm1401, %v1391, 2102212464
    %v1404 = vsel %vm1400, %v1388, %v1403
    %v1405 = vsel %vm1399, %v1402, %v1404
    %v1406 = vsel %vm1398, %v1385, %v1388
    %v1407 = vsel %vm1401, %v1394, 920167782
    %v1408 = vsel %vm1400, %v1391, %v1407
    %v1409 = vsel %vm1399, %v1406, %v1408
    %v1410 = vsel %vm1398, %v1388, %v1391
    %v1411 = vsel %vm1401, %v1397, 1326507024
    %v1412 = vsel %vm1400, %v1394, %v1411
    %v1413 = vsel %vm1399, %v1410, %v1412
    %v1414 = vshll.u32 %v1374, 8
    %v1415 = vmul.u32.u64.compose %v1414, %v1413
    %v1416 = vextract.low.u32 %v1415
    %v1417 = vextract.high.u32 %v1415
    %v1418 = vmul.u32.u64.compose %v1414, %v1409
    %v1419 = vextract.low.u32 %v1418
    %v1420 = vextract.high.u32 %v1418
    %v1421 = vmul.u32 %v1414, %v1405
    %v1422 = vadd.s32 %v1417, %v1419
    %vm1423 = vc.u32 %v1417, %v1419
    %v1424 = vadd.s32 %v1420, 1
    %v1425 = vsel %vm1423, %v1424, %v1420
    %v1426 = vadd.s32 %v1421, %v1425
    %v1427 = vadd.s32 %v1426, 536870912
    %v1428 = vshrl.u32 %v1427, 30
    %v1429 = vshll.u32 %v1428, 30
    %v1430 = vsub.s32 %v1426, %v1429
    %vm1431 = vcmp.lt.s32.totalorder %v1430, 0
    %v1432 = vsub.s32 0, %v1430
    %v1433 = vsel %vm1431, %v1432, %v1430
    %v1434 = vclz %v1433
    %v1435 = vsub.s32 %v1434, 2
    %vm1436 = vcmp.gt.s32.totalorder 0, %v1435
    %v1437 = vsel %vm1436, 0, %v1435
    %v1438 = vsub.s32 32, %v1437
    %v1439 = vshll.u32 %v1430, %v1437
    %v1440 = vshrl.u32 %v1422, %v1438
    %v1441 = vor.u32 %v1439, %v1440
    %v1442 = vsub.s32 4294967266, %v1437
    %v1443 = vadd.s32 %v1442, 127
    %v1444 = vshll.u32 %v1443, 23
    %v1445 = vor.u32 4788187, %v1444
    %v1446 = vand.u32 2147483647, %v1445
    %v1448 = vcvt.s32.f32 %v1441
    %v1449 = vmul.f32 %v1448, %v1446
    %v1450 = vxor.u32 %v1449, 2147483648
    %v1451 = vsel %vm1368, %v1450, %v1449
    %v1452 = vsub.s32 4, %v1428
    %v1453 = vsel %vm1368, %v1452, %v1428
    %v1454 = vsel %vm1367, %v515, %v1451
    %v1455 = vsel %vm1367, 0, %v1453
    %v1456 = vcosq.f32.pop %v1454
    %v1457 = vsinq.f32.pop %v1454
    %vm1458 = vweird.f32 %v515
    %v1459 = vadd.s32 %v1455, 3
    %v1460 = vand.u32 %v1459, 3
    %vm1461 = vcmp.lt.s32.totalorder %v1460, 2
    %vm1462 = vcmp.eq.s32.totalorder %v1460, 0
    %v1463 = vxor.u32 %v1457, 2147483648
    %v1464 = vsel %vm1462, %v1456, %v1463
    %vm1465 = vcmp.eq.s32.totalorder %v1460, 2
    %v1466 = vxor.u32 %v1456, 2147483648
    %v1467 = vsel %vm1465, %v1466, %v1457
    %v1468 = vsel %vm1461, %v1464, %v1467
    %v1469 = vsel %vm1458, nan, %v1468
    %v1470 = vand.u32 2147483647, %v520
    %vm1471 = vcmp.le.f32.partialorder %v1470, 0.7853982
    %vm1472 = vcmp.lt.s32.totalorder %v520, 0
    %v1473 = vand.u32 %v520, 2139095040
    %v1474 = vshrl.u32 %v1473, 23
    %v1475 = vsub.s32 %v1474, 127
    %v1476 = vand.u32 2147483647, %v520
    %v1477 = vand.u32 %v1476, 8388607
    %v1478 = vor.u32 %v1477, 8388608
    %v1479 = vsub.s32 0, %v1478
    %v1480 = vadd.s32 %v1475, 1
    %vm1481 = vcmp.gt.s32.totalorder %v1480, 0
    %v1482 = vsel %vm1481, %v1480, 0
    %v1483 = vshrl.u32 %v1482, 5
    %v1484 = vand.u32 %v1482, 31
    %v1485 = vsub.s32 32, %v1484
    %v1486 = vshrl.u32 683565275, %v1485
    %v1487 = vshll.u32 683565275, %v1484
    %v1488 = vshrl.u32 2475754826, %v1485
    %v1489 = vor.u32 %v1487, %v1488
    %v1490 = vshll.u32 2475754826, %v1484
    %v1491 = vshrl.u32 2131351028, %v1485
    %v1492 = vor.u32 %v1490, %v1491
    %v1493 = vshll.u32 2131351028, %v1484
    %v1494 = vshrl.u32 2102212464, %v1485
    %v1495 = vor.u32 %v1493, %v1494
    %v1496 = vshll.u32 2102212464, %v1484
    %v1497 = vshrl.u32 920167782, %v1485
    %v1498 = vor.u32 %v1496, %v1497
    %v1499 = vshll.u32 920167782, %v1484
    %v1500 = vshrl.u32 1326507024, %v1485
    %v1501 = vor.u32 %v1499, %v1500
    %vm1502 = vcmp.lt.s32.totalorder %v1483, 1
    %vm1503 = vcmp.lt.s32.totalorder %v1483, 2
    %vm1504 = vcmp.lt.s32.totalorder %v1483, 3
    %vm1505 = vcmp.lt.s32.totalorder %v1483, 4
    %v1506 = vsel %vm1502, %v1486, %v1489
    %v1507 = vsel %vm1505, %v1495, 2102212464
    %v1508 = vsel %vm1504, %v1492, %v1507
    %v1509 = vsel %vm1503, %v1506, %v1508
    %v1510 = vsel %vm1502, %v1489, %v1492
    %v1511 = vsel %vm1505, %v1498, 920167782
    %v1512 = vsel %vm1504, %v1495, %v1511
    %v1513 = vsel %vm1503, %v1510, %v1512
    %v1514 = vsel %vm1502, %v1492, %v1495
    %v1515 = vsel %vm1505, %v1501, 1326507024
    %v1516 = vsel %vm1504, %v1498, %v1515
    %v1517 = vsel %vm1503, %v1514, %v1516
    %v1518 = vshll.u32 %v1478, 8
    %v1519 = vmul.u32.u64.compose %v1518, %v1517
    %v1520 = vextract.low.u32 %v1519
    %v1521 = vextract.high.u32 %v1519
    %v1522 = vmul.u32.u64.compose %v1518, %v1513
    %v1523 = vextract.low.u32 %v1522
    %v1524 = vextract.high.u32 %v1522
    %v1525 = vmul.u32 %v1518, %v1509
    %v1526 = vadd.s32 %v1521, %v1523
    %vm1527 = vc.u32 %v1521, %v1523
    %v1528 = vadd.s32 %v1524, 1
    %v1529 = vsel %vm1527, %v1528, %v1524
    %v1530 = vadd.s32 %v1525, %v1529
    %v1531 = vadd.s32 %v1530, 536870912
    %v1532 = vshrl.u32 %v1531, 30
    %v1533 = vshll.u32 %v1532, 30
    %v1534 = vsub.s32 %v1530, %v1533
    %vm1535 = vcmp.lt.s32.totalorder %v1534, 0
    %v1536 = vsub.s32 0, %v1534
    %v1537 = vsel %vm1535, %v1536, %v1534
    %v1538 = vclz %v1537
    %v1539 = vsub.s32 %v1538, 2
    %vm1540 = vcmp.gt.s32.totalorder 0, %v1539
    %v1541 = vsel %vm1540, 0, %v1539
    %v1542 = vsub.s32 32, %v1541
    %v1543 = vshll.u32 %v1534, %v1541
    %v1544 = vshrl.u32 %v1526, %v1542
    %v1545 = vor.u32 %v1543, %v1544
    %v1546 = vsub.s32 4294967266, %v1541
    %v1547 = vadd.s32 %v1546, 127
    %v1548 = vshll.u32 %v1547, 23
    %v1549 = vor.u32 4788187, %v1548
    %v1550 = vand.u32 2147483647, %v1549
    %v1552 = vcvt.s32.f32 %v1545
    %v1553 = vmul.f32 %v1552, %v1550
    %v1554 = vxor.u32 %v1553, 2147483648
    %v1555 = vsel %vm1472, %v1554, %v1553
    %v1556 = vsub.s32 4, %v1532
    %v1557 = vsel %vm1472, %v1556, %v1532
    %v1558 = vsel %vm1471, %v520, %v1555
    %v1559 = vsel %vm1471, 0, %v1557
    %v1560 = vcosq.f32.pop %v1558
    %v1561 = vsinq.f32.pop %v1558
    %vm1562 = vweird.f32 %v520
    %v1563 = vadd.s32 %v1559, 3
    %v1564 = vand.u32 %v1563, 3
    %vm1565 = vcmp.lt.s32.totalorder %v1564, 2
    %vm1566 = vcmp.eq.s32.totalorder %v1564, 0
    %v1567 = vxor.u32 %v1561, 2147483648
    %v1568 = vsel %vm1566, %v1560, %v1567
    %vm1569 = vcmp.eq.s32.totalorder %v1564, 2
    %v1570 = vxor.u32 %v1560, 2147483648
    %v1571 = vsel %vm1569, %v1570, %v1561
    %v1572 = vsel %vm1565, %v1568, %v1571
    %v1573 = vsel %vm1562, nan, %v1572
    %v1574 = vand.u32 2147483647, %v525
    %vm1575 = vcmp.le.f32.partialorder %v1574, 0.7853982
    %vm1576 = vcmp.lt.s32.totalorder %v525, 0
    %v1577 = vand.u32 %v525, 2139095040
    %v1578 = vshrl.u32 %v1577, 23
    %v1579 = vsub.s32 %v1578, 127
    %v1580 = vand.u32 2147483647, %v525
    %v1581 = vand.u32 %v1580, 8388607
    %v1582 = vor.u32 %v1581, 8388608
    %v1583 = vsub.s32 0, %v1582
    %v1584 = vadd.s32 %v1579, 1
    %vm1585 = vcmp.gt.s32.totalorder %v1584, 0
    %v1586 = vsel %vm1585, %v1584, 0
    %v1587 = vshrl.u32 %v1586, 5
    %v1588 = vand.u32 %v1586, 31
    %v1589 = vsub.s32 32, %v1588
    %v1590 = vshrl.u32 683565275, %v1589
    %v1591 = vshll.u32 683565275, %v1588
    %v1592 = vshrl.u32 2475754826, %v1589
    %v1593 = vor.u32 %v1591, %v1592
    %v1594 = vshll.u32 2475754826, %v1588
    %v1595 = vshrl.u32 2131351028, %v1589
    %v1596 = vor.u32 %v1594, %v1595
    %v1597 = vshll.u32 2131351028, %v1588
    %v1598 = vshrl.u32 2102212464, %v1589
    %v1599 = vor.u32 %v1597, %v1598
    %v1600 = vshll.u32 2102212464, %v1588
    %v1601 = vshrl.u32 920167782, %v1589
    %v1602 = vor.u32 %v1600, %v1601
    %v1603 = vshll.u32 920167782, %v1588
    %v1604 = vshrl.u32 1326507024, %v1589
    %v1605 = vor.u32 %v1603, %v1604
    %vm1606 = vcmp.lt.s32.totalorder %v1587, 1
    %vm1607 = vcmp.lt.s32.totalorder %v1587, 2
    %vm1608 = vcmp.lt.s32.totalorder %v1587, 3
    %vm1609 = vcmp.lt.s32.totalorder %v1587, 4
    %v1610 = vsel %vm1606, %v1590, %v1593
    %v1611 = vsel %vm1609, %v1599, 2102212464
    %v1612 = vsel %vm1608, %v1596, %v1611
    %v1613 = vsel %vm1607, %v1610, %v1612
    %v1614 = vsel %vm1606, %v1593, %v1596
    %v1615 = vsel %vm1609, %v1602, 920167782
    %v1616 = vsel %vm1608, %v1599, %v1615
    %v1617 = vsel %vm1607, %v1614, %v1616
    %v1618 = vsel %vm1606, %v1596, %v1599
    %v1619 = vsel %vm1609, %v1605, 1326507024
    %v1620 = vsel %vm1608, %v1602, %v1619
    %v1621 = vsel %vm1607, %v1618, %v1620
    %v1622 = vshll.u32 %v1582, 8
    %v1623 = vmul.u32.u64.compose %v1622, %v1621
    %v1624 = vextract.low.u32 %v1623
    %v1625 = vextract.high.u32 %v1623
    %v1626 = vmul.u32.u64.compose %v1622, %v1617
    %v1627 = vextract.low.u32 %v1626
    %v1628 = vextract.high.u32 %v1626
    %v1629 = vmul.u32 %v1622, %v1613
    %v1630 = vadd.s32 %v1625, %v1627
    %vm1631 = vc.u32 %v1625, %v1627
    %v1632 = vadd.s32 %v1628, 1
    %v1633 = vsel %vm1631, %v1632, %v1628
    %v1634 = vadd.s32 %v1629, %v1633
    %v1635 = vadd.s32 %v1634, 536870912
    %v1636 = vshrl.u32 %v1635, 30
    %v1637 = vshll.u32 %v1636, 30
    %v1638 = vsub.s32 %v1634, %v1637
    %vm1639 = vcmp.lt.s32.totalorder %v1638, 0
    %v1640 = vsub.s32 0, %v1638
    %v1641 = vsel %vm1639, %v1640, %v1638
    %v1642 = vclz %v1641
    %v1643 = vsub.s32 %v1642, 2
    %vm1644 = vcmp.gt.s32.totalorder 0, %v1643
    %v1645 = vsel %vm1644, 0, %v1643
    %v1646 = vsub.s32 32, %v1645
    %v1647 = vshll.u32 %v1638, %v1645
    %v1648 = vshrl.u32 %v1630, %v1646
    %v1649 = vor.u32 %v1647, %v1648
    %v1650 = vsub.s32 4294967266, %v1645
    %v1651 = vadd.s32 %v1650, 127
    %v1652 = vshll.u32 %v1651, 23
    %v1653 = vor.u32 4788187, %v1652
    %v1654 = vand.u32 2147483647, %v1653
    %v1656 = vcvt.s32.f32 %v1649
    %v1657 = vmul.f32 %v1656, %v1654
    %v1658 = vxor.u32 %v1657, 2147483648
    %v1659 = vsel %vm1576, %v1658, %v1657
    %v1660 = vsub.s32 4, %v1636
    %v1661 = vsel %vm1576, %v1660, %v1636
    %v1662 = vsel %vm1575, %v525, %v1659
    %v1663 = vsel %vm1575, 0, %v1661
    %v1664 = vcosq.f32.pop %v1662
    %v1665 = vsinq.f32.pop %v1662
    %vm1666 = vweird.f32 %v525
    %v1667 = vadd.s32 %v1663, 3
    %v1668 = vand.u32 %v1667, 3
    %vm1669 = vcmp.lt.s32.totalorder %v1668, 2
    %vm1670 = vcmp.eq.s32.totalorder %v1668, 0
    %v1671 = vxor.u32 %v1665, 2147483648
    %v1672 = vsel %vm1670, %v1664, %v1671
    %vm1673 = vcmp.eq.s32.totalorder %v1668, 2
    %v1674 = vxor.u32 %v1664, 2147483648
    %v1675 = vsel %vm1673, %v1674, %v1665
    %v1676 = vsel %vm1669, %v1672, %v1675
    %v1677 = vsel %vm1666, nan, %v1676
    %v1678 = vand.u32 2147483647, %v530
    %vm1679 = vcmp.le.f32.partialorder %v1678, 0.7853982
    %vm1680 = vcmp.lt.s32.totalorder %v530, 0
    %v1681 = vand.u32 %v530, 2139095040
    %v1682 = vshrl.u32 %v1681, 23
    %v1683 = vsub.s32 %v1682, 127
    %v1684 = vand.u32 2147483647, %v530
    %v1685 = vand.u32 %v1684, 8388607
    %v1686 = vor.u32 %v1685, 8388608
    %v1687 = vsub.s32 0, %v1686
    %v1688 = vadd.s32 %v1683, 1
    %vm1689 = vcmp.gt.s32.totalorder %v1688, 0
    %v1690 = vsel %vm1689, %v1688, 0
    %v1691 = vshrl.u32 %v1690, 5
    %v1692 = vand.u32 %v1690, 31
    %v1693 = vsub.s32 32, %v1692
    %v1694 = vshrl.u32 683565275, %v1693
    %v1695 = vshll.u32 683565275, %v1692
    %v1696 = vshrl.u32 2475754826, %v1693
    %v1697 = vor.u32 %v1695, %v1696
    %v1698 = vshll.u32 2475754826, %v1692
    %v1699 = vshrl.u32 2131351028, %v1693
    %v1700 = vor.u32 %v1698, %v1699
    %v1701 = vshll.u32 2131351028, %v1692
    %v1702 = vshrl.u32 2102212464, %v1693
    %v1703 = vor.u32 %v1701, %v1702
    %v1704 = vshll.u32 2102212464, %v1692
    %v1705 = vshrl.u32 920167782, %v1693
    %v1706 = vor.u32 %v1704, %v1705
    %v1707 = vshll.u32 920167782, %v1692
    %v1708 = vshrl.u32 1326507024, %v1693
    %v1709 = vor.u32 %v1707, %v1708
    %vm1710 = vcmp.lt.s32.totalorder %v1691, 1
    %vm1711 = vcmp.lt.s32.totalorder %v1691, 2
    %vm1712 = vcmp.lt.s32.totalorder %v1691, 3
    %vm1713 = vcmp.lt.s32.totalorder %v1691, 4
    %v1714 = vsel %vm1710, %v1694, %v1697
    %v1715 = vsel %vm1713, %v1703, 2102212464
    %v1716 = vsel %vm1712, %v1700, %v1715
    %v1717 = vsel %vm1711, %v1714, %v1716
    %v1718 = vsel %vm1710, %v1697, %v1700
    %v1719 = vsel %vm1713, %v1706, 920167782
    %v1720 = vsel %vm1712, %v1703, %v1719
    %v1721 = vsel %vm1711, %v1718, %v1720
    %v1722 = vsel %vm1710, %v1700, %v1703
    %v1723 = vsel %vm1713, %v1709, 1326507024
    %v1724 = vsel %vm1712, %v1706, %v1723
    %v1725 = vsel %vm1711, %v1722, %v1724
    %v1726 = vshll.u32 %v1686, 8
    %v1727 = vmul.u32.u64.compose %v1726, %v1725
    %v1728 = vextract.low.u32 %v1727
    %v1729 = vextract.high.u32 %v1727
    %v1730 = vmul.u32.u64.compose %v1726, %v1721
    %v1731 = vextract.low.u32 %v1730
    %v1732 = vextract.high.u32 %v1730
    %v1733 = vmul.u32 %v1726, %v1717
    %v1734 = vadd.s32 %v1729, %v1731
    %vm1735 = vc.u32 %v1729, %v1731
    %v1736 = vadd.s32 %v1732, 1
    %v1737 = vsel %vm1735, %v1736, %v1732
    %v1738 = vadd.s32 %v1733, %v1737
    %v1739 = vadd.s32 %v1738, 536870912
    %v1740 = vshrl.u32 %v1739, 30
    %v1741 = vshll.u32 %v1740, 30
    %v1742 = vsub.s32 %v1738, %v1741
    %vm1743 = vcmp.lt.s32.totalorder %v1742, 0
    %v1744 = vsub.s32 0, %v1742
    %v1745 = vsel %vm1743, %v1744, %v1742
    %v1746 = vclz %v1745
    %v1747 = vsub.s32 %v1746, 2
    %vm1748 = vcmp.gt.s32.totalorder 0, %v1747
    %v1749 = vsel %vm1748, 0, %v1747
    %v1750 = vsub.s32 32, %v1749
    %v1751 = vshll.u32 %v1742, %v1749
    %v1752 = vshrl.u32 %v1734, %v1750
    %v1753 = vor.u32 %v1751, %v1752
    %v1754 = vsub.s32 4294967266, %v1749
    %v1755 = vadd.s32 %v1754, 127
    %v1756 = vshll.u32 %v1755, 23
    %v1757 = vor.u32 4788187, %v1756
    %v1758 = vand.u32 2147483647, %v1757
    %v1760 = vcvt.s32.f32 %v1753
    %v1761 = vmul.f32 %v1760, %v1758
    %v1762 = vxor.u32 %v1761, 2147483648
    %v1763 = vsel %vm1680, %v1762, %v1761
    %v1764 = vsub.s32 4, %v1740
    %v1765 = vsel %vm1680, %v1764, %v1740
    %v1766 = vsel %vm1679, %v530, %v1763
    %v1767 = vsel %vm1679, 0, %v1765
    %v1768 = vcosq.f32.pop %v1766
    %v1769 = vsinq.f32.pop %v1766
    %vm1770 = vweird.f32 %v530
    %v1771 = vadd.s32 %v1767, 3
    %v1772 = vand.u32 %v1771, 3
    %vm1773 = vcmp.lt.s32.totalorder %v1772, 2
    %vm1774 = vcmp.eq.s32.totalorder %v1772, 0
    %v1775 = vxor.u32 %v1769, 2147483648
    %v1776 = vsel %vm1774, %v1768, %v1775
    %vm1777 = vcmp.eq.s32.totalorder %v1772, 2
    %v1778 = vxor.u32 %v1768, 2147483648
    %v1779 = vsel %vm1777, %v1778, %v1769
    %v1780 = vsel %vm1773, %v1776, %v1779
    %v1781 = vsel %vm1770, nan, %v1780
    %v1782 = vand.u32 2147483647, %v535
    %vm1783 = vcmp.le.f32.partialorder %v1782, 0.7853982
    %vm1784 = vcmp.lt.s32.totalorder %v535, 0
    %v1785 = vand.u32 %v535, 2139095040
    %v1786 = vshrl.u32 %v1785, 23
    %v1787 = vsub.s32 %v1786, 127
    %v1788 = vand.u32 2147483647, %v535
    %v1789 = vand.u32 %v1788, 8388607
    %v1790 = vor.u32 %v1789, 8388608
    %v1791 = vsub.s32 0, %v1790
    %v1792 = vadd.s32 %v1787, 1
    %vm1793 = vcmp.gt.s32.totalorder %v1792, 0
    %v1794 = vsel %vm1793, %v1792, 0
    %v1795 = vshrl.u32 %v1794, 5
    %v1796 = vand.u32 %v1794, 31
    %v1797 = vsub.s32 32, %v1796
    %v1798 = vshrl.u32 683565275, %v1797
    %v1799 = vshll.u32 683565275, %v1796
    %v1800 = vshrl.u32 2475754826, %v1797
    %v1801 = vor.u32 %v1799, %v1800
    %v1802 = vshll.u32 2475754826, %v1796
    %v1803 = vshrl.u32 2131351028, %v1797
    %v1804 = vor.u32 %v1802, %v1803
    %v1805 = vshll.u32 2131351028, %v1796
    %v1806 = vshrl.u32 2102212464, %v1797
    %v1807 = vor.u32 %v1805, %v1806
    %v1808 = vshll.u32 2102212464, %v1796
    %v1809 = vshrl.u32 920167782, %v1797
    %v1810 = vor.u32 %v1808, %v1809
    %v1811 = vshll.u32 920167782, %v1796
    %v1812 = vshrl.u32 1326507024, %v1797
    %v1813 = vor.u32 %v1811, %v1812
    %vm1814 = vcmp.lt.s32.totalorder %v1795, 1
    %vm1815 = vcmp.lt.s32.totalorder %v1795, 2
    %vm1816 = vcmp.lt.s32.totalorder %v1795, 3
    %vm1817 = vcmp.lt.s32.totalorder %v1795, 4
    %v1818 = vsel %vm1814, %v1798, %v1801
    %v1819 = vsel %vm1817, %v1807, 2102212464
    %v1820 = vsel %vm1816, %v1804, %v1819
    %v1821 = vsel %vm1815, %v1818, %v1820
    %v1822 = vsel %vm1814, %v1801, %v1804
    %v1823 = vsel %vm1817, %v1810, 920167782
    %v1824 = vsel %vm1816, %v1807, %v1823
    %v1825 = vsel %vm1815, %v1822, %v1824
    %v1826 = vsel %vm1814, %v1804, %v1807
    %v1827 = vsel %vm1817, %v1813, 1326507024
    %v1828 = vsel %vm1816, %v1810, %v1827
    %v1829 = vsel %vm1815, %v1826, %v1828
    %v1830 = vshll.u32 %v1790, 8
    %v1831 = vmul.u32.u64.compose %v1830, %v1829
    %v1832 = vextract.low.u32 %v1831
    %v1833 = vextract.high.u32 %v1831
    %v1834 = vmul.u32.u64.compose %v1830, %v1825
    %v1835 = vextract.low.u32 %v1834
    %v1836 = vextract.high.u32 %v1834
    %v1837 = vmul.u32 %v1830, %v1821
    %v1838 = vadd.s32 %v1833, %v1835
    %vm1839 = vc.u32 %v1833, %v1835
    %v1840 = vadd.s32 %v1836, 1
    %v1841 = vsel %vm1839, %v1840, %v1836
    %v1842 = vadd.s32 %v1837, %v1841
    %v1843 = vadd.s32 %v1842, 536870912
    %v1844 = vshrl.u32 %v1843, 30
    %v1845 = vshll.u32 %v1844, 30
    %v1846 = vsub.s32 %v1842, %v1845
    %vm1847 = vcmp.lt.s32.totalorder %v1846, 0
    %v1848 = vsub.s32 0, %v1846
    %v1849 = vsel %vm1847, %v1848, %v1846
    %v1850 = vclz %v1849
    %v1851 = vsub.s32 %v1850, 2
    %vm1852 = vcmp.gt.s32.totalorder 0, %v1851
    %v1853 = vsel %vm1852, 0, %v1851
    %v1854 = vsub.s32 32, %v1853
    %v1855 = vshll.u32 %v1846, %v1853
    %v1856 = vshrl.u32 %v1838, %v1854
    %v1857 = vor.u32 %v1855, %v1856
    %v1858 = vsub.s32 4294967266, %v1853
    %v1859 = vadd.s32 %v1858, 127
    %v1860 = vshll.u32 %v1859, 23
    %v1861 = vor.u32 4788187, %v1860
    %v1862 = vand.u32 2147483647, %v1861
    %v1864 = vcvt.s32.f32 %v1857
    %v1865 = vmul.f32 %v1864, %v1862
    %v1866 = vxor.u32 %v1865, 2147483648
    %v1867 = vsel %vm1784, %v1866, %v1865
    %v1868 = vsub.s32 4, %v1844
    %v1869 = vsel %vm1784, %v1868, %v1844
    %v1870 = vsel %vm1783, %v535, %v1867
    %v1871 = vsel %vm1783, 0, %v1869
    %v1872 = vcosq.f32.pop %v1870
    %v1873 = vsinq.f32.pop %v1870
    %vm1874 = vweird.f32 %v535
    %v1875 = vadd.s32 %v1871, 3
    %v1876 = vand.u32 %v1875, 3
    %vm1877 = vcmp.lt.s32.totalorder %v1876, 2
    %vm1878 = vcmp.eq.s32.totalorder %v1876, 0
    %v1879 = vxor.u32 %v1873, 2147483648
    %v1880 = vsel %vm1878, %v1872, %v1879
    %vm1881 = vcmp.eq.s32.totalorder %v1876, 2
    %v1882 = vxor.u32 %v1872, 2147483648
    %v1883 = vsel %vm1881, %v1882, %v1873
    %v1884 = vsel %vm1877, %v1880, %v1883
    %v1885 = vsel %vm1874, nan, %v1884
    %v1886 = vand.u32 2147483647, %v540
    %vm1887 = vcmp.le.f32.partialorder %v1886, 0.7853982
    %vm1888 = vcmp.lt.s32.totalorder %v540, 0
    %v1889 = vand.u32 %v540, 2139095040
    %v1890 = vshrl.u32 %v1889, 23
    %v1891 = vsub.s32 %v1890, 127
    %v1892 = vand.u32 2147483647, %v540
    %v1893 = vand.u32 %v1892, 8388607
    %v1894 = vor.u32 %v1893, 8388608
    %v1895 = vsub.s32 0, %v1894
    %v1896 = vadd.s32 %v1891, 1
    %vm1897 = vcmp.gt.s32.totalorder %v1896, 0
    %v1898 = vsel %vm1897, %v1896, 0
    %v1899 = vshrl.u32 %v1898, 5
    %v1900 = vand.u32 %v1898, 31
    %v1901 = vsub.s32 32, %v1900
    %v1902 = vshrl.u32 683565275, %v1901
    %v1903 = vshll.u32 683565275, %v1900
    %v1904 = vshrl.u32 2475754826, %v1901
    %v1905 = vor.u32 %v1903, %v1904
    %v1906 = vshll.u32 2475754826, %v1900
    %v1907 = vshrl.u32 2131351028, %v1901
    %v1908 = vor.u32 %v1906, %v1907
    %v1909 = vshll.u32 2131351028, %v1900
    %v1910 = vshrl.u32 2102212464, %v1901
    %v1911 = vor.u32 %v1909, %v1910
    %v1912 = vshll.u32 2102212464, %v1900
    %v1913 = vshrl.u32 920167782, %v1901
    %v1914 = vor.u32 %v1912, %v1913
    %v1915 = vshll.u32 920167782, %v1900
    %v1916 = vshrl.u32 1326507024, %v1901
    %v1917 = vor.u32 %v1915, %v1916
    %vm1918 = vcmp.lt.s32.totalorder %v1899, 1
    %vm1919 = vcmp.lt.s32.totalorder %v1899, 2
    %vm1920 = vcmp.lt.s32.totalorder %v1899, 3
    %vm1921 = vcmp.lt.s32.totalorder %v1899, 4
    %v1922 = vsel %vm1918, %v1902, %v1905
    %v1923 = vsel %vm1921, %v1911, 2102212464
    %v1924 = vsel %vm1920, %v1908, %v1923
    %v1925 = vsel %vm1919, %v1922, %v1924
    %v1926 = vsel %vm1918, %v1905, %v1908
    %v1927 = vsel %vm1921, %v1914, 920167782
    %v1928 = vsel %vm1920, %v1911, %v1927
    %v1929 = vsel %vm1919, %v1926, %v1928
    %v1930 = vsel %vm1918, %v1908, %v1911
    %v1931 = vsel %vm1921, %v1917, 1326507024
    %v1932 = vsel %vm1920, %v1914, %v1931
    %v1933 = vsel %vm1919, %v1930, %v1932
    %v1934 = vshll.u32 %v1894, 8
    %v1935 = vmul.u32.u64.compose %v1934, %v1933
    %v1936 = vextract.low.u32 %v1935
    %v1937 = vextract.high.u32 %v1935
    %v1938 = vmul.u32.u64.compose %v1934, %v1929
    %v1939 = vextract.low.u32 %v1938
    %v1940 = vextract.high.u32 %v1938
    %v1941 = vmul.u32 %v1934, %v1925
    %v1942 = vadd.s32 %v1937, %v1939
    %vm1943 = vc.u32 %v1937, %v1939
    %v1944 = vadd.s32 %v1940, 1
    %v1945 = vsel %vm1943, %v1944, %v1940
    %v1946 = vadd.s32 %v1941, %v1945
    %v1947 = vadd.s32 %v1946, 536870912
    %v1948 = vshrl.u32 %v1947, 30
    %v1949 = vshll.u32 %v1948, 30
    %v1950 = vsub.s32 %v1946, %v1949
    %vm1951 = vcmp.lt.s32.totalorder %v1950, 0
    %v1952 = vsub.s32 0, %v1950
    %v1953 = vsel %vm1951, %v1952, %v1950
    %v1954 = vclz %v1953
    %v1955 = vsub.s32 %v1954, 2
    %vm1956 = vcmp.gt.s32.totalorder 0, %v1955
    %v1957 = vsel %vm1956, 0, %v1955
    %v1958 = vsub.s32 32, %v1957
    %v1959 = vshll.u32 %v1950, %v1957
    %v1960 = vshrl.u32 %v1942, %v1958
    %v1961 = vor.u32 %v1959, %v1960
    %v1962 = vsub.s32 4294967266, %v1957
    %v1963 = vadd.s32 %v1962, 127
    %v1964 = vshll.u32 %v1963, 23
    %v1965 = vor.u32 4788187, %v1964
    %v1966 = vand.u32 2147483647, %v1965
    %v1968 = vcvt.s32.f32 %v1961
    %v1969 = vmul.f32 %v1968, %v1966
    %v1970 = vxor.u32 %v1969, 2147483648
    %v1971 = vsel %vm1888, %v1970, %v1969
    %v1972 = vsub.s32 4, %v1948
    %v1973 = vsel %vm1888, %v1972, %v1948
    %v1974 = vsel %vm1887, %v540, %v1971
    %v1975 = vsel %vm1887, 0, %v1973
    %v1976 = vcosq.f32.pop %v1974
    %v1977 = vsinq.f32.pop %v1974
    %vm1978 = vweird.f32 %v540
    %v1979 = vadd.s32 %v1975, 3
    %v1980 = vand.u32 %v1979, 3
    %vm1981 = vcmp.lt.s32.totalorder %v1980, 2
    %vm1982 = vcmp.eq.s32.totalorder %v1980, 0
    %v1983 = vxor.u32 %v1977, 2147483648
    %v1984 = vsel %vm1982, %v1976, %v1983
    %vm1985 = vcmp.eq.s32.totalorder %v1980, 2
    %v1986 = vxor.u32 %v1976, 2147483648
    %v1987 = vsel %vm1985, %v1986, %v1977
    %v1988 = vsel %vm1981, %v1984, %v1987
    %v1989 = vsel %vm1978, nan, %v1988
    %v1990 = vand.u32 2147483647, %v545
    %vm1991 = vcmp.le.f32.partialorder %v1990, 0.7853982
    %vm1992 = vcmp.lt.s32.totalorder %v545, 0
    %v1993 = vand.u32 %v545, 2139095040
    %v1994 = vshrl.u32 %v1993, 23
    %v1995 = vsub.s32 %v1994, 127
    %v1996 = vand.u32 2147483647, %v545
    %v1997 = vand.u32 %v1996, 8388607
    %v1998 = vor.u32 %v1997, 8388608
    %v1999 = vsub.s32 0, %v1998
    %v2000 = vadd.s32 %v1995, 1
    %vm2001 = vcmp.gt.s32.totalorder %v2000, 0
    %v2002 = vsel %vm2001, %v2000, 0
    %v2003 = vshrl.u32 %v2002, 5
    %v2004 = vand.u32 %v2002, 31
    %v2005 = vsub.s32 32, %v2004
    %v2006 = vshrl.u32 683565275, %v2005
    %v2007 = vshll.u32 683565275, %v2004
    %v2008 = vshrl.u32 2475754826, %v2005
    %v2009 = vor.u32 %v2007, %v2008
    %v2010 = vshll.u32 2475754826, %v2004
    %v2011 = vshrl.u32 2131351028, %v2005
    %v2012 = vor.u32 %v2010, %v2011
    %v2013 = vshll.u32 2131351028, %v2004
    %v2014 = vshrl.u32 2102212464, %v2005
    %v2015 = vor.u32 %v2013, %v2014
    %v2016 = vshll.u32 2102212464, %v2004
    %v2017 = vshrl.u32 920167782, %v2005
    %v2018 = vor.u32 %v2016, %v2017
    %v2019 = vshll.u32 920167782, %v2004
    %v2020 = vshrl.u32 1326507024, %v2005
    %v2021 = vor.u32 %v2019, %v2020
    %vm2022 = vcmp.lt.s32.totalorder %v2003, 1
    %vm2023 = vcmp.lt.s32.totalorder %v2003, 2
    %vm2024 = vcmp.lt.s32.totalorder %v2003, 3
    %vm2025 = vcmp.lt.s32.totalorder %v2003, 4
    %v2026 = vsel %vm2022, %v2006, %v2009
    %v2027 = vsel %vm2025, %v2015, 2102212464
    %v2028 = vsel %vm2024, %v2012, %v2027
    %v2029 = vsel %vm2023, %v2026, %v2028
    %v2030 = vsel %vm2022, %v2009, %v2012
    %v2031 = vsel %vm2025, %v2018, 920167782
    %v2032 = vsel %vm2024, %v2015, %v2031
    %v2033 = vsel %vm2023, %v2030, %v2032
    %v2034 = vsel %vm2022, %v2012, %v2015
    %v2035 = vsel %vm2025, %v2021, 1326507024
    %v2036 = vsel %vm2024, %v2018, %v2035
    %v2037 = vsel %vm2023, %v2034, %v2036
    %v2038 = vshll.u32 %v1998, 8
    %v2039 = vmul.u32.u64.compose %v2038, %v2037
    %v2040 = vextract.low.u32 %v2039
    %v2041 = vextract.high.u32 %v2039
    %v2042 = vmul.u32.u64.compose %v2038, %v2033
    %v2043 = vextract.low.u32 %v2042
    %v2044 = vextract.high.u32 %v2042
    %v2045 = vmul.u32 %v2038, %v2029
    %v2046 = vadd.s32 %v2041, %v2043
    %vm2047 = vc.u32 %v2041, %v2043
    %v2048 = vadd.s32 %v2044, 1
    %v2049 = vsel %vm2047, %v2048, %v2044
    %v2050 = vadd.s32 %v2045, %v2049
    %v2051 = vadd.s32 %v2050, 536870912
    %v2052 = vshrl.u32 %v2051, 30
    %v2053 = vshll.u32 %v2052, 30
    %v2054 = vsub.s32 %v2050, %v2053
    %vm2055 = vcmp.lt.s32.totalorder %v2054, 0
    %v2056 = vsub.s32 0, %v2054
    %v2057 = vsel %vm2055, %v2056, %v2054
    %v2058 = vclz %v2057
    %v2059 = vsub.s32 %v2058, 2
    %vm2060 = vcmp.gt.s32.totalorder 0, %v2059
    %v2061 = vsel %vm2060, 0, %v2059
    %v2062 = vsub.s32 32, %v2061
    %v2063 = vshll.u32 %v2054, %v2061
    %v2064 = vshrl.u32 %v2046, %v2062
    %v2065 = vor.u32 %v2063, %v2064
    %v2066 = vsub.s32 4294967266, %v2061
    %v2067 = vadd.s32 %v2066, 127
    %v2068 = vshll.u32 %v2067, 23
    %v2069 = vor.u32 4788187, %v2068
    %v2070 = vand.u32 2147483647, %v2069
    %v2072 = vcvt.s32.f32 %v2065
    %v2073 = vmul.f32 %v2072, %v2070
    %v2074 = vxor.u32 %v2073, 2147483648
    %v2075 = vsel %vm1992, %v2074, %v2073
    %v2076 = vsub.s32 4, %v2052
    %v2077 = vsel %vm1992, %v2076, %v2052
    %v2078 = vsel %vm1991, %v545, %v2075
    %v2079 = vsel %vm1991, 0, %v2077
    %v2080 = vcosq.f32.pop %v2078
    %v2081 = vsinq.f32.pop %v2078
    %vm2082 = vweird.f32 %v545
    %v2083 = vadd.s32 %v2079, 3
    %v2084 = vand.u32 %v2083, 3
    %vm2085 = vcmp.lt.s32.totalorder %v2084, 2
    %vm2086 = vcmp.eq.s32.totalorder %v2084, 0
    %v2087 = vxor.u32 %v2081, 2147483648
    %v2088 = vsel %vm2086, %v2080, %v2087
    %vm2089 = vcmp.eq.s32.totalorder %v2084, 2
    %v2090 = vxor.u32 %v2080, 2147483648
    %v2091 = vsel %vm2089, %v2090, %v2081
    %v2092 = vsel %vm2085, %v2088, %v2091
    %v2093 = vsel %vm2082, nan, %v2092
    %v2094 = vand.u32 2147483647, %v550
    %vm2095 = vcmp.le.f32.partialorder %v2094, 0.7853982
    %vm2096 = vcmp.lt.s32.totalorder %v550, 0
    %v2097 = vand.u32 %v550, 2139095040
    %v2098 = vshrl.u32 %v2097, 23
    %v2099 = vsub.s32 %v2098, 127
    %v2100 = vand.u32 2147483647, %v550
    %v2101 = vand.u32 %v2100, 8388607
    %v2102 = vor.u32 %v2101, 8388608
    %v2103 = vsub.s32 0, %v2102
    %v2104 = vadd.s32 %v2099, 1
    %vm2105 = vcmp.gt.s32.totalorder %v2104, 0
    %v2106 = vsel %vm2105, %v2104, 0
    %v2107 = vshrl.u32 %v2106, 5
    %v2108 = vand.u32 %v2106, 31
    %v2109 = vsub.s32 32, %v2108
    %v2110 = vshrl.u32 683565275, %v2109
    %v2111 = vshll.u32 683565275, %v2108
    %v2112 = vshrl.u32 2475754826, %v2109
    %v2113 = vor.u32 %v2111, %v2112
    %v2114 = vshll.u32 2475754826, %v2108
    %v2115 = vshrl.u32 2131351028, %v2109
    %v2116 = vor.u32 %v2114, %v2115
    %v2117 = vshll.u32 2131351028, %v2108
    %v2118 = vshrl.u32 2102212464, %v2109
    %v2119 = vor.u32 %v2117, %v2118
    %v2120 = vshll.u32 2102212464, %v2108
    %v2121 = vshrl.u32 920167782, %v2109
    %v2122 = vor.u32 %v2120, %v2121
    %v2123 = vshll.u32 920167782, %v2108
    %v2124 = vshrl.u32 1326507024, %v2109
    %v2125 = vor.u32 %v2123, %v2124
    %vm2126 = vcmp.lt.s32.totalorder %v2107, 1
    %vm2127 = vcmp.lt.s32.totalorder %v2107, 2
    %vm2128 = vcmp.lt.s32.totalorder %v2107, 3
    %vm2129 = vcmp.lt.s32.totalorder %v2107, 4
    %v2130 = vsel %vm2126, %v2110, %v2113
    %v2131 = vsel %vm2129, %v2119, 2102212464
    %v2132 = vsel %vm2128, %v2116, %v2131
    %v2133 = vsel %vm2127, %v2130, %v2132
    %v2134 = vsel %vm2126, %v2113, %v2116
    %v2135 = vsel %vm2129, %v2122, 920167782
    %v2136 = vsel %vm2128, %v2119, %v2135
    %v2137 = vsel %vm2127, %v2134, %v2136
    %v2138 = vsel %vm2126, %v2116, %v2119
    %v2139 = vsel %vm2129, %v2125, 1326507024
    %v2140 = vsel %vm2128, %v2122, %v2139
    %v2141 = vsel %vm2127, %v2138, %v2140
    %v2142 = vshll.u32 %v2102, 8
    %v2143 = vmul.u32.u64.compose %v2142, %v2141
    %v2144 = vextract.low.u32 %v2143
    %v2145 = vextract.high.u32 %v2143
    %v2146 = vmul.u32.u64.compose %v2142, %v2137
    %v2147 = vextract.low.u32 %v2146
    %v2148 = vextract.high.u32 %v2146
    %v2149 = vmul.u32 %v2142, %v2133
    %v2150 = vadd.s32 %v2145, %v2147
    %vm2151 = vc.u32 %v2145, %v2147
    %v2152 = vadd.s32 %v2148, 1
    %v2153 = vsel %vm2151, %v2152, %v2148
    %v2154 = vadd.s32 %v2149, %v2153
    %v2155 = vadd.s32 %v2154, 536870912
    %v2156 = vshrl.u32 %v2155, 30
    %v2157 = vshll.u32 %v2156, 30
    %v2158 = vsub.s32 %v2154, %v2157
    %vm2159 = vcmp.lt.s32.totalorder %v2158, 0
    %v2160 = vsub.s32 0, %v2158
    %v2161 = vsel %vm2159, %v2160, %v2158
    %v2162 = vclz %v2161
    %v2163 = vsub.s32 %v2162, 2
    %vm2164 = vcmp.gt.s32.totalorder 0, %v2163
    %v2165 = vsel %vm2164, 0, %v2163
    %v2166 = vsub.s32 32, %v2165
    %v2167 = vshll.u32 %v2158, %v2165
    %v2168 = vshrl.u32 %v2150, %v2166
    %v2169 = vor.u32 %v2167, %v2168
    %v2170 = vsub.s32 4294967266, %v2165
    %v2171 = vadd.s32 %v2170, 127
    %v2172 = vshll.u32 %v2171, 23
    %v2173 = vor.u32 4788187, %v2172
    %v2174 = vand.u32 2147483647, %v2173
    %v2176 = vcvt.s32.f32 %v2169
    %v2177 = vmul.f32 %v2176, %v2174
    %v2178 = vxor.u32 %v2177, 2147483648
    %v2179 = vsel %vm2096, %v2178, %v2177
    %v2180 = vsub.s32 4, %v2156
    %v2181 = vsel %vm2096, %v2180, %v2156
    %v2182 = vsel %vm2095, %v550, %v2179
    %v2183 = vsel %vm2095, 0, %v2181
    %v2184 = vcosq.f32.pop %v2182
    %v2185 = vsinq.f32.pop %v2182
    %vm2186 = vweird.f32 %v550
    %v2187 = vadd.s32 %v2183, 3
    %v2188 = vand.u32 %v2187, 3
    %vm2189 = vcmp.lt.s32.totalorder %v2188, 2
    %vm2190 = vcmp.eq.s32.totalorder %v2188, 0
    %v2191 = vxor.u32 %v2185, 2147483648
    %v2192 = vsel %vm2190, %v2184, %v2191
    %vm2193 = vcmp.eq.s32.totalorder %v2188, 2
    %v2194 = vxor.u32 %v2184, 2147483648
    %v2195 = vsel %vm2193, %v2194, %v2185
    %v2196 = vsel %vm2189, %v2192, %v2195
    %v2197 = vsel %vm2186, nan, %v2196
    %v2198 = vand.u32 2147483647, %v555
    %vm2199 = vcmp.le.f32.partialorder %v2198, 0.7853982
    %vm2200 = vcmp.lt.s32.totalorder %v555, 0
    %v2201 = vand.u32 %v555, 2139095040
    %v2202 = vshrl.u32 %v2201, 23
    %v2203 = vsub.s32 %v2202, 127
    %v2204 = vand.u32 2147483647, %v555
    %v2205 = vand.u32 %v2204, 8388607
    %v2206 = vor.u32 %v2205, 8388608
    %v2207 = vsub.s32 0, %v2206
    %v2208 = vadd.s32 %v2203, 1
    %vm2209 = vcmp.gt.s32.totalorder %v2208, 0
    %v2210 = vsel %vm2209, %v2208, 0
    %v2211 = vshrl.u32 %v2210, 5
    %v2212 = vand.u32 %v2210, 31
    %v2213 = vsub.s32 32, %v2212
    %v2214 = vshrl.u32 683565275, %v2213
    %v2215 = vshll.u32 683565275, %v2212
    %v2216 = vshrl.u32 2475754826, %v2213
    %v2217 = vor.u32 %v2215, %v2216
    %v2218 = vshll.u32 2475754826, %v2212
    %v2219 = vshrl.u32 2131351028, %v2213
    %v2220 = vor.u32 %v2218, %v2219
    %v2221 = vshll.u32 2131351028, %v2212
    %v2222 = vshrl.u32 2102212464, %v2213
    %v2223 = vor.u32 %v2221, %v2222
    %v2224 = vshll.u32 2102212464, %v2212
    %v2225 = vshrl.u32 920167782, %v2213
    %v2226 = vor.u32 %v2224, %v2225
    %v2227 = vshll.u32 920167782, %v2212
    %v2228 = vshrl.u32 1326507024, %v2213
    %v2229 = vor.u32 %v2227, %v2228
    %vm2230 = vcmp.lt.s32.totalorder %v2211, 1
    %vm2231 = vcmp.lt.s32.totalorder %v2211, 2
    %vm2232 = vcmp.lt.s32.totalorder %v2211, 3
    %vm2233 = vcmp.lt.s32.totalorder %v2211, 4
    %v2234 = vsel %vm2230, %v2214, %v2217
    %v2235 = vsel %vm2233, %v2223, 2102212464
    %v2236 = vsel %vm2232, %v2220, %v2235
    %v2237 = vsel %vm2231, %v2234, %v2236
    %v2238 = vsel %vm2230, %v2217, %v2220
    %v2239 = vsel %vm2233, %v2226, 920167782
    %v2240 = vsel %vm2232, %v2223, %v2239
    %v2241 = vsel %vm2231, %v2238, %v2240
    %v2242 = vsel %vm2230, %v2220, %v2223
    %v2243 = vsel %vm2233, %v2229, 1326507024
    %v2244 = vsel %vm2232, %v2226, %v2243
    %v2245 = vsel %vm2231, %v2242, %v2244
    %v2246 = vshll.u32 %v2206, 8
    %v2247 = vmul.u32.u64.compose %v2246, %v2245
    %v2248 = vextract.low.u32 %v2247
    %v2249 = vextract.high.u32 %v2247
    %v2250 = vmul.u32.u64.compose %v2246, %v2241
    %v2251 = vextract.low.u32 %v2250
    %v2252 = vextract.high.u32 %v2250
    %v2253 = vmul.u32 %v2246, %v2237
    %v2254 = vadd.s32 %v2249, %v2251
    %vm2255 = vc.u32 %v2249, %v2251
    %v2256 = vadd.s32 %v2252, 1
    %v2257 = vsel %vm2255, %v2256, %v2252
    %v2258 = vadd.s32 %v2253, %v2257
    %v2259 = vadd.s32 %v2258, 536870912
    %v2260 = vshrl.u32 %v2259, 30
    %v2261 = vshll.u32 %v2260, 30
    %v2262 = vsub.s32 %v2258, %v2261
    %vm2263 = vcmp.lt.s32.totalorder %v2262, 0
    %v2264 = vsub.s32 0, %v2262
    %v2265 = vsel %vm2263, %v2264, %v2262
    %v2266 = vclz %v2265
    %v2267 = vsub.s32 %v2266, 2
    %vm2268 = vcmp.gt.s32.totalorder 0, %v2267
    %v2269 = vsel %vm2268, 0, %v2267
    %v2270 = vsub.s32 32, %v2269
    %v2271 = vshll.u32 %v2262, %v2269
    %v2272 = vshrl.u32 %v2254, %v2270
    %v2273 = vor.u32 %v2271, %v2272
    %v2274 = vsub.s32 4294967266, %v2269
    %v2275 = vadd.s32 %v2274, 127
    %v2276 = vshll.u32 %v2275, 23
    %v2277 = vor.u32 4788187, %v2276
    %v2278 = vand.u32 2147483647, %v2277
    %v2280 = vcvt.s32.f32 %v2273
    %v2281 = vmul.f32 %v2280, %v2278
    %v2282 = vxor.u32 %v2281, 2147483648
    %v2283 = vsel %vm2200, %v2282, %v2281
    %v2284 = vsub.s32 4, %v2260
    %v2285 = vsel %vm2200, %v2284, %v2260
    %v2286 = vsel %vm2199, %v555, %v2283
    %v2287 = vsel %vm2199, 0, %v2285
    %v2288 = vcosq.f32.pop %v2286
    %v2289 = vsinq.f32.pop %v2286
    %vm2290 = vweird.f32 %v555
    %v2291 = vadd.s32 %v2287, 3
    %v2292 = vand.u32 %v2291, 3
    %vm2293 = vcmp.lt.s32.totalorder %v2292, 2
    %vm2294 = vcmp.eq.s32.totalorder %v2292, 0
    %v2295 = vxor.u32 %v2289, 2147483648
    %v2296 = vsel %vm2294, %v2288, %v2295
    %vm2297 = vcmp.eq.s32.totalorder %v2292, 2
    %v2298 = vxor.u32 %v2288, 2147483648
    %v2299 = vsel %vm2297, %v2298, %v2289
    %v2300 = vsel %vm2293, %v2296, %v2299
    %v2301 = vsel %vm2290, nan, %v2300
    %v2302 = vand.u32 2147483647, %v560
    %vm2303 = vcmp.le.f32.partialorder %v2302, 0.7853982
    %vm2304 = vcmp.lt.s32.totalorder %v560, 0
    %v2305 = vand.u32 %v560, 2139095040
    %v2306 = vshrl.u32 %v2305, 23
    %v2307 = vsub.s32 %v2306, 127
    %v2308 = vand.u32 2147483647, %v560
    %v2309 = vand.u32 %v2308, 8388607
    %v2310 = vor.u32 %v2309, 8388608
    %v2311 = vsub.s32 0, %v2310
    %v2312 = vadd.s32 %v2307, 1
    %vm2313 = vcmp.gt.s32.totalorder %v2312, 0
    %v2314 = vsel %vm2313, %v2312, 0
    %v2315 = vshrl.u32 %v2314, 5
    %v2316 = vand.u32 %v2314, 31
    %v2317 = vsub.s32 32, %v2316
    %v2318 = vshrl.u32 683565275, %v2317
    %v2319 = vshll.u32 683565275, %v2316
    %v2320 = vshrl.u32 2475754826, %v2317
    %v2321 = vor.u32 %v2319, %v2320
    %v2322 = vshll.u32 2475754826, %v2316
    %v2323 = vshrl.u32 2131351028, %v2317
    %v2324 = vor.u32 %v2322, %v2323
    %v2325 = vshll.u32 2131351028, %v2316
    %v2326 = vshrl.u32 2102212464, %v2317
    %v2327 = vor.u32 %v2325, %v2326
    %v2328 = vshll.u32 2102212464, %v2316
    %v2329 = vshrl.u32 920167782, %v2317
    %v2330 = vor.u32 %v2328, %v2329
    %v2331 = vshll.u32 920167782, %v2316
    %v2332 = vshrl.u32 1326507024, %v2317
    %v2333 = vor.u32 %v2331, %v2332
    %vm2334 = vcmp.lt.s32.totalorder %v2315, 1
    %vm2335 = vcmp.lt.s32.totalorder %v2315, 2
    %vm2336 = vcmp.lt.s32.totalorder %v2315, 3
    %vm2337 = vcmp.lt.s32.totalorder %v2315, 4
    %v2338 = vsel %vm2334, %v2318, %v2321
    %v2339 = vsel %vm2337, %v2327, 2102212464
    %v2340 = vsel %vm2336, %v2324, %v2339
    %v2341 = vsel %vm2335, %v2338, %v2340
    %v2342 = vsel %vm2334, %v2321, %v2324
    %v2343 = vsel %vm2337, %v2330, 920167782
    %v2344 = vsel %vm2336, %v2327, %v2343
    %v2345 = vsel %vm2335, %v2342, %v2344
    %v2346 = vsel %vm2334, %v2324, %v2327
    %v2347 = vsel %vm2337, %v2333, 1326507024
    %v2348 = vsel %vm2336, %v2330, %v2347
    %v2349 = vsel %vm2335, %v2346, %v2348
    %v2350 = vshll.u32 %v2310, 8
    %v2351 = vmul.u32.u64.compose %v2350, %v2349
    %v2352 = vextract.low.u32 %v2351
    %v2353 = vextract.high.u32 %v2351
    %v2354 = vmul.u32.u64.compose %v2350, %v2345
    %v2355 = vextract.low.u32 %v2354
    %v2356 = vextract.high.u32 %v2354
    %v2357 = vmul.u32 %v2350, %v2341
    %v2358 = vadd.s32 %v2353, %v2355
    %vm2359 = vc.u32 %v2353, %v2355
    %v2360 = vadd.s32 %v2356, 1
    %v2361 = vsel %vm2359, %v2360, %v2356
    %v2362 = vadd.s32 %v2357, %v2361
    %v2363 = vadd.s32 %v2362, 536870912
    %v2364 = vshrl.u32 %v2363, 30
    %v2365 = vshll.u32 %v2364, 30
    %v2366 = vsub.s32 %v2362, %v2365
    %vm2367 = vcmp.lt.s32.totalorder %v2366, 0
    %v2368 = vsub.s32 0, %v2366
    %v2369 = vsel %vm2367, %v2368, %v2366
    %v2370 = vclz %v2369
    %v2371 = vsub.s32 %v2370, 2
    %vm2372 = vcmp.gt.s32.totalorder 0, %v2371
    %v2373 = vsel %vm2372, 0, %v2371
    %v2374 = vsub.s32 32, %v2373
    %v2375 = vshll.u32 %v2366, %v2373
    %v2376 = vshrl.u32 %v2358, %v2374
    %v2377 = vor.u32 %v2375, %v2376
    %v2378 = vsub.s32 4294967266, %v2373
    %v2379 = vadd.s32 %v2378, 127
    %v2380 = vshll.u32 %v2379, 23
    %v2381 = vor.u32 4788187, %v2380
    %v2382 = vand.u32 2147483647, %v2381
    %v2384 = vcvt.s32.f32 %v2377
    %v2385 = vmul.f32 %v2384, %v2382
    %v2386 = vxor.u32 %v2385, 2147483648
    %v2387 = vsel %vm2304, %v2386, %v2385
    %v2388 = vsub.s32 4, %v2364
    %v2389 = vsel %vm2304, %v2388, %v2364
    %v2390 = vsel %vm2303, %v560, %v2387
    %v2391 = vsel %vm2303, 0, %v2389
    %v2392 = vcosq.f32.pop %v2390
    %v2393 = vsinq.f32.pop %v2390
    %vm2394 = vweird.f32 %v560
    %v2395 = vadd.s32 %v2391, 3
    %v2396 = vand.u32 %v2395, 3
    %vm2397 = vcmp.lt.s32.totalorder %v2396, 2
    %vm2398 = vcmp.eq.s32.totalorder %v2396, 0
    %v2399 = vxor.u32 %v2393, 2147483648
    %v2400 = vsel %vm2398, %v2392, %v2399
    %vm2401 = vcmp.eq.s32.totalorder %v2396, 2
    %v2402 = vxor.u32 %v2392, 2147483648
    %v2403 = vsel %vm2401, %v2402, %v2393
    %v2404 = vsel %vm2397, %v2400, %v2403
    %v2405 = vsel %vm2394, nan, %v2404
    %v2406 = vand.u32 2147483647, %v565
    %vm2407 = vcmp.le.f32.partialorder %v2406, 0.7853982
    %vm2408 = vcmp.lt.s32.totalorder %v565, 0
    %v2409 = vand.u32 %v565, 2139095040
    %v2410 = vshrl.u32 %v2409, 23
    %v2411 = vsub.s32 %v2410, 127
    %v2412 = vand.u32 2147483647, %v565
    %v2413 = vand.u32 %v2412, 8388607
    %v2414 = vor.u32 %v2413, 8388608
    %v2415 = vsub.s32 0, %v2414
    %v2416 = vadd.s32 %v2411, 1
    %vm2417 = vcmp.gt.s32.totalorder %v2416, 0
    %v2418 = vsel %vm2417, %v2416, 0
    %v2419 = vshrl.u32 %v2418, 5
    %v2420 = vand.u32 %v2418, 31
    %v2421 = vsub.s32 32, %v2420
    %v2422 = vshrl.u32 683565275, %v2421
    %v2423 = vshll.u32 683565275, %v2420
    %v2424 = vshrl.u32 2475754826, %v2421
    %v2425 = vor.u32 %v2423, %v2424
    %v2426 = vshll.u32 2475754826, %v2420
    %v2427 = vshrl.u32 2131351028, %v2421
    %v2428 = vor.u32 %v2426, %v2427
    %v2429 = vshll.u32 2131351028, %v2420
    %v2430 = vshrl.u32 2102212464, %v2421
    %v2431 = vor.u32 %v2429, %v2430
    %v2432 = vshll.u32 2102212464, %v2420
    %v2433 = vshrl.u32 920167782, %v2421
    %v2434 = vor.u32 %v2432, %v2433
    %v2435 = vshll.u32 920167782, %v2420
    %v2436 = vshrl.u32 1326507024, %v2421
    %v2437 = vor.u32 %v2435, %v2436
    %vm2438 = vcmp.lt.s32.totalorder %v2419, 1
    %vm2439 = vcmp.lt.s32.totalorder %v2419, 2
    %vm2440 = vcmp.lt.s32.totalorder %v2419, 3
    %vm2441 = vcmp.lt.s32.totalorder %v2419, 4
    %v2442 = vsel %vm2438, %v2422, %v2425
    %v2443 = vsel %vm2441, %v2431, 2102212464
    %v2444 = vsel %vm2440, %v2428, %v2443
    %v2445 = vsel %vm2439, %v2442, %v2444
    %v2446 = vsel %vm2438, %v2425, %v2428
    %v2447 = vsel %vm2441, %v2434, 920167782
    %v2448 = vsel %vm2440, %v2431, %v2447
    %v2449 = vsel %vm2439, %v2446, %v2448
    %v2450 = vsel %vm2438, %v2428, %v2431
    %v2451 = vsel %vm2441, %v2437, 1326507024
    %v2452 = vsel %vm2440, %v2434, %v2451
    %v2453 = vsel %vm2439, %v2450, %v2452
    %v2454 = vshll.u32 %v2414, 8
    %v2455 = vmul.u32.u64.compose %v2454, %v2453
    %v2456 = vextract.low.u32 %v2455
    %v2457 = vextract.high.u32 %v2455
    %v2458 = vmul.u32.u64.compose %v2454, %v2449
    %v2459 = vextract.low.u32 %v2458
    %v2460 = vextract.high.u32 %v2458
    %v2461 = vmul.u32 %v2454, %v2445
    %v2462 = vadd.s32 %v2457, %v2459
    %vm2463 = vc.u32 %v2457, %v2459
    %v2464 = vadd.s32 %v2460, 1
    %v2465 = vsel %vm2463, %v2464, %v2460
    %v2466 = vadd.s32 %v2461, %v2465
    %v2467 = vadd.s32 %v2466, 536870912
    %v2468 = vshrl.u32 %v2467, 30
    %v2469 = vshll.u32 %v2468, 30
    %v2470 = vsub.s32 %v2466, %v2469
    %vm2471 = vcmp.lt.s32.totalorder %v2470, 0
    %v2472 = vsub.s32 0, %v2470
    %v2473 = vsel %vm2471, %v2472, %v2470
    %v2474 = vclz %v2473
    %v2475 = vsub.s32 %v2474, 2
    %vm2476 = vcmp.gt.s32.totalorder 0, %v2475
    %v2477 = vsel %vm2476, 0, %v2475
    %v2478 = vsub.s32 32, %v2477
    %v2479 = vshll.u32 %v2470, %v2477
    %v2480 = vshrl.u32 %v2462, %v2478
    %v2481 = vor.u32 %v2479, %v2480
    %v2482 = vsub.s32 4294967266, %v2477
    %v2483 = vadd.s32 %v2482, 127
    %v2484 = vshll.u32 %v2483, 23
    %v2485 = vor.u32 4788187, %v2484
    %v2486 = vand.u32 2147483647, %v2485
    %v2488 = vcvt.s32.f32 %v2481
    %v2489 = vmul.f32 %v2488, %v2486
    %v2490 = vxor.u32 %v2489, 2147483648
    %v2491 = vsel %vm2408, %v2490, %v2489
    %v2492 = vsub.s32 4, %v2468
    %v2493 = vsel %vm2408, %v2492, %v2468
    %v2494 = vsel %vm2407, %v565, %v2491
    %v2495 = vsel %vm2407, 0, %v2493
    %v2496 = vcosq.f32.pop %v2494
    %v2497 = vsinq.f32.pop %v2494
    %vm2498 = vweird.f32 %v565
    %v2499 = vadd.s32 %v2495, 3
    %v2500 = vand.u32 %v2499, 3
    %vm2501 = vcmp.lt.s32.totalorder %v2500, 2
    %vm2502 = vcmp.eq.s32.totalorder %v2500, 0
    %v2503 = vxor.u32 %v2497, 2147483648
    %v2504 = vsel %vm2502, %v2496, %v2503
    %vm2505 = vcmp.eq.s32.totalorder %v2500, 2
    %v2506 = vxor.u32 %v2496, 2147483648
    %v2507 = vsel %vm2505, %v2506, %v2497
    %v2508 = vsel %vm2501, %v2504, %v2507
    %v2509 = vsel %vm2498, nan, %v2508
    %v2510 = vand.u32 2147483647, %v570
    %vm2511 = vcmp.le.f32.partialorder %v2510, 0.7853982
    %vm2512 = vcmp.lt.s32.totalorder %v570, 0
    %v2513 = vand.u32 %v570, 2139095040
    %v2514 = vshrl.u32 %v2513, 23
    %v2515 = vsub.s32 %v2514, 127
    %v2516 = vand.u32 2147483647, %v570
    %v2517 = vand.u32 %v2516, 8388607
    %v2518 = vor.u32 %v2517, 8388608
    %v2519 = vsub.s32 0, %v2518
    %v2520 = vadd.s32 %v2515, 1
    %vm2521 = vcmp.gt.s32.totalorder %v2520, 0
    %v2522 = vsel %vm2521, %v2520, 0
    %v2523 = vshrl.u32 %v2522, 5
    %v2524 = vand.u32 %v2522, 31
    %v2525 = vsub.s32 32, %v2524
    %v2526 = vshrl.u32 683565275, %v2525
    %v2527 = vshll.u32 683565275, %v2524
    %v2528 = vshrl.u32 2475754826, %v2525
    %v2529 = vor.u32 %v2527, %v2528
    %v2530 = vshll.u32 2475754826, %v2524
    %v2531 = vshrl.u32 2131351028, %v2525
    %v2532 = vor.u32 %v2530, %v2531
    %v2533 = vshll.u32 2131351028, %v2524
    %v2534 = vshrl.u32 2102212464, %v2525
    %v2535 = vor.u32 %v2533, %v2534
    %v2536 = vshll.u32 2102212464, %v2524
    %v2537 = vshrl.u32 920167782, %v2525
    %v2538 = vor.u32 %v2536, %v2537
    %v2539 = vshll.u32 920167782, %v2524
    %v2540 = vshrl.u32 1326507024, %v2525
    %v2541 = vor.u32 %v2539, %v2540
    %vm2542 = vcmp.lt.s32.totalorder %v2523, 1
    %vm2543 = vcmp.lt.s32.totalorder %v2523, 2
    %vm2544 = vcmp.lt.s32.totalorder %v2523, 3
    %vm2545 = vcmp.lt.s32.totalorder %v2523, 4
    %v2546 = vsel %vm2542, %v2526, %v2529
    %v2547 = vsel %vm2545, %v2535, 2102212464
    %v2548 = vsel %vm2544, %v2532, %v2547
    %v2549 = vsel %vm2543, %v2546, %v2548
    %v2550 = vsel %vm2542, %v2529, %v2532
    %v2551 = vsel %vm2545, %v2538, 920167782
    %v2552 = vsel %vm2544, %v2535, %v2551
    %v2553 = vsel %vm2543, %v2550, %v2552
    %v2554 = vsel %vm2542, %v2532, %v2535
    %v2555 = vsel %vm2545, %v2541, 1326507024
    %v2556 = vsel %vm2544, %v2538, %v2555
    %v2557 = vsel %vm2543, %v2554, %v2556
    %v2558 = vshll.u32 %v2518, 8
    %v2559 = vmul.u32.u64.compose %v2558, %v2557
    %v2560 = vextract.low.u32 %v2559
    %v2561 = vextract.high.u32 %v2559
    %v2562 = vmul.u32.u64.compose %v2558, %v2553
    %v2563 = vextract.low.u32 %v2562
    %v2564 = vextract.high.u32 %v2562
    %v2565 = vmul.u32 %v2558, %v2549
    %v2566 = vadd.s32 %v2561, %v2563
    %vm2567 = vc.u32 %v2561, %v2563
    %v2568 = vadd.s32 %v2564, 1
    %v2569 = vsel %vm2567, %v2568, %v2564
    %v2570 = vadd.s32 %v2565, %v2569
    %v2571 = vadd.s32 %v2570, 536870912
    %v2572 = vshrl.u32 %v2571, 30
    %v2573 = vshll.u32 %v2572, 30
    %v2574 = vsub.s32 %v2570, %v2573
    %vm2575 = vcmp.lt.s32.totalorder %v2574, 0
    %v2576 = vsub.s32 0, %v2574
    %v2577 = vsel %vm2575, %v2576, %v2574
    %v2578 = vclz %v2577
    %v2579 = vsub.s32 %v2578, 2
    %vm2580 = vcmp.gt.s32.totalorder 0, %v2579
    %v2581 = vsel %vm2580, 0, %v2579
    %v2582 = vsub.s32 32, %v2581
    %v2583 = vshll.u32 %v2574, %v2581
    %v2584 = vshrl.u32 %v2566, %v2582
    %v2585 = vor.u32 %v2583, %v2584
    %v2586 = vsub.s32 4294967266, %v2581
    %v2587 = vadd.s32 %v2586, 127
    %v2588 = vshll.u32 %v2587, 23
    %v2589 = vor.u32 4788187, %v2588
    %v2590 = vand.u32 2147483647, %v2589
    %v2592 = vcvt.s32.f32 %v2585
    %v2593 = vmul.f32 %v2592, %v2590
    %v2594 = vxor.u32 %v2593, 2147483648
    %v2595 = vsel %vm2512, %v2594, %v2593
    %v2596 = vsub.s32 4, %v2572
    %v2597 = vsel %vm2512, %v2596, %v2572
    %v2598 = vsel %vm2511, %v570, %v2595
    %v2599 = vsel %vm2511, 0, %v2597
    %v2600 = vcosq.f32.pop %v2598
    %v2601 = vsinq.f32.pop %v2598
    %vm2602 = vweird.f32 %v570
    %v2603 = vadd.s32 %v2599, 3
    %v2604 = vand.u32 %v2603, 3
    %vm2605 = vcmp.lt.s32.totalorder %v2604, 2
    %vm2606 = vcmp.eq.s32.totalorder %v2604, 0
    %v2607 = vxor.u32 %v2601, 2147483648
    %v2608 = vsel %vm2606, %v2600, %v2607
    %vm2609 = vcmp.eq.s32.totalorder %v2604, 2
    %v2610 = vxor.u32 %v2600, 2147483648
    %v2611 = vsel %vm2609, %v2610, %v2601
    %v2612 = vsel %vm2605, %v2608, %v2611
    %v2613 = vsel %vm2602, nan, %v2612
    %v2614 = vand.u32 2147483647, %v575
    %vm2615 = vcmp.le.f32.partialorder %v2614, 0.7853982
    %vm2616 = vcmp.lt.s32.totalorder %v575, 0
    %v2617 = vand.u32 %v575, 2139095040
    %v2618 = vshrl.u32 %v2617, 23
    %v2619 = vsub.s32 %v2618, 127
    %v2620 = vand.u32 2147483647, %v575
    %v2621 = vand.u32 %v2620, 8388607
    %v2622 = vor.u32 %v2621, 8388608
    %v2623 = vsub.s32 0, %v2622
    %v2624 = vadd.s32 %v2619, 1
    %vm2625 = vcmp.gt.s32.totalorder %v2624, 0
    %v2626 = vsel %vm2625, %v2624, 0
    %v2627 = vshrl.u32 %v2626, 5
    %v2628 = vand.u32 %v2626, 31
    %v2629 = vsub.s32 32, %v2628
    %v2630 = vshrl.u32 683565275, %v2629
    %v2631 = vshll.u32 683565275, %v2628
    %v2632 = vshrl.u32 2475754826, %v2629
    %v2633 = vor.u32 %v2631, %v2632
    %v2634 = vshll.u32 2475754826, %v2628
    %v2635 = vshrl.u32 2131351028, %v2629
    %v2636 = vor.u32 %v2634, %v2635
    %v2637 = vshll.u32 2131351028, %v2628
    %v2638 = vshrl.u32 2102212464, %v2629
    %v2639 = vor.u32 %v2637, %v2638
    %v2640 = vshll.u32 2102212464, %v2628
    %v2641 = vshrl.u32 920167782, %v2629
    %v2642 = vor.u32 %v2640, %v2641
    %v2643 = vshll.u32 920167782, %v2628
    %v2644 = vshrl.u32 1326507024, %v2629
    %v2645 = vor.u32 %v2643, %v2644
    %vm2646 = vcmp.lt.s32.totalorder %v2627, 1
    %vm2647 = vcmp.lt.s32.totalorder %v2627, 2
    %vm2648 = vcmp.lt.s32.totalorder %v2627, 3
    %vm2649 = vcmp.lt.s32.totalorder %v2627, 4
    %v2650 = vsel %vm2646, %v2630, %v2633
    %v2651 = vsel %vm2649, %v2639, 2102212464
    %v2652 = vsel %vm2648, %v2636, %v2651
    %v2653 = vsel %vm2647, %v2650, %v2652
    %v2654 = vsel %vm2646, %v2633, %v2636
    %v2655 = vsel %vm2649, %v2642, 920167782
    %v2656 = vsel %vm2648, %v2639, %v2655
    %v2657 = vsel %vm2647, %v2654, %v2656
    %v2658 = vsel %vm2646, %v2636, %v2639
    %v2659 = vsel %vm2649, %v2645, 1326507024
    %v2660 = vsel %vm2648, %v2642, %v2659
    %v2661 = vsel %vm2647, %v2658, %v2660
    %v2662 = vshll.u32 %v2622, 8
    %v2663 = vmul.u32.u64.compose %v2662, %v2661
    %v2664 = vextract.low.u32 %v2663
    %v2665 = vextract.high.u32 %v2663
    %v2666 = vmul.u32.u64.compose %v2662, %v2657
    %v2667 = vextract.low.u32 %v2666
    %v2668 = vextract.high.u32 %v2666
    %v2669 = vmul.u32 %v2662, %v2653
    %v2670 = vadd.s32 %v2665, %v2667
    %vm2671 = vc.u32 %v2665, %v2667
    %v2672 = vadd.s32 %v2668, 1
    %v2673 = vsel %vm2671, %v2672, %v2668
    %v2674 = vadd.s32 %v2669, %v2673
    %v2675 = vadd.s32 %v2674, 536870912
    %v2676 = vshrl.u32 %v2675, 30
    %v2677 = vshll.u32 %v2676, 30
    %v2678 = vsub.s32 %v2674, %v2677
    %vm2679 = vcmp.lt.s32.totalorder %v2678, 0
    %v2680 = vsub.s32 0, %v2678
    %v2681 = vsel %vm2679, %v2680, %v2678
    %v2682 = vclz %v2681
    %v2683 = vsub.s32 %v2682, 2
    %vm2684 = vcmp.gt.s32.totalorder 0, %v2683
    %v2685 = vsel %vm2684, 0, %v2683
    %v2686 = vsub.s32 32, %v2685
    %v2687 = vshll.u32 %v2678, %v2685
    %v2688 = vshrl.u32 %v2670, %v2686
    %v2689 = vor.u32 %v2687, %v2688
    %v2690 = vsub.s32 4294967266, %v2685
    %v2691 = vadd.s32 %v2690, 127
    %v2692 = vshll.u32 %v2691, 23
    %v2693 = vor.u32 4788187, %v2692
    %v2694 = vand.u32 2147483647, %v2693
    %v2696 = vcvt.s32.f32 %v2689
    %v2697 = vmul.f32 %v2696, %v2694
    %v2698 = vxor.u32 %v2697, 2147483648
    %v2699 = vsel %vm2616, %v2698, %v2697
    %v2700 = vsub.s32 4, %v2676
    %v2701 = vsel %vm2616, %v2700, %v2676
    %v2702 = vsel %vm2615, %v575, %v2699
    %v2703 = vsel %vm2615, 0, %v2701
    %v2704 = vcosq.f32.pop %v2702
    %v2705 = vsinq.f32.pop %v2702
    %vm2706 = vweird.f32 %v575
    %v2707 = vadd.s32 %v2703, 3
    %v2708 = vand.u32 %v2707, 3
    %vm2709 = vcmp.lt.s32.totalorder %v2708, 2
    %vm2710 = vcmp.eq.s32.totalorder %v2708, 0
    %v2711 = vxor.u32 %v2705, 2147483648
    %v2712 = vsel %vm2710, %v2704, %v2711
    %vm2713 = vcmp.eq.s32.totalorder %v2708, 2
    %v2714 = vxor.u32 %v2704, 2147483648
    %v2715 = vsel %vm2713, %v2714, %v2705
    %v2716 = vsel %vm2709, %v2712, %v2715
    %v2717 = vsel %vm2706, nan, %v2716
    %v2718 = vand.u32 2147483647, %v580
    %vm2719 = vcmp.le.f32.partialorder %v2718, 0.7853982
    %vm2720 = vcmp.lt.s32.totalorder %v580, 0
    %v2721 = vand.u32 %v580, 2139095040
    %v2722 = vshrl.u32 %v2721, 23
    %v2723 = vsub.s32 %v2722, 127
    %v2724 = vand.u32 2147483647, %v580
    %v2725 = vand.u32 %v2724, 8388607
    %v2726 = vor.u32 %v2725, 8388608
    %v2727 = vsub.s32 0, %v2726
    %v2728 = vadd.s32 %v2723, 1
    %vm2729 = vcmp.gt.s32.totalorder %v2728, 0
    %v2730 = vsel %vm2729, %v2728, 0
    %v2731 = vshrl.u32 %v2730, 5
    %v2732 = vand.u32 %v2730, 31
    %v2733 = vsub.s32 32, %v2732
    %v2734 = vshrl.u32 683565275, %v2733
    %v2735 = vshll.u32 683565275, %v2732
    %v2736 = vshrl.u32 2475754826, %v2733
    %v2737 = vor.u32 %v2735, %v2736
    %v2738 = vshll.u32 2475754826, %v2732
    %v2739 = vshrl.u32 2131351028, %v2733
    %v2740 = vor.u32 %v2738, %v2739
    %v2741 = vshll.u32 2131351028, %v2732
    %v2742 = vshrl.u32 2102212464, %v2733
    %v2743 = vor.u32 %v2741, %v2742
    %v2744 = vshll.u32 2102212464, %v2732
    %v2745 = vshrl.u32 920167782, %v2733
    %v2746 = vor.u32 %v2744, %v2745
    %v2747 = vshll.u32 920167782, %v2732
    %v2748 = vshrl.u32 1326507024, %v2733
    %v2749 = vor.u32 %v2747, %v2748
    %vm2750 = vcmp.lt.s32.totalorder %v2731, 1
    %vm2751 = vcmp.lt.s32.totalorder %v2731, 2
    %vm2752 = vcmp.lt.s32.totalorder %v2731, 3
    %vm2753 = vcmp.lt.s32.totalorder %v2731, 4
    %v2754 = vsel %vm2750, %v2734, %v2737
    %v2755 = vsel %vm2753, %v2743, 2102212464
    %v2756 = vsel %vm2752, %v2740, %v2755
    %v2757 = vsel %vm2751, %v2754, %v2756
    %v2758 = vsel %vm2750, %v2737, %v2740
    %v2759 = vsel %vm2753, %v2746, 920167782
    %v2760 = vsel %vm2752, %v2743, %v2759
    %v2761 = vsel %vm2751, %v2758, %v2760
    %v2762 = vsel %vm2750, %v2740, %v2743
    %v2763 = vsel %vm2753, %v2749, 1326507024
    %v2764 = vsel %vm2752, %v2746, %v2763
    %v2765 = vsel %vm2751, %v2762, %v2764
    %v2766 = vshll.u32 %v2726, 8
    %v2767 = vmul.u32.u64.compose %v2766, %v2765
    %v2768 = vextract.low.u32 %v2767
    %v2769 = vextract.high.u32 %v2767
    %v2770 = vmul.u32.u64.compose %v2766, %v2761
    %v2771 = vextract.low.u32 %v2770
    %v2772 = vextract.high.u32 %v2770
    %v2773 = vmul.u32 %v2766, %v2757
    %v2774 = vadd.s32 %v2769, %v2771
    %vm2775 = vc.u32 %v2769, %v2771
    %v2776 = vadd.s32 %v2772, 1
    %v2777 = vsel %vm2775, %v2776, %v2772
    %v2778 = vadd.s32 %v2773, %v2777
    %v2779 = vadd.s32 %v2778, 536870912
    %v2780 = vshrl.u32 %v2779, 30
    %v2781 = vshll.u32 %v2780, 30
    %v2782 = vsub.s32 %v2778, %v2781
    %vm2783 = vcmp.lt.s32.totalorder %v2782, 0
    %v2784 = vsub.s32 0, %v2782
    %v2785 = vsel %vm2783, %v2784, %v2782
    %v2786 = vclz %v2785
    %v2787 = vsub.s32 %v2786, 2
    %vm2788 = vcmp.gt.s32.totalorder 0, %v2787
    %v2789 = vsel %vm2788, 0, %v2787
    %v2790 = vsub.s32 32, %v2789
    %v2791 = vshll.u32 %v2782, %v2789
    %v2792 = vshrl.u32 %v2774, %v2790
    %v2793 = vor.u32 %v2791, %v2792
    %v2794 = vsub.s32 4294967266, %v2789
    %v2795 = vadd.s32 %v2794, 127
    %v2796 = vshll.u32 %v2795, 23
    %v2797 = vor.u32 4788187, %v2796
    %v2798 = vand.u32 2147483647, %v2797
    %v2800 = vcvt.s32.f32 %v2793
    %v2801 = vmul.f32 %v2800, %v2798
    %v2802 = vxor.u32 %v2801, 2147483648
    %v2803 = vsel %vm2720, %v2802, %v2801
    %v2804 = vsub.s32 4, %v2780
    %v2805 = vsel %vm2720, %v2804, %v2780
    %v2806 = vsel %vm2719, %v580, %v2803
    %v2807 = vsel %vm2719, 0, %v2805
    %v2808 = vcosq.f32.pop %v2806
    %v2809 = vsinq.f32.pop %v2806
    %vm2810 = vweird.f32 %v580
    %v2811 = vadd.s32 %v2807, 3
    %v2812 = vand.u32 %v2811, 3
    %vm2813 = vcmp.lt.s32.totalorder %v2812, 2
    %vm2814 = vcmp.eq.s32.totalorder %v2812, 0
    %v2815 = vxor.u32 %v2809, 2147483648
    %v2816 = vsel %vm2814, %v2808, %v2815
    %vm2817 = vcmp.eq.s32.totalorder %v2812, 2
    %v2818 = vxor.u32 %v2808, 2147483648
    %v2819 = vsel %vm2817, %v2818, %v2809
    %v2820 = vsel %vm2813, %v2816, %v2819
    %v2821 = vsel %vm2810, nan, %v2820
    %v2822 = vand.u32 2147483647, %v585
    %vm2823 = vcmp.le.f32.partialorder %v2822, 0.7853982
    %vm2824 = vcmp.lt.s32.totalorder %v585, 0
    %v2825 = vand.u32 %v585, 2139095040
    %v2826 = vshrl.u32 %v2825, 23
    %v2827 = vsub.s32 %v2826, 127
    %v2828 = vand.u32 2147483647, %v585
    %v2829 = vand.u32 %v2828, 8388607
    %v2830 = vor.u32 %v2829, 8388608
    %v2831 = vsub.s32 0, %v2830
    %v2832 = vadd.s32 %v2827, 1
    %vm2833 = vcmp.gt.s32.totalorder %v2832, 0
    %v2834 = vsel %vm2833, %v2832, 0
    %v2835 = vshrl.u32 %v2834, 5
    %v2836 = vand.u32 %v2834, 31
    %v2837 = vsub.s32 32, %v2836
    %v2838 = vshrl.u32 683565275, %v2837
    %v2839 = vshll.u32 683565275, %v2836
    %v2840 = vshrl.u32 2475754826, %v2837
    %v2841 = vor.u32 %v2839, %v2840
    %v2842 = vshll.u32 2475754826, %v2836
    %v2843 = vshrl.u32 2131351028, %v2837
    %v2844 = vor.u32 %v2842, %v2843
    %v2845 = vshll.u32 2131351028, %v2836
    %v2846 = vshrl.u32 2102212464, %v2837
    %v2847 = vor.u32 %v2845, %v2846
    %v2848 = vshll.u32 2102212464, %v2836
    %v2849 = vshrl.u32 920167782, %v2837
    %v2850 = vor.u32 %v2848, %v2849
    %v2851 = vshll.u32 920167782, %v2836
    %v2852 = vshrl.u32 1326507024, %v2837
    %v2853 = vor.u32 %v2851, %v2852
    %vm2854 = vcmp.lt.s32.totalorder %v2835, 1
    %vm2855 = vcmp.lt.s32.totalorder %v2835, 2
    %vm2856 = vcmp.lt.s32.totalorder %v2835, 3
    %vm2857 = vcmp.lt.s32.totalorder %v2835, 4
    %v2858 = vsel %vm2854, %v2838, %v2841
    %v2859 = vsel %vm2857, %v2847, 2102212464
    %v2860 = vsel %vm2856, %v2844, %v2859
    %v2861 = vsel %vm2855, %v2858, %v2860
    %v2862 = vsel %vm2854, %v2841, %v2844
    %v2863 = vsel %vm2857, %v2850, 920167782
    %v2864 = vsel %vm2856, %v2847, %v2863
    %v2865 = vsel %vm2855, %v2862, %v2864
    %v2866 = vsel %vm2854, %v2844, %v2847
    %v2867 = vsel %vm2857, %v2853, 1326507024
    %v2868 = vsel %vm2856, %v2850, %v2867
    %v2869 = vsel %vm2855, %v2866, %v2868
    %v2870 = vshll.u32 %v2830, 8
    %v2871 = vmul.u32.u64.compose %v2870, %v2869
    %v2872 = vextract.low.u32 %v2871
    %v2873 = vextract.high.u32 %v2871
    %v2874 = vmul.u32.u64.compose %v2870, %v2865
    %v2875 = vextract.low.u32 %v2874
    %v2876 = vextract.high.u32 %v2874
    %v2877 = vmul.u32 %v2870, %v2861
    %v2878 = vadd.s32 %v2873, %v2875
    %vm2879 = vc.u32 %v2873, %v2875
    %v2880 = vadd.s32 %v2876, 1
    %v2881 = vsel %vm2879, %v2880, %v2876
    %v2882 = vadd.s32 %v2877, %v2881
    %v2883 = vadd.s32 %v2882, 536870912
    %v2884 = vshrl.u32 %v2883, 30
    %v2885 = vshll.u32 %v2884, 30
    %v2886 = vsub.s32 %v2882, %v2885
    %vm2887 = vcmp.lt.s32.totalorder %v2886, 0
    %v2888 = vsub.s32 0, %v2886
    %v2889 = vsel %vm2887, %v2888, %v2886
    %v2890 = vclz %v2889
    %v2891 = vsub.s32 %v2890, 2
    %vm2892 = vcmp.gt.s32.totalorder 0, %v2891
    %v2893 = vsel %vm2892, 0, %v2891
    %v2894 = vsub.s32 32, %v2893
    %v2895 = vshll.u32 %v2886, %v2893
    %v2896 = vshrl.u32 %v2878, %v2894
    %v2897 = vor.u32 %v2895, %v2896
    %v2898 = vsub.s32 4294967266, %v2893
    %v2899 = vadd.s32 %v2898, 127
    %v2900 = vshll.u32 %v2899, 23
    %v2901 = vor.u32 4788187, %v2900
    %v2902 = vand.u32 2147483647, %v2901
    %v2904 = vcvt.s32.f32 %v2897
    %v2905 = vmul.f32 %v2904, %v2902
    %v2906 = vxor.u32 %v2905, 2147483648
    %v2907 = vsel %vm2824, %v2906, %v2905
    %v2908 = vsub.s32 4, %v2884
    %v2909 = vsel %vm2824, %v2908, %v2884
    %v2910 = vsel %vm2823, %v585, %v2907
    %v2911 = vsel %vm2823, 0, %v2909
    %v2912 = vcosq.f32.pop %v2910
    %v2913 = vsinq.f32.pop %v2910
    %vm2914 = vweird.f32 %v585
    %v2915 = vadd.s32 %v2911, 3
    %v2916 = vand.u32 %v2915, 3
    %vm2917 = vcmp.lt.s32.totalorder %v2916, 2
    %vm2918 = vcmp.eq.s32.totalorder %v2916, 0
    %v2919 = vxor.u32 %v2913, 2147483648
    %v2920 = vsel %vm2918, %v2912, %v2919
    %vm2921 = vcmp.eq.s32.totalorder %v2916, 2
    %v2922 = vxor.u32 %v2912, 2147483648
    %v2923 = vsel %vm2921, %v2922, %v2913
    %v2924 = vsel %vm2917, %v2920, %v2923
    %v2925 = vsel %vm2914, nan, %v2924
    %v2926 = vand.u32 2147483647, %v590
    %vm2927 = vcmp.le.f32.partialorder %v2926, 0.7853982
    %vm2928 = vcmp.lt.s32.totalorder %v590, 0
    %v2929 = vand.u32 %v590, 2139095040
    %v2930 = vshrl.u32 %v2929, 23
    %v2931 = vsub.s32 %v2930, 127
    %v2932 = vand.u32 2147483647, %v590
    %v2933 = vand.u32 %v2932, 8388607
    %v2934 = vor.u32 %v2933, 8388608
    %v2935 = vsub.s32 0, %v2934
    %v2936 = vadd.s32 %v2931, 1
    %vm2937 = vcmp.gt.s32.totalorder %v2936, 0
    %v2938 = vsel %vm2937, %v2936, 0
    %v2939 = vshrl.u32 %v2938, 5
    %v2940 = vand.u32 %v2938, 31
    %v2941 = vsub.s32 32, %v2940
    %v2942 = vshrl.u32 683565275, %v2941
    %v2943 = vshll.u32 683565275, %v2940
    %v2944 = vshrl.u32 2475754826, %v2941
    %v2945 = vor.u32 %v2943, %v2944
    %v2946 = vshll.u32 2475754826, %v2940
    %v2947 = vshrl.u32 2131351028, %v2941
    %v2948 = vor.u32 %v2946, %v2947
    %v2949 = vshll.u32 2131351028, %v2940
    %v2950 = vshrl.u32 2102212464, %v2941
    %v2951 = vor.u32 %v2949, %v2950
    %v2952 = vshll.u32 2102212464, %v2940
    %v2953 = vshrl.u32 920167782, %v2941
    %v2954 = vor.u32 %v2952, %v2953
    %v2955 = vshll.u32 920167782, %v2940
    %v2956 = vshrl.u32 1326507024, %v2941
    %v2957 = vor.u32 %v2955, %v2956
    %vm2958 = vcmp.lt.s32.totalorder %v2939, 1
    %vm2959 = vcmp.lt.s32.totalorder %v2939, 2
    %vm2960 = vcmp.lt.s32.totalorder %v2939, 3
    %vm2961 = vcmp.lt.s32.totalorder %v2939, 4
    %v2962 = vsel %vm2958, %v2942, %v2945
    %v2963 = vsel %vm2961, %v2951, 2102212464
    %v2964 = vsel %vm2960, %v2948, %v2963
    %v2965 = vsel %vm2959, %v2962, %v2964
    %v2966 = vsel %vm2958, %v2945, %v2948
    %v2967 = vsel %vm2961, %v2954, 920167782
    %v2968 = vsel %vm2960, %v2951, %v2967
    %v2969 = vsel %vm2959, %v2966, %v2968
    %v2970 = vsel %vm2958, %v2948, %v2951
    %v2971 = vsel %vm2961, %v2957, 1326507024
    %v2972 = vsel %vm2960, %v2954, %v2971
    %v2973 = vsel %vm2959, %v2970, %v2972
    %v2974 = vshll.u32 %v2934, 8
    %v2975 = vmul.u32.u64.compose %v2974, %v2973
    %v2976 = vextract.low.u32 %v2975
    %v2977 = vextract.high.u32 %v2975
    %v2978 = vmul.u32.u64.compose %v2974, %v2969
    %v2979 = vextract.low.u32 %v2978
    %v2980 = vextract.high.u32 %v2978
    %v2981 = vmul.u32 %v2974, %v2965
    %v2982 = vadd.s32 %v2977, %v2979
    %vm2983 = vc.u32 %v2977, %v2979
    %v2984 = vadd.s32 %v2980, 1
    %v2985 = vsel %vm2983, %v2984, %v2980
    %v2986 = vadd.s32 %v2981, %v2985
    %v2987 = vadd.s32 %v2986, 536870912
    %v2988 = vshrl.u32 %v2987, 30
    %v2989 = vshll.u32 %v2988, 30
    %v2990 = vsub.s32 %v2986, %v2989
    %vm2991 = vcmp.lt.s32.totalorder %v2990, 0
    %v2992 = vsub.s32 0, %v2990
    %v2993 = vsel %vm2991, %v2992, %v2990
    %v2994 = vclz %v2993
    %v2995 = vsub.s32 %v2994, 2
    %vm2996 = vcmp.gt.s32.totalorder 0, %v2995
    %v2997 = vsel %vm2996, 0, %v2995
    %v2998 = vsub.s32 32, %v2997
    %v2999 = vshll.u32 %v2990, %v2997
    %v3000 = vshrl.u32 %v2982, %v2998
    %v3001 = vor.u32 %v2999, %v3000
    %v3002 = vsub.s32 4294967266, %v2997
    %v3003 = vadd.s32 %v3002, 127
    %v3004 = vshll.u32 %v3003, 23
    %v3005 = vor.u32 4788187, %v3004
    %v3006 = vand.u32 2147483647, %v3005
    %v3008 = vcvt.s32.f32 %v3001
    %v3009 = vmul.f32 %v3008, %v3006
    %v3010 = vxor.u32 %v3009, 2147483648
    %v3011 = vsel %vm2928, %v3010, %v3009
    %v3012 = vsub.s32 4, %v2988
    %v3013 = vsel %vm2928, %v3012, %v2988
    %v3014 = vsel %vm2927, %v590, %v3011
    %v3015 = vsel %vm2927, 0, %v3013
    %v3016 = vcosq.f32.pop %v3014
    %v3017 = vsinq.f32.pop %v3014
    %vm3018 = vweird.f32 %v590
    %v3019 = vadd.s32 %v3015, 3
    %v3020 = vand.u32 %v3019, 3
    %vm3021 = vcmp.lt.s32.totalorder %v3020, 2
    %vm3022 = vcmp.eq.s32.totalorder %v3020, 0
    %v3023 = vxor.u32 %v3017, 2147483648
    %v3024 = vsel %vm3022, %v3016, %v3023
    %vm3025 = vcmp.eq.s32.totalorder %v3020, 2
    %v3026 = vxor.u32 %v3016, 2147483648
    %v3027 = vsel %vm3025, %v3026, %v3017
    %v3028 = vsel %vm3021, %v3024, %v3027
    %v3029 = vsel %vm3018, nan, %v3028
    %v3030 = vand.u32 2147483647, %v595
    %vm3031 = vcmp.le.f32.partialorder %v3030, 0.7853982
    %vm3032 = vcmp.lt.s32.totalorder %v595, 0
    %v3033 = vand.u32 %v595, 2139095040
    %v3034 = vshrl.u32 %v3033, 23
    %v3035 = vsub.s32 %v3034, 127
    %v3036 = vand.u32 2147483647, %v595
    %v3037 = vand.u32 %v3036, 8388607
    %v3038 = vor.u32 %v3037, 8388608
    %v3039 = vsub.s32 0, %v3038
    %v3040 = vadd.s32 %v3035, 1
    %vm3041 = vcmp.gt.s32.totalorder %v3040, 0
    %v3042 = vsel %vm3041, %v3040, 0
    %v3043 = vshrl.u32 %v3042, 5
    %v3044 = vand.u32 %v3042, 31
    %v3045 = vsub.s32 32, %v3044
    %v3046 = vshrl.u32 683565275, %v3045
    %v3047 = vshll.u32 683565275, %v3044
    %v3048 = vshrl.u32 2475754826, %v3045
    %v3049 = vor.u32 %v3047, %v3048
    %v3050 = vshll.u32 2475754826, %v3044
    %v3051 = vshrl.u32 2131351028, %v3045
    %v3052 = vor.u32 %v3050, %v3051
    %v3053 = vshll.u32 2131351028, %v3044
    %v3054 = vshrl.u32 2102212464, %v3045
    %v3055 = vor.u32 %v3053, %v3054
    %v3056 = vshll.u32 2102212464, %v3044
    %v3057 = vshrl.u32 920167782, %v3045
    %v3058 = vor.u32 %v3056, %v3057
    %v3059 = vshll.u32 920167782, %v3044
    %v3060 = vshrl.u32 1326507024, %v3045
    %v3061 = vor.u32 %v3059, %v3060
    %vm3062 = vcmp.lt.s32.totalorder %v3043, 1
    %vm3063 = vcmp.lt.s32.totalorder %v3043, 2
    %vm3064 = vcmp.lt.s32.totalorder %v3043, 3
    %vm3065 = vcmp.lt.s32.totalorder %v3043, 4
    %v3066 = vsel %vm3062, %v3046, %v3049
    %v3067 = vsel %vm3065, %v3055, 2102212464
    %v3068 = vsel %vm3064, %v3052, %v3067
    %v3069 = vsel %vm3063, %v3066, %v3068
    %v3070 = vsel %vm3062, %v3049, %v3052
    %v3071 = vsel %vm3065, %v3058, 920167782
    %v3072 = vsel %vm3064, %v3055, %v3071
    %v3073 = vsel %vm3063, %v3070, %v3072
    %v3074 = vsel %vm3062, %v3052, %v3055
    %v3075 = vsel %vm3065, %v3061, 1326507024
    %v3076 = vsel %vm3064, %v3058, %v3075
    %v3077 = vsel %vm3063, %v3074, %v3076
    %v3078 = vshll.u32 %v3038, 8
    %v3079 = vmul.u32.u64.compose %v3078, %v3077
    %v3080 = vextract.low.u32 %v3079
    %v3081 = vextract.high.u32 %v3079
    %v3082 = vmul.u32.u64.compose %v3078, %v3073
    %v3083 = vextract.low.u32 %v3082
    %v3084 = vextract.high.u32 %v3082
    %v3085 = vmul.u32 %v3078, %v3069
    %v3086 = vadd.s32 %v3081, %v3083
    %vm3087 = vc.u32 %v3081, %v3083
    %v3088 = vadd.s32 %v3084, 1
    %v3089 = vsel %vm3087, %v3088, %v3084
    %v3090 = vadd.s32 %v3085, %v3089
    %v3091 = vadd.s32 %v3090, 536870912
    %v3092 = vshrl.u32 %v3091, 30
    %v3093 = vshll.u32 %v3092, 30
    %v3094 = vsub.s32 %v3090, %v3093
    %vm3095 = vcmp.lt.s32.totalorder %v3094, 0
    %v3096 = vsub.s32 0, %v3094
    %v3097 = vsel %vm3095, %v3096, %v3094
    %v3098 = vclz %v3097
    %v3099 = vsub.s32 %v3098, 2
    %vm3100 = vcmp.gt.s32.totalorder 0, %v3099
    %v3101 = vsel %vm3100, 0, %v3099
    %v3102 = vsub.s32 32, %v3101
    %v3103 = vshll.u32 %v3094, %v3101
    %v3104 = vshrl.u32 %v3086, %v3102
    %v3105 = vor.u32 %v3103, %v3104
    %v3106 = vsub.s32 4294967266, %v3101
    %v3107 = vadd.s32 %v3106, 127
    %v3108 = vshll.u32 %v3107, 23
    %v3109 = vor.u32 4788187, %v3108
    %v3110 = vand.u32 2147483647, %v3109
    %v3112 = vcvt.s32.f32 %v3105
    %v3113 = vmul.f32 %v3112, %v3110
    %v3114 = vxor.u32 %v3113, 2147483648
    %v3115 = vsel %vm3032, %v3114, %v3113
    %v3116 = vsub.s32 4, %v3092
    %v3117 = vsel %vm3032, %v3116, %v3092
    %v3118 = vsel %vm3031, %v595, %v3115
    %v3119 = vsel %vm3031, 0, %v3117
    %v3120 = vcosq.f32.pop %v3118
    %v3121 = vsinq.f32.pop %v3118
    %vm3122 = vweird.f32 %v595
    %v3123 = vadd.s32 %v3119, 3
    %v3124 = vand.u32 %v3123, 3
    %vm3125 = vcmp.lt.s32.totalorder %v3124, 2
    %vm3126 = vcmp.eq.s32.totalorder %v3124, 0
    %v3127 = vxor.u32 %v3121, 2147483648
    %v3128 = vsel %vm3126, %v3120, %v3127
    %vm3129 = vcmp.eq.s32.totalorder %v3124, 2
    %v3130 = vxor.u32 %v3120, 2147483648
    %v3131 = vsel %vm3129, %v3130, %v3121
    %v3132 = vsel %vm3125, %v3128, %v3131
    %v3133 = vsel %vm3122, nan, %v3132
    %v3134 = vand.u32 2147483647, %v600
    %vm3135 = vcmp.le.f32.partialorder %v3134, 0.7853982
    %vm3136 = vcmp.lt.s32.totalorder %v600, 0
    %v3137 = vand.u32 %v600, 2139095040
    %v3138 = vshrl.u32 %v3137, 23
    %v3139 = vsub.s32 %v3138, 127
    %v3140 = vand.u32 2147483647, %v600
    %v3141 = vand.u32 %v3140, 8388607
    %v3142 = vor.u32 %v3141, 8388608
    %v3143 = vsub.s32 0, %v3142
    %v3144 = vadd.s32 %v3139, 1
    %vm3145 = vcmp.gt.s32.totalorder %v3144, 0
    %v3146 = vsel %vm3145, %v3144, 0
    %v3147 = vshrl.u32 %v3146, 5
    %v3148 = vand.u32 %v3146, 31
    %v3149 = vsub.s32 32, %v3148
    %v3150 = vshrl.u32 683565275, %v3149
    %v3151 = vshll.u32 683565275, %v3148
    %v3152 = vshrl.u32 2475754826, %v3149
    %v3153 = vor.u32 %v3151, %v3152
    %v3154 = vshll.u32 2475754826, %v3148
    %v3155 = vshrl.u32 2131351028, %v3149
    %v3156 = vor.u32 %v3154, %v3155
    %v3157 = vshll.u32 2131351028, %v3148
    %v3158 = vshrl.u32 2102212464, %v3149
    %v3159 = vor.u32 %v3157, %v3158
    %v3160 = vshll.u32 2102212464, %v3148
    %v3161 = vshrl.u32 920167782, %v3149
    %v3162 = vor.u32 %v3160, %v3161
    %v3163 = vshll.u32 920167782, %v3148
    %v3164 = vshrl.u32 1326507024, %v3149
    %v3165 = vor.u32 %v3163, %v3164
    %vm3166 = vcmp.lt.s32.totalorder %v3147, 1
    %vm3167 = vcmp.lt.s32.totalorder %v3147, 2
    %vm3168 = vcmp.lt.s32.totalorder %v3147, 3
    %vm3169 = vcmp.lt.s32.totalorder %v3147, 4
    %v3170 = vsel %vm3166, %v3150, %v3153
    %v3171 = vsel %vm3169, %v3159, 2102212464
    %v3172 = vsel %vm3168, %v3156, %v3171
    %v3173 = vsel %vm3167, %v3170, %v3172
    %v3174 = vsel %vm3166, %v3153, %v3156
    %v3175 = vsel %vm3169, %v3162, 920167782
    %v3176 = vsel %vm3168, %v3159, %v3175
    %v3177 = vsel %vm3167, %v3174, %v3176
    %v3178 = vsel %vm3166, %v3156, %v3159
    %v3179 = vsel %vm3169, %v3165, 1326507024
    %v3180 = vsel %vm3168, %v3162, %v3179
    %v3181 = vsel %vm3167, %v3178, %v3180
    %v3182 = vshll.u32 %v3142, 8
    %v3183 = vmul.u32.u64.compose %v3182, %v3181
    %v3184 = vextract.low.u32 %v3183
    %v3185 = vextract.high.u32 %v3183
    %v3186 = vmul.u32.u64.compose %v3182, %v3177
    %v3187 = vextract.low.u32 %v3186
    %v3188 = vextract.high.u32 %v3186
    %v3189 = vmul.u32 %v3182, %v3173
    %v3190 = vadd.s32 %v3185, %v3187
    %vm3191 = vc.u32 %v3185, %v3187
    %v3192 = vadd.s32 %v3188, 1
    %v3193 = vsel %vm3191, %v3192, %v3188
    %v3194 = vadd.s32 %v3189, %v3193
    %v3195 = vadd.s32 %v3194, 536870912
    %v3196 = vshrl.u32 %v3195, 30
    %v3197 = vshll.u32 %v3196, 30
    %v3198 = vsub.s32 %v3194, %v3197
    %vm3199 = vcmp.lt.s32.totalorder %v3198, 0
    %v3200 = vsub.s32 0, %v3198
    %v3201 = vsel %vm3199, %v3200, %v3198
    %v3202 = vclz %v3201
    %v3203 = vsub.s32 %v3202, 2
    %vm3204 = vcmp.gt.s32.totalorder 0, %v3203
    %v3205 = vsel %vm3204, 0, %v3203
    %v3206 = vsub.s32 32, %v3205
    %v3207 = vshll.u32 %v3198, %v3205
    %v3208 = vshrl.u32 %v3190, %v3206
    %v3209 = vor.u32 %v3207, %v3208
    %v3210 = vsub.s32 4294967266, %v3205
    %v3211 = vadd.s32 %v3210, 127
    %v3212 = vshll.u32 %v3211, 23
    %v3213 = vor.u32 4788187, %v3212
    %v3214 = vand.u32 2147483647, %v3213
    %v3216 = vcvt.s32.f32 %v3209
    %v3217 = vmul.f32 %v3216, %v3214
    %v3218 = vxor.u32 %v3217, 2147483648
    %v3219 = vsel %vm3136, %v3218, %v3217
    %v3220 = vsub.s32 4, %v3196
    %v3221 = vsel %vm3136, %v3220, %v3196
    %v3222 = vsel %vm3135, %v600, %v3219
    %v3223 = vsel %vm3135, 0, %v3221
    %v3224 = vcosq.f32.pop %v3222
    %v3225 = vsinq.f32.pop %v3222
    %vm3226 = vweird.f32 %v600
    %v3227 = vadd.s32 %v3223, 3
    %v3228 = vand.u32 %v3227, 3
    %vm3229 = vcmp.lt.s32.totalorder %v3228, 2
    %vm3230 = vcmp.eq.s32.totalorder %v3228, 0
    %v3231 = vxor.u32 %v3225, 2147483648
    %v3232 = vsel %vm3230, %v3224, %v3231
    %vm3233 = vcmp.eq.s32.totalorder %v3228, 2
    %v3234 = vxor.u32 %v3224, 2147483648
    %v3235 = vsel %vm3233, %v3234, %v3225
    %v3236 = vsel %vm3229, %v3232, %v3235
    %v3237 = vsel %vm3226, nan, %v3236
    %v3238 = vand.u32 2147483647, %v605
    %vm3239 = vcmp.le.f32.partialorder %v3238, 0.7853982
    %vm3240 = vcmp.lt.s32.totalorder %v605, 0
    %v3241 = vand.u32 %v605, 2139095040
    %v3242 = vshrl.u32 %v3241, 23
    %v3243 = vsub.s32 %v3242, 127
    %v3244 = vand.u32 2147483647, %v605
    %v3245 = vand.u32 %v3244, 8388607
    %v3246 = vor.u32 %v3245, 8388608
    %v3247 = vsub.s32 0, %v3246
    %v3248 = vadd.s32 %v3243, 1
    %vm3249 = vcmp.gt.s32.totalorder %v3248, 0
    %v3250 = vsel %vm3249, %v3248, 0
    %v3251 = vshrl.u32 %v3250, 5
    %v3252 = vand.u32 %v3250, 31
    %v3253 = vsub.s32 32, %v3252
    %v3254 = vshrl.u32 683565275, %v3253
    %v3255 = vshll.u32 683565275, %v3252
    %v3256 = vshrl.u32 2475754826, %v3253
    %v3257 = vor.u32 %v3255, %v3256
    %v3258 = vshll.u32 2475754826, %v3252
    %v3259 = vshrl.u32 2131351028, %v3253
    %v3260 = vor.u32 %v3258, %v3259
    %v3261 = vshll.u32 2131351028, %v3252
    %v3262 = vshrl.u32 2102212464, %v3253
    %v3263 = vor.u32 %v3261, %v3262
    %v3264 = vshll.u32 2102212464, %v3252
    %v3265 = vshrl.u32 920167782, %v3253
    %v3266 = vor.u32 %v3264, %v3265
    %v3267 = vshll.u32 920167782, %v3252
    %v3268 = vshrl.u32 1326507024, %v3253
    %v3269 = vor.u32 %v3267, %v3268
    %vm3270 = vcmp.lt.s32.totalorder %v3251, 1
    %vm3271 = vcmp.lt.s32.totalorder %v3251, 2
    %vm3272 = vcmp.lt.s32.totalorder %v3251, 3
    %vm3273 = vcmp.lt.s32.totalorder %v3251, 4
    %v3274 = vsel %vm3270, %v3254, %v3257
    %v3275 = vsel %vm3273, %v3263, 2102212464
    %v3276 = vsel %vm3272, %v3260, %v3275
    %v3277 = vsel %vm3271, %v3274, %v3276
    %v3278 = vsel %vm3270, %v3257, %v3260
    %v3279 = vsel %vm3273, %v3266, 920167782
    %v3280 = vsel %vm3272, %v3263, %v3279
    %v3281 = vsel %vm3271, %v3278, %v3280
    %v3282 = vsel %vm3270, %v3260, %v3263
    %v3283 = vsel %vm3273, %v3269, 1326507024
    %v3284 = vsel %vm3272, %v3266, %v3283
    %v3285 = vsel %vm3271, %v3282, %v3284
    %v3286 = vshll.u32 %v3246, 8
    %v3287 = vmul.u32.u64.compose %v3286, %v3285
    %v3288 = vextract.low.u32 %v3287
    %v3289 = vextract.high.u32 %v3287
    %v3290 = vmul.u32.u64.compose %v3286, %v3281
    %v3291 = vextract.low.u32 %v3290
    %v3292 = vextract.high.u32 %v3290
    %v3293 = vmul.u32 %v3286, %v3277
    %v3294 = vadd.s32 %v3289, %v3291
    %vm3295 = vc.u32 %v3289, %v3291
    %v3296 = vadd.s32 %v3292, 1
    %v3297 = vsel %vm3295, %v3296, %v3292
    %v3298 = vadd.s32 %v3293, %v3297
    %v3299 = vadd.s32 %v3298, 536870912
    %v3300 = vshrl.u32 %v3299, 30
    %v3301 = vshll.u32 %v3300, 30
    %v3302 = vsub.s32 %v3298, %v3301
    %vm3303 = vcmp.lt.s32.totalorder %v3302, 0
    %v3304 = vsub.s32 0, %v3302
    %v3305 = vsel %vm3303, %v3304, %v3302
    %v3306 = vclz %v3305
    %v3307 = vsub.s32 %v3306, 2
    %vm3308 = vcmp.gt.s32.totalorder 0, %v3307
    %v3309 = vsel %vm3308, 0, %v3307
    %v3310 = vsub.s32 32, %v3309
    %v3311 = vshll.u32 %v3302, %v3309
    %v3312 = vshrl.u32 %v3294, %v3310
    %v3313 = vor.u32 %v3311, %v3312
    %v3314 = vsub.s32 4294967266, %v3309
    %v3315 = vadd.s32 %v3314, 127
    %v3316 = vshll.u32 %v3315, 23
    %v3317 = vor.u32 4788187, %v3316
    %v3318 = vand.u32 2147483647, %v3317
    %v3320 = vcvt.s32.f32 %v3313
    %v3321 = vmul.f32 %v3320, %v3318
    %v3322 = vxor.u32 %v3321, 2147483648
    %v3323 = vsel %vm3240, %v3322, %v3321
    %v3324 = vsub.s32 4, %v3300
    %v3325 = vsel %vm3240, %v3324, %v3300
    %v3326 = vsel %vm3239, %v605, %v3323
    %v3327 = vsel %vm3239, 0, %v3325
    %v3328 = vcosq.f32.pop %v3326
    %v3329 = vsinq.f32.pop %v3326
    %vm3330 = vweird.f32 %v605
    %v3331 = vadd.s32 %v3327, 3
    %v3332 = vand.u32 %v3331, 3
    %vm3333 = vcmp.lt.s32.totalorder %v3332, 2
    %vm3334 = vcmp.eq.s32.totalorder %v3332, 0
    %v3335 = vxor.u32 %v3329, 2147483648
    %v3336 = vsel %vm3334, %v3328, %v3335
    %vm3337 = vcmp.eq.s32.totalorder %v3332, 2
    %v3338 = vxor.u32 %v3328, 2147483648
    %v3339 = vsel %vm3337, %v3338, %v3329
    %v3340 = vsel %vm3333, %v3336, %v3339
    %v3341 = vsel %vm3330, nan, %v3340
    %v3342 = vand.u32 2147483647, %v610
    %vm3343 = vcmp.le.f32.partialorder %v3342, 0.7853982
    %vm3344 = vcmp.lt.s32.totalorder %v610, 0
    %v3345 = vand.u32 %v610, 2139095040
    %v3346 = vshrl.u32 %v3345, 23
    %v3347 = vsub.s32 %v3346, 127
    %v3348 = vand.u32 2147483647, %v610
    %v3349 = vand.u32 %v3348, 8388607
    %v3350 = vor.u32 %v3349, 8388608
    %v3351 = vsub.s32 0, %v3350
    %v3352 = vadd.s32 %v3347, 1
    %vm3353 = vcmp.gt.s32.totalorder %v3352, 0
    %v3354 = vsel %vm3353, %v3352, 0
    %v3355 = vshrl.u32 %v3354, 5
    %v3356 = vand.u32 %v3354, 31
    %v3357 = vsub.s32 32, %v3356
    %v3358 = vshrl.u32 683565275, %v3357
    %v3359 = vshll.u32 683565275, %v3356
    %v3360 = vshrl.u32 2475754826, %v3357
    %v3361 = vor.u32 %v3359, %v3360
    %v3362 = vshll.u32 2475754826, %v3356
    %v3363 = vshrl.u32 2131351028, %v3357
    %v3364 = vor.u32 %v3362, %v3363
    %v3365 = vshll.u32 2131351028, %v3356
    %v3366 = vshrl.u32 2102212464, %v3357
    %v3367 = vor.u32 %v3365, %v3366
    %v3368 = vshll.u32 2102212464, %v3356
    %v3369 = vshrl.u32 920167782, %v3357
    %v3370 = vor.u32 %v3368, %v3369
    %v3371 = vshll.u32 920167782, %v3356
    %v3372 = vshrl.u32 1326507024, %v3357
    %v3373 = vor.u32 %v3371, %v3372
    %vm3374 = vcmp.lt.s32.totalorder %v3355, 1
    %vm3375 = vcmp.lt.s32.totalorder %v3355, 2
    %vm3376 = vcmp.lt.s32.totalorder %v3355, 3
    %vm3377 = vcmp.lt.s32.totalorder %v3355, 4
    %v3378 = vsel %vm3374, %v3358, %v3361
    %v3379 = vsel %vm3377, %v3367, 2102212464
    %v3380 = vsel %vm3376, %v3364, %v3379
    %v3381 = vsel %vm3375, %v3378, %v3380
    %v3382 = vsel %vm3374, %v3361, %v3364
    %v3383 = vsel %vm3377, %v3370, 920167782
    %v3384 = vsel %vm3376, %v3367, %v3383
    %v3385 = vsel %vm3375, %v3382, %v3384
    %v3386 = vsel %vm3374, %v3364, %v3367
    %v3387 = vsel %vm3377, %v3373, 1326507024
    %v3388 = vsel %vm3376, %v3370, %v3387
    %v3389 = vsel %vm3375, %v3386, %v3388
    %v3390 = vshll.u32 %v3350, 8
    %v3391 = vmul.u32.u64.compose %v3390, %v3389
    %v3392 = vextract.low.u32 %v3391
    %v3393 = vextract.high.u32 %v3391
    %v3394 = vmul.u32.u64.compose %v3390, %v3385
    %v3395 = vextract.low.u32 %v3394
    %v3396 = vextract.high.u32 %v3394
    %v3397 = vmul.u32 %v3390, %v3381
    %v3398 = vadd.s32 %v3393, %v3395
    %vm3399 = vc.u32 %v3393, %v3395
    %v3400 = vadd.s32 %v3396, 1
    %v3401 = vsel %vm3399, %v3400, %v3396
    %v3402 = vadd.s32 %v3397, %v3401
    %v3403 = vadd.s32 %v3402, 536870912
    %v3404 = vshrl.u32 %v3403, 30
    %v3405 = vshll.u32 %v3404, 30
    %v3406 = vsub.s32 %v3402, %v3405
    %vm3407 = vcmp.lt.s32.totalorder %v3406, 0
    %v3408 = vsub.s32 0, %v3406
    %v3409 = vsel %vm3407, %v3408, %v3406
    %v3410 = vclz %v3409
    %v3411 = vsub.s32 %v3410, 2
    %vm3412 = vcmp.gt.s32.totalorder 0, %v3411
    %v3413 = vsel %vm3412, 0, %v3411
    %v3414 = vsub.s32 32, %v3413
    %v3415 = vshll.u32 %v3406, %v3413
    %v3416 = vshrl.u32 %v3398, %v3414
    %v3417 = vor.u32 %v3415, %v3416
    %v3418 = vsub.s32 4294967266, %v3413
    %v3419 = vadd.s32 %v3418, 127
    %v3420 = vshll.u32 %v3419, 23
    %v3421 = vor.u32 4788187, %v3420
    %v3422 = vand.u32 2147483647, %v3421
    %v3424 = vcvt.s32.f32 %v3417
    %v3425 = vmul.f32 %v3424, %v3422
    %v3426 = vxor.u32 %v3425, 2147483648
    %v3427 = vsel %vm3344, %v3426, %v3425
    %v3428 = vsub.s32 4, %v3404
    %v3429 = vsel %vm3344, %v3428, %v3404
    %v3430 = vsel %vm3343, %v610, %v3427
    %v3431 = vsel %vm3343, 0, %v3429
    %v3432 = vcosq.f32.pop %v3430
    %v3433 = vsinq.f32.pop %v3430
    %vm3434 = vweird.f32 %v610
    %v3435 = vadd.s32 %v3431, 3
    %v3436 = vand.u32 %v3435, 3
    %vm3437 = vcmp.lt.s32.totalorder %v3436, 2
    %vm3438 = vcmp.eq.s32.totalorder %v3436, 0
    %v3439 = vxor.u32 %v3433, 2147483648
    %v3440 = vsel %vm3438, %v3432, %v3439
    %vm3441 = vcmp.eq.s32.totalorder %v3436, 2
    %v3442 = vxor.u32 %v3432, 2147483648
    %v3443 = vsel %vm3441, %v3442, %v3433
    %v3444 = vsel %vm3437, %v3440, %v3443
    %v3445 = vsel %vm3434, nan, %v3444
    %v3446 = vand.u32 2147483647, %v615
    %vm3447 = vcmp.le.f32.partialorder %v3446, 0.7853982
    %vm3448 = vcmp.lt.s32.totalorder %v615, 0
    %v3449 = vand.u32 %v615, 2139095040
    %v3450 = vshrl.u32 %v3449, 23
    %v3451 = vsub.s32 %v3450, 127
    %v3452 = vand.u32 2147483647, %v615
    %v3453 = vand.u32 %v3452, 8388607
    %v3454 = vor.u32 %v3453, 8388608
    %v3455 = vsub.s32 0, %v3454
    %v3456 = vadd.s32 %v3451, 1
    %vm3457 = vcmp.gt.s32.totalorder %v3456, 0
    %v3458 = vsel %vm3457, %v3456, 0
    %v3459 = vshrl.u32 %v3458, 5
    %v3460 = vand.u32 %v3458, 31
    %v3461 = vsub.s32 32, %v3460
    %v3462 = vshrl.u32 683565275, %v3461
    %v3463 = vshll.u32 683565275, %v3460
    %v3464 = vshrl.u32 2475754826, %v3461
    %v3465 = vor.u32 %v3463, %v3464
    %v3466 = vshll.u32 2475754826, %v3460
    %v3467 = vshrl.u32 2131351028, %v3461
    %v3468 = vor.u32 %v3466, %v3467
    %v3469 = vshll.u32 2131351028, %v3460
    %v3470 = vshrl.u32 2102212464, %v3461
    %v3471 = vor.u32 %v3469, %v3470
    %v3472 = vshll.u32 2102212464, %v3460
    %v3473 = vshrl.u32 920167782, %v3461
    %v3474 = vor.u32 %v3472, %v3473
    %v3475 = vshll.u32 920167782, %v3460
    %v3476 = vshrl.u32 1326507024, %v3461
    %v3477 = vor.u32 %v3475, %v3476
    %vm3478 = vcmp.lt.s32.totalorder %v3459, 1
    %vm3479 = vcmp.lt.s32.totalorder %v3459, 2
    %vm3480 = vcmp.lt.s32.totalorder %v3459, 3
    %vm3481 = vcmp.lt.s32.totalorder %v3459, 4
    %v3482 = vsel %vm3478, %v3462, %v3465
    %v3483 = vsel %vm3481, %v3471, 2102212464
    %v3484 = vsel %vm3480, %v3468, %v3483
    %v3485 = vsel %vm3479, %v3482, %v3484
    %v3486 = vsel %vm3478, %v3465, %v3468
    %v3487 = vsel %vm3481, %v3474, 920167782
    %v3488 = vsel %vm3480, %v3471, %v3487
    %v3489 = vsel %vm3479, %v3486, %v3488
    %v3490 = vsel %vm3478, %v3468, %v3471
    %v3491 = vsel %vm3481, %v3477, 1326507024
    %v3492 = vsel %vm3480, %v3474, %v3491
    %v3493 = vsel %vm3479, %v3490, %v3492
    %v3494 = vshll.u32 %v3454, 8
    %v3495 = vmul.u32.u64.compose %v3494, %v3493
    %v3496 = vextract.low.u32 %v3495
    %v3497 = vextract.high.u32 %v3495
    %v3498 = vmul.u32.u64.compose %v3494, %v3489
    %v3499 = vextract.low.u32 %v3498
    %v3500 = vextract.high.u32 %v3498
    %v3501 = vmul.u32 %v3494, %v3485
    %v3502 = vadd.s32 %v3497, %v3499
    %vm3503 = vc.u32 %v3497, %v3499
    %v3504 = vadd.s32 %v3500, 1
    %v3505 = vsel %vm3503, %v3504, %v3500
    %v3506 = vadd.s32 %v3501, %v3505
    %v3507 = vadd.s32 %v3506, 536870912
    %v3508 = vshrl.u32 %v3507, 30
    %v3509 = vshll.u32 %v3508, 30
    %v3510 = vsub.s32 %v3506, %v3509
    %vm3511 = vcmp.lt.s32.totalorder %v3510, 0
    %v3512 = vsub.s32 0, %v3510
    %v3513 = vsel %vm3511, %v3512, %v3510
    %v3514 = vclz %v3513
    %v3515 = vsub.s32 %v3514, 2
    %vm3516 = vcmp.gt.s32.totalorder 0, %v3515
    %v3517 = vsel %vm3516, 0, %v3515
    %v3518 = vsub.s32 32, %v3517
    %v3519 = vshll.u32 %v3510, %v3517
    %v3520 = vshrl.u32 %v3502, %v3518
    %v3521 = vor.u32 %v3519, %v3520
    %v3522 = vsub.s32 4294967266, %v3517
    %v3523 = vadd.s32 %v3522, 127
    %v3524 = vshll.u32 %v3523, 23
    %v3525 = vor.u32 4788187, %v3524
    %v3526 = vand.u32 2147483647, %v3525
    %v3528 = vcvt.s32.f32 %v3521
    %v3529 = vmul.f32 %v3528, %v3526
    %v3530 = vxor.u32 %v3529, 2147483648
    %v3531 = vsel %vm3448, %v3530, %v3529
    %v3532 = vsub.s32 4, %v3508
    %v3533 = vsel %vm3448, %v3532, %v3508
    %v3534 = vsel %vm3447, %v615, %v3531
    %v3535 = vsel %vm3447, 0, %v3533
    %v3536 = vcosq.f32.pop %v3534
    %v3537 = vsinq.f32.pop %v3534
    %vm3538 = vweird.f32 %v615
    %v3539 = vadd.s32 %v3535, 3
    %v3540 = vand.u32 %v3539, 3
    %vm3541 = vcmp.lt.s32.totalorder %v3540, 2
    %vm3542 = vcmp.eq.s32.totalorder %v3540, 0
    %v3543 = vxor.u32 %v3537, 2147483648
    %v3544 = vsel %vm3542, %v3536, %v3543
    %vm3545 = vcmp.eq.s32.totalorder %v3540, 2
    %v3546 = vxor.u32 %v3536, 2147483648
    %v3547 = vsel %vm3545, %v3546, %v3537
    %v3548 = vsel %vm3541, %v3544, %v3547
    %v3549 = vsel %vm3538, nan, %v3548
    %v3550 = vand.u32 2147483647, %v620
    %vm3551 = vcmp.le.f32.partialorder %v3550, 0.7853982
    %vm3552 = vcmp.lt.s32.totalorder %v620, 0
    %v3553 = vand.u32 %v620, 2139095040
    %v3554 = vshrl.u32 %v3553, 23
    %v3555 = vsub.s32 %v3554, 127
    %v3556 = vand.u32 2147483647, %v620
    %v3557 = vand.u32 %v3556, 8388607
    %v3558 = vor.u32 %v3557, 8388608
    %v3559 = vsub.s32 0, %v3558
    %v3560 = vadd.s32 %v3555, 1
    %vm3561 = vcmp.gt.s32.totalorder %v3560, 0
    %v3562 = vsel %vm3561, %v3560, 0
    %v3563 = vshrl.u32 %v3562, 5
    %v3564 = vand.u32 %v3562, 31
    %v3565 = vsub.s32 32, %v3564
    %v3566 = vshrl.u32 683565275, %v3565
    %v3567 = vshll.u32 683565275, %v3564
    %v3568 = vshrl.u32 2475754826, %v3565
    %v3569 = vor.u32 %v3567, %v3568
    %v3570 = vshll.u32 2475754826, %v3564
    %v3571 = vshrl.u32 2131351028, %v3565
    %v3572 = vor.u32 %v3570, %v3571
    %v3573 = vshll.u32 2131351028, %v3564
    %v3574 = vshrl.u32 2102212464, %v3565
    %v3575 = vor.u32 %v3573, %v3574
    %v3576 = vshll.u32 2102212464, %v3564
    %v3577 = vshrl.u32 920167782, %v3565
    %v3578 = vor.u32 %v3576, %v3577
    %v3579 = vshll.u32 920167782, %v3564
    %v3580 = vshrl.u32 1326507024, %v3565
    %v3581 = vor.u32 %v3579, %v3580
    %vm3582 = vcmp.lt.s32.totalorder %v3563, 1
    %vm3583 = vcmp.lt.s32.totalorder %v3563, 2
    %vm3584 = vcmp.lt.s32.totalorder %v3563, 3
    %vm3585 = vcmp.lt.s32.totalorder %v3563, 4
    %v3586 = vsel %vm3582, %v3566, %v3569
    %v3587 = vsel %vm3585, %v3575, 2102212464
    %v3588 = vsel %vm3584, %v3572, %v3587
    %v3589 = vsel %vm3583, %v3586, %v3588
    %v3590 = vsel %vm3582, %v3569, %v3572
    %v3591 = vsel %vm3585, %v3578, 920167782
    %v3592 = vsel %vm3584, %v3575, %v3591
    %v3593 = vsel %vm3583, %v3590, %v3592
    %v3594 = vsel %vm3582, %v3572, %v3575
    %v3595 = vsel %vm3585, %v3581, 1326507024
    %v3596 = vsel %vm3584, %v3578, %v3595
    %v3597 = vsel %vm3583, %v3594, %v3596
    %v3598 = vshll.u32 %v3558, 8
    %v3599 = vmul.u32.u64.compose %v3598, %v3597
    %v3600 = vextract.low.u32 %v3599
    %v3601 = vextract.high.u32 %v3599
    %v3602 = vmul.u32.u64.compose %v3598, %v3593
    %v3603 = vextract.low.u32 %v3602
    %v3604 = vextract.high.u32 %v3602
    %v3605 = vmul.u32 %v3598, %v3589
    %v3606 = vadd.s32 %v3601, %v3603
    %vm3607 = vc.u32 %v3601, %v3603
    %v3608 = vadd.s32 %v3604, 1
    %v3609 = vsel %vm3607, %v3608, %v3604
    %v3610 = vadd.s32 %v3605, %v3609
    %v3611 = vadd.s32 %v3610, 536870912
    %v3612 = vshrl.u32 %v3611, 30
    %v3613 = vshll.u32 %v3612, 30
    %v3614 = vsub.s32 %v3610, %v3613
    %vm3615 = vcmp.lt.s32.totalorder %v3614, 0
    %v3616 = vsub.s32 0, %v3614
    %v3617 = vsel %vm3615, %v3616, %v3614
    %v3618 = vclz %v3617
    %v3619 = vsub.s32 %v3618, 2
    %vm3620 = vcmp.gt.s32.totalorder 0, %v3619
    %v3621 = vsel %vm3620, 0, %v3619
    %v3622 = vsub.s32 32, %v3621
    %v3623 = vshll.u32 %v3614, %v3621
    %v3624 = vshrl.u32 %v3606, %v3622
    %v3625 = vor.u32 %v3623, %v3624
    %v3626 = vsub.s32 4294967266, %v3621
    %v3627 = vadd.s32 %v3626, 127
    %v3628 = vshll.u32 %v3627, 23
    %v3629 = vor.u32 4788187, %v3628
    %v3630 = vand.u32 2147483647, %v3629
    %v3632 = vcvt.s32.f32 %v3625
    %v3633 = vmul.f32 %v3632, %v3630
    %v3634 = vxor.u32 %v3633, 2147483648
    %v3635 = vsel %vm3552, %v3634, %v3633
    %v3636 = vsub.s32 4, %v3612
    %v3637 = vsel %vm3552, %v3636, %v3612
    %v3638 = vsel %vm3551, %v620, %v3635
    %v3639 = vsel %vm3551, 0, %v3637
    %v3640 = vcosq.f32.pop %v3638
    %v3641 = vsinq.f32.pop %v3638
    %vm3642 = vweird.f32 %v620
    %v3643 = vadd.s32 %v3639, 3
    %v3644 = vand.u32 %v3643, 3
    %vm3645 = vcmp.lt.s32.totalorder %v3644, 2
    %vm3646 = vcmp.eq.s32.totalorder %v3644, 0
    %v3647 = vxor.u32 %v3641, 2147483648
    %v3648 = vsel %vm3646, %v3640, %v3647
    %vm3649 = vcmp.eq.s32.totalorder %v3644, 2
    %v3650 = vxor.u32 %v3640, 2147483648
    %v3651 = vsel %vm3649, %v3650, %v3641
    %v3652 = vsel %vm3645, %v3648, %v3651
    %v3653 = vsel %vm3642, nan, %v3652
    %v3654 = vand.u32 2147483647, %v625
    %vm3655 = vcmp.le.f32.partialorder %v3654, 0.7853982
    %vm3656 = vcmp.lt.s32.totalorder %v625, 0
    %v3657 = vand.u32 %v625, 2139095040
    %v3658 = vshrl.u32 %v3657, 23
    %v3659 = vsub.s32 %v3658, 127
    %v3660 = vand.u32 2147483647, %v625
    %v3661 = vand.u32 %v3660, 8388607
    %v3662 = vor.u32 %v3661, 8388608
    %v3663 = vsub.s32 0, %v3662
    %v3664 = vadd.s32 %v3659, 1
    %vm3665 = vcmp.gt.s32.totalorder %v3664, 0
    %v3666 = vsel %vm3665, %v3664, 0
    %v3667 = vshrl.u32 %v3666, 5
    %v3668 = vand.u32 %v3666, 31
    %v3669 = vsub.s32 32, %v3668
    %v3670 = vshrl.u32 683565275, %v3669
    %v3671 = vshll.u32 683565275, %v3668
    %v3672 = vshrl.u32 2475754826, %v3669
    %v3673 = vor.u32 %v3671, %v3672
    %v3674 = vshll.u32 2475754826, %v3668
    %v3675 = vshrl.u32 2131351028, %v3669
    %v3676 = vor.u32 %v3674, %v3675
    %v3677 = vshll.u32 2131351028, %v3668
    %v3678 = vshrl.u32 2102212464, %v3669
    %v3679 = vor.u32 %v3677, %v3678
    %v3680 = vshll.u32 2102212464, %v3668
    %v3681 = vshrl.u32 920167782, %v3669
    %v3682 = vor.u32 %v3680, %v3681
    %v3683 = vshll.u32 920167782, %v3668
    %v3684 = vshrl.u32 1326507024, %v3669
    %v3685 = vor.u32 %v3683, %v3684
    %vm3686 = vcmp.lt.s32.totalorder %v3667, 1
    %vm3687 = vcmp.lt.s32.totalorder %v3667, 2
    %vm3688 = vcmp.lt.s32.totalorder %v3667, 3
    %vm3689 = vcmp.lt.s32.totalorder %v3667, 4
    %v3690 = vsel %vm3686, %v3670, %v3673
    %v3691 = vsel %vm3689, %v3679, 2102212464
    %v3692 = vsel %vm3688, %v3676, %v3691
    %v3693 = vsel %vm3687, %v3690, %v3692
    %v3694 = vsel %vm3686, %v3673, %v3676
    %v3695 = vsel %vm3689, %v3682, 920167782
    %v3696 = vsel %vm3688, %v3679, %v3695
    %v3697 = vsel %vm3687, %v3694, %v3696
    %v3698 = vsel %vm3686, %v3676, %v3679
    %v3699 = vsel %vm3689, %v3685, 1326507024
    %v3700 = vsel %vm3688, %v3682, %v3699
    %v3701 = vsel %vm3687, %v3698, %v3700
    %v3702 = vshll.u32 %v3662, 8
    %v3703 = vmul.u32.u64.compose %v3702, %v3701
    %v3704 = vextract.low.u32 %v3703
    %v3705 = vextract.high.u32 %v3703
    %v3706 = vmul.u32.u64.compose %v3702, %v3697
    %v3707 = vextract.low.u32 %v3706
    %v3708 = vextract.high.u32 %v3706
    %v3709 = vmul.u32 %v3702, %v3693
    %v3710 = vadd.s32 %v3705, %v3707
    %vm3711 = vc.u32 %v3705, %v3707
    %v3712 = vadd.s32 %v3708, 1
    %v3713 = vsel %vm3711, %v3712, %v3708
    %v3714 = vadd.s32 %v3709, %v3713
    %v3715 = vadd.s32 %v3714, 536870912
    %v3716 = vshrl.u32 %v3715, 30
    %v3717 = vshll.u32 %v3716, 30
    %v3718 = vsub.s32 %v3714, %v3717
    %vm3719 = vcmp.lt.s32.totalorder %v3718, 0
    %v3720 = vsub.s32 0, %v3718
    %v3721 = vsel %vm3719, %v3720, %v3718
    %v3722 = vclz %v3721
    %v3723 = vsub.s32 %v3722, 2
    %vm3724 = vcmp.gt.s32.totalorder 0, %v3723
    %v3725 = vsel %vm3724, 0, %v3723
    %v3726 = vsub.s32 32, %v3725
    %v3727 = vshll.u32 %v3718, %v3725
    %v3728 = vshrl.u32 %v3710, %v3726
    %v3729 = vor.u32 %v3727, %v3728
    %v3730 = vsub.s32 4294967266, %v3725
    %v3731 = vadd.s32 %v3730, 127
    %v3732 = vshll.u32 %v3731, 23
    %v3733 = vor.u32 4788187, %v3732
    %v3734 = vand.u32 2147483647, %v3733
    %v3736 = vcvt.s32.f32 %v3729
    %v3737 = vmul.f32 %v3736, %v3734
    %v3738 = vxor.u32 %v3737, 2147483648
    %v3739 = vsel %vm3656, %v3738, %v3737
    %v3740 = vsub.s32 4, %v3716
    %v3741 = vsel %vm3656, %v3740, %v3716
    %v3742 = vsel %vm3655, %v625, %v3739
    %v3743 = vsel %vm3655, 0, %v3741
    %v3744 = vcosq.f32.pop %v3742
    %v3745 = vsinq.f32.pop %v3742
    %vm3746 = vweird.f32 %v625
    %v3747 = vadd.s32 %v3743, 3
    %v3748 = vand.u32 %v3747, 3
    %vm3749 = vcmp.lt.s32.totalorder %v3748, 2
    %vm3750 = vcmp.eq.s32.totalorder %v3748, 0
    %v3751 = vxor.u32 %v3745, 2147483648
    %v3752 = vsel %vm3750, %v3744, %v3751
    %vm3753 = vcmp.eq.s32.totalorder %v3748, 2
    %v3754 = vxor.u32 %v3744, 2147483648
    %v3755 = vsel %vm3753, %v3754, %v3745
    %v3756 = vsel %vm3749, %v3752, %v3755
    %v3757 = vsel %vm3746, nan, %v3756
    %v3758 = vand.u32 2147483647, %v630
    %vm3759 = vcmp.le.f32.partialorder %v3758, 0.7853982
    %vm3760 = vcmp.lt.s32.totalorder %v630, 0
    %v3761 = vand.u32 %v630, 2139095040
    %v3762 = vshrl.u32 %v3761, 23
    %v3763 = vsub.s32 %v3762, 127
    %v3764 = vand.u32 2147483647, %v630
    %v3765 = vand.u32 %v3764, 8388607
    %v3766 = vor.u32 %v3765, 8388608
    %v3767 = vsub.s32 0, %v3766
    %v3768 = vadd.s32 %v3763, 1
    %vm3769 = vcmp.gt.s32.totalorder %v3768, 0
    %v3770 = vsel %vm3769, %v3768, 0
    %v3771 = vshrl.u32 %v3770, 5
    %v3772 = vand.u32 %v3770, 31
    %v3773 = vsub.s32 32, %v3772
    %v3774 = vshrl.u32 683565275, %v3773
    %v3775 = vshll.u32 683565275, %v3772
    %v3776 = vshrl.u32 2475754826, %v3773
    %v3777 = vor.u32 %v3775, %v3776
    %v3778 = vshll.u32 2475754826, %v3772
    %v3779 = vshrl.u32 2131351028, %v3773
    %v3780 = vor.u32 %v3778, %v3779
    %v3781 = vshll.u32 2131351028, %v3772
    %v3782 = vshrl.u32 2102212464, %v3773
    %v3783 = vor.u32 %v3781, %v3782
    %v3784 = vshll.u32 2102212464, %v3772
    %v3785 = vshrl.u32 920167782, %v3773
    %v3786 = vor.u32 %v3784, %v3785
    %v3787 = vshll.u32 920167782, %v3772
    %v3788 = vshrl.u32 1326507024, %v3773
    %v3789 = vor.u32 %v3787, %v3788
    %vm3790 = vcmp.lt.s32.totalorder %v3771, 1
    %vm3791 = vcmp.lt.s32.totalorder %v3771, 2
    %vm3792 = vcmp.lt.s32.totalorder %v3771, 3
    %vm3793 = vcmp.lt.s32.totalorder %v3771, 4
    %v3794 = vsel %vm3790, %v3774, %v3777
    %v3795 = vsel %vm3793, %v3783, 2102212464
    %v3796 = vsel %vm3792, %v3780, %v3795
    %v3797 = vsel %vm3791, %v3794, %v3796
    %v3798 = vsel %vm3790, %v3777, %v3780
    %v3799 = vsel %vm3793, %v3786, 920167782
    %v3800 = vsel %vm3792, %v3783, %v3799
    %v3801 = vsel %vm3791, %v3798, %v3800
    %v3802 = vsel %vm3790, %v3780, %v3783
    %v3803 = vsel %vm3793, %v3789, 1326507024
    %v3804 = vsel %vm3792, %v3786, %v3803
    %v3805 = vsel %vm3791, %v3802, %v3804
    %v3806 = vshll.u32 %v3766, 8
    %v3807 = vmul.u32.u64.compose %v3806, %v3805
    %v3808 = vextract.low.u32 %v3807
    %v3809 = vextract.high.u32 %v3807
    %v3810 = vmul.u32.u64.compose %v3806, %v3801
    %v3811 = vextract.low.u32 %v3810
    %v3812 = vextract.high.u32 %v3810
    %v3813 = vmul.u32 %v3806, %v3797
    %v3814 = vadd.s32 %v3809, %v3811
    %vm3815 = vc.u32 %v3809, %v3811
    %v3816 = vadd.s32 %v3812, 1
    %v3817 = vsel %vm3815, %v3816, %v3812
    %v3818 = vadd.s32 %v3813, %v3817
    %v3819 = vadd.s32 %v3818, 536870912
    %v3820 = vshrl.u32 %v3819, 30
    %v3821 = vshll.u32 %v3820, 30
    %v3822 = vsub.s32 %v3818, %v3821
    %vm3823 = vcmp.lt.s32.totalorder %v3822, 0
    %v3824 = vsub.s32 0, %v3822
    %v3825 = vsel %vm3823, %v3824, %v3822
    %v3826 = vclz %v3825
    %v3827 = vsub.s32 %v3826, 2
    %vm3828 = vcmp.gt.s32.totalorder 0, %v3827
    %v3829 = vsel %vm3828, 0, %v3827
    %v3830 = vsub.s32 32, %v3829
    %v3831 = vshll.u32 %v3822, %v3829
    %v3832 = vshrl.u32 %v3814, %v3830
    %v3833 = vor.u32 %v3831, %v3832
    %v3834 = vsub.s32 4294967266, %v3829
    %v3835 = vadd.s32 %v3834, 127
    %v3836 = vshll.u32 %v3835, 23
    %v3837 = vor.u32 4788187, %v3836
    %v3838 = vand.u32 2147483647, %v3837
    %v3840 = vcvt.s32.f32 %v3833
    %v3841 = vmul.f32 %v3840, %v3838
    %v3842 = vxor.u32 %v3841, 2147483648
    %v3843 = vsel %vm3760, %v3842, %v3841
    %v3844 = vsub.s32 4, %v3820
    %v3845 = vsel %vm3760, %v3844, %v3820
    %v3846 = vsel %vm3759, %v630, %v3843
    %v3847 = vsel %vm3759, 0, %v3845
    %v3848 = vcosq.f32.pop %v3846
    %v3849 = vsinq.f32.pop %v3846
    %vm3850 = vweird.f32 %v630
    %v3851 = vadd.s32 %v3847, 3
    %v3852 = vand.u32 %v3851, 3
    %vm3853 = vcmp.lt.s32.totalorder %v3852, 2
    %vm3854 = vcmp.eq.s32.totalorder %v3852, 0
    %v3855 = vxor.u32 %v3849, 2147483648
    %v3856 = vsel %vm3854, %v3848, %v3855
    %vm3857 = vcmp.eq.s32.totalorder %v3852, 2
    %v3858 = vxor.u32 %v3848, 2147483648
    %v3859 = vsel %vm3857, %v3858, %v3849
    %v3860 = vsel %vm3853, %v3856, %v3859
    %v3861 = vsel %vm3850, nan, %v3860
    %v3862 = vand.u32 2147483647, %v635
    %vm3863 = vcmp.le.f32.partialorder %v3862, 0.7853982
    %vm3864 = vcmp.lt.s32.totalorder %v635, 0
    %v3865 = vand.u32 %v635, 2139095040
    %v3866 = vshrl.u32 %v3865, 23
    %v3867 = vsub.s32 %v3866, 127
    %v3868 = vand.u32 2147483647, %v635
    %v3869 = vand.u32 %v3868, 8388607
    %v3870 = vor.u32 %v3869, 8388608
    %v3871 = vsub.s32 0, %v3870
    %v3872 = vadd.s32 %v3867, 1
    %vm3873 = vcmp.gt.s32.totalorder %v3872, 0
    %v3874 = vsel %vm3873, %v3872, 0
    %v3875 = vshrl.u32 %v3874, 5
    %v3876 = vand.u32 %v3874, 31
    %v3877 = vsub.s32 32, %v3876
    %v3878 = vshrl.u32 683565275, %v3877
    %v3879 = vshll.u32 683565275, %v3876
    %v3880 = vshrl.u32 2475754826, %v3877
    %v3881 = vor.u32 %v3879, %v3880
    %v3882 = vshll.u32 2475754826, %v3876
    %v3883 = vshrl.u32 2131351028, %v3877
    %v3884 = vor.u32 %v3882, %v3883
    %v3885 = vshll.u32 2131351028, %v3876
    %v3886 = vshrl.u32 2102212464, %v3877
    %v3887 = vor.u32 %v3885, %v3886
    %v3888 = vshll.u32 2102212464, %v3876
    %v3889 = vshrl.u32 920167782, %v3877
    %v3890 = vor.u32 %v3888, %v3889
    %v3891 = vshll.u32 920167782, %v3876
    %v3892 = vshrl.u32 1326507024, %v3877
    %v3893 = vor.u32 %v3891, %v3892
    %vm3894 = vcmp.lt.s32.totalorder %v3875, 1
    %vm3895 = vcmp.lt.s32.totalorder %v3875, 2
    %vm3896 = vcmp.lt.s32.totalorder %v3875, 3
    %vm3897 = vcmp.lt.s32.totalorder %v3875, 4
    %v3898 = vsel %vm3894, %v3878, %v3881
    %v3899 = vsel %vm3897, %v3887, 2102212464
    %v3900 = vsel %vm3896, %v3884, %v3899
    %v3901 = vsel %vm3895, %v3898, %v3900
    %v3902 = vsel %vm3894, %v3881, %v3884
    %v3903 = vsel %vm3897, %v3890, 920167782
    %v3904 = vsel %vm3896, %v3887, %v3903
    %v3905 = vsel %vm3895, %v3902, %v3904
    %v3906 = vsel %vm3894, %v3884, %v3887
    %v3907 = vsel %vm3897, %v3893, 1326507024
    %v3908 = vsel %vm3896, %v3890, %v3907
    %v3909 = vsel %vm3895, %v3906, %v3908
    %v3910 = vshll.u32 %v3870, 8
    %v3911 = vmul.u32.u64.compose %v3910, %v3909
    %v3912 = vextract.low.u32 %v3911
    %v3913 = vextract.high.u32 %v3911
    %v3914 = vmul.u32.u64.compose %v3910, %v3905
    %v3915 = vextract.low.u32 %v3914
    %v3916 = vextract.high.u32 %v3914
    %v3917 = vmul.u32 %v3910, %v3901
    %v3918 = vadd.s32 %v3913, %v3915
    %vm3919 = vc.u32 %v3913, %v3915
    %v3920 = vadd.s32 %v3916, 1
    %v3921 = vsel %vm3919, %v3920, %v3916
    %v3922 = vadd.s32 %v3917, %v3921
    %v3923 = vadd.s32 %v3922, 536870912
    %v3924 = vshrl.u32 %v3923, 30
    %v3925 = vshll.u32 %v3924, 30
    %v3926 = vsub.s32 %v3922, %v3925
    %vm3927 = vcmp.lt.s32.totalorder %v3926, 0
    %v3928 = vsub.s32 0, %v3926
    %v3929 = vsel %vm3927, %v3928, %v3926
    %v3930 = vclz %v3929
    %v3931 = vsub.s32 %v3930, 2
    %vm3932 = vcmp.gt.s32.totalorder 0, %v3931
    %v3933 = vsel %vm3932, 0, %v3931
    %v3934 = vsub.s32 32, %v3933
    %v3935 = vshll.u32 %v3926, %v3933
    %v3936 = vshrl.u32 %v3918, %v3934
    %v3937 = vor.u32 %v3935, %v3936
    %v3938 = vsub.s32 4294967266, %v3933
    %v3939 = vadd.s32 %v3938, 127
    %v3940 = vshll.u32 %v3939, 23
    %v3941 = vor.u32 4788187, %v3940
    %v3942 = vand.u32 2147483647, %v3941
    %v3944 = vcvt.s32.f32 %v3937
    %v3945 = vmul.f32 %v3944, %v3942
    %v3946 = vxor.u32 %v3945, 2147483648
    %v3947 = vsel %vm3864, %v3946, %v3945
    %v3948 = vsub.s32 4, %v3924
    %v3949 = vsel %vm3864, %v3948, %v3924
    %v3950 = vsel %vm3863, %v635, %v3947
    %v3951 = vsel %vm3863, 0, %v3949
    %v3952 = vcosq.f32.pop %v3950
    %v3953 = vsinq.f32.pop %v3950
    %vm3954 = vweird.f32 %v635
    %v3955 = vadd.s32 %v3951, 3
    %v3956 = vand.u32 %v3955, 3
    %vm3957 = vcmp.lt.s32.totalorder %v3956, 2
    %vm3958 = vcmp.eq.s32.totalorder %v3956, 0
    %v3959 = vxor.u32 %v3953, 2147483648
    %v3960 = vsel %vm3958, %v3952, %v3959
    %vm3961 = vcmp.eq.s32.totalorder %v3956, 2
    %v3962 = vxor.u32 %v3952, 2147483648
    %v3963 = vsel %vm3961, %v3962, %v3953
    %v3964 = vsel %vm3957, %v3960, %v3963
    %v3965 = vsel %vm3954, nan, %v3964
    %v3966 = vadd.f32 %v232, %v741
    %v3967 = vadd.f32 %v237, %v845
    %v3968 = vadd.f32 %v242, %v949
    %v3969 = vadd.f32 %v247, %v1053
    %v3970 = vadd.f32 %v252, %v1157
    %v3971 = vadd.f32 %v257, %v1261
    %v3972 = vadd.f32 %v262, %v1365
    %v3973 = vadd.f32 %v267, %v1469
    %v3974 = vadd.f32 %v272, %v1573
    %v3975 = vadd.f32 %v277, %v1677
    %v3976 = vadd.f32 %v282, %v1781
    %v3977 = vadd.f32 %v287, %v1885
    %v3978 = vadd.f32 %v292, %v1989
    %v3979 = vadd.f32 %v297, %v2093
    %v3980 = vadd.f32 %v302, %v2197
    %v3981 = vadd.f32 %v307, %v2301
    %v3982 = vadd.f32 %v312, %v2405
    %v3983 = vadd.f32 %v317, %v2509
    %v3984 = vadd.f32 %v322, %v2613
    %v3985 = vadd.f32 %v327, %v2717
    %v3986 = vadd.f32 %v332, %v2821
    %v3987 = vadd.f32 %v337, %v2925
    %v3988 = vadd.f32 %v342, %v3029
    %v3989 = vadd.f32 %v347, %v3133
    %v3990 = vadd.f32 %v352, %v3237
    %v3991 = vadd.f32 %v357, %v3341
    %v3992 = vadd.f32 %v362, %v3445
    %v3993 = vadd.f32 %v367, %v3549
    %v3994 = vadd.f32 %v372, %v3653
    %v3995 = vadd.f32 %v377, %v3757
    %v3996 = vadd.f32 %v382, %v3861
    %v3997 = vadd.f32 %v387, %v3965
    %s3998 = scalar_lea.vmem [#allocation2], 128
    %v3999 = vld [vmem:[%s3998] sm:$0xff]
    %v4000 = vld [vmem:[%s3998 + $0x8] sm:$0xff]
    %v4001 = vld [vmem:[%s3998 + $0x10] sm:$0xff]
    %v4002 = vld [vmem:[%s3998 + $0x18] sm:$0xff]
    %v4003 = vld [vmem:[%s3998 + $0x20] sm:$0xff]
    %v4004 = vld [vmem:[%s3998 + $0x28] sm:$0xff]
    %v4005 = vld [vmem:[%s3998 + $0x30] sm:$0xff]
    %v4006 = vld [vmem:[%s3998 + $0x38] sm:$0xff]
    %v4007 = vld [vmem:[%s3998 + $0x40] sm:$0xff]
    %v4008 = vld [vmem:[%s3998 + $0x48] sm:$0xff]
    %v4009 = vld [vmem:[%s3998 + $0x50] sm:$0xff]
    %v4010 = vld [vmem:[%s3998 + $0x58] sm:$0xff]
    %v4011 = vld [vmem:[%s3998 + $0x60] sm:$0xff]
    %v4012 = vld [vmem:[%s3998 + $0x68] sm:$0xff]
    %v4013 = vld [vmem:[%s3998 + $0x70] sm:$0xff]
    %v4014 = vld [vmem:[%s3998 + $0x78] sm:$0xff]
    %s4015 = scalar_lea.vmem %s3, 1
    %v4016 = vld [vmem:[%s4015] sm:$0x1]
    %v4018 = vlaneseq
    %v4019 = vshrl.u32 %v4018, 7
    %v4020 = vsub.s32 0, %v4019
    %v4021 = vrot.slane %v4016, %v4020
    %4023 = vmatprep.subr.mxu0 0.0
    %4024 = vmatpush1.msra.mxu0 %v3999
    %4025 = vmatprep.subr.mxu0 0.0
    %4026 = vmatpush1.msra.mxu0 %v4000
    %4027 = vmatprep.subr.mxu0 0.0
    %4028 = vmatpush1.msra.mxu0 %v4001
    %4029 = vmatprep.subr.mxu0 0.0
    %4030 = vmatpush1.msra.mxu0 %v4002
    %4031 = vmatprep.subr.mxu0 0.0
    %4032 = vmatpush1.msra.mxu0 %v4003
    %4033 = vmatprep.subr.mxu0 0.0
    %4034 = vmatpush1.msra.mxu0 %v4004
    %4035 = vmatprep.subr.mxu0 0.0
    %4036 = vmatpush1.msra.mxu0 %v4005
    %4037 = vmatprep.subr.mxu0 0.0
    %4038 = vmatpush1.msra.mxu0 %v4006
    %4039 = vmatprep.subr.mxu0 0.0
    %4040 = vmatpush1.msra.mxu0 %v4007
    %4041 = vmatprep.subr.mxu0 0.0
    %4042 = vmatpush1.msra.mxu0 %v4008
    %4043 = vmatprep.subr.mxu0 0.0
    %4044 = vmatpush1.msra.mxu0 %v4009
    %4045 = vmatprep.subr.mxu0 0.0
    %4046 = vmatpush1.msra.mxu0 %v4010
    %4047 = vmatprep.subr.mxu0 0.0
    %4048 = vmatpush1.msra.mxu0 %v4011
    %4049 = vmatprep.subr.mxu0 0.0
    %4050 = vmatpush1.msra.mxu0 %v4012
    %4051 = vmatprep.subr.mxu0 0.0
    %4052 = vmatpush1.msra.mxu0 %v4013
    %4053 = vmatprep.subr.mxu0 0.0
    %4054 = vmatpush1.msra.mxu0 %v4014
    %4055 = vmatprep.subr.mxu0 0.0
    %4056 = vmatpush1.msra.mxu0 0.0
    %4057 = vmatprep.subr.mxu0 0.0
    %4058 = vmatpush1.msra.mxu0 0.0
    %4059 = vmatprep.subr.mxu0 0.0
    %4060 = vmatpush1.msra.mxu0 0.0
    %4061 = vmatprep.subr.mxu0 0.0
    %4062 = vmatpush1.msra.mxu0 0.0
    %4063 = vmatprep.subr.mxu0 0.0
    %4064 = vmatpush1.msra.mxu0 0.0
    %4065 = vmatprep.subr.mxu0 0.0
    %4066 = vmatpush1.msra.mxu0 0.0
    %4067 = vmatprep.subr.mxu0 0.0
    %4068 = vmatpush1.msra.mxu0 0.0
    %4069 = vmatprep.subr.mxu0 0.0
    %4070 = vmatpush1.msra.mxu0 0.0
    %4071 = vmatprep.subr.mxu0 0.0
    %4072 = vmatpush1.msra.mxu0 0.0
    %4073 = vmatprep.subr.mxu0 0.0
    %4074 = vmatpush1.msra.mxu0 0.0
    %4075 = vmatprep.subr.mxu0 0.0
    %4076 = vmatpush1.msra.mxu0 0.0
    %4077 = vmatprep.subr.mxu0 0.0
    %4078 = vmatpush1.msra.mxu0 0.0
    %4079 = vmatprep.subr.mxu0 0.0
    %4080 = vmatpush1.msra.mxu0 0.0
    %4081 = vmatprep.subr.mxu0 0.0
    %4082 = vmatpush1.msra.mxu0 0.0
    %4083 = vmatprep.subr.mxu0 0.0
    %4084 = vmatpush1.msra.mxu0 0.0
    %4085 = vmatprep.subr.mxu0 0.0
    %4086 = vmatpush1.msra.mxu0 0.0
    %4087 = vmatprep.mubr.f32.mxu0 0.0
    %4088 = vmatmul.mubr.f32.gmra.mrb[0].mxu0 %v3966
    %v4089 = vpop.f32.mrb[0].mxu0
    %v4090 = vadd.f32 %v4021, %v4089
    %v4091 = vpop.f32.mrb[0].mxu0
    %4092 = vmatprep.mubr.f32.mxu0 0.0
    %4093 = vmatmul.mubr.f32.gmra.mrb[0].mxu0 %v3967
    %v4094 = vpop.f32.mrb[0].mxu0
    %v4095 = vadd.f32 %v4021, %v4094
    %v4096 = vpop.f32.mrb[0].mxu0
    %4097 = vmatprep.mubr.f32.mxu0 0.0
    %4098 = vmatmul.mubr.f32.gmra.mrb[0].mxu0 %v3968
    %v4099 = vpop.f32.mrb[0].mxu0
    %v4100 = vadd.f32 %v4021, %v4099
    %v4101 = vpop.f32.mrb[0].mxu0
    %4102 = vmatprep.mubr.f32.mxu0 0.0
    %4103 = vmatmul.mubr.f32.gmra.mrb[0].mxu0 %v3969
    %v4104 = vpop.f32.mrb[0].mxu0
    %v4105 = vadd.f32 %v4021, %v4104
    %v4106 = vpop.f32.mrb[0].mxu0
    %4107 = vmatprep.mubr.f32.mxu0 0.0
    %4108 = vmatmul.mubr.f32.gmra.mrb[0].mxu0 %v3970
    %v4109 = vpop.f32.mrb[0].mxu0
    %v4110 = vadd.f32 %v4021, %v4109
    %v4111 = vpop.f32.mrb[0].mxu0
    %4112 = vmatprep.mubr.f32.mxu0 0.0
    %4113 = vmatmul.mubr.f32.gmra.mrb[0].mxu0 %v3971
    %v4114 = vpop.f32.mrb[0].mxu0
    %v4115 = vadd.f32 %v4021, %v4114
    %v4116 = vpop.f32.mrb[0].mxu0
    %4117 = vmatprep.mubr.f32.mxu0 0.0
    %4118 = vmatmul.mubr.f32.gmra.mrb[0].mxu0 %v3972
    %v4119 = vpop.f32.mrb[0].mxu0
    %v4120 = vadd.f32 %v4021, %v4119
    %v4121 = vpop.f32.mrb[0].mxu0
    %4122 = vmatprep.mubr.f32.mxu0 0.0
    %4123 = vmatmul.mubr.f32.gmra.mrb[0].mxu0 %v3973
    %v4124 = vpop.f32.mrb[0].mxu0
    %v4125 = vadd.f32 %v4021, %v4124
    %v4126 = vpop.f32.mrb[0].mxu0
    %4127 = vmatprep.mubr.f32.mxu0 0.0
    %4128 = vmatmul.mubr.f32.gmra.mrb[0].mxu0 %v3974
    %v4129 = vpop.f32.mrb[0].mxu0
    %v4130 = vadd.f32 %v4021, %v4129
    %v4131 = vpop.f32.mrb[0].mxu0
    %4132 = vmatprep.mubr.f32.mxu0 0.0
    %4133 = vmatmul.mubr.f32.gmra.mrb[0].mxu0 %v3975
    %v4134 = vpop.f32.mrb[0].mxu0
    %v4135 = vadd.f32 %v4021, %v4134
    %v4136 = vpop.f32.mrb[0].mxu0
    %4137 = vmatprep.mubr.f32.mxu0 0.0
    %4138 = vmatmul.mubr.f32.gmra.mrb[0].mxu0 %v3976
    %v4139 = vpop.f32.mrb[0].mxu0
    %v4140 = vadd.f32 %v4021, %v4139
    %v4141 = vpop.f32.mrb[0].mxu0
    %4142 = vmatprep.mubr.f32.mxu0 0.0
    %4143 = vmatmul.mubr.f32.gmra.mrb[0].mxu0 %v3977
    %v4144 = vpop.f32.mrb[0].mxu0
    %v4145 = vadd.f32 %v4021, %v4144
    %v4146 = vpop.f32.mrb[0].mxu0
    %4147 = vmatprep.mubr.f32.mxu0 0.0
    %4148 = vmatmul.mubr.f32.gmra.mrb[0].mxu0 %v3978
    %v4149 = vpop.f32.mrb[0].mxu0
    %v4150 = vadd.f32 %v4021, %v4149
    %v4151 = vpop.f32.mrb[0].mxu0
    %4152 = vmatprep.mubr.f32.mxu0 0.0
    %4153 = vmatmul.mubr.f32.gmra.mrb[0].mxu0 %v3979
    %v4154 = vpop.f32.mrb[0].mxu0
    %v4155 = vadd.f32 %v4021, %v4154
    %v4156 = vpop.f32.mrb[0].mxu0
    %4157 = vmatprep.mubr.f32.mxu0 0.0
    %4158 = vmatmul.mubr.f32.gmra.mrb[0].mxu0 %v3980
    %v4159 = vpop.f32.mrb[0].mxu0
    %v4160 = vadd.f32 %v4021, %v4159
    %v4161 = vpop.f32.mrb[0].mxu0
    %4162 = vmatprep.mubr.f32.mxu0 0.0
    %4163 = vmatmul.mubr.f32.gmra.mrb[0].mxu0 %v3981
    %v4164 = vpop.f32.mrb[0].mxu0
    %v4165 = vadd.f32 %v4021, %v4164
    %v4166 = vpop.f32.mrb[0].mxu0
    %4167 = vmatprep.mubr.f32.mxu0 0.0
    %4168 = vmatmul.mubr.f32.gmra.mrb[0].mxu0 %v3982
    %v4169 = vpop.f32.mrb[0].mxu0
    %v4170 = vadd.f32 %v4021, %v4169
    %v4171 = vpop.f32.mrb[0].mxu0
    %4172 = vmatprep.mubr.f32.mxu0 0.0
    %4173 = vmatmul.mubr.f32.gmra.mrb[0].mxu0 %v3983
    %v4174 = vpop.f32.mrb[0].mxu0
    %v4175 = vadd.f32 %v4021, %v4174
    %v4176 = vpop.f32.mrb[0].mxu0
    %4177 = vmatprep.mubr.f32.mxu0 0.0
    %4178 = vmatmul.mubr.f32.gmra.mrb[0].mxu0 %v3984
    %v4179 = vpop.f32.mrb[0].mxu0
    %v4180 = vadd.f32 %v4021, %v4179
    %v4181 = vpop.f32.mrb[0].mxu0
    %4182 = vmatprep.mubr.f32.mxu0 0.0
    %4183 = vmatmul.mubr.f32.gmra.mrb[0].mxu0 %v3985
    %v4184 = vpop.f32.mrb[0].mxu0
    %v4185 = vadd.f32 %v4021, %v4184
    %v4186 = vpop.f32.mrb[0].mxu0
    %4187 = vmatprep.mubr.f32.mxu0 0.0
    %4188 = vmatmul.mubr.f32.gmra.mrb[0].mxu0 %v3986
    %v4189 = vpop.f32.mrb[0].mxu0
    %v4190 = vadd.f32 %v4021, %v4189
    %v4191 = vpop.f32.mrb[0].mxu0
    %4192 = vmatprep.mubr.f32.mxu0 0.0
    %4193 = vmatmul.mubr.f32.gmra.mrb[0].mxu0 %v3987
    %v4194 = vpop.f32.mrb[0].mxu0
    %v4195 = vadd.f32 %v4021, %v4194
    %v4196 = vpop.f32.mrb[0].mxu0
    %4197 = vmatprep.mubr.f32.mxu0 0.0
    %4198 = vmatmul.mubr.f32.gmra.mrb[0].mxu0 %v3988
    %v4199 = vpop.f32.mrb[0].mxu0
    %v4200 = vadd.f32 %v4021, %v4199
    %v4201 = vpop.f32.mrb[0].mxu0
    %4202 = vmatprep.mubr.f32.mxu0 0.0
    %4203 = vmatmul.mubr.f32.gmra.mrb[0].mxu0 %v3989
    %v4204 = vpop.f32.mrb[0].mxu0
    %v4205 = vadd.f32 %v4021, %v4204
    %v4206 = vpop.f32.mrb[0].mxu0
    %4207 = vmatprep.mubr.f32.mxu0 0.0
    %4208 = vmatmul.mubr.f32.gmra.mrb[0].mxu0 %v3990
    %v4209 = vpop.f32.mrb[0].mxu0
    %v4210 = vadd.f32 %v4021, %v4209
    %v4211 = vpop.f32.mrb[0].mxu0
    %4212 = vmatprep.mubr.f32.mxu0 0.0
    %4213 = vmatmul.mubr.f32.gmra.mrb[0].mxu0 %v3991
    %v4214 = vpop.f32.mrb[0].mxu0
    %v4215 = vadd.f32 %v4021, %v4214
    %v4216 = vpop.f32.mrb[0].mxu0
    %4217 = vmatprep.mubr.f32.mxu0 0.0
    %4218 = vmatmul.mubr.f32.gmra.mrb[0].mxu0 %v3992
    %v4219 = vpop.f32.mrb[0].mxu0
    %v4220 = vadd.f32 %v4021, %v4219
    %v4221 = vpop.f32.mrb[0].mxu0
    %4222 = vmatprep.mubr.f32.mxu0 0.0
    %4223 = vmatmul.mubr.f32.gmra.mrb[0].mxu0 %v3993
    %v4224 = vpop.f32.mrb[0].mxu0
    %v4225 = vadd.f32 %v4021, %v4224
    %v4226 = vpop.f32.mrb[0].mxu0
    %4227 = vmatprep.mubr.f32.mxu0 0.0
    %4228 = vmatmul.mubr.f32.gmra.mrb[0].mxu0 %v3994
    %v4229 = vpop.f32.mrb[0].mxu0
    %v4230 = vadd.f32 %v4021, %v4229
    %v4231 = vpop.f32.mrb[0].mxu0
    %4232 = vmatprep.mubr.f32.mxu0 0.0
    %4233 = vmatmul.mubr.f32.gmra.mrb[0].mxu0 %v3995
    %v4234 = vpop.f32.mrb[0].mxu0
    %v4235 = vadd.f32 %v4021, %v4234
    %v4236 = vpop.f32.mrb[0].mxu0
    %4237 = vmatprep.mubr.f32.mxu0 0.0
    %4238 = vmatmul.mubr.f32.gmra.mrb[0].mxu0 %v3996
    %v4239 = vpop.f32.mrb[0].mxu0
    %v4240 = vadd.f32 %v4021, %v4239
    %v4241 = vpop.f32.mrb[0].mxu0
    %4242 = vmatprep.mubr.f32.mxu0 0.0
    %4243 = vmatmul.mubr.f32.gmra.mrb[0].mxu0 %v3997
    %v4244 = vpop.f32.mrb[0].mxu0
    %v4245 = vadd.f32 %v4021, %v4244
    %v4246 = vpop.f32.mrb[0].mxu0
    %4247 = vdwg.mxu0
    %v4248 = vand.u32 2147483647, %v4090
    %vm4249 = vcmp.le.f32.partialorder %v4248, 0.7853982
    %vm4250 = vcmp.lt.s32.totalorder %v4090, 0
    %v4251 = vand.u32 %v4090, 2139095040
    %v4252 = vshrl.u32 %v4251, 23
    %v4253 = vsub.s32 %v4252, 127
    %v4254 = vand.u32 2147483647, %v4090
    %v4255 = vand.u32 %v4254, 8388607
    %v4256 = vor.u32 %v4255, 8388608
    %v4257 = vsub.s32 0, %v4256
    %v4258 = vadd.s32 %v4253, 1
    %vm4259 = vcmp.gt.s32.totalorder %v4258, 0
    %v4260 = vsel %vm4259, %v4258, 0
    %v4261 = vshrl.u32 %v4260, 5
    %v4262 = vand.u32 %v4260, 31
    %v4263 = vsub.s32 32, %v4262
    %v4264 = vshrl.u32 683565275, %v4263
    %v4265 = vshll.u32 683565275, %v4262
    %v4266 = vshrl.u32 2475754826, %v4263
    %v4267 = vor.u32 %v4265, %v4266
    %v4268 = vshll.u32 2475754826, %v4262
    %v4269 = vshrl.u32 2131351028, %v4263
    %v4270 = vor.u32 %v4268, %v4269
    %v4271 = vshll.u32 2131351028, %v4262
    %v4272 = vshrl.u32 2102212464, %v4263
    %v4273 = vor.u32 %v4271, %v4272
    %v4274 = vshll.u32 2102212464, %v4262
    %v4275 = vshrl.u32 920167782, %v4263
    %v4276 = vor.u32 %v4274, %v4275
    %v4277 = vshll.u32 920167782, %v4262
    %v4278 = vshrl.u32 1326507024, %v4263
    %v4279 = vor.u32 %v4277, %v4278
    %vm4280 = vcmp.lt.s32.totalorder %v4261, 1
    %vm4281 = vcmp.lt.s32.totalorder %v4261, 2
    %vm4282 = vcmp.lt.s32.totalorder %v4261, 3
    %vm4283 = vcmp.lt.s32.totalorder %v4261, 4
    %v4284 = vsel %vm4280, %v4264, %v4267
    %v4285 = vsel %vm4283, %v4273, 2102212464
    %v4286 = vsel %vm4282, %v4270, %v4285
    %v4287 = vsel %vm4281, %v4284, %v4286
    %v4288 = vsel %vm4280, %v4267, %v4270
    %v4289 = vsel %vm4283, %v4276, 920167782
    %v4290 = vsel %vm4282, %v4273, %v4289
    %v4291 = vsel %vm4281, %v4288, %v4290
    %v4292 = vsel %vm4280, %v4270, %v4273
    %v4293 = vsel %vm4283, %v4279, 1326507024
    %v4294 = vsel %vm4282, %v4276, %v4293
    %v4295 = vsel %vm4281, %v4292, %v4294
    %v4296 = vshll.u32 %v4256, 8
    %v4297 = vmul.u32.u64.compose %v4296, %v4295
    %v4298 = vextract.low.u32 %v4297
    %v4299 = vextract.high.u32 %v4297
    %v4300 = vmul.u32.u64.compose %v4296, %v4291
    %v4301 = vextract.low.u32 %v4300
    %v4302 = vextract.high.u32 %v4300
    %v4303 = vmul.u32 %v4296, %v4287
    %v4304 = vadd.s32 %v4299, %v4301
    %vm4305 = vc.u32 %v4299, %v4301
    %v4306 = vadd.s32 %v4302, 1
    %v4307 = vsel %vm4305, %v4306, %v4302
    %v4308 = vadd.s32 %v4303, %v4307
    %v4309 = vadd.s32 %v4308, 536870912
    %v4310 = vshrl.u32 %v4309, 30
    %v4311 = vshll.u32 %v4310, 30
    %v4312 = vsub.s32 %v4308, %v4311
    %vm4313 = vcmp.lt.s32.totalorder %v4312, 0
    %v4314 = vsub.s32 0, %v4312
    %v4315 = vsel %vm4313, %v4314, %v4312
    %v4316 = vclz %v4315
    %v4317 = vsub.s32 %v4316, 2
    %vm4318 = vcmp.gt.s32.totalorder 0, %v4317
    %v4319 = vsel %vm4318, 0, %v4317
    %v4320 = vsub.s32 32, %v4319
    %v4321 = vshll.u32 %v4312, %v4319
    %v4322 = vshrl.u32 %v4304, %v4320
    %v4323 = vor.u32 %v4321, %v4322
    %v4324 = vsub.s32 4294967266, %v4319
    %v4325 = vadd.s32 %v4324, 127
    %v4326 = vshll.u32 %v4325, 23
    %v4327 = vor.u32 4788187, %v4326
    %v4328 = vand.u32 2147483647, %v4327
    %v4330 = vcvt.s32.f32 %v4323
    %v4331 = vmul.f32 %v4330, %v4328
    %v4332 = vxor.u32 %v4331, 2147483648
    %v4333 = vsel %vm4250, %v4332, %v4331
    %v4334 = vsub.s32 4, %v4310
    %v4335 = vsel %vm4250, %v4334, %v4310
    %v4336 = vsel %vm4249, %v4090, %v4333
    %v4337 = vsel %vm4249, 0, %v4335
    %v4338 = vcosq.f32.pop %v4336
    %v4339 = vsinq.f32.pop %v4336
    %vm4340 = vweird.f32 %v4090
    %v4341 = vadd.s32 %v4337, 3
    %v4342 = vand.u32 %v4341, 3
    %vm4343 = vcmp.lt.s32.totalorder %v4342, 2
    %vm4344 = vcmp.eq.s32.totalorder %v4342, 0
    %v4345 = vxor.u32 %v4339, 2147483648
    %v4346 = vsel %vm4344, %v4338, %v4345
    %vm4347 = vcmp.eq.s32.totalorder %v4342, 2
    %v4348 = vxor.u32 %v4338, 2147483648
    %v4349 = vsel %vm4347, %v4348, %v4339
    %v4350 = vsel %vm4343, %v4346, %v4349
    %v4351 = vsel %vm4340, nan, %v4350
    %v4352 = vand.u32 2147483647, %v4095
    %vm4353 = vcmp.le.f32.partialorder %v4352, 0.7853982
    %vm4354 = vcmp.lt.s32.totalorder %v4095, 0
    %v4355 = vand.u32 %v4095, 2139095040
    %v4356 = vshrl.u32 %v4355, 23
    %v4357 = vsub.s32 %v4356, 127
    %v4358 = vand.u32 2147483647, %v4095
    %v4359 = vand.u32 %v4358, 8388607
    %v4360 = vor.u32 %v4359, 8388608
    %v4361 = vsub.s32 0, %v4360
    %v4362 = vadd.s32 %v4357, 1
    %vm4363 = vcmp.gt.s32.totalorder %v4362, 0
    %v4364 = vsel %vm4363, %v4362, 0
    %v4365 = vshrl.u32 %v4364, 5
    %v4366 = vand.u32 %v4364, 31
    %v4367 = vsub.s32 32, %v4366
    %v4368 = vshrl.u32 683565275, %v4367
    %v4369 = vshll.u32 683565275, %v4366
    %v4370 = vshrl.u32 2475754826, %v4367
    %v4371 = vor.u32 %v4369, %v4370
    %v4372 = vshll.u32 2475754826, %v4366
    %v4373 = vshrl.u32 2131351028, %v4367
    %v4374 = vor.u32 %v4372, %v4373
    %v4375 = vshll.u32 2131351028, %v4366
    %v4376 = vshrl.u32 2102212464, %v4367
    %v4377 = vor.u32 %v4375, %v4376
    %v4378 = vshll.u32 2102212464, %v4366
    %v4379 = vshrl.u32 920167782, %v4367
    %v4380 = vor.u32 %v4378, %v4379
    %v4381 = vshll.u32 920167782, %v4366
    %v4382 = vshrl.u32 1326507024, %v4367
    %v4383 = vor.u32 %v4381, %v4382
    %vm4384 = vcmp.lt.s32.totalorder %v4365, 1
    %vm4385 = vcmp.lt.s32.totalorder %v4365, 2
    %vm4386 = vcmp.lt.s32.totalorder %v4365, 3
    %vm4387 = vcmp.lt.s32.totalorder %v4365, 4
    %v4388 = vsel %vm4384, %v4368, %v4371
    %v4389 = vsel %vm4387, %v4377, 2102212464
    %v4390 = vsel %vm4386, %v4374, %v4389
    %v4391 = vsel %vm4385, %v4388, %v4390
    %v4392 = vsel %vm4384, %v4371, %v4374
    %v4393 = vsel %vm4387, %v4380, 920167782
    %v4394 = vsel %vm4386, %v4377, %v4393
    %v4395 = vsel %vm4385, %v4392, %v4394
    %v4396 = vsel %vm4384, %v4374, %v4377
    %v4397 = vsel %vm4387, %v4383, 1326507024
    %v4398 = vsel %vm4386, %v4380, %v4397
    %v4399 = vsel %vm4385, %v4396, %v4398
    %v4400 = vshll.u32 %v4360, 8
    %v4401 = vmul.u32.u64.compose %v4400, %v4399
    %v4402 = vextract.low.u32 %v4401
    %v4403 = vextract.high.u32 %v4401
    %v4404 = vmul.u32.u64.compose %v4400, %v4395
    %v4405 = vextract.low.u32 %v4404
    %v4406 = vextract.high.u32 %v4404
    %v4407 = vmul.u32 %v4400, %v4391
    %v4408 = vadd.s32 %v4403, %v4405
    %vm4409 = vc.u32 %v4403, %v4405
    %v4410 = vadd.s32 %v4406, 1
    %v4411 = vsel %vm4409, %v4410, %v4406
    %v4412 = vadd.s32 %v4407, %v4411
    %v4413 = vadd.s32 %v4412, 536870912
    %v4414 = vshrl.u32 %v4413, 30
    %v4415 = vshll.u32 %v4414, 30
    %v4416 = vsub.s32 %v4412, %v4415
    %vm4417 = vcmp.lt.s32.totalorder %v4416, 0
    %v4418 = vsub.s32 0, %v4416
    %v4419 = vsel %vm4417, %v4418, %v4416
    %v4420 = vclz %v4419
    %v4421 = vsub.s32 %v4420, 2
    %vm4422 = vcmp.gt.s32.totalorder 0, %v4421
    %v4423 = vsel %vm4422, 0, %v4421
    %v4424 = vsub.s32 32, %v4423
    %v4425 = vshll.u32 %v4416, %v4423
    %v4426 = vshrl.u32 %v4408, %v4424
    %v4427 = vor.u32 %v4425, %v4426
    %v4428 = vsub.s32 4294967266, %v4423
    %v4429 = vadd.s32 %v4428, 127
    %v4430 = vshll.u32 %v4429, 23
    %v4431 = vor.u32 4788187, %v4430
    %v4432 = vand.u32 2147483647, %v4431
    %v4434 = vcvt.s32.f32 %v4427
    %v4435 = vmul.f32 %v4434, %v4432
    %v4436 = vxor.u32 %v4435, 2147483648
    %v4437 = vsel %vm4354, %v4436, %v4435
    %v4438 = vsub.s32 4, %v4414
    %v4439 = vsel %vm4354, %v4438, %v4414
    %v4440 = vsel %vm4353, %v4095, %v4437
    %v4441 = vsel %vm4353, 0, %v4439
    %v4442 = vcosq.f32.pop %v4440
    %v4443 = vsinq.f32.pop %v4440
    %vm4444 = vweird.f32 %v4095
    %v4445 = vadd.s32 %v4441, 3
    %v4446 = vand.u32 %v4445, 3
    %vm4447 = vcmp.lt.s32.totalorder %v4446, 2
    %vm4448 = vcmp.eq.s32.totalorder %v4446, 0
    %v4449 = vxor.u32 %v4443, 2147483648
    %v4450 = vsel %vm4448, %v4442, %v4449
    %vm4451 = vcmp.eq.s32.totalorder %v4446, 2
    %v4452 = vxor.u32 %v4442, 2147483648
    %v4453 = vsel %vm4451, %v4452, %v4443
    %v4454 = vsel %vm4447, %v4450, %v4453
    %v4455 = vsel %vm4444, nan, %v4454
    %v4456 = vand.u32 2147483647, %v4100
    %vm4457 = vcmp.le.f32.partialorder %v4456, 0.7853982
    %vm4458 = vcmp.lt.s32.totalorder %v4100, 0
    %v4459 = vand.u32 %v4100, 2139095040
    %v4460 = vshrl.u32 %v4459, 23
    %v4461 = vsub.s32 %v4460, 127
    %v4462 = vand.u32 2147483647, %v4100
    %v4463 = vand.u32 %v4462, 8388607
    %v4464 = vor.u32 %v4463, 8388608
    %v4465 = vsub.s32 0, %v4464
    %v4466 = vadd.s32 %v4461, 1
    %vm4467 = vcmp.gt.s32.totalorder %v4466, 0
    %v4468 = vsel %vm4467, %v4466, 0
    %v4469 = vshrl.u32 %v4468, 5
    %v4470 = vand.u32 %v4468, 31
    %v4471 = vsub.s32 32, %v4470
    %v4472 = vshrl.u32 683565275, %v4471
    %v4473 = vshll.u32 683565275, %v4470
    %v4474 = vshrl.u32 2475754826, %v4471
    %v4475 = vor.u32 %v4473, %v4474
    %v4476 = vshll.u32 2475754826, %v4470
    %v4477 = vshrl.u32 2131351028, %v4471
    %v4478 = vor.u32 %v4476, %v4477
    %v4479 = vshll.u32 2131351028, %v4470
    %v4480 = vshrl.u32 2102212464, %v4471
    %v4481 = vor.u32 %v4479, %v4480
    %v4482 = vshll.u32 2102212464, %v4470
    %v4483 = vshrl.u32 920167782, %v4471
    %v4484 = vor.u32 %v4482, %v4483
    %v4485 = vshll.u32 920167782, %v4470
    %v4486 = vshrl.u32 1326507024, %v4471
    %v4487 = vor.u32 %v4485, %v4486
    %vm4488 = vcmp.lt.s32.totalorder %v4469, 1
    %vm4489 = vcmp.lt.s32.totalorder %v4469, 2
    %vm4490 = vcmp.lt.s32.totalorder %v4469, 3
    %vm4491 = vcmp.lt.s32.totalorder %v4469, 4
    %v4492 = vsel %vm4488, %v4472, %v4475
    %v4493 = vsel %vm4491, %v4481, 2102212464
    %v4494 = vsel %vm4490, %v4478, %v4493
    %v4495 = vsel %vm4489, %v4492, %v4494
    %v4496 = vsel %vm4488, %v4475, %v4478
    %v4497 = vsel %vm4491, %v4484, 920167782
    %v4498 = vsel %vm4490, %v4481, %v4497
    %v4499 = vsel %vm4489, %v4496, %v4498
    %v4500 = vsel %vm4488, %v4478, %v4481
    %v4501 = vsel %vm4491, %v4487, 1326507024
    %v4502 = vsel %vm4490, %v4484, %v4501
    %v4503 = vsel %vm4489, %v4500, %v4502
    %v4504 = vshll.u32 %v4464, 8
    %v4505 = vmul.u32.u64.compose %v4504, %v4503
    %v4506 = vextract.low.u32 %v4505
    %v4507 = vextract.high.u32 %v4505
    %v4508 = vmul.u32.u64.compose %v4504, %v4499
    %v4509 = vextract.low.u32 %v4508
    %v4510 = vextract.high.u32 %v4508
    %v4511 = vmul.u32 %v4504, %v4495
    %v4512 = vadd.s32 %v4507, %v4509
    %vm4513 = vc.u32 %v4507, %v4509
    %v4514 = vadd.s32 %v4510, 1
    %v4515 = vsel %vm4513, %v4514, %v4510
    %v4516 = vadd.s32 %v4511, %v4515
    %v4517 = vadd.s32 %v4516, 536870912
    %v4518 = vshrl.u32 %v4517, 30
    %v4519 = vshll.u32 %v4518, 30
    %v4520 = vsub.s32 %v4516, %v4519
    %vm4521 = vcmp.lt.s32.totalorder %v4520, 0
    %v4522 = vsub.s32 0, %v4520
    %v4523 = vsel %vm4521, %v4522, %v4520
    %v4524 = vclz %v4523
    %v4525 = vsub.s32 %v4524, 2
    %vm4526 = vcmp.gt.s32.totalorder 0, %v4525
    %v4527 = vsel %vm4526, 0, %v4525
    %v4528 = vsub.s32 32, %v4527
    %v4529 = vshll.u32 %v4520, %v4527
    %v4530 = vshrl.u32 %v4512, %v4528
    %v4531 = vor.u32 %v4529, %v4530
    %v4532 = vsub.s32 4294967266, %v4527
    %v4533 = vadd.s32 %v4532, 127
    %v4534 = vshll.u32 %v4533, 23
    %v4535 = vor.u32 4788187, %v4534
    %v4536 = vand.u32 2147483647, %v4535
    %v4538 = vcvt.s32.f32 %v4531
    %v4539 = vmul.f32 %v4538, %v4536
    %v4540 = vxor.u32 %v4539, 2147483648
    %v4541 = vsel %vm4458, %v4540, %v4539
    %v4542 = vsub.s32 4, %v4518
    %v4543 = vsel %vm4458, %v4542, %v4518
    %v4544 = vsel %vm4457, %v4100, %v4541
    %v4545 = vsel %vm4457, 0, %v4543
    %v4546 = vcosq.f32.pop %v4544
    %v4547 = vsinq.f32.pop %v4544
    %vm4548 = vweird.f32 %v4100
    %v4549 = vadd.s32 %v4545, 3
    %v4550 = vand.u32 %v4549, 3
    %vm4551 = vcmp.lt.s32.totalorder %v4550, 2
    %vm4552 = vcmp.eq.s32.totalorder %v4550, 0
    %v4553 = vxor.u32 %v4547, 2147483648
    %v4554 = vsel %vm4552, %v4546, %v4553
    %vm4555 = vcmp.eq.s32.totalorder %v4550, 2
    %v4556 = vxor.u32 %v4546, 2147483648
    %v4557 = vsel %vm4555, %v4556, %v4547
    %v4558 = vsel %vm4551, %v4554, %v4557
    %v4559 = vsel %vm4548, nan, %v4558
    %v4560 = vand.u32 2147483647, %v4105
    %vm4561 = vcmp.le.f32.partialorder %v4560, 0.7853982
    %vm4562 = vcmp.lt.s32.totalorder %v4105, 0
    %v4563 = vand.u32 %v4105, 2139095040
    %v4564 = vshrl.u32 %v4563, 23
    %v4565 = vsub.s32 %v4564, 127
    %v4566 = vand.u32 2147483647, %v4105
    %v4567 = vand.u32 %v4566, 8388607
    %v4568 = vor.u32 %v4567, 8388608
    %v4569 = vsub.s32 0, %v4568
    %v4570 = vadd.s32 %v4565, 1
    %vm4571 = vcmp.gt.s32.totalorder %v4570, 0
    %v4572 = vsel %vm4571, %v4570, 0
    %v4573 = vshrl.u32 %v4572, 5
    %v4574 = vand.u32 %v4572, 31
    %v4575 = vsub.s32 32, %v4574
    %v4576 = vshrl.u32 683565275, %v4575
    %v4577 = vshll.u32 683565275, %v4574
    %v4578 = vshrl.u32 2475754826, %v4575
    %v4579 = vor.u32 %v4577, %v4578
    %v4580 = vshll.u32 2475754826, %v4574
    %v4581 = vshrl.u32 2131351028, %v4575
    %v4582 = vor.u32 %v4580, %v4581
    %v4583 = vshll.u32 2131351028, %v4574
    %v4584 = vshrl.u32 2102212464, %v4575
    %v4585 = vor.u32 %v4583, %v4584
    %v4586 = vshll.u32 2102212464, %v4574
    %v4587 = vshrl.u32 920167782, %v4575
    %v4588 = vor.u32 %v4586, %v4587
    %v4589 = vshll.u32 920167782, %v4574
    %v4590 = vshrl.u32 1326507024, %v4575
    %v4591 = vor.u32 %v4589, %v4590
    %vm4592 = vcmp.lt.s32.totalorder %v4573, 1
    %vm4593 = vcmp.lt.s32.totalorder %v4573, 2
    %vm4594 = vcmp.lt.s32.totalorder %v4573, 3
    %vm4595 = vcmp.lt.s32.totalorder %v4573, 4
    %v4596 = vsel %vm4592, %v4576, %v4579
    %v4597 = vsel %vm4595, %v4585, 2102212464
    %v4598 = vsel %vm4594, %v4582, %v4597
    %v4599 = vsel %vm4593, %v4596, %v4598
    %v4600 = vsel %vm4592, %v4579, %v4582
    %v4601 = vsel %vm4595, %v4588, 920167782
    %v4602 = vsel %vm4594, %v4585, %v4601
    %v4603 = vsel %vm4593, %v4600, %v4602
    %v4604 = vsel %vm4592, %v4582, %v4585
    %v4605 = vsel %vm4595, %v4591, 1326507024
    %v4606 = vsel %vm4594, %v4588, %v4605
    %v4607 = vsel %vm4593, %v4604, %v4606
    %v4608 = vshll.u32 %v4568, 8
    %v4609 = vmul.u32.u64.compose %v4608, %v4607
    %v4610 = vextract.low.u32 %v4609
    %v4611 = vextract.high.u32 %v4609
    %v4612 = vmul.u32.u64.compose %v4608, %v4603
    %v4613 = vextract.low.u32 %v4612
    %v4614 = vextract.high.u32 %v4612
    %v4615 = vmul.u32 %v4608, %v4599
    %v4616 = vadd.s32 %v4611, %v4613
    %vm4617 = vc.u32 %v4611, %v4613
    %v4618 = vadd.s32 %v4614, 1
    %v4619 = vsel %vm4617, %v4618, %v4614
    %v4620 = vadd.s32 %v4615, %v4619
    %v4621 = vadd.s32 %v4620, 536870912
    %v4622 = vshrl.u32 %v4621, 30
    %v4623 = vshll.u32 %v4622, 30
    %v4624 = vsub.s32 %v4620, %v4623
    %vm4625 = vcmp.lt.s32.totalorder %v4624, 0
    %v4626 = vsub.s32 0, %v4624
    %v4627 = vsel %vm4625, %v4626, %v4624
    %v4628 = vclz %v4627
    %v4629 = vsub.s32 %v4628, 2
    %vm4630 = vcmp.gt.s32.totalorder 0, %v4629
    %v4631 = vsel %vm4630, 0, %v4629
    %v4632 = vsub.s32 32, %v4631
    %v4633 = vshll.u32 %v4624, %v4631
    %v4634 = vshrl.u32 %v4616, %v4632
    %v4635 = vor.u32 %v4633, %v4634
    %v4636 = vsub.s32 4294967266, %v4631
    %v4637 = vadd.s32 %v4636, 127
    %v4638 = vshll.u32 %v4637, 23
    %v4639 = vor.u32 4788187, %v4638
    %v4640 = vand.u32 2147483647, %v4639
    %v4642 = vcvt.s32.f32 %v4635
    %v4643 = vmul.f32 %v4642, %v4640
    %v4644 = vxor.u32 %v4643, 2147483648
    %v4645 = vsel %vm4562, %v4644, %v4643
    %v4646 = vsub.s32 4, %v4622
    %v4647 = vsel %vm4562, %v4646, %v4622
    %v4648 = vsel %vm4561, %v4105, %v4645
    %v4649 = vsel %vm4561, 0, %v4647
    %v4650 = vcosq.f32.pop %v4648
    %v4651 = vsinq.f32.pop %v4648
    %vm4652 = vweird.f32 %v4105
    %v4653 = vadd.s32 %v4649, 3
    %v4654 = vand.u32 %v4653, 3
    %vm4655 = vcmp.lt.s32.totalorder %v4654, 2
    %vm4656 = vcmp.eq.s32.totalorder %v4654, 0
    %v4657 = vxor.u32 %v4651, 2147483648
    %v4658 = vsel %vm4656, %v4650, %v4657
    %vm4659 = vcmp.eq.s32.totalorder %v4654, 2
    %v4660 = vxor.u32 %v4650, 2147483648
    %v4661 = vsel %vm4659, %v4660, %v4651
    %v4662 = vsel %vm4655, %v4658, %v4661
    %v4663 = vsel %vm4652, nan, %v4662
    %v4664 = vand.u32 2147483647, %v4110
    %vm4665 = vcmp.le.f32.partialorder %v4664, 0.7853982
    %vm4666 = vcmp.lt.s32.totalorder %v4110, 0
    %v4667 = vand.u32 %v4110, 2139095040
    %v4668 = vshrl.u32 %v4667, 23
    %v4669 = vsub.s32 %v4668, 127
    %v4670 = vand.u32 2147483647, %v4110
    %v4671 = vand.u32 %v4670, 8388607
    %v4672 = vor.u32 %v4671, 8388608
    %v4673 = vsub.s32 0, %v4672
    %v4674 = vadd.s32 %v4669, 1
    %vm4675 = vcmp.gt.s32.totalorder %v4674, 0
    %v4676 = vsel %vm4675, %v4674, 0
    %v4677 = vshrl.u32 %v4676, 5
    %v4678 = vand.u32 %v4676, 31
    %v4679 = vsub.s32 32, %v4678
    %v4680 = vshrl.u32 683565275, %v4679
    %v4681 = vshll.u32 683565275, %v4678
    %v4682 = vshrl.u32 2475754826, %v4679
    %v4683 = vor.u32 %v4681, %v4682
    %v4684 = vshll.u32 2475754826, %v4678
    %v4685 = vshrl.u32 2131351028, %v4679
    %v4686 = vor.u32 %v4684, %v4685
    %v4687 = vshll.u32 2131351028, %v4678
    %v4688 = vshrl.u32 2102212464, %v4679
    %v4689 = vor.u32 %v4687, %v4688
    %v4690 = vshll.u32 2102212464, %v4678
    %v4691 = vshrl.u32 920167782, %v4679
    %v4692 = vor.u32 %v4690, %v4691
    %v4693 = vshll.u32 920167782, %v4678
    %v4694 = vshrl.u32 1326507024, %v4679
    %v4695 = vor.u32 %v4693, %v4694
    %vm4696 = vcmp.lt.s32.totalorder %v4677, 1
    %vm4697 = vcmp.lt.s32.totalorder %v4677, 2
    %vm4698 = vcmp.lt.s32.totalorder %v4677, 3
    %vm4699 = vcmp.lt.s32.totalorder %v4677, 4
    %v4700 = vsel %vm4696, %v4680, %v4683
    %v4701 = vsel %vm4699, %v4689, 2102212464
    %v4702 = vsel %vm4698, %v4686, %v4701
    %v4703 = vsel %vm4697, %v4700, %v4702
    %v4704 = vsel %vm4696, %v4683, %v4686
    %v4705 = vsel %vm4699, %v4692, 920167782
    %v4706 = vsel %vm4698, %v4689, %v4705
    %v4707 = vsel %vm4697, %v4704, %v4706
    %v4708 = vsel %vm4696, %v4686, %v4689
    %v4709 = vsel %vm4699, %v4695, 1326507024
    %v4710 = vsel %vm4698, %v4692, %v4709
    %v4711 = vsel %vm4697, %v4708, %v4710
    %v4712 = vshll.u32 %v4672, 8
    %v4713 = vmul.u32.u64.compose %v4712, %v4711
    %v4714 = vextract.low.u32 %v4713
    %v4715 = vextract.high.u32 %v4713
    %v4716 = vmul.u32.u64.compose %v4712, %v4707
    %v4717 = vextract.low.u32 %v4716
    %v4718 = vextract.high.u32 %v4716
    %v4719 = vmul.u32 %v4712, %v4703
    %v4720 = vadd.s32 %v4715, %v4717
    %vm4721 = vc.u32 %v4715, %v4717
    %v4722 = vadd.s32 %v4718, 1
    %v4723 = vsel %vm4721, %v4722, %v4718
    %v4724 = vadd.s32 %v4719, %v4723
    %v4725 = vadd.s32 %v4724, 536870912
    %v4726 = vshrl.u32 %v4725, 30
    %v4727 = vshll.u32 %v4726, 30
    %v4728 = vsub.s32 %v4724, %v4727
    %vm4729 = vcmp.lt.s32.totalorder %v4728, 0
    %v4730 = vsub.s32 0, %v4728
    %v4731 = vsel %vm4729, %v4730, %v4728
    %v4732 = vclz %v4731
    %v4733 = vsub.s32 %v4732, 2
    %vm4734 = vcmp.gt.s32.totalorder 0, %v4733
    %v4735 = vsel %vm4734, 0, %v4733
    %v4736 = vsub.s32 32, %v4735
    %v4737 = vshll.u32 %v4728, %v4735
    %v4738 = vshrl.u32 %v4720, %v4736
    %v4739 = vor.u32 %v4737, %v4738
    %v4740 = vsub.s32 4294967266, %v4735
    %v4741 = vadd.s32 %v4740, 127
    %v4742 = vshll.u32 %v4741, 23
    %v4743 = vor.u32 4788187, %v4742
    %v4744 = vand.u32 2147483647, %v4743
    %v4746 = vcvt.s32.f32 %v4739
    %v4747 = vmul.f32 %v4746, %v4744
    %v4748 = vxor.u32 %v4747, 2147483648
    %v4749 = vsel %vm4666, %v4748, %v4747
    %v4750 = vsub.s32 4, %v4726
    %v4751 = vsel %vm4666, %v4750, %v4726
    %v4752 = vsel %vm4665, %v4110, %v4749
    %v4753 = vsel %vm4665, 0, %v4751
    %v4754 = vcosq.f32.pop %v4752
    %v4755 = vsinq.f32.pop %v4752
    %vm4756 = vweird.f32 %v4110
    %v4757 = vadd.s32 %v4753, 3
    %v4758 = vand.u32 %v4757, 3
    %vm4759 = vcmp.lt.s32.totalorder %v4758, 2
    %vm4760 = vcmp.eq.s32.totalorder %v4758, 0
    %v4761 = vxor.u32 %v4755, 2147483648
    %v4762 = vsel %vm4760, %v4754, %v4761
    %vm4763 = vcmp.eq.s32.totalorder %v4758, 2
    %v4764 = vxor.u32 %v4754, 2147483648
    %v4765 = vsel %vm4763, %v4764, %v4755
    %v4766 = vsel %vm4759, %v4762, %v4765
    %v4767 = vsel %vm4756, nan, %v4766
    %v4768 = vand.u32 2147483647, %v4115
    %vm4769 = vcmp.le.f32.partialorder %v4768, 0.7853982
    %vm4770 = vcmp.lt.s32.totalorder %v4115, 0
    %v4771 = vand.u32 %v4115, 2139095040
    %v4772 = vshrl.u32 %v4771, 23
    %v4773 = vsub.s32 %v4772, 127
    %v4774 = vand.u32 2147483647, %v4115
    %v4775 = vand.u32 %v4774, 8388607
    %v4776 = vor.u32 %v4775, 8388608
    %v4777 = vsub.s32 0, %v4776
    %v4778 = vadd.s32 %v4773, 1
    %vm4779 = vcmp.gt.s32.totalorder %v4778, 0
    %v4780 = vsel %vm4779, %v4778, 0
    %v4781 = vshrl.u32 %v4780, 5
    %v4782 = vand.u32 %v4780, 31
    %v4783 = vsub.s32 32, %v4782
    %v4784 = vshrl.u32 683565275, %v4783
    %v4785 = vshll.u32 683565275, %v4782
    %v4786 = vshrl.u32 2475754826, %v4783
    %v4787 = vor.u32 %v4785, %v4786
    %v4788 = vshll.u32 2475754826, %v4782
    %v4789 = vshrl.u32 2131351028, %v4783
    %v4790 = vor.u32 %v4788, %v4789
    %v4791 = vshll.u32 2131351028, %v4782
    %v4792 = vshrl.u32 2102212464, %v4783
    %v4793 = vor.u32 %v4791, %v4792
    %v4794 = vshll.u32 2102212464, %v4782
    %v4795 = vshrl.u32 920167782, %v4783
    %v4796 = vor.u32 %v4794, %v4795
    %v4797 = vshll.u32 920167782, %v4782
    %v4798 = vshrl.u32 1326507024, %v4783
    %v4799 = vor.u32 %v4797, %v4798
    %vm4800 = vcmp.lt.s32.totalorder %v4781, 1
    %vm4801 = vcmp.lt.s32.totalorder %v4781, 2
    %vm4802 = vcmp.lt.s32.totalorder %v4781, 3
    %vm4803 = vcmp.lt.s32.totalorder %v4781, 4
    %v4804 = vsel %vm4800, %v4784, %v4787
    %v4805 = vsel %vm4803, %v4793, 2102212464
    %v4806 = vsel %vm4802, %v4790, %v4805
    %v4807 = vsel %vm4801, %v4804, %v4806
    %v4808 = vsel %vm4800, %v4787, %v4790
    %v4809 = vsel %vm4803, %v4796, 920167782
    %v4810 = vsel %vm4802, %v4793, %v4809
    %v4811 = vsel %vm4801, %v4808, %v4810
    %v4812 = vsel %vm4800, %v4790, %v4793
    %v4813 = vsel %vm4803, %v4799, 1326507024
    %v4814 = vsel %vm4802, %v4796, %v4813
    %v4815 = vsel %vm4801, %v4812, %v4814
    %v4816 = vshll.u32 %v4776, 8
    %v4817 = vmul.u32.u64.compose %v4816, %v4815
    %v4818 = vextract.low.u32 %v4817
    %v4819 = vextract.high.u32 %v4817
    %v4820 = vmul.u32.u64.compose %v4816, %v4811
    %v4821 = vextract.low.u32 %v4820
    %v4822 = vextract.high.u32 %v4820
    %v4823 = vmul.u32 %v4816, %v4807
    %v4824 = vadd.s32 %v4819, %v4821
    %vm4825 = vc.u32 %v4819, %v4821
    %v4826 = vadd.s32 %v4822, 1
    %v4827 = vsel %vm4825, %v4826, %v4822
    %v4828 = vadd.s32 %v4823, %v4827
    %v4829 = vadd.s32 %v4828, 536870912
    %v4830 = vshrl.u32 %v4829, 30
    %v4831 = vshll.u32 %v4830, 30
    %v4832 = vsub.s32 %v4828, %v4831
    %vm4833 = vcmp.lt.s32.totalorder %v4832, 0
    %v4834 = vsub.s32 0, %v4832
    %v4835 = vsel %vm4833, %v4834, %v4832
    %v4836 = vclz %v4835
    %v4837 = vsub.s32 %v4836, 2
    %vm4838 = vcmp.gt.s32.totalorder 0, %v4837
    %v4839 = vsel %vm4838, 0, %v4837
    %v4840 = vsub.s32 32, %v4839
    %v4841 = vshll.u32 %v4832, %v4839
    %v4842 = vshrl.u32 %v4824, %v4840
    %v4843 = vor.u32 %v4841, %v4842
    %v4844 = vsub.s32 4294967266, %v4839
    %v4845 = vadd.s32 %v4844, 127
    %v4846 = vshll.u32 %v4845, 23
    %v4847 = vor.u32 4788187, %v4846
    %v4848 = vand.u32 2147483647, %v4847
    %v4850 = vcvt.s32.f32 %v4843
    %v4851 = vmul.f32 %v4850, %v4848
    %v4852 = vxor.u32 %v4851, 2147483648
    %v4853 = vsel %vm4770, %v4852, %v4851
    %v4854 = vsub.s32 4, %v4830
    %v4855 = vsel %vm4770, %v4854, %v4830
    %v4856 = vsel %vm4769, %v4115, %v4853
    %v4857 = vsel %vm4769, 0, %v4855
    %v4858 = vcosq.f32.pop %v4856
    %v4859 = vsinq.f32.pop %v4856
    %vm4860 = vweird.f32 %v4115
    %v4861 = vadd.s32 %v4857, 3
    %v4862 = vand.u32 %v4861, 3
    %vm4863 = vcmp.lt.s32.totalorder %v4862, 2
    %vm4864 = vcmp.eq.s32.totalorder %v4862, 0
    %v4865 = vxor.u32 %v4859, 2147483648
    %v4866 = vsel %vm4864, %v4858, %v4865
    %vm4867 = vcmp.eq.s32.totalorder %v4862, 2
    %v4868 = vxor.u32 %v4858, 2147483648
    %v4869 = vsel %vm4867, %v4868, %v4859
    %v4870 = vsel %vm4863, %v4866, %v4869
    %v4871 = vsel %vm4860, nan, %v4870
    %v4872 = vand.u32 2147483647, %v4120
    %vm4873 = vcmp.le.f32.partialorder %v4872, 0.7853982
    %vm4874 = vcmp.lt.s32.totalorder %v4120, 0
    %v4875 = vand.u32 %v4120, 2139095040
    %v4876 = vshrl.u32 %v4875, 23
    %v4877 = vsub.s32 %v4876, 127
    %v4878 = vand.u32 2147483647, %v4120
    %v4879 = vand.u32 %v4878, 8388607
    %v4880 = vor.u32 %v4879, 8388608
    %v4881 = vsub.s32 0, %v4880
    %v4882 = vadd.s32 %v4877, 1
    %vm4883 = vcmp.gt.s32.totalorder %v4882, 0
    %v4884 = vsel %vm4883, %v4882, 0
    %v4885 = vshrl.u32 %v4884, 5
    %v4886 = vand.u32 %v4884, 31
    %v4887 = vsub.s32 32, %v4886
    %v4888 = vshrl.u32 683565275, %v4887
    %v4889 = vshll.u32 683565275, %v4886
    %v4890 = vshrl.u32 2475754826, %v4887
    %v4891 = vor.u32 %v4889, %v4890
    %v4892 = vshll.u32 2475754826, %v4886
    %v4893 = vshrl.u32 2131351028, %v4887
    %v4894 = vor.u32 %v4892, %v4893
    %v4895 = vshll.u32 2131351028, %v4886
    %v4896 = vshrl.u32 2102212464, %v4887
    %v4897 = vor.u32 %v4895, %v4896
    %v4898 = vshll.u32 2102212464, %v4886
    %v4899 = vshrl.u32 920167782, %v4887
    %v4900 = vor.u32 %v4898, %v4899
    %v4901 = vshll.u32 920167782, %v4886
    %v4902 = vshrl.u32 1326507024, %v4887
    %v4903 = vor.u32 %v4901, %v4902
    %vm4904 = vcmp.lt.s32.totalorder %v4885, 1
    %vm4905 = vcmp.lt.s32.totalorder %v4885, 2
    %vm4906 = vcmp.lt.s32.totalorder %v4885, 3
    %vm4907 = vcmp.lt.s32.totalorder %v4885, 4
    %v4908 = vsel %vm4904, %v4888, %v4891
    %v4909 = vsel %vm4907, %v4897, 2102212464
    %v4910 = vsel %vm4906, %v4894, %v4909
    %v4911 = vsel %vm4905, %v4908, %v4910
    %v4912 = vsel %vm4904, %v4891, %v4894
    %v4913 = vsel %vm4907, %v4900, 920167782
    %v4914 = vsel %vm4906, %v4897, %v4913
    %v4915 = vsel %vm4905, %v4912, %v4914
    %v4916 = vsel %vm4904, %v4894, %v4897
    %v4917 = vsel %vm4907, %v4903, 1326507024
    %v4918 = vsel %vm4906, %v4900, %v4917
    %v4919 = vsel %vm4905, %v4916, %v4918
    %v4920 = vshll.u32 %v4880, 8
    %v4921 = vmul.u32.u64.compose %v4920, %v4919
    %v4922 = vextract.low.u32 %v4921
    %v4923 = vextract.high.u32 %v4921
    %v4924 = vmul.u32.u64.compose %v4920, %v4915
    %v4925 = vextract.low.u32 %v4924
    %v4926 = vextract.high.u32 %v4924
    %v4927 = vmul.u32 %v4920, %v4911
    %v4928 = vadd.s32 %v4923, %v4925
    %vm4929 = vc.u32 %v4923, %v4925
    %v4930 = vadd.s32 %v4926, 1
    %v4931 = vsel %vm4929, %v4930, %v4926
    %v4932 = vadd.s32 %v4927, %v4931
    %v4933 = vadd.s32 %v4932, 536870912
    %v4934 = vshrl.u32 %v4933, 30
    %v4935 = vshll.u32 %v4934, 30
    %v4936 = vsub.s32 %v4932, %v4935
    %vm4937 = vcmp.lt.s32.totalorder %v4936, 0
    %v4938 = vsub.s32 0, %v4936
    %v4939 = vsel %vm4937, %v4938, %v4936
    %v4940 = vclz %v4939
    %v4941 = vsub.s32 %v4940, 2
    %vm4942 = vcmp.gt.s32.totalorder 0, %v4941
    %v4943 = vsel %vm4942, 0, %v4941
    %v4944 = vsub.s32 32, %v4943
    %v4945 = vshll.u32 %v4936, %v4943
    %v4946 = vshrl.u32 %v4928, %v4944
    %v4947 = vor.u32 %v4945, %v4946
    %v4948 = vsub.s32 4294967266, %v4943
    %v4949 = vadd.s32 %v4948, 127
    %v4950 = vshll.u32 %v4949, 23
    %v4951 = vor.u32 4788187, %v4950
    %v4952 = vand.u32 2147483647, %v4951
    %v4954 = vcvt.s32.f32 %v4947
    %v4955 = vmul.f32 %v4954, %v4952
    %v4956 = vxor.u32 %v4955, 2147483648
    %v4957 = vsel %vm4874, %v4956, %v4955
    %v4958 = vsub.s32 4, %v4934
    %v4959 = vsel %vm4874, %v4958, %v4934
    %v4960 = vsel %vm4873, %v4120, %v4957
    %v4961 = vsel %vm4873, 0, %v4959
    %v4962 = vcosq.f32.pop %v4960
    %v4963 = vsinq.f32.pop %v4960
    %vm4964 = vweird.f32 %v4120
    %v4965 = vadd.s32 %v4961, 3
    %v4966 = vand.u32 %v4965, 3
    %vm4967 = vcmp.lt.s32.totalorder %v4966, 2
    %vm4968 = vcmp.eq.s32.totalorder %v4966, 0
    %v4969 = vxor.u32 %v4963, 2147483648
    %v4970 = vsel %vm4968, %v4962, %v4969
    %vm4971 = vcmp.eq.s32.totalorder %v4966, 2
    %v4972 = vxor.u32 %v4962, 2147483648
    %v4973 = vsel %vm4971, %v4972, %v4963
    %v4974 = vsel %vm4967, %v4970, %v4973
    %v4975 = vsel %vm4964, nan, %v4974
    %v4976 = vand.u32 2147483647, %v4125
    %vm4977 = vcmp.le.f32.partialorder %v4976, 0.7853982
    %vm4978 = vcmp.lt.s32.totalorder %v4125, 0
    %v4979 = vand.u32 %v4125, 2139095040
    %v4980 = vshrl.u32 %v4979, 23
    %v4981 = vsub.s32 %v4980, 127
    %v4982 = vand.u32 2147483647, %v4125
    %v4983 = vand.u32 %v4982, 8388607
    %v4984 = vor.u32 %v4983, 8388608
    %v4985 = vsub.s32 0, %v4984
    %v4986 = vadd.s32 %v4981, 1
    %vm4987 = vcmp.gt.s32.totalorder %v4986, 0
    %v4988 = vsel %vm4987, %v4986, 0
    %v4989 = vshrl.u32 %v4988, 5
    %v4990 = vand.u32 %v4988, 31
    %v4991 = vsub.s32 32, %v4990
    %v4992 = vshrl.u32 683565275, %v4991
    %v4993 = vshll.u32 683565275, %v4990
    %v4994 = vshrl.u32 2475754826, %v4991
    %v4995 = vor.u32 %v4993, %v4994
    %v4996 = vshll.u32 2475754826, %v4990
    %v4997 = vshrl.u32 2131351028, %v4991
    %v4998 = vor.u32 %v4996, %v4997
    %v4999 = vshll.u32 2131351028, %v4990
    %v5000 = vshrl.u32 2102212464, %v4991
    %v5001 = vor.u32 %v4999, %v5000
    %v5002 = vshll.u32 2102212464, %v4990
    %v5003 = vshrl.u32 920167782, %v4991
    %v5004 = vor.u32 %v5002, %v5003
    %v5005 = vshll.u32 920167782, %v4990
    %v5006 = vshrl.u32 1326507024, %v4991
    %v5007 = vor.u32 %v5005, %v5006
    %vm5008 = vcmp.lt.s32.totalorder %v4989, 1
    %vm5009 = vcmp.lt.s32.totalorder %v4989, 2
    %vm5010 = vcmp.lt.s32.totalorder %v4989, 3
    %vm5011 = vcmp.lt.s32.totalorder %v4989, 4
    %v5012 = vsel %vm5008, %v4992, %v4995
    %v5013 = vsel %vm5011, %v5001, 2102212464
    %v5014 = vsel %vm5010, %v4998, %v5013
    %v5015 = vsel %vm5009, %v5012, %v5014
    %v5016 = vsel %vm5008, %v4995, %v4998
    %v5017 = vsel %vm5011, %v5004, 920167782
    %v5018 = vsel %vm5010, %v5001, %v5017
    %v5019 = vsel %vm5009, %v5016, %v5018
    %v5020 = vsel %vm5008, %v4998, %v5001
    %v5021 = vsel %vm5011, %v5007, 1326507024
    %v5022 = vsel %vm5010, %v5004, %v5021
    %v5023 = vsel %vm5009, %v5020, %v5022
    %v5024 = vshll.u32 %v4984, 8
    %v5025 = vmul.u32.u64.compose %v5024, %v5023
    %v5026 = vextract.low.u32 %v5025
    %v5027 = vextract.high.u32 %v5025
    %v5028 = vmul.u32.u64.compose %v5024, %v5019
    %v5029 = vextract.low.u32 %v5028
    %v5030 = vextract.high.u32 %v5028
    %v5031 = vmul.u32 %v5024, %v5015
    %v5032 = vadd.s32 %v5027, %v5029
    %vm5033 = vc.u32 %v5027, %v5029
    %v5034 = vadd.s32 %v5030, 1
    %v5035 = vsel %vm5033, %v5034, %v5030
    %v5036 = vadd.s32 %v5031, %v5035
    %v5037 = vadd.s32 %v5036, 536870912
    %v5038 = vshrl.u32 %v5037, 30
    %v5039 = vshll.u32 %v5038, 30
    %v5040 = vsub.s32 %v5036, %v5039
    %vm5041 = vcmp.lt.s32.totalorder %v5040, 0
    %v5042 = vsub.s32 0, %v5040
    %v5043 = vsel %vm5041, %v5042, %v5040
    %v5044 = vclz %v5043
    %v5045 = vsub.s32 %v5044, 2
    %vm5046 = vcmp.gt.s32.totalorder 0, %v5045
    %v5047 = vsel %vm5046, 0, %v5045
    %v5048 = vsub.s32 32, %v5047
    %v5049 = vshll.u32 %v5040, %v5047
    %v5050 = vshrl.u32 %v5032, %v5048
    %v5051 = vor.u32 %v5049, %v5050
    %v5052 = vsub.s32 4294967266, %v5047
    %v5053 = vadd.s32 %v5052, 127
    %v5054 = vshll.u32 %v5053, 23
    %v5055 = vor.u32 4788187, %v5054
    %v5056 = vand.u32 2147483647, %v5055
    %v5058 = vcvt.s32.f32 %v5051
    %v5059 = vmul.f32 %v5058, %v5056
    %v5060 = vxor.u32 %v5059, 2147483648
    %v5061 = vsel %vm4978, %v5060, %v5059
    %v5062 = vsub.s32 4, %v5038
    %v5063 = vsel %vm4978, %v5062, %v5038
    %v5064 = vsel %vm4977, %v4125, %v5061
    %v5065 = vsel %vm4977, 0, %v5063
    %v5066 = vcosq.f32.pop %v5064
    %v5067 = vsinq.f32.pop %v5064
    %vm5068 = vweird.f32 %v4125
    %v5069 = vadd.s32 %v5065, 3
    %v5070 = vand.u32 %v5069, 3
    %vm5071 = vcmp.lt.s32.totalorder %v5070, 2
    %vm5072 = vcmp.eq.s32.totalorder %v5070, 0
    %v5073 = vxor.u32 %v5067, 2147483648
    %v5074 = vsel %vm5072, %v5066, %v5073
    %vm5075 = vcmp.eq.s32.totalorder %v5070, 2
    %v5076 = vxor.u32 %v5066, 2147483648
    %v5077 = vsel %vm5075, %v5076, %v5067
    %v5078 = vsel %vm5071, %v5074, %v5077
    %v5079 = vsel %vm5068, nan, %v5078
    %v5080 = vand.u32 2147483647, %v4130
    %vm5081 = vcmp.le.f32.partialorder %v5080, 0.7853982
    %vm5082 = vcmp.lt.s32.totalorder %v4130, 0
    %v5083 = vand.u32 %v4130, 2139095040
    %v5084 = vshrl.u32 %v5083, 23
    %v5085 = vsub.s32 %v5084, 127
    %v5086 = vand.u32 2147483647, %v4130
    %v5087 = vand.u32 %v5086, 8388607
    %v5088 = vor.u32 %v5087, 8388608
    %v5089 = vsub.s32 0, %v5088
    %v5090 = vadd.s32 %v5085, 1
    %vm5091 = vcmp.gt.s32.totalorder %v5090, 0
    %v5092 = vsel %vm5091, %v5090, 0
    %v5093 = vshrl.u32 %v5092, 5
    %v5094 = vand.u32 %v5092, 31
    %v5095 = vsub.s32 32, %v5094
    %v5096 = vshrl.u32 683565275, %v5095
    %v5097 = vshll.u32 683565275, %v5094
    %v5098 = vshrl.u32 2475754826, %v5095
    %v5099 = vor.u32 %v5097, %v5098
    %v5100 = vshll.u32 2475754826, %v5094
    %v5101 = vshrl.u32 2131351028, %v5095
    %v5102 = vor.u32 %v5100, %v5101
    %v5103 = vshll.u32 2131351028, %v5094
    %v5104 = vshrl.u32 2102212464, %v5095
    %v5105 = vor.u32 %v5103, %v5104
    %v5106 = vshll.u32 2102212464, %v5094
    %v5107 = vshrl.u32 920167782, %v5095
    %v5108 = vor.u32 %v5106, %v5107
    %v5109 = vshll.u32 920167782, %v5094
    %v5110 = vshrl.u32 1326507024, %v5095
    %v5111 = vor.u32 %v5109, %v5110
    %vm5112 = vcmp.lt.s32.totalorder %v5093, 1
    %vm5113 = vcmp.lt.s32.totalorder %v5093, 2
    %vm5114 = vcmp.lt.s32.totalorder %v5093, 3
    %vm5115 = vcmp.lt.s32.totalorder %v5093, 4
    %v5116 = vsel %vm5112, %v5096, %v5099
    %v5117 = vsel %vm5115, %v5105, 2102212464
    %v5118 = vsel %vm5114, %v5102, %v5117
    %v5119 = vsel %vm5113, %v5116, %v5118
    %v5120 = vsel %vm5112, %v5099, %v5102
    %v5121 = vsel %vm5115, %v5108, 920167782
    %v5122 = vsel %vm5114, %v5105, %v5121
    %v5123 = vsel %vm5113, %v5120, %v5122
    %v5124 = vsel %vm5112, %v5102, %v5105
    %v5125 = vsel %vm5115, %v5111, 1326507024
    %v5126 = vsel %vm5114, %v5108, %v5125
    %v5127 = vsel %vm5113, %v5124, %v5126
    %v5128 = vshll.u32 %v5088, 8
    %v5129 = vmul.u32.u64.compose %v5128, %v5127
    %v5130 = vextract.low.u32 %v5129
    %v5131 = vextract.high.u32 %v5129
    %v5132 = vmul.u32.u64.compose %v5128, %v5123
    %v5133 = vextract.low.u32 %v5132
    %v5134 = vextract.high.u32 %v5132
    %v5135 = vmul.u32 %v5128, %v5119
    %v5136 = vadd.s32 %v5131, %v5133
    %vm5137 = vc.u32 %v5131, %v5133
    %v5138 = vadd.s32 %v5134, 1
    %v5139 = vsel %vm5137, %v5138, %v5134
    %v5140 = vadd.s32 %v5135, %v5139
    %v5141 = vadd.s32 %v5140, 536870912
    %v5142 = vshrl.u32 %v5141, 30
    %v5143 = vshll.u32 %v5142, 30
    %v5144 = vsub.s32 %v5140, %v5143
    %vm5145 = vcmp.lt.s32.totalorder %v5144, 0
    %v5146 = vsub.s32 0, %v5144
    %v5147 = vsel %vm5145, %v5146, %v5144
    %v5148 = vclz %v5147
    %v5149 = vsub.s32 %v5148, 2
    %vm5150 = vcmp.gt.s32.totalorder 0, %v5149
    %v5151 = vsel %vm5150, 0, %v5149
    %v5152 = vsub.s32 32, %v5151
    %v5153 = vshll.u32 %v5144, %v5151
    %v5154 = vshrl.u32 %v5136, %v5152
    %v5155 = vor.u32 %v5153, %v5154
    %v5156 = vsub.s32 4294967266, %v5151
    %v5157 = vadd.s32 %v5156, 127
    %v5158 = vshll.u32 %v5157, 23
    %v5159 = vor.u32 4788187, %v5158
    %v5160 = vand.u32 2147483647, %v5159
    %v5162 = vcvt.s32.f32 %v5155
    %v5163 = vmul.f32 %v5162, %v5160
    %v5164 = vxor.u32 %v5163, 2147483648
    %v5165 = vsel %vm5082, %v5164, %v5163
    %v5166 = vsub.s32 4, %v5142
    %v5167 = vsel %vm5082, %v5166, %v5142
    %v5168 = vsel %vm5081, %v4130, %v5165
    %v5169 = vsel %vm5081, 0, %v5167
    %v5170 = vcosq.f32.pop %v5168
    %v5171 = vsinq.f32.pop %v5168
    %vm5172 = vweird.f32 %v4130
    %v5173 = vadd.s32 %v5169, 3
    %v5174 = vand.u32 %v5173, 3
    %vm5175 = vcmp.lt.s32.totalorder %v5174, 2
    %vm5176 = vcmp.eq.s32.totalorder %v5174, 0
    %v5177 = vxor.u32 %v5171, 2147483648
    %v5178 = vsel %vm5176, %v5170, %v5177
    %vm5179 = vcmp.eq.s32.totalorder %v5174, 2
    %v5180 = vxor.u32 %v5170, 2147483648
    %v5181 = vsel %vm5179, %v5180, %v5171
    %v5182 = vsel %vm5175, %v5178, %v5181
    %v5183 = vsel %vm5172, nan, %v5182
    %v5184 = vand.u32 2147483647, %v4135
    %vm5185 = vcmp.le.f32.partialorder %v5184, 0.7853982
    %vm5186 = vcmp.lt.s32.totalorder %v4135, 0
    %v5187 = vand.u32 %v4135, 2139095040
    %v5188 = vshrl.u32 %v5187, 23
    %v5189 = vsub.s32 %v5188, 127
    %v5190 = vand.u32 2147483647, %v4135
    %v5191 = vand.u32 %v5190, 8388607
    %v5192 = vor.u32 %v5191, 8388608
    %v5193 = vsub.s32 0, %v5192
    %v5194 = vadd.s32 %v5189, 1
    %vm5195 = vcmp.gt.s32.totalorder %v5194, 0
    %v5196 = vsel %vm5195, %v5194, 0
    %v5197 = vshrl.u32 %v5196, 5
    %v5198 = vand.u32 %v5196, 31
    %v5199 = vsub.s32 32, %v5198
    %v5200 = vshrl.u32 683565275, %v5199
    %v5201 = vshll.u32 683565275, %v5198
    %v5202 = vshrl.u32 2475754826, %v5199
    %v5203 = vor.u32 %v5201, %v5202
    %v5204 = vshll.u32 2475754826, %v5198
    %v5205 = vshrl.u32 2131351028, %v5199
    %v5206 = vor.u32 %v5204, %v5205
    %v5207 = vshll.u32 2131351028, %v5198
    %v5208 = vshrl.u32 2102212464, %v5199
    %v5209 = vor.u32 %v5207, %v5208
    %v5210 = vshll.u32 2102212464, %v5198
    %v5211 = vshrl.u32 920167782, %v5199
    %v5212 = vor.u32 %v5210, %v5211
    %v5213 = vshll.u32 920167782, %v5198
    %v5214 = vshrl.u32 1326507024, %v5199
    %v5215 = vor.u32 %v5213, %v5214
    %vm5216 = vcmp.lt.s32.totalorder %v5197, 1
    %vm5217 = vcmp.lt.s32.totalorder %v5197, 2
    %vm5218 = vcmp.lt.s32.totalorder %v5197, 3
    %vm5219 = vcmp.lt.s32.totalorder %v5197, 4
    %v5220 = vsel %vm5216, %v5200, %v5203
    %v5221 = vsel %vm5219, %v5209, 2102212464
    %v5222 = vsel %vm5218, %v5206, %v5221
    %v5223 = vsel %vm5217, %v5220, %v5222
    %v5224 = vsel %vm5216, %v5203, %v5206
    %v5225 = vsel %vm5219, %v5212, 920167782
    %v5226 = vsel %vm5218, %v5209, %v5225
    %v5227 = vsel %vm5217, %v5224, %v5226
    %v5228 = vsel %vm5216, %v5206, %v5209
    %v5229 = vsel %vm5219, %v5215, 1326507024
    %v5230 = vsel %vm5218, %v5212, %v5229
    %v5231 = vsel %vm5217, %v5228, %v5230
    %v5232 = vshll.u32 %v5192, 8
    %v5233 = vmul.u32.u64.compose %v5232, %v5231
    %v5234 = vextract.low.u32 %v5233
    %v5235 = vextract.high.u32 %v5233
    %v5236 = vmul.u32.u64.compose %v5232, %v5227
    %v5237 = vextract.low.u32 %v5236
    %v5238 = vextract.high.u32 %v5236
    %v5239 = vmul.u32 %v5232, %v5223
    %v5240 = vadd.s32 %v5235, %v5237
    %vm5241 = vc.u32 %v5235, %v5237
    %v5242 = vadd.s32 %v5238, 1
    %v5243 = vsel %vm5241, %v5242, %v5238
    %v5244 = vadd.s32 %v5239, %v5243
    %v5245 = vadd.s32 %v5244, 536870912
    %v5246 = vshrl.u32 %v5245, 30
    %v5247 = vshll.u32 %v5246, 30
    %v5248 = vsub.s32 %v5244, %v5247
    %vm5249 = vcmp.lt.s32.totalorder %v5248, 0
    %v5250 = vsub.s32 0, %v5248
    %v5251 = vsel %vm5249, %v5250, %v5248
    %v5252 = vclz %v5251
    %v5253 = vsub.s32 %v5252, 2
    %vm5254 = vcmp.gt.s32.totalorder 0, %v5253
    %v5255 = vsel %vm5254, 0, %v5253
    %v5256 = vsub.s32 32, %v5255
    %v5257 = vshll.u32 %v5248, %v5255
    %v5258 = vshrl.u32 %v5240, %v5256
    %v5259 = vor.u32 %v5257, %v5258
    %v5260 = vsub.s32 4294967266, %v5255
    %v5261 = vadd.s32 %v5260, 127
    %v5262 = vshll.u32 %v5261, 23
    %v5263 = vor.u32 4788187, %v5262
    %v5264 = vand.u32 2147483647, %v5263
    %v5266 = vcvt.s32.f32 %v5259
    %v5267 = vmul.f32 %v5266, %v5264
    %v5268 = vxor.u32 %v5267, 2147483648
    %v5269 = vsel %vm5186, %v5268, %v5267
    %v5270 = vsub.s32 4, %v5246
    %v5271 = vsel %vm5186, %v5270, %v5246
    %v5272 = vsel %vm5185, %v4135, %v5269
    %v5273 = vsel %vm5185, 0, %v5271
    %v5274 = vcosq.f32.pop %v5272
    %v5275 = vsinq.f32.pop %v5272
    %vm5276 = vweird.f32 %v4135
    %v5277 = vadd.s32 %v5273, 3
    %v5278 = vand.u32 %v5277, 3
    %vm5279 = vcmp.lt.s32.totalorder %v5278, 2
    %vm5280 = vcmp.eq.s32.totalorder %v5278, 0
    %v5281 = vxor.u32 %v5275, 2147483648
    %v5282 = vsel %vm5280, %v5274, %v5281
    %vm5283 = vcmp.eq.s32.totalorder %v5278, 2
    %v5284 = vxor.u32 %v5274, 2147483648
    %v5285 = vsel %vm5283, %v5284, %v5275
    %v5286 = vsel %vm5279, %v5282, %v5285
    %v5287 = vsel %vm5276, nan, %v5286
    %v5288 = vand.u32 2147483647, %v4140
    %vm5289 = vcmp.le.f32.partialorder %v5288, 0.7853982
    %vm5290 = vcmp.lt.s32.totalorder %v4140, 0
    %v5291 = vand.u32 %v4140, 2139095040
    %v5292 = vshrl.u32 %v5291, 23
    %v5293 = vsub.s32 %v5292, 127
    %v5294 = vand.u32 2147483647, %v4140
    %v5295 = vand.u32 %v5294, 8388607
    %v5296 = vor.u32 %v5295, 8388608
    %v5297 = vsub.s32 0, %v5296
    %v5298 = vadd.s32 %v5293, 1
    %vm5299 = vcmp.gt.s32.totalorder %v5298, 0
    %v5300 = vsel %vm5299, %v5298, 0
    %v5301 = vshrl.u32 %v5300, 5
    %v5302 = vand.u32 %v5300, 31
    %v5303 = vsub.s32 32, %v5302
    %v5304 = vshrl.u32 683565275, %v5303
    %v5305 = vshll.u32 683565275, %v5302
    %v5306 = vshrl.u32 2475754826, %v5303
    %v5307 = vor.u32 %v5305, %v5306
    %v5308 = vshll.u32 2475754826, %v5302
    %v5309 = vshrl.u32 2131351028, %v5303
    %v5310 = vor.u32 %v5308, %v5309
    %v5311 = vshll.u32 2131351028, %v5302
    %v5312 = vshrl.u32 2102212464, %v5303
    %v5313 = vor.u32 %v5311, %v5312
    %v5314 = vshll.u32 2102212464, %v5302
    %v5315 = vshrl.u32 920167782, %v5303
    %v5316 = vor.u32 %v5314, %v5315
    %v5317 = vshll.u32 920167782, %v5302
    %v5318 = vshrl.u32 1326507024, %v5303
    %v5319 = vor.u32 %v5317, %v5318
    %vm5320 = vcmp.lt.s32.totalorder %v5301, 1
    %vm5321 = vcmp.lt.s32.totalorder %v5301, 2
    %vm5322 = vcmp.lt.s32.totalorder %v5301, 3
    %vm5323 = vcmp.lt.s32.totalorder %v5301, 4
    %v5324 = vsel %vm5320, %v5304, %v5307
    %v5325 = vsel %vm5323, %v5313, 2102212464
    %v5326 = vsel %vm5322, %v5310, %v5325
    %v5327 = vsel %vm5321, %v5324, %v5326
    %v5328 = vsel %vm5320, %v5307, %v5310
    %v5329 = vsel %vm5323, %v5316, 920167782
    %v5330 = vsel %vm5322, %v5313, %v5329
    %v5331 = vsel %vm5321, %v5328, %v5330
    %v5332 = vsel %vm5320, %v5310, %v5313
    %v5333 = vsel %vm5323, %v5319, 1326507024
    %v5334 = vsel %vm5322, %v5316, %v5333
    %v5335 = vsel %vm5321, %v5332, %v5334
    %v5336 = vshll.u32 %v5296, 8
    %v5337 = vmul.u32.u64.compose %v5336, %v5335
    %v5338 = vextract.low.u32 %v5337
    %v5339 = vextract.high.u32 %v5337
    %v5340 = vmul.u32.u64.compose %v5336, %v5331
    %v5341 = vextract.low.u32 %v5340
    %v5342 = vextract.high.u32 %v5340
    %v5343 = vmul.u32 %v5336, %v5327
    %v5344 = vadd.s32 %v5339, %v5341
    %vm5345 = vc.u32 %v5339, %v5341
    %v5346 = vadd.s32 %v5342, 1
    %v5347 = vsel %vm5345, %v5346, %v5342
    %v5348 = vadd.s32 %v5343, %v5347
    %v5349 = vadd.s32 %v5348, 536870912
    %v5350 = vshrl.u32 %v5349, 30
    %v5351 = vshll.u32 %v5350, 30
    %v5352 = vsub.s32 %v5348, %v5351
    %vm5353 = vcmp.lt.s32.totalorder %v5352, 0
    %v5354 = vsub.s32 0, %v5352
    %v5355 = vsel %vm5353, %v5354, %v5352
    %v5356 = vclz %v5355
    %v5357 = vsub.s32 %v5356, 2
    %vm5358 = vcmp.gt.s32.totalorder 0, %v5357
    %v5359 = vsel %vm5358, 0, %v5357
    %v5360 = vsub.s32 32, %v5359
    %v5361 = vshll.u32 %v5352, %v5359
    %v5362 = vshrl.u32 %v5344, %v5360
    %v5363 = vor.u32 %v5361, %v5362
    %v5364 = vsub.s32 4294967266, %v5359
    %v5365 = vadd.s32 %v5364, 127
    %v5366 = vshll.u32 %v5365, 23
    %v5367 = vor.u32 4788187, %v5366
    %v5368 = vand.u32 2147483647, %v5367
    %v5370 = vcvt.s32.f32 %v5363
    %v5371 = vmul.f32 %v5370, %v5368
    %v5372 = vxor.u32 %v5371, 2147483648
    %v5373 = vsel %vm5290, %v5372, %v5371
    %v5374 = vsub.s32 4, %v5350
    %v5375 = vsel %vm5290, %v5374, %v5350
    %v5376 = vsel %vm5289, %v4140, %v5373
    %v5377 = vsel %vm5289, 0, %v5375
    %v5378 = vcosq.f32.pop %v5376
    %v5379 = vsinq.f32.pop %v5376
    %vm5380 = vweird.f32 %v4140
    %v5381 = vadd.s32 %v5377, 3
    %v5382 = vand.u32 %v5381, 3
    %vm5383 = vcmp.lt.s32.totalorder %v5382, 2
    %vm5384 = vcmp.eq.s32.totalorder %v5382, 0
    %v5385 = vxor.u32 %v5379, 2147483648
    %v5386 = vsel %vm5384, %v5378, %v5385
    %vm5387 = vcmp.eq.s32.totalorder %v5382, 2
    %v5388 = vxor.u32 %v5378, 2147483648
    %v5389 = vsel %vm5387, %v5388, %v5379
    %v5390 = vsel %vm5383, %v5386, %v5389
    %v5391 = vsel %vm5380, nan, %v5390
    %v5392 = vand.u32 2147483647, %v4145
    %vm5393 = vcmp.le.f32.partialorder %v5392, 0.7853982
    %vm5394 = vcmp.lt.s32.totalorder %v4145, 0
    %v5395 = vand.u32 %v4145, 2139095040
    %v5396 = vshrl.u32 %v5395, 23
    %v5397 = vsub.s32 %v5396, 127
    %v5398 = vand.u32 2147483647, %v4145
    %v5399 = vand.u32 %v5398, 8388607
    %v5400 = vor.u32 %v5399, 8388608
    %v5401 = vsub.s32 0, %v5400
    %v5402 = vadd.s32 %v5397, 1
    %vm5403 = vcmp.gt.s32.totalorder %v5402, 0
    %v5404 = vsel %vm5403, %v5402, 0
    %v5405 = vshrl.u32 %v5404, 5
    %v5406 = vand.u32 %v5404, 31
    %v5407 = vsub.s32 32, %v5406
    %v5408 = vshrl.u32 683565275, %v5407
    %v5409 = vshll.u32 683565275, %v5406
    %v5410 = vshrl.u32 2475754826, %v5407
    %v5411 = vor.u32 %v5409, %v5410
    %v5412 = vshll.u32 2475754826, %v5406
    %v5413 = vshrl.u32 2131351028, %v5407
    %v5414 = vor.u32 %v5412, %v5413
    %v5415 = vshll.u32 2131351028, %v5406
    %v5416 = vshrl.u32 2102212464, %v5407
    %v5417 = vor.u32 %v5415, %v5416
    %v5418 = vshll.u32 2102212464, %v5406
    %v5419 = vshrl.u32 920167782, %v5407
    %v5420 = vor.u32 %v5418, %v5419
    %v5421 = vshll.u32 920167782, %v5406
    %v5422 = vshrl.u32 1326507024, %v5407
    %v5423 = vor.u32 %v5421, %v5422
    %vm5424 = vcmp.lt.s32.totalorder %v5405, 1
    %vm5425 = vcmp.lt.s32.totalorder %v5405, 2
    %vm5426 = vcmp.lt.s32.totalorder %v5405, 3
    %vm5427 = vcmp.lt.s32.totalorder %v5405, 4
    %v5428 = vsel %vm5424, %v5408, %v5411
    %v5429 = vsel %vm5427, %v5417, 2102212464
    %v5430 = vsel %vm5426, %v5414, %v5429
    %v5431 = vsel %vm5425, %v5428, %v5430
    %v5432 = vsel %vm5424, %v5411, %v5414
    %v5433 = vsel %vm5427, %v5420, 920167782
    %v5434 = vsel %vm5426, %v5417, %v5433
    %v5435 = vsel %vm5425, %v5432, %v5434
    %v5436 = vsel %vm5424, %v5414, %v5417
    %v5437 = vsel %vm5427, %v5423, 1326507024
    %v5438 = vsel %vm5426, %v5420, %v5437
    %v5439 = vsel %vm5425, %v5436, %v5438
    %v5440 = vshll.u32 %v5400, 8
    %v5441 = vmul.u32.u64.compose %v5440, %v5439
    %v5442 = vextract.low.u32 %v5441
    %v5443 = vextract.high.u32 %v5441
    %v5444 = vmul.u32.u64.compose %v5440, %v5435
    %v5445 = vextract.low.u32 %v5444
    %v5446 = vextract.high.u32 %v5444
    %v5447 = vmul.u32 %v5440, %v5431
    %v5448 = vadd.s32 %v5443, %v5445
    %vm5449 = vc.u32 %v5443, %v5445
    %v5450 = vadd.s32 %v5446, 1
    %v5451 = vsel %vm5449, %v5450, %v5446
    %v5452 = vadd.s32 %v5447, %v5451
    %v5453 = vadd.s32 %v5452, 536870912
    %v5454 = vshrl.u32 %v5453, 30
    %v5455 = vshll.u32 %v5454, 30
    %v5456 = vsub.s32 %v5452, %v5455
    %vm5457 = vcmp.lt.s32.totalorder %v5456, 0
    %v5458 = vsub.s32 0, %v5456
    %v5459 = vsel %vm5457, %v5458, %v5456
    %v5460 = vclz %v5459
    %v5461 = vsub.s32 %v5460, 2
    %vm5462 = vcmp.gt.s32.totalorder 0, %v5461
    %v5463 = vsel %vm5462, 0, %v5461
    %v5464 = vsub.s32 32, %v5463
    %v5465 = vshll.u32 %v5456, %v5463
    %v5466 = vshrl.u32 %v5448, %v5464
    %v5467 = vor.u32 %v5465, %v5466
    %v5468 = vsub.s32 4294967266, %v5463
    %v5469 = vadd.s32 %v5468, 127
    %v5470 = vshll.u32 %v5469, 23
    %v5471 = vor.u32 4788187, %v5470
    %v5472 = vand.u32 2147483647, %v5471
    %v5474 = vcvt.s32.f32 %v5467
    %v5475 = vmul.f32 %v5474, %v5472
    %v5476 = vxor.u32 %v5475, 2147483648
    %v5477 = vsel %vm5394, %v5476, %v5475
    %v5478 = vsub.s32 4, %v5454
    %v5479 = vsel %vm5394, %v5478, %v5454
    %v5480 = vsel %vm5393, %v4145, %v5477
    %v5481 = vsel %vm5393, 0, %v5479
    %v5482 = vcosq.f32.pop %v5480
    %v5483 = vsinq.f32.pop %v5480
    %vm5484 = vweird.f32 %v4145
    %v5485 = vadd.s32 %v5481, 3
    %v5486 = vand.u32 %v5485, 3
    %vm5487 = vcmp.lt.s32.totalorder %v5486, 2
    %vm5488 = vcmp.eq.s32.totalorder %v5486, 0
    %v5489 = vxor.u32 %v5483, 2147483648
    %v5490 = vsel %vm5488, %v5482, %v5489
    %vm5491 = vcmp.eq.s32.totalorder %v5486, 2
    %v5492 = vxor.u32 %v5482, 2147483648
    %v5493 = vsel %vm5491, %v5492, %v5483
    %v5494 = vsel %vm5487, %v5490, %v5493
    %v5495 = vsel %vm5484, nan, %v5494
    %v5496 = vand.u32 2147483647, %v4150
    %vm5497 = vcmp.le.f32.partialorder %v5496, 0.7853982
    %vm5498 = vcmp.lt.s32.totalorder %v4150, 0
    %v5499 = vand.u32 %v4150, 2139095040
    %v5500 = vshrl.u32 %v5499, 23
    %v5501 = vsub.s32 %v5500, 127
    %v5502 = vand.u32 2147483647, %v4150
    %v5503 = vand.u32 %v5502, 8388607
    %v5504 = vor.u32 %v5503, 8388608
    %v5505 = vsub.s32 0, %v5504
    %v5506 = vadd.s32 %v5501, 1
    %vm5507 = vcmp.gt.s32.totalorder %v5506, 0
    %v5508 = vsel %vm5507, %v5506, 0
    %v5509 = vshrl.u32 %v5508, 5
    %v5510 = vand.u32 %v5508, 31
    %v5511 = vsub.s32 32, %v5510
    %v5512 = vshrl.u32 683565275, %v5511
    %v5513 = vshll.u32 683565275, %v5510
    %v5514 = vshrl.u32 2475754826, %v5511
    %v5515 = vor.u32 %v5513, %v5514
    %v5516 = vshll.u32 2475754826, %v5510
    %v5517 = vshrl.u32 2131351028, %v5511
    %v5518 = vor.u32 %v5516, %v5517
    %v5519 = vshll.u32 2131351028, %v5510
    %v5520 = vshrl.u32 2102212464, %v5511
    %v5521 = vor.u32 %v5519, %v5520
    %v5522 = vshll.u32 2102212464, %v5510
    %v5523 = vshrl.u32 920167782, %v5511
    %v5524 = vor.u32 %v5522, %v5523
    %v5525 = vshll.u32 920167782, %v5510
    %v5526 = vshrl.u32 1326507024, %v5511
    %v5527 = vor.u32 %v5525, %v5526
    %vm5528 = vcmp.lt.s32.totalorder %v5509, 1
    %vm5529 = vcmp.lt.s32.totalorder %v5509, 2
    %vm5530 = vcmp.lt.s32.totalorder %v5509, 3
    %vm5531 = vcmp.lt.s32.totalorder %v5509, 4
    %v5532 = vsel %vm5528, %v5512, %v5515
    %v5533 = vsel %vm5531, %v5521, 2102212464
    %v5534 = vsel %vm5530, %v5518, %v5533
    %v5535 = vsel %vm5529, %v5532, %v5534
    %v5536 = vsel %vm5528, %v5515, %v5518
    %v5537 = vsel %vm5531, %v5524, 920167782
    %v5538 = vsel %vm5530, %v5521, %v5537
    %v5539 = vsel %vm5529, %v5536, %v5538
    %v5540 = vsel %vm5528, %v5518, %v5521
    %v5541 = vsel %vm5531, %v5527, 1326507024
    %v5542 = vsel %vm5530, %v5524, %v5541
    %v5543 = vsel %vm5529, %v5540, %v5542
    %v5544 = vshll.u32 %v5504, 8
    %v5545 = vmul.u32.u64.compose %v5544, %v5543
    %v5546 = vextract.low.u32 %v5545
    %v5547 = vextract.high.u32 %v5545
    %v5548 = vmul.u32.u64.compose %v5544, %v5539
    %v5549 = vextract.low.u32 %v5548
    %v5550 = vextract.high.u32 %v5548
    %v5551 = vmul.u32 %v5544, %v5535
    %v5552 = vadd.s32 %v5547, %v5549
    %vm5553 = vc.u32 %v5547, %v5549
    %v5554 = vadd.s32 %v5550, 1
    %v5555 = vsel %vm5553, %v5554, %v5550
    %v5556 = vadd.s32 %v5551, %v5555
    %v5557 = vadd.s32 %v5556, 536870912
    %v5558 = vshrl.u32 %v5557, 30
    %v5559 = vshll.u32 %v5558, 30
    %v5560 = vsub.s32 %v5556, %v5559
    %vm5561 = vcmp.lt.s32.totalorder %v5560, 0
    %v5562 = vsub.s32 0, %v5560
    %v5563 = vsel %vm5561, %v5562, %v5560
    %v5564 = vclz %v5563
    %v5565 = vsub.s32 %v5564, 2
    %vm5566 = vcmp.gt.s32.totalorder 0, %v5565
    %v5567 = vsel %vm5566, 0, %v5565
    %v5568 = vsub.s32 32, %v5567
    %v5569 = vshll.u32 %v5560, %v5567
    %v5570 = vshrl.u32 %v5552, %v5568
    %v5571 = vor.u32 %v5569, %v5570
    %v5572 = vsub.s32 4294967266, %v5567
    %v5573 = vadd.s32 %v5572, 127
    %v5574 = vshll.u32 %v5573, 23
    %v5575 = vor.u32 4788187, %v5574
    %v5576 = vand.u32 2147483647, %v5575
    %v5578 = vcvt.s32.f32 %v5571
    %v5579 = vmul.f32 %v5578, %v5576
    %v5580 = vxor.u32 %v5579, 2147483648
    %v5581 = vsel %vm5498, %v5580, %v5579
    %v5582 = vsub.s32 4, %v5558
    %v5583 = vsel %vm5498, %v5582, %v5558
    %v5584 = vsel %vm5497, %v4150, %v5581
    %v5585 = vsel %vm5497, 0, %v5583
    %v5586 = vcosq.f32.pop %v5584
    %v5587 = vsinq.f32.pop %v5584
    %vm5588 = vweird.f32 %v4150
    %v5589 = vadd.s32 %v5585, 3
    %v5590 = vand.u32 %v5589, 3
    %vm5591 = vcmp.lt.s32.totalorder %v5590, 2
    %vm5592 = vcmp.eq.s32.totalorder %v5590, 0
    %v5593 = vxor.u32 %v5587, 2147483648
    %v5594 = vsel %vm5592, %v5586, %v5593
    %vm5595 = vcmp.eq.s32.totalorder %v5590, 2
    %v5596 = vxor.u32 %v5586, 2147483648
    %v5597 = vsel %vm5595, %v5596, %v5587
    %v5598 = vsel %vm5591, %v5594, %v5597
    %v5599 = vsel %vm5588, nan, %v5598
    %v5600 = vand.u32 2147483647, %v4155
    %vm5601 = vcmp.le.f32.partialorder %v5600, 0.7853982
    %vm5602 = vcmp.lt.s32.totalorder %v4155, 0
    %v5603 = vand.u32 %v4155, 2139095040
    %v5604 = vshrl.u32 %v5603, 23
    %v5605 = vsub.s32 %v5604, 127
    %v5606 = vand.u32 2147483647, %v4155
    %v5607 = vand.u32 %v5606, 8388607
    %v5608 = vor.u32 %v5607, 8388608
    %v5609 = vsub.s32 0, %v5608
    %v5610 = vadd.s32 %v5605, 1
    %vm5611 = vcmp.gt.s32.totalorder %v5610, 0
    %v5612 = vsel %vm5611, %v5610, 0
    %v5613 = vshrl.u32 %v5612, 5
    %v5614 = vand.u32 %v5612, 31
    %v5615 = vsub.s32 32, %v5614
    %v5616 = vshrl.u32 683565275, %v5615
    %v5617 = vshll.u32 683565275, %v5614
    %v5618 = vshrl.u32 2475754826, %v5615
    %v5619 = vor.u32 %v5617, %v5618
    %v5620 = vshll.u32 2475754826, %v5614
    %v5621 = vshrl.u32 2131351028, %v5615
    %v5622 = vor.u32 %v5620, %v5621
    %v5623 = vshll.u32 2131351028, %v5614
    %v5624 = vshrl.u32 2102212464, %v5615
    %v5625 = vor.u32 %v5623, %v5624
    %v5626 = vshll.u32 2102212464, %v5614
    %v5627 = vshrl.u32 920167782, %v5615
    %v5628 = vor.u32 %v5626, %v5627
    %v5629 = vshll.u32 920167782, %v5614
    %v5630 = vshrl.u32 1326507024, %v5615
    %v5631 = vor.u32 %v5629, %v5630
    %vm5632 = vcmp.lt.s32.totalorder %v5613, 1
    %vm5633 = vcmp.lt.s32.totalorder %v5613, 2
    %vm5634 = vcmp.lt.s32.totalorder %v5613, 3
    %vm5635 = vcmp.lt.s32.totalorder %v5613, 4
    %v5636 = vsel %vm5632, %v5616, %v5619
    %v5637 = vsel %vm5635, %v5625, 2102212464
    %v5638 = vsel %vm5634, %v5622, %v5637
    %v5639 = vsel %vm5633, %v5636, %v5638
    %v5640 = vsel %vm5632, %v5619, %v5622
    %v5641 = vsel %vm5635, %v5628, 920167782
    %v5642 = vsel %vm5634, %v5625, %v5641
    %v5643 = vsel %vm5633, %v5640, %v5642
    %v5644 = vsel %vm5632, %v5622, %v5625
    %v5645 = vsel %vm5635, %v5631, 1326507024
    %v5646 = vsel %vm5634, %v5628, %v5645
    %v5647 = vsel %vm5633, %v5644, %v5646
    %v5648 = vshll.u32 %v5608, 8
    %v5649 = vmul.u32.u64.compose %v5648, %v5647
    %v5650 = vextract.low.u32 %v5649
    %v5651 = vextract.high.u32 %v5649
    %v5652 = vmul.u32.u64.compose %v5648, %v5643
    %v5653 = vextract.low.u32 %v5652
    %v5654 = vextract.high.u32 %v5652
    %v5655 = vmul.u32 %v5648, %v5639
    %v5656 = vadd.s32 %v5651, %v5653
    %vm5657 = vc.u32 %v5651, %v5653
    %v5658 = vadd.s32 %v5654, 1
    %v5659 = vsel %vm5657, %v5658, %v5654
    %v5660 = vadd.s32 %v5655, %v5659
    %v5661 = vadd.s32 %v5660, 536870912
    %v5662 = vshrl.u32 %v5661, 30
    %v5663 = vshll.u32 %v5662, 30
    %v5664 = vsub.s32 %v5660, %v5663
    %vm5665 = vcmp.lt.s32.totalorder %v5664, 0
    %v5666 = vsub.s32 0, %v5664
    %v5667 = vsel %vm5665, %v5666, %v5664
    %v5668 = vclz %v5667
    %v5669 = vsub.s32 %v5668, 2
    %vm5670 = vcmp.gt.s32.totalorder 0, %v5669
    %v5671 = vsel %vm5670, 0, %v5669
    %v5672 = vsub.s32 32, %v5671
    %v5673 = vshll.u32 %v5664, %v5671
    %v5674 = vshrl.u32 %v5656, %v5672
    %v5675 = vor.u32 %v5673, %v5674
    %v5676 = vsub.s32 4294967266, %v5671
    %v5677 = vadd.s32 %v5676, 127
    %v5678 = vshll.u32 %v5677, 23
    %v5679 = vor.u32 4788187, %v5678
    %v5680 = vand.u32 2147483647, %v5679
    %v5682 = vcvt.s32.f32 %v5675
    %v5683 = vmul.f32 %v5682, %v5680
    %v5684 = vxor.u32 %v5683, 2147483648
    %v5685 = vsel %vm5602, %v5684, %v5683
    %v5686 = vsub.s32 4, %v5662
    %v5687 = vsel %vm5602, %v5686, %v5662
    %v5688 = vsel %vm5601, %v4155, %v5685
    %v5689 = vsel %vm5601, 0, %v5687
    %v5690 = vcosq.f32.pop %v5688
    %v5691 = vsinq.f32.pop %v5688
    %vm5692 = vweird.f32 %v4155
    %v5693 = vadd.s32 %v5689, 3
    %v5694 = vand.u32 %v5693, 3
    %vm5695 = vcmp.lt.s32.totalorder %v5694, 2
    %vm5696 = vcmp.eq.s32.totalorder %v5694, 0
    %v5697 = vxor.u32 %v5691, 2147483648
    %v5698 = vsel %vm5696, %v5690, %v5697
    %vm5699 = vcmp.eq.s32.totalorder %v5694, 2
    %v5700 = vxor.u32 %v5690, 2147483648
    %v5701 = vsel %vm5699, %v5700, %v5691
    %v5702 = vsel %vm5695, %v5698, %v5701
    %v5703 = vsel %vm5692, nan, %v5702
    %v5704 = vand.u32 2147483647, %v4160
    %vm5705 = vcmp.le.f32.partialorder %v5704, 0.7853982
    %vm5706 = vcmp.lt.s32.totalorder %v4160, 0
    %v5707 = vand.u32 %v4160, 2139095040
    %v5708 = vshrl.u32 %v5707, 23
    %v5709 = vsub.s32 %v5708, 127
    %v5710 = vand.u32 2147483647, %v4160
    %v5711 = vand.u32 %v5710, 8388607
    %v5712 = vor.u32 %v5711, 8388608
    %v5713 = vsub.s32 0, %v5712
    %v5714 = vadd.s32 %v5709, 1
    %vm5715 = vcmp.gt.s32.totalorder %v5714, 0
    %v5716 = vsel %vm5715, %v5714, 0
    %v5717 = vshrl.u32 %v5716, 5
    %v5718 = vand.u32 %v5716, 31
    %v5719 = vsub.s32 32, %v5718
    %v5720 = vshrl.u32 683565275, %v5719
    %v5721 = vshll.u32 683565275, %v5718
    %v5722 = vshrl.u32 2475754826, %v5719
    %v5723 = vor.u32 %v5721, %v5722
    %v5724 = vshll.u32 2475754826, %v5718
    %v5725 = vshrl.u32 2131351028, %v5719
    %v5726 = vor.u32 %v5724, %v5725
    %v5727 = vshll.u32 2131351028, %v5718
    %v5728 = vshrl.u32 2102212464, %v5719
    %v5729 = vor.u32 %v5727, %v5728
    %v5730 = vshll.u32 2102212464, %v5718
    %v5731 = vshrl.u32 920167782, %v5719
    %v5732 = vor.u32 %v5730, %v5731
    %v5733 = vshll.u32 920167782, %v5718
    %v5734 = vshrl.u32 1326507024, %v5719
    %v5735 = vor.u32 %v5733, %v5734
    %vm5736 = vcmp.lt.s32.totalorder %v5717, 1
    %vm5737 = vcmp.lt.s32.totalorder %v5717, 2
    %vm5738 = vcmp.lt.s32.totalorder %v5717, 3
    %vm5739 = vcmp.lt.s32.totalorder %v5717, 4
    %v5740 = vsel %vm5736, %v5720, %v5723
    %v5741 = vsel %vm5739, %v5729, 2102212464
    %v5742 = vsel %vm5738, %v5726, %v5741
    %v5743 = vsel %vm5737, %v5740, %v5742
    %v5744 = vsel %vm5736, %v5723, %v5726
    %v5745 = vsel %vm5739, %v5732, 920167782
    %v5746 = vsel %vm5738, %v5729, %v5745
    %v5747 = vsel %vm5737, %v5744, %v5746
    %v5748 = vsel %vm5736, %v5726, %v5729
    %v5749 = vsel %vm5739, %v5735, 1326507024
    %v5750 = vsel %vm5738, %v5732, %v5749
    %v5751 = vsel %vm5737, %v5748, %v5750
    %v5752 = vshll.u32 %v5712, 8
    %v5753 = vmul.u32.u64.compose %v5752, %v5751
    %v5754 = vextract.low.u32 %v5753
    %v5755 = vextract.high.u32 %v5753
    %v5756 = vmul.u32.u64.compose %v5752, %v5747
    %v5757 = vextract.low.u32 %v5756
    %v5758 = vextract.high.u32 %v5756
    %v5759 = vmul.u32 %v5752, %v5743
    %v5760 = vadd.s32 %v5755, %v5757
    %vm5761 = vc.u32 %v5755, %v5757
    %v5762 = vadd.s32 %v5758, 1
    %v5763 = vsel %vm5761, %v5762, %v5758
    %v5764 = vadd.s32 %v5759, %v5763
    %v5765 = vadd.s32 %v5764, 536870912
    %v5766 = vshrl.u32 %v5765, 30
    %v5767 = vshll.u32 %v5766, 30
    %v5768 = vsub.s32 %v5764, %v5767
    %vm5769 = vcmp.lt.s32.totalorder %v5768, 0
    %v5770 = vsub.s32 0, %v5768
    %v5771 = vsel %vm5769, %v5770, %v5768
    %v5772 = vclz %v5771
    %v5773 = vsub.s32 %v5772, 2
    %vm5774 = vcmp.gt.s32.totalorder 0, %v5773
    %v5775 = vsel %vm5774, 0, %v5773
    %v5776 = vsub.s32 32, %v5775
    %v5777 = vshll.u32 %v5768, %v5775
    %v5778 = vshrl.u32 %v5760, %v5776
    %v5779 = vor.u32 %v5777, %v5778
    %v5780 = vsub.s32 4294967266, %v5775
    %v5781 = vadd.s32 %v5780, 127
    %v5782 = vshll.u32 %v5781, 23
    %v5783 = vor.u32 4788187, %v5782
    %v5784 = vand.u32 2147483647, %v5783
    %v5786 = vcvt.s32.f32 %v5779
    %v5787 = vmul.f32 %v5786, %v5784
    %v5788 = vxor.u32 %v5787, 2147483648
    %v5789 = vsel %vm5706, %v5788, %v5787
    %v5790 = vsub.s32 4, %v5766
    %v5791 = vsel %vm5706, %v5790, %v5766
    %v5792 = vsel %vm5705, %v4160, %v5789
    %v5793 = vsel %vm5705, 0, %v5791
    %v5794 = vcosq.f32.pop %v5792
    %v5795 = vsinq.f32.pop %v5792
    %vm5796 = vweird.f32 %v4160
    %v5797 = vadd.s32 %v5793, 3
    %v5798 = vand.u32 %v5797, 3
    %vm5799 = vcmp.lt.s32.totalorder %v5798, 2
    %vm5800 = vcmp.eq.s32.totalorder %v5798, 0
    %v5801 = vxor.u32 %v5795, 2147483648
    %v5802 = vsel %vm5800, %v5794, %v5801
    %vm5803 = vcmp.eq.s32.totalorder %v5798, 2
    %v5804 = vxor.u32 %v5794, 2147483648
    %v5805 = vsel %vm5803, %v5804, %v5795
    %v5806 = vsel %vm5799, %v5802, %v5805
    %v5807 = vsel %vm5796, nan, %v5806
    %v5808 = vand.u32 2147483647, %v4165
    %vm5809 = vcmp.le.f32.partialorder %v5808, 0.7853982
    %vm5810 = vcmp.lt.s32.totalorder %v4165, 0
    %v5811 = vand.u32 %v4165, 2139095040
    %v5812 = vshrl.u32 %v5811, 23
    %v5813 = vsub.s32 %v5812, 127
    %v5814 = vand.u32 2147483647, %v4165
    %v5815 = vand.u32 %v5814, 8388607
    %v5816 = vor.u32 %v5815, 8388608
    %v5817 = vsub.s32 0, %v5816
    %v5818 = vadd.s32 %v5813, 1
    %vm5819 = vcmp.gt.s32.totalorder %v5818, 0
    %v5820 = vsel %vm5819, %v5818, 0
    %v5821 = vshrl.u32 %v5820, 5
    %v5822 = vand.u32 %v5820, 31
    %v5823 = vsub.s32 32, %v5822
    %v5824 = vshrl.u32 683565275, %v5823
    %v5825 = vshll.u32 683565275, %v5822
    %v5826 = vshrl.u32 2475754826, %v5823
    %v5827 = vor.u32 %v5825, %v5826
    %v5828 = vshll.u32 2475754826, %v5822
    %v5829 = vshrl.u32 2131351028, %v5823
    %v5830 = vor.u32 %v5828, %v5829
    %v5831 = vshll.u32 2131351028, %v5822
    %v5832 = vshrl.u32 2102212464, %v5823
    %v5833 = vor.u32 %v5831, %v5832
    %v5834 = vshll.u32 2102212464, %v5822
    %v5835 = vshrl.u32 920167782, %v5823
    %v5836 = vor.u32 %v5834, %v5835
    %v5837 = vshll.u32 920167782, %v5822
    %v5838 = vshrl.u32 1326507024, %v5823
    %v5839 = vor.u32 %v5837, %v5838
    %vm5840 = vcmp.lt.s32.totalorder %v5821, 1
    %vm5841 = vcmp.lt.s32.totalorder %v5821, 2
    %vm5842 = vcmp.lt.s32.totalorder %v5821, 3
    %vm5843 = vcmp.lt.s32.totalorder %v5821, 4
    %v5844 = vsel %vm5840, %v5824, %v5827
    %v5845 = vsel %vm5843, %v5833, 2102212464
    %v5846 = vsel %vm5842, %v5830, %v5845
    %v5847 = vsel %vm5841, %v5844, %v5846
    %v5848 = vsel %vm5840, %v5827, %v5830
    %v5849 = vsel %vm5843, %v5836, 920167782
    %v5850 = vsel %vm5842, %v5833, %v5849
    %v5851 = vsel %vm5841, %v5848, %v5850
    %v5852 = vsel %vm5840, %v5830, %v5833
    %v5853 = vsel %vm5843, %v5839, 1326507024
    %v5854 = vsel %vm5842, %v5836, %v5853
    %v5855 = vsel %vm5841, %v5852, %v5854
    %v5856 = vshll.u32 %v5816, 8
    %v5857 = vmul.u32.u64.compose %v5856, %v5855
    %v5858 = vextract.low.u32 %v5857
    %v5859 = vextract.high.u32 %v5857
    %v5860 = vmul.u32.u64.compose %v5856, %v5851
    %v5861 = vextract.low.u32 %v5860
    %v5862 = vextract.high.u32 %v5860
    %v5863 = vmul.u32 %v5856, %v5847
    %v5864 = vadd.s32 %v5859, %v5861
    %vm5865 = vc.u32 %v5859, %v5861
    %v5866 = vadd.s32 %v5862, 1
    %v5867 = vsel %vm5865, %v5866, %v5862
    %v5868 = vadd.s32 %v5863, %v5867
    %v5869 = vadd.s32 %v5868, 536870912
    %v5870 = vshrl.u32 %v5869, 30
    %v5871 = vshll.u32 %v5870, 30
    %v5872 = vsub.s32 %v5868, %v5871
    %vm5873 = vcmp.lt.s32.totalorder %v5872, 0
    %v5874 = vsub.s32 0, %v5872
    %v5875 = vsel %vm5873, %v5874, %v5872
    %v5876 = vclz %v5875
    %v5877 = vsub.s32 %v5876, 2
    %vm5878 = vcmp.gt.s32.totalorder 0, %v5877
    %v5879 = vsel %vm5878, 0, %v5877
    %v5880 = vsub.s32 32, %v5879
    %v5881 = vshll.u32 %v5872, %v5879
    %v5882 = vshrl.u32 %v5864, %v5880
    %v5883 = vor.u32 %v5881, %v5882
    %v5884 = vsub.s32 4294967266, %v5879
    %v5885 = vadd.s32 %v5884, 127
    %v5886 = vshll.u32 %v5885, 23
    %v5887 = vor.u32 4788187, %v5886
    %v5888 = vand.u32 2147483647, %v5887
    %v5890 = vcvt.s32.f32 %v5883
    %v5891 = vmul.f32 %v5890, %v5888
    %v5892 = vxor.u32 %v5891, 2147483648
    %v5893 = vsel %vm5810, %v5892, %v5891
    %v5894 = vsub.s32 4, %v5870
    %v5895 = vsel %vm5810, %v5894, %v5870
    %v5896 = vsel %vm5809, %v4165, %v5893
    %v5897 = vsel %vm5809, 0, %v5895
    %v5898 = vcosq.f32.pop %v5896
    %v5899 = vsinq.f32.pop %v5896
    %vm5900 = vweird.f32 %v4165
    %v5901 = vadd.s32 %v5897, 3
    %v5902 = vand.u32 %v5901, 3
    %vm5903 = vcmp.lt.s32.totalorder %v5902, 2
    %vm5904 = vcmp.eq.s32.totalorder %v5902, 0
    %v5905 = vxor.u32 %v5899, 2147483648
    %v5906 = vsel %vm5904, %v5898, %v5905
    %vm5907 = vcmp.eq.s32.totalorder %v5902, 2
    %v5908 = vxor.u32 %v5898, 2147483648
    %v5909 = vsel %vm5907, %v5908, %v5899
    %v5910 = vsel %vm5903, %v5906, %v5909
    %v5911 = vsel %vm5900, nan, %v5910
    %v5912 = vand.u32 2147483647, %v4170
    %vm5913 = vcmp.le.f32.partialorder %v5912, 0.7853982
    %vm5914 = vcmp.lt.s32.totalorder %v4170, 0
    %v5915 = vand.u32 %v4170, 2139095040
    %v5916 = vshrl.u32 %v5915, 23
    %v5917 = vsub.s32 %v5916, 127
    %v5918 = vand.u32 2147483647, %v4170
    %v5919 = vand.u32 %v5918, 8388607
    %v5920 = vor.u32 %v5919, 8388608
    %v5921 = vsub.s32 0, %v5920
    %v5922 = vadd.s32 %v5917, 1
    %vm5923 = vcmp.gt.s32.totalorder %v5922, 0
    %v5924 = vsel %vm5923, %v5922, 0
    %v5925 = vshrl.u32 %v5924, 5
    %v5926 = vand.u32 %v5924, 31
    %v5927 = vsub.s32 32, %v5926
    %v5928 = vshrl.u32 683565275, %v5927
    %v5929 = vshll.u32 683565275, %v5926
    %v5930 = vshrl.u32 2475754826, %v5927
    %v5931 = vor.u32 %v5929, %v5930
    %v5932 = vshll.u32 2475754826, %v5926
    %v5933 = vshrl.u32 2131351028, %v5927
    %v5934 = vor.u32 %v5932, %v5933
    %v5935 = vshll.u32 2131351028, %v5926
    %v5936 = vshrl.u32 2102212464, %v5927
    %v5937 = vor.u32 %v5935, %v5936
    %v5938 = vshll.u32 2102212464, %v5926
    %v5939 = vshrl.u32 920167782, %v5927
    %v5940 = vor.u32 %v5938, %v5939
    %v5941 = vshll.u32 920167782, %v5926
    %v5942 = vshrl.u32 1326507024, %v5927
    %v5943 = vor.u32 %v5941, %v5942
    %vm5944 = vcmp.lt.s32.totalorder %v5925, 1
    %vm5945 = vcmp.lt.s32.totalorder %v5925, 2
    %vm5946 = vcmp.lt.s32.totalorder %v5925, 3
    %vm5947 = vcmp.lt.s32.totalorder %v5925, 4
    %v5948 = vsel %vm5944, %v5928, %v5931
    %v5949 = vsel %vm5947, %v5937, 2102212464
    %v5950 = vsel %vm5946, %v5934, %v5949
    %v5951 = vsel %vm5945, %v5948, %v5950
    %v5952 = vsel %vm5944, %v5931, %v5934
    %v5953 = vsel %vm5947, %v5940, 920167782
    %v5954 = vsel %vm5946, %v5937, %v5953
    %v5955 = vsel %vm5945, %v5952, %v5954
    %v5956 = vsel %vm5944, %v5934, %v5937
    %v5957 = vsel %vm5947, %v5943, 1326507024
    %v5958 = vsel %vm5946, %v5940, %v5957
    %v5959 = vsel %vm5945, %v5956, %v5958
    %v5960 = vshll.u32 %v5920, 8
    %v5961 = vmul.u32.u64.compose %v5960, %v5959
    %v5962 = vextract.low.u32 %v5961
    %v5963 = vextract.high.u32 %v5961
    %v5964 = vmul.u32.u64.compose %v5960, %v5955
    %v5965 = vextract.low.u32 %v5964
    %v5966 = vextract.high.u32 %v5964
    %v5967 = vmul.u32 %v5960, %v5951
    %v5968 = vadd.s32 %v5963, %v5965
    %vm5969 = vc.u32 %v5963, %v5965
    %v5970 = vadd.s32 %v5966, 1
    %v5971 = vsel %vm5969, %v5970, %v5966
    %v5972 = vadd.s32 %v5967, %v5971
    %v5973 = vadd.s32 %v5972, 536870912
    %v5974 = vshrl.u32 %v5973, 30
    %v5975 = vshll.u32 %v5974, 30
    %v5976 = vsub.s32 %v5972, %v5975
    %vm5977 = vcmp.lt.s32.totalorder %v5976, 0
    %v5978 = vsub.s32 0, %v5976
    %v5979 = vsel %vm5977, %v5978, %v5976
    %v5980 = vclz %v5979
    %v5981 = vsub.s32 %v5980, 2
    %vm5982 = vcmp.gt.s32.totalorder 0, %v5981
    %v5983 = vsel %vm5982, 0, %v5981
    %v5984 = vsub.s32 32, %v5983
    %v5985 = vshll.u32 %v5976, %v5983
    %v5986 = vshrl.u32 %v5968, %v5984
    %v5987 = vor.u32 %v5985, %v5986
    %v5988 = vsub.s32 4294967266, %v5983
    %v5989 = vadd.s32 %v5988, 127
    %v5990 = vshll.u32 %v5989, 23
    %v5991 = vor.u32 4788187, %v5990
    %v5992 = vand.u32 2147483647, %v5991
    %v5994 = vcvt.s32.f32 %v5987
    %v5995 = vmul.f32 %v5994, %v5992
    %v5996 = vxor.u32 %v5995, 2147483648
    %v5997 = vsel %vm5914, %v5996, %v5995
    %v5998 = vsub.s32 4, %v5974
    %v5999 = vsel %vm5914, %v5998, %v5974
    %v6000 = vsel %vm5913, %v4170, %v5997
    %v6001 = vsel %vm5913, 0, %v5999
    %v6002 = vcosq.f32.pop %v6000
    %v6003 = vsinq.f32.pop %v6000
    %vm6004 = vweird.f32 %v4170
    %v6005 = vadd.s32 %v6001, 3
    %v6006 = vand.u32 %v6005, 3
    %vm6007 = vcmp.lt.s32.totalorder %v6006, 2
    %vm6008 = vcmp.eq.s32.totalorder %v6006, 0
    %v6009 = vxor.u32 %v6003, 2147483648
    %v6010 = vsel %vm6008, %v6002, %v6009
    %vm6011 = vcmp.eq.s32.totalorder %v6006, 2
    %v6012 = vxor.u32 %v6002, 2147483648
    %v6013 = vsel %vm6011, %v6012, %v6003
    %v6014 = vsel %vm6007, %v6010, %v6013
    %v6015 = vsel %vm6004, nan, %v6014
    %v6016 = vand.u32 2147483647, %v4175
    %vm6017 = vcmp.le.f32.partialorder %v6016, 0.7853982
    %vm6018 = vcmp.lt.s32.totalorder %v4175, 0
    %v6019 = vand.u32 %v4175, 2139095040
    %v6020 = vshrl.u32 %v6019, 23
    %v6021 = vsub.s32 %v6020, 127
    %v6022 = vand.u32 2147483647, %v4175
    %v6023 = vand.u32 %v6022, 8388607
    %v6024 = vor.u32 %v6023, 8388608
    %v6025 = vsub.s32 0, %v6024
    %v6026 = vadd.s32 %v6021, 1
    %vm6027 = vcmp.gt.s32.totalorder %v6026, 0
    %v6028 = vsel %vm6027, %v6026, 0
    %v6029 = vshrl.u32 %v6028, 5
    %v6030 = vand.u32 %v6028, 31
    %v6031 = vsub.s32 32, %v6030
    %v6032 = vshrl.u32 683565275, %v6031
    %v6033 = vshll.u32 683565275, %v6030
    %v6034 = vshrl.u32 2475754826, %v6031
    %v6035 = vor.u32 %v6033, %v6034
    %v6036 = vshll.u32 2475754826, %v6030
    %v6037 = vshrl.u32 2131351028, %v6031
    %v6038 = vor.u32 %v6036, %v6037
    %v6039 = vshll.u32 2131351028, %v6030
    %v6040 = vshrl.u32 2102212464, %v6031
    %v6041 = vor.u32 %v6039, %v6040
    %v6042 = vshll.u32 2102212464, %v6030
    %v6043 = vshrl.u32 920167782, %v6031
    %v6044 = vor.u32 %v6042, %v6043
    %v6045 = vshll.u32 920167782, %v6030
    %v6046 = vshrl.u32 1326507024, %v6031
    %v6047 = vor.u32 %v6045, %v6046
    %vm6048 = vcmp.lt.s32.totalorder %v6029, 1
    %vm6049 = vcmp.lt.s32.totalorder %v6029, 2
    %vm6050 = vcmp.lt.s32.totalorder %v6029, 3
    %vm6051 = vcmp.lt.s32.totalorder %v6029, 4
    %v6052 = vsel %vm6048, %v6032, %v6035
    %v6053 = vsel %vm6051, %v6041, 2102212464
    %v6054 = vsel %vm6050, %v6038, %v6053
    %v6055 = vsel %vm6049, %v6052, %v6054
    %v6056 = vsel %vm6048, %v6035, %v6038
    %v6057 = vsel %vm6051, %v6044, 920167782
    %v6058 = vsel %vm6050, %v6041, %v6057
    %v6059 = vsel %vm6049, %v6056, %v6058
    %v6060 = vsel %vm6048, %v6038, %v6041
    %v6061 = vsel %vm6051, %v6047, 1326507024
    %v6062 = vsel %vm6050, %v6044, %v6061
    %v6063 = vsel %vm6049, %v6060, %v6062
    %v6064 = vshll.u32 %v6024, 8
    %v6065 = vmul.u32.u64.compose %v6064, %v6063
    %v6066 = vextract.low.u32 %v6065
    %v6067 = vextract.high.u32 %v6065
    %v6068 = vmul.u32.u64.compose %v6064, %v6059
    %v6069 = vextract.low.u32 %v6068
    %v6070 = vextract.high.u32 %v6068
    %v6071 = vmul.u32 %v6064, %v6055
    %v6072 = vadd.s32 %v6067, %v6069
    %vm6073 = vc.u32 %v6067, %v6069
    %v6074 = vadd.s32 %v6070, 1
    %v6075 = vsel %vm6073, %v6074, %v6070
    %v6076 = vadd.s32 %v6071, %v6075
    %v6077 = vadd.s32 %v6076, 536870912
    %v6078 = vshrl.u32 %v6077, 30
    %v6079 = vshll.u32 %v6078, 30
    %v6080 = vsub.s32 %v6076, %v6079
    %vm6081 = vcmp.lt.s32.totalorder %v6080, 0
    %v6082 = vsub.s32 0, %v6080
    %v6083 = vsel %vm6081, %v6082, %v6080
    %v6084 = vclz %v6083
    %v6085 = vsub.s32 %v6084, 2
    %vm6086 = vcmp.gt.s32.totalorder 0, %v6085
    %v6087 = vsel %vm6086, 0, %v6085
    %v6088 = vsub.s32 32, %v6087
    %v6089 = vshll.u32 %v6080, %v6087
    %v6090 = vshrl.u32 %v6072, %v6088
    %v6091 = vor.u32 %v6089, %v6090
    %v6092 = vsub.s32 4294967266, %v6087
    %v6093 = vadd.s32 %v6092, 127
    %v6094 = vshll.u32 %v6093, 23
    %v6095 = vor.u32 4788187, %v6094
    %v6096 = vand.u32 2147483647, %v6095
    %v6098 = vcvt.s32.f32 %v6091
    %v6099 = vmul.f32 %v6098, %v6096
    %v6100 = vxor.u32 %v6099, 2147483648
    %v6101 = vsel %vm6018, %v6100, %v6099
    %v6102 = vsub.s32 4, %v6078
    %v6103 = vsel %vm6018, %v6102, %v6078
    %v6104 = vsel %vm6017, %v4175, %v6101
    %v6105 = vsel %vm6017, 0, %v6103
    %v6106 = vcosq.f32.pop %v6104
    %v6107 = vsinq.f32.pop %v6104
    %vm6108 = vweird.f32 %v4175
    %v6109 = vadd.s32 %v6105, 3
    %v6110 = vand.u32 %v6109, 3
    %vm6111 = vcmp.lt.s32.totalorder %v6110, 2
    %vm6112 = vcmp.eq.s32.totalorder %v6110, 0
    %v6113 = vxor.u32 %v6107, 2147483648
    %v6114 = vsel %vm6112, %v6106, %v6113
    %vm6115 = vcmp.eq.s32.totalorder %v6110, 2
    %v6116 = vxor.u32 %v6106, 2147483648
    %v6117 = vsel %vm6115, %v6116, %v6107
    %v6118 = vsel %vm6111, %v6114, %v6117
    %v6119 = vsel %vm6108, nan, %v6118
    %v6120 = vand.u32 2147483647, %v4180
    %vm6121 = vcmp.le.f32.partialorder %v6120, 0.7853982
    %vm6122 = vcmp.lt.s32.totalorder %v4180, 0
    %v6123 = vand.u32 %v4180, 2139095040
    %v6124 = vshrl.u32 %v6123, 23
    %v6125 = vsub.s32 %v6124, 127
    %v6126 = vand.u32 2147483647, %v4180
    %v6127 = vand.u32 %v6126, 8388607
    %v6128 = vor.u32 %v6127, 8388608
    %v6129 = vsub.s32 0, %v6128
    %v6130 = vadd.s32 %v6125, 1
    %vm6131 = vcmp.gt.s32.totalorder %v6130, 0
    %v6132 = vsel %vm6131, %v6130, 0
    %v6133 = vshrl.u32 %v6132, 5
    %v6134 = vand.u32 %v6132, 31
    %v6135 = vsub.s32 32, %v6134
    %v6136 = vshrl.u32 683565275, %v6135
    %v6137 = vshll.u32 683565275, %v6134
    %v6138 = vshrl.u32 2475754826, %v6135
    %v6139 = vor.u32 %v6137, %v6138
    %v6140 = vshll.u32 2475754826, %v6134
    %v6141 = vshrl.u32 2131351028, %v6135
    %v6142 = vor.u32 %v6140, %v6141
    %v6143 = vshll.u32 2131351028, %v6134
    %v6144 = vshrl.u32 2102212464, %v6135
    %v6145 = vor.u32 %v6143, %v6144
    %v6146 = vshll.u32 2102212464, %v6134
    %v6147 = vshrl.u32 920167782, %v6135
    %v6148 = vor.u32 %v6146, %v6147
    %v6149 = vshll.u32 920167782, %v6134
    %v6150 = vshrl.u32 1326507024, %v6135
    %v6151 = vor.u32 %v6149, %v6150
    %vm6152 = vcmp.lt.s32.totalorder %v6133, 1
    %vm6153 = vcmp.lt.s32.totalorder %v6133, 2
    %vm6154 = vcmp.lt.s32.totalorder %v6133, 3
    %vm6155 = vcmp.lt.s32.totalorder %v6133, 4
    %v6156 = vsel %vm6152, %v6136, %v6139
    %v6157 = vsel %vm6155, %v6145, 2102212464
    %v6158 = vsel %vm6154, %v6142, %v6157
    %v6159 = vsel %vm6153, %v6156, %v6158
    %v6160 = vsel %vm6152, %v6139, %v6142
    %v6161 = vsel %vm6155, %v6148, 920167782
    %v6162 = vsel %vm6154, %v6145, %v6161
    %v6163 = vsel %vm6153, %v6160, %v6162
    %v6164 = vsel %vm6152, %v6142, %v6145
    %v6165 = vsel %vm6155, %v6151, 1326507024
    %v6166 = vsel %vm6154, %v6148, %v6165
    %v6167 = vsel %vm6153, %v6164, %v6166
    %v6168 = vshll.u32 %v6128, 8
    %v6169 = vmul.u32.u64.compose %v6168, %v6167
    %v6170 = vextract.low.u32 %v6169
    %v6171 = vextract.high.u32 %v6169
    %v6172 = vmul.u32.u64.compose %v6168, %v6163
    %v6173 = vextract.low.u32 %v6172
    %v6174 = vextract.high.u32 %v6172
    %v6175 = vmul.u32 %v6168, %v6159
    %v6176 = vadd.s32 %v6171, %v6173
    %vm6177 = vc.u32 %v6171, %v6173
    %v6178 = vadd.s32 %v6174, 1
    %v6179 = vsel %vm6177, %v6178, %v6174
    %v6180 = vadd.s32 %v6175, %v6179
    %v6181 = vadd.s32 %v6180, 536870912
    %v6182 = vshrl.u32 %v6181, 30
    %v6183 = vshll.u32 %v6182, 30
    %v6184 = vsub.s32 %v6180, %v6183
    %vm6185 = vcmp.lt.s32.totalorder %v6184, 0
    %v6186 = vsub.s32 0, %v6184
    %v6187 = vsel %vm6185, %v6186, %v6184
    %v6188 = vclz %v6187
    %v6189 = vsub.s32 %v6188, 2
    %vm6190 = vcmp.gt.s32.totalorder 0, %v6189
    %v6191 = vsel %vm6190, 0, %v6189
    %v6192 = vsub.s32 32, %v6191
    %v6193 = vshll.u32 %v6184, %v6191
    %v6194 = vshrl.u32 %v6176, %v6192
    %v6195 = vor.u32 %v6193, %v6194
    %v6196 = vsub.s32 4294967266, %v6191
    %v6197 = vadd.s32 %v6196, 127
    %v6198 = vshll.u32 %v6197, 23
    %v6199 = vor.u32 4788187, %v6198
    %v6200 = vand.u32 2147483647, %v6199
    %v6202 = vcvt.s32.f32 %v6195
    %v6203 = vmul.f32 %v6202, %v6200
    %v6204 = vxor.u32 %v6203, 2147483648
    %v6205 = vsel %vm6122, %v6204, %v6203
    %v6206 = vsub.s32 4, %v6182
    %v6207 = vsel %vm6122, %v6206, %v6182
    %v6208 = vsel %vm6121, %v4180, %v6205
    %v6209 = vsel %vm6121, 0, %v6207
    %v6210 = vcosq.f32.pop %v6208
    %v6211 = vsinq.f32.pop %v6208
    %vm6212 = vweird.f32 %v4180
    %v6213 = vadd.s32 %v6209, 3
    %v6214 = vand.u32 %v6213, 3
    %vm6215 = vcmp.lt.s32.totalorder %v6214, 2
    %vm6216 = vcmp.eq.s32.totalorder %v6214, 0
    %v6217 = vxor.u32 %v6211, 2147483648
    %v6218 = vsel %vm6216, %v6210, %v6217
    %vm6219 = vcmp.eq.s32.totalorder %v6214, 2
    %v6220 = vxor.u32 %v6210, 2147483648
    %v6221 = vsel %vm6219, %v6220, %v6211
    %v6222 = vsel %vm6215, %v6218, %v6221
    %v6223 = vsel %vm6212, nan, %v6222
    %v6224 = vand.u32 2147483647, %v4185
    %vm6225 = vcmp.le.f32.partialorder %v6224, 0.7853982
    %vm6226 = vcmp.lt.s32.totalorder %v4185, 0
    %v6227 = vand.u32 %v4185, 2139095040
    %v6228 = vshrl.u32 %v6227, 23
    %v6229 = vsub.s32 %v6228, 127
    %v6230 = vand.u32 2147483647, %v4185
    %v6231 = vand.u32 %v6230, 8388607
    %v6232 = vor.u32 %v6231, 8388608
    %v6233 = vsub.s32 0, %v6232
    %v6234 = vadd.s32 %v6229, 1
    %vm6235 = vcmp.gt.s32.totalorder %v6234, 0
    %v6236 = vsel %vm6235, %v6234, 0
    %v6237 = vshrl.u32 %v6236, 5
    %v6238 = vand.u32 %v6236, 31
    %v6239 = vsub.s32 32, %v6238
    %v6240 = vshrl.u32 683565275, %v6239
    %v6241 = vshll.u32 683565275, %v6238
    %v6242 = vshrl.u32 2475754826, %v6239
    %v6243 = vor.u32 %v6241, %v6242
    %v6244 = vshll.u32 2475754826, %v6238
    %v6245 = vshrl.u32 2131351028, %v6239
    %v6246 = vor.u32 %v6244, %v6245
    %v6247 = vshll.u32 2131351028, %v6238
    %v6248 = vshrl.u32 2102212464, %v6239
    %v6249 = vor.u32 %v6247, %v6248
    %v6250 = vshll.u32 2102212464, %v6238
    %v6251 = vshrl.u32 920167782, %v6239
    %v6252 = vor.u32 %v6250, %v6251
    %v6253 = vshll.u32 920167782, %v6238
    %v6254 = vshrl.u32 1326507024, %v6239
    %v6255 = vor.u32 %v6253, %v6254
    %vm6256 = vcmp.lt.s32.totalorder %v6237, 1
    %vm6257 = vcmp.lt.s32.totalorder %v6237, 2
    %vm6258 = vcmp.lt.s32.totalorder %v6237, 3
    %vm6259 = vcmp.lt.s32.totalorder %v6237, 4
    %v6260 = vsel %vm6256, %v6240, %v6243
    %v6261 = vsel %vm6259, %v6249, 2102212464
    %v6262 = vsel %vm6258, %v6246, %v6261
    %v6263 = vsel %vm6257, %v6260, %v6262
    %v6264 = vsel %vm6256, %v6243, %v6246
    %v6265 = vsel %vm6259, %v6252, 920167782
    %v6266 = vsel %vm6258, %v6249, %v6265
    %v6267 = vsel %vm6257, %v6264, %v6266
    %v6268 = vsel %vm6256, %v6246, %v6249
    %v6269 = vsel %vm6259, %v6255, 1326507024
    %v6270 = vsel %vm6258, %v6252, %v6269
    %v6271 = vsel %vm6257, %v6268, %v6270
    %v6272 = vshll.u32 %v6232, 8
    %v6273 = vmul.u32.u64.compose %v6272, %v6271
    %v6274 = vextract.low.u32 %v6273
    %v6275 = vextract.high.u32 %v6273
    %v6276 = vmul.u32.u64.compose %v6272, %v6267
    %v6277 = vextract.low.u32 %v6276
    %v6278 = vextract.high.u32 %v6276
    %v6279 = vmul.u32 %v6272, %v6263
    %v6280 = vadd.s32 %v6275, %v6277
    %vm6281 = vc.u32 %v6275, %v6277
    %v6282 = vadd.s32 %v6278, 1
    %v6283 = vsel %vm6281, %v6282, %v6278
    %v6284 = vadd.s32 %v6279, %v6283
    %v6285 = vadd.s32 %v6284, 536870912
    %v6286 = vshrl.u32 %v6285, 30
    %v6287 = vshll.u32 %v6286, 30
    %v6288 = vsub.s32 %v6284, %v6287
    %vm6289 = vcmp.lt.s32.totalorder %v6288, 0
    %v6290 = vsub.s32 0, %v6288
    %v6291 = vsel %vm6289, %v6290, %v6288
    %v6292 = vclz %v6291
    %v6293 = vsub.s32 %v6292, 2
    %vm6294 = vcmp.gt.s32.totalorder 0, %v6293
    %v6295 = vsel %vm6294, 0, %v6293
    %v6296 = vsub.s32 32, %v6295
    %v6297 = vshll.u32 %v6288, %v6295
    %v6298 = vshrl.u32 %v6280, %v6296
    %v6299 = vor.u32 %v6297, %v6298
    %v6300 = vsub.s32 4294967266, %v6295
    %v6301 = vadd.s32 %v6300, 127
    %v6302 = vshll.u32 %v6301, 23
    %v6303 = vor.u32 4788187, %v6302
    %v6304 = vand.u32 2147483647, %v6303
    %v6306 = vcvt.s32.f32 %v6299
    %v6307 = vmul.f32 %v6306, %v6304
    %v6308 = vxor.u32 %v6307, 2147483648
    %v6309 = vsel %vm6226, %v6308, %v6307
    %v6310 = vsub.s32 4, %v6286
    %v6311 = vsel %vm6226, %v6310, %v6286
    %v6312 = vsel %vm6225, %v4185, %v6309
    %v6313 = vsel %vm6225, 0, %v6311
    %v6314 = vcosq.f32.pop %v6312
    %v6315 = vsinq.f32.pop %v6312
    %vm6316 = vweird.f32 %v4185
    %v6317 = vadd.s32 %v6313, 3
    %v6318 = vand.u32 %v6317, 3
    %vm6319 = vcmp.lt.s32.totalorder %v6318, 2
    %vm6320 = vcmp.eq.s32.totalorder %v6318, 0
    %v6321 = vxor.u32 %v6315, 2147483648
    %v6322 = vsel %vm6320, %v6314, %v6321
    %vm6323 = vcmp.eq.s32.totalorder %v6318, 2
    %v6324 = vxor.u32 %v6314, 2147483648
    %v6325 = vsel %vm6323, %v6324, %v6315
    %v6326 = vsel %vm6319, %v6322, %v6325
    %v6327 = vsel %vm6316, nan, %v6326
    %v6328 = vand.u32 2147483647, %v4190
    %vm6329 = vcmp.le.f32.partialorder %v6328, 0.7853982
    %vm6330 = vcmp.lt.s32.totalorder %v4190, 0
    %v6331 = vand.u32 %v4190, 2139095040
    %v6332 = vshrl.u32 %v6331, 23
    %v6333 = vsub.s32 %v6332, 127
    %v6334 = vand.u32 2147483647, %v4190
    %v6335 = vand.u32 %v6334, 8388607
    %v6336 = vor.u32 %v6335, 8388608
    %v6337 = vsub.s32 0, %v6336
    %v6338 = vadd.s32 %v6333, 1
    %vm6339 = vcmp.gt.s32.totalorder %v6338, 0
    %v6340 = vsel %vm6339, %v6338, 0
    %v6341 = vshrl.u32 %v6340, 5
    %v6342 = vand.u32 %v6340, 31
    %v6343 = vsub.s32 32, %v6342
    %v6344 = vshrl.u32 683565275, %v6343
    %v6345 = vshll.u32 683565275, %v6342
    %v6346 = vshrl.u32 2475754826, %v6343
    %v6347 = vor.u32 %v6345, %v6346
    %v6348 = vshll.u32 2475754826, %v6342
    %v6349 = vshrl.u32 2131351028, %v6343
    %v6350 = vor.u32 %v6348, %v6349
    %v6351 = vshll.u32 2131351028, %v6342
    %v6352 = vshrl.u32 2102212464, %v6343
    %v6353 = vor.u32 %v6351, %v6352
    %v6354 = vshll.u32 2102212464, %v6342
    %v6355 = vshrl.u32 920167782, %v6343
    %v6356 = vor.u32 %v6354, %v6355
    %v6357 = vshll.u32 920167782, %v6342
    %v6358 = vshrl.u32 1326507024, %v6343
    %v6359 = vor.u32 %v6357, %v6358
    %vm6360 = vcmp.lt.s32.totalorder %v6341, 1
    %vm6361 = vcmp.lt.s32.totalorder %v6341, 2
    %vm6362 = vcmp.lt.s32.totalorder %v6341, 3
    %vm6363 = vcmp.lt.s32.totalorder %v6341, 4
    %v6364 = vsel %vm6360, %v6344, %v6347
    %v6365 = vsel %vm6363, %v6353, 2102212464
    %v6366 = vsel %vm6362, %v6350, %v6365
    %v6367 = vsel %vm6361, %v6364, %v6366
    %v6368 = vsel %vm6360, %v6347, %v6350
    %v6369 = vsel %vm6363, %v6356, 920167782
    %v6370 = vsel %vm6362, %v6353, %v6369
    %v6371 = vsel %vm6361, %v6368, %v6370
    %v6372 = vsel %vm6360, %v6350, %v6353
    %v6373 = vsel %vm6363, %v6359, 1326507024
    %v6374 = vsel %vm6362, %v6356, %v6373
    %v6375 = vsel %vm6361, %v6372, %v6374
    %v6376 = vshll.u32 %v6336, 8
    %v6377 = vmul.u32.u64.compose %v6376, %v6375
    %v6378 = vextract.low.u32 %v6377
    %v6379 = vextract.high.u32 %v6377
    %v6380 = vmul.u32.u64.compose %v6376, %v6371
    %v6381 = vextract.low.u32 %v6380
    %v6382 = vextract.high.u32 %v6380
    %v6383 = vmul.u32 %v6376, %v6367
    %v6384 = vadd.s32 %v6379, %v6381
    %vm6385 = vc.u32 %v6379, %v6381
    %v6386 = vadd.s32 %v6382, 1
    %v6387 = vsel %vm6385, %v6386, %v6382
    %v6388 = vadd.s32 %v6383, %v6387
    %v6389 = vadd.s32 %v6388, 536870912
    %v6390 = vshrl.u32 %v6389, 30
    %v6391 = vshll.u32 %v6390, 30
    %v6392 = vsub.s32 %v6388, %v6391
    %vm6393 = vcmp.lt.s32.totalorder %v6392, 0
    %v6394 = vsub.s32 0, %v6392
    %v6395 = vsel %vm6393, %v6394, %v6392
    %v6396 = vclz %v6395
    %v6397 = vsub.s32 %v6396, 2
    %vm6398 = vcmp.gt.s32.totalorder 0, %v6397
    %v6399 = vsel %vm6398, 0, %v6397
    %v6400 = vsub.s32 32, %v6399
    %v6401 = vshll.u32 %v6392, %v6399
    %v6402 = vshrl.u32 %v6384, %v6400
    %v6403 = vor.u32 %v6401, %v6402
    %v6404 = vsub.s32 4294967266, %v6399
    %v6405 = vadd.s32 %v6404, 127
    %v6406 = vshll.u32 %v6405, 23
    %v6407 = vor.u32 4788187, %v6406
    %v6408 = vand.u32 2147483647, %v6407
    %v6410 = vcvt.s32.f32 %v6403
    %v6411 = vmul.f32 %v6410, %v6408
    %v6412 = vxor.u32 %v6411, 2147483648
    %v6413 = vsel %vm6330, %v6412, %v6411
    %v6414 = vsub.s32 4, %v6390
    %v6415 = vsel %vm6330, %v6414, %v6390
    %v6416 = vsel %vm6329, %v4190, %v6413
    %v6417 = vsel %vm6329, 0, %v6415
    %v6418 = vcosq.f32.pop %v6416
    %v6419 = vsinq.f32.pop %v6416
    %vm6420 = vweird.f32 %v4190
    %v6421 = vadd.s32 %v6417, 3
    %v6422 = vand.u32 %v6421, 3
    %vm6423 = vcmp.lt.s32.totalorder %v6422, 2
    %vm6424 = vcmp.eq.s32.totalorder %v6422, 0
    %v6425 = vxor.u32 %v6419, 2147483648
    %v6426 = vsel %vm6424, %v6418, %v6425
    %vm6427 = vcmp.eq.s32.totalorder %v6422, 2
    %v6428 = vxor.u32 %v6418, 2147483648
    %v6429 = vsel %vm6427, %v6428, %v6419
    %v6430 = vsel %vm6423, %v6426, %v6429
    %v6431 = vsel %vm6420, nan, %v6430
    %v6432 = vand.u32 2147483647, %v4195
    %vm6433 = vcmp.le.f32.partialorder %v6432, 0.7853982
    %vm6434 = vcmp.lt.s32.totalorder %v4195, 0
    %v6435 = vand.u32 %v4195, 2139095040
    %v6436 = vshrl.u32 %v6435, 23
    %v6437 = vsub.s32 %v6436, 127
    %v6438 = vand.u32 2147483647, %v4195
    %v6439 = vand.u32 %v6438, 8388607
    %v6440 = vor.u32 %v6439, 8388608
    %v6441 = vsub.s32 0, %v6440
    %v6442 = vadd.s32 %v6437, 1
    %vm6443 = vcmp.gt.s32.totalorder %v6442, 0
    %v6444 = vsel %vm6443, %v6442, 0
    %v6445 = vshrl.u32 %v6444, 5
    %v6446 = vand.u32 %v6444, 31
    %v6447 = vsub.s32 32, %v6446
    %v6448 = vshrl.u32 683565275, %v6447
    %v6449 = vshll.u32 683565275, %v6446
    %v6450 = vshrl.u32 2475754826, %v6447
    %v6451 = vor.u32 %v6449, %v6450
    %v6452 = vshll.u32 2475754826, %v6446
    %v6453 = vshrl.u32 2131351028, %v6447
    %v6454 = vor.u32 %v6452, %v6453
    %v6455 = vshll.u32 2131351028, %v6446
    %v6456 = vshrl.u32 2102212464, %v6447
    %v6457 = vor.u32 %v6455, %v6456
    %v6458 = vshll.u32 2102212464, %v6446
    %v6459 = vshrl.u32 920167782, %v6447
    %v6460 = vor.u32 %v6458, %v6459
    %v6461 = vshll.u32 920167782, %v6446
    %v6462 = vshrl.u32 1326507024, %v6447
    %v6463 = vor.u32 %v6461, %v6462
    %vm6464 = vcmp.lt.s32.totalorder %v6445, 1
    %vm6465 = vcmp.lt.s32.totalorder %v6445, 2
    %vm6466 = vcmp.lt.s32.totalorder %v6445, 3
    %vm6467 = vcmp.lt.s32.totalorder %v6445, 4
    %v6468 = vsel %vm6464, %v6448, %v6451
    %v6469 = vsel %vm6467, %v6457, 2102212464
    %v6470 = vsel %vm6466, %v6454, %v6469
    %v6471 = vsel %vm6465, %v6468, %v6470
    %v6472 = vsel %vm6464, %v6451, %v6454
    %v6473 = vsel %vm6467, %v6460, 920167782
    %v6474 = vsel %vm6466, %v6457, %v6473
    %v6475 = vsel %vm6465, %v6472, %v6474
    %v6476 = vsel %vm6464, %v6454, %v6457
    %v6477 = vsel %vm6467, %v6463, 1326507024
    %v6478 = vsel %vm6466, %v6460, %v6477
    %v6479 = vsel %vm6465, %v6476, %v6478
    %v6480 = vshll.u32 %v6440, 8
    %v6481 = vmul.u32.u64.compose %v6480, %v6479
    %v6482 = vextract.low.u32 %v6481
    %v6483 = vextract.high.u32 %v6481
    %v6484 = vmul.u32.u64.compose %v6480, %v6475
    %v6485 = vextract.low.u32 %v6484
    %v6486 = vextract.high.u32 %v6484
    %v6487 = vmul.u32 %v6480, %v6471
    %v6488 = vadd.s32 %v6483, %v6485
    %vm6489 = vc.u32 %v6483, %v6485
    %v6490 = vadd.s32 %v6486, 1
    %v6491 = vsel %vm6489, %v6490, %v6486
    %v6492 = vadd.s32 %v6487, %v6491
    %v6493 = vadd.s32 %v6492, 536870912
    %v6494 = vshrl.u32 %v6493, 30
    %v6495 = vshll.u32 %v6494, 30
    %v6496 = vsub.s32 %v6492, %v6495
    %vm6497 = vcmp.lt.s32.totalorder %v6496, 0
    %v6498 = vsub.s32 0, %v6496
    %v6499 = vsel %vm6497, %v6498, %v6496
    %v6500 = vclz %v6499
    %v6501 = vsub.s32 %v6500, 2
    %vm6502 = vcmp.gt.s32.totalorder 0, %v6501
    %v6503 = vsel %vm6502, 0, %v6501
    %v6504 = vsub.s32 32, %v6503
    %v6505 = vshll.u32 %v6496, %v6503
    %v6506 = vshrl.u32 %v6488, %v6504
    %v6507 = vor.u32 %v6505, %v6506
    %v6508 = vsub.s32 4294967266, %v6503
    %v6509 = vadd.s32 %v6508, 127
    %v6510 = vshll.u32 %v6509, 23
    %v6511 = vor.u32 4788187, %v6510
    %v6512 = vand.u32 2147483647, %v6511
    %v6514 = vcvt.s32.f32 %v6507
    %v6515 = vmul.f32 %v6514, %v6512
    %v6516 = vxor.u32 %v6515, 2147483648
    %v6517 = vsel %vm6434, %v6516, %v6515
    %v6518 = vsub.s32 4, %v6494
    %v6519 = vsel %vm6434, %v6518, %v6494
    %v6520 = vsel %vm6433, %v4195, %v6517
    %v6521 = vsel %vm6433, 0, %v6519
    %v6522 = vcosq.f32.pop %v6520
    %v6523 = vsinq.f32.pop %v6520
    %vm6524 = vweird.f32 %v4195
    %v6525 = vadd.s32 %v6521, 3
    %v6526 = vand.u32 %v6525, 3
    %vm6527 = vcmp.lt.s32.totalorder %v6526, 2
    %vm6528 = vcmp.eq.s32.totalorder %v6526, 0
    %v6529 = vxor.u32 %v6523, 2147483648
    %v6530 = vsel %vm6528, %v6522, %v6529
    %vm6531 = vcmp.eq.s32.totalorder %v6526, 2
    %v6532 = vxor.u32 %v6522, 2147483648
    %v6533 = vsel %vm6531, %v6532, %v6523
    %v6534 = vsel %vm6527, %v6530, %v6533
    %v6535 = vsel %vm6524, nan, %v6534
    %v6536 = vand.u32 2147483647, %v4200
    %vm6537 = vcmp.le.f32.partialorder %v6536, 0.7853982
    %vm6538 = vcmp.lt.s32.totalorder %v4200, 0
    %v6539 = vand.u32 %v4200, 2139095040
    %v6540 = vshrl.u32 %v6539, 23
    %v6541 = vsub.s32 %v6540, 127
    %v6542 = vand.u32 2147483647, %v4200
    %v6543 = vand.u32 %v6542, 8388607
    %v6544 = vor.u32 %v6543, 8388608
    %v6545 = vsub.s32 0, %v6544
    %v6546 = vadd.s32 %v6541, 1
    %vm6547 = vcmp.gt.s32.totalorder %v6546, 0
    %v6548 = vsel %vm6547, %v6546, 0
    %v6549 = vshrl.u32 %v6548, 5
    %v6550 = vand.u32 %v6548, 31
    %v6551 = vsub.s32 32, %v6550
    %v6552 = vshrl.u32 683565275, %v6551
    %v6553 = vshll.u32 683565275, %v6550
    %v6554 = vshrl.u32 2475754826, %v6551
    %v6555 = vor.u32 %v6553, %v6554
    %v6556 = vshll.u32 2475754826, %v6550
    %v6557 = vshrl.u32 2131351028, %v6551
    %v6558 = vor.u32 %v6556, %v6557
    %v6559 = vshll.u32 2131351028, %v6550
    %v6560 = vshrl.u32 2102212464, %v6551
    %v6561 = vor.u32 %v6559, %v6560
    %v6562 = vshll.u32 2102212464, %v6550
    %v6563 = vshrl.u32 920167782, %v6551
    %v6564 = vor.u32 %v6562, %v6563
    %v6565 = vshll.u32 920167782, %v6550
    %v6566 = vshrl.u32 1326507024, %v6551
    %v6567 = vor.u32 %v6565, %v6566
    %vm6568 = vcmp.lt.s32.totalorder %v6549, 1
    %vm6569 = vcmp.lt.s32.totalorder %v6549, 2
    %vm6570 = vcmp.lt.s32.totalorder %v6549, 3
    %vm6571 = vcmp.lt.s32.totalorder %v6549, 4
    %v6572 = vsel %vm6568, %v6552, %v6555
    %v6573 = vsel %vm6571, %v6561, 2102212464
    %v6574 = vsel %vm6570, %v6558, %v6573
    %v6575 = vsel %vm6569, %v6572, %v6574
    %v6576 = vsel %vm6568, %v6555, %v6558
    %v6577 = vsel %vm6571, %v6564, 920167782
    %v6578 = vsel %vm6570, %v6561, %v6577
    %v6579 = vsel %vm6569, %v6576, %v6578
    %v6580 = vsel %vm6568, %v6558, %v6561
    %v6581 = vsel %vm6571, %v6567, 1326507024
    %v6582 = vsel %vm6570, %v6564, %v6581
    %v6583 = vsel %vm6569, %v6580, %v6582
    %v6584 = vshll.u32 %v6544, 8
    %v6585 = vmul.u32.u64.compose %v6584, %v6583
    %v6586 = vextract.low.u32 %v6585
    %v6587 = vextract.high.u32 %v6585
    %v6588 = vmul.u32.u64.compose %v6584, %v6579
    %v6589 = vextract.low.u32 %v6588
    %v6590 = vextract.high.u32 %v6588
    %v6591 = vmul.u32 %v6584, %v6575
    %v6592 = vadd.s32 %v6587, %v6589
    %vm6593 = vc.u32 %v6587, %v6589
    %v6594 = vadd.s32 %v6590, 1
    %v6595 = vsel %vm6593, %v6594, %v6590
    %v6596 = vadd.s32 %v6591, %v6595
    %v6597 = vadd.s32 %v6596, 536870912
    %v6598 = vshrl.u32 %v6597, 30
    %v6599 = vshll.u32 %v6598, 30
    %v6600 = vsub.s32 %v6596, %v6599
    %vm6601 = vcmp.lt.s32.totalorder %v6600, 0
    %v6602 = vsub.s32 0, %v6600
    %v6603 = vsel %vm6601, %v6602, %v6600
    %v6604 = vclz %v6603
    %v6605 = vsub.s32 %v6604, 2
    %vm6606 = vcmp.gt.s32.totalorder 0, %v6605
    %v6607 = vsel %vm6606, 0, %v6605
    %v6608 = vsub.s32 32, %v6607
    %v6609 = vshll.u32 %v6600, %v6607
    %v6610 = vshrl.u32 %v6592, %v6608
    %v6611 = vor.u32 %v6609, %v6610
    %v6612 = vsub.s32 4294967266, %v6607
    %v6613 = vadd.s32 %v6612, 127
    %v6614 = vshll.u32 %v6613, 23
    %v6615 = vor.u32 4788187, %v6614
    %v6616 = vand.u32 2147483647, %v6615
    %v6618 = vcvt.s32.f32 %v6611
    %v6619 = vmul.f32 %v6618, %v6616
    %v6620 = vxor.u32 %v6619, 2147483648
    %v6621 = vsel %vm6538, %v6620, %v6619
    %v6622 = vsub.s32 4, %v6598
    %v6623 = vsel %vm6538, %v6622, %v6598
    %v6624 = vsel %vm6537, %v4200, %v6621
    %v6625 = vsel %vm6537, 0, %v6623
    %v6626 = vcosq.f32.pop %v6624
    %v6627 = vsinq.f32.pop %v6624
    %vm6628 = vweird.f32 %v4200
    %v6629 = vadd.s32 %v6625, 3
    %v6630 = vand.u32 %v6629, 3
    %vm6631 = vcmp.lt.s32.totalorder %v6630, 2
    %vm6632 = vcmp.eq.s32.totalorder %v6630, 0
    %v6633 = vxor.u32 %v6627, 2147483648
    %v6634 = vsel %vm6632, %v6626, %v6633
    %vm6635 = vcmp.eq.s32.totalorder %v6630, 2
    %v6636 = vxor.u32 %v6626, 2147483648
    %v6637 = vsel %vm6635, %v6636, %v6627
    %v6638 = vsel %vm6631, %v6634, %v6637
    %v6639 = vsel %vm6628, nan, %v6638
    %v6640 = vand.u32 2147483647, %v4205
    %vm6641 = vcmp.le.f32.partialorder %v6640, 0.7853982
    %vm6642 = vcmp.lt.s32.totalorder %v4205, 0
    %v6643 = vand.u32 %v4205, 2139095040
    %v6644 = vshrl.u32 %v6643, 23
    %v6645 = vsub.s32 %v6644, 127
    %v6646 = vand.u32 2147483647, %v4205
    %v6647 = vand.u32 %v6646, 8388607
    %v6648 = vor.u32 %v6647, 8388608
    %v6649 = vsub.s32 0, %v6648
    %v6650 = vadd.s32 %v6645, 1
    %vm6651 = vcmp.gt.s32.totalorder %v6650, 0
    %v6652 = vsel %vm6651, %v6650, 0
    %v6653 = vshrl.u32 %v6652, 5
    %v6654 = vand.u32 %v6652, 31
    %v6655 = vsub.s32 32, %v6654
    %v6656 = vshrl.u32 683565275, %v6655
    %v6657 = vshll.u32 683565275, %v6654
    %v6658 = vshrl.u32 2475754826, %v6655
    %v6659 = vor.u32 %v6657, %v6658
    %v6660 = vshll.u32 2475754826, %v6654
    %v6661 = vshrl.u32 2131351028, %v6655
    %v6662 = vor.u32 %v6660, %v6661
    %v6663 = vshll.u32 2131351028, %v6654
    %v6664 = vshrl.u32 2102212464, %v6655
    %v6665 = vor.u32 %v6663, %v6664
    %v6666 = vshll.u32 2102212464, %v6654
    %v6667 = vshrl.u32 920167782, %v6655
    %v6668 = vor.u32 %v6666, %v6667
    %v6669 = vshll.u32 920167782, %v6654
    %v6670 = vshrl.u32 1326507024, %v6655
    %v6671 = vor.u32 %v6669, %v6670
    %vm6672 = vcmp.lt.s32.totalorder %v6653, 1
    %vm6673 = vcmp.lt.s32.totalorder %v6653, 2
    %vm6674 = vcmp.lt.s32.totalorder %v6653, 3
    %vm6675 = vcmp.lt.s32.totalorder %v6653, 4
    %v6676 = vsel %vm6672, %v6656, %v6659
    %v6677 = vsel %vm6675, %v6665, 2102212464
    %v6678 = vsel %vm6674, %v6662, %v6677
    %v6679 = vsel %vm6673, %v6676, %v6678
    %v6680 = vsel %vm6672, %v6659, %v6662
    %v6681 = vsel %vm6675, %v6668, 920167782
    %v6682 = vsel %vm6674, %v6665, %v6681
    %v6683 = vsel %vm6673, %v6680, %v6682
    %v6684 = vsel %vm6672, %v6662, %v6665
    %v6685 = vsel %vm6675, %v6671, 1326507024
    %v6686 = vsel %vm6674, %v6668, %v6685
    %v6687 = vsel %vm6673, %v6684, %v6686
    %v6688 = vshll.u32 %v6648, 8
    %v6689 = vmul.u32.u64.compose %v6688, %v6687
    %v6690 = vextract.low.u32 %v6689
    %v6691 = vextract.high.u32 %v6689
    %v6692 = vmul.u32.u64.compose %v6688, %v6683
    %v6693 = vextract.low.u32 %v6692
    %v6694 = vextract.high.u32 %v6692
    %v6695 = vmul.u32 %v6688, %v6679
    %v6696 = vadd.s32 %v6691, %v6693
    %vm6697 = vc.u32 %v6691, %v6693
    %v6698 = vadd.s32 %v6694, 1
    %v6699 = vsel %vm6697, %v6698, %v6694
    %v6700 = vadd.s32 %v6695, %v6699
    %v6701 = vadd.s32 %v6700, 536870912
    %v6702 = vshrl.u32 %v6701, 30
    %v6703 = vshll.u32 %v6702, 30
    %v6704 = vsub.s32 %v6700, %v6703
    %vm6705 = vcmp.lt.s32.totalorder %v6704, 0
    %v6706 = vsub.s32 0, %v6704
    %v6707 = vsel %vm6705, %v6706, %v6704
    %v6708 = vclz %v6707
    %v6709 = vsub.s32 %v6708, 2
    %vm6710 = vcmp.gt.s32.totalorder 0, %v6709
    %v6711 = vsel %vm6710, 0, %v6709
    %v6712 = vsub.s32 32, %v6711
    %v6713 = vshll.u32 %v6704, %v6711
    %v6714 = vshrl.u32 %v6696, %v6712
    %v6715 = vor.u32 %v6713, %v6714
    %v6716 = vsub.s32 4294967266, %v6711
    %v6717 = vadd.s32 %v6716, 127
    %v6718 = vshll.u32 %v6717, 23
    %v6719 = vor.u32 4788187, %v6718
    %v6720 = vand.u32 2147483647, %v6719
    %v6722 = vcvt.s32.f32 %v6715
    %v6723 = vmul.f32 %v6722, %v6720
    %v6724 = vxor.u32 %v6723, 2147483648
    %v6725 = vsel %vm6642, %v6724, %v6723
    %v6726 = vsub.s32 4, %v6702
    %v6727 = vsel %vm6642, %v6726, %v6702
    %v6728 = vsel %vm6641, %v4205, %v6725
    %v6729 = vsel %vm6641, 0, %v6727
    %v6730 = vcosq.f32.pop %v6728
    %v6731 = vsinq.f32.pop %v6728
    %vm6732 = vweird.f32 %v4205
    %v6733 = vadd.s32 %v6729, 3
    %v6734 = vand.u32 %v6733, 3
    %vm6735 = vcmp.lt.s32.totalorder %v6734, 2
    %vm6736 = vcmp.eq.s32.totalorder %v6734, 0
    %v6737 = vxor.u32 %v6731, 2147483648
    %v6738 = vsel %vm6736, %v6730, %v6737
    %vm6739 = vcmp.eq.s32.totalorder %v6734, 2
    %v6740 = vxor.u32 %v6730, 2147483648
    %v6741 = vsel %vm6739, %v6740, %v6731
    %v6742 = vsel %vm6735, %v6738, %v6741
    %v6743 = vsel %vm6732, nan, %v6742
    %v6744 = vand.u32 2147483647, %v4210
    %vm6745 = vcmp.le.f32.partialorder %v6744, 0.7853982
    %vm6746 = vcmp.lt.s32.totalorder %v4210, 0
    %v6747 = vand.u32 %v4210, 2139095040
    %v6748 = vshrl.u32 %v6747, 23
    %v6749 = vsub.s32 %v6748, 127
    %v6750 = vand.u32 2147483647, %v4210
    %v6751 = vand.u32 %v6750, 8388607
    %v6752 = vor.u32 %v6751, 8388608
    %v6753 = vsub.s32 0, %v6752
    %v6754 = vadd.s32 %v6749, 1
    %vm6755 = vcmp.gt.s32.totalorder %v6754, 0
    %v6756 = vsel %vm6755, %v6754, 0
    %v6757 = vshrl.u32 %v6756, 5
    %v6758 = vand.u32 %v6756, 31
    %v6759 = vsub.s32 32, %v6758
    %v6760 = vshrl.u32 683565275, %v6759
    %v6761 = vshll.u32 683565275, %v6758
    %v6762 = vshrl.u32 2475754826, %v6759
    %v6763 = vor.u32 %v6761, %v6762
    %v6764 = vshll.u32 2475754826, %v6758
    %v6765 = vshrl.u32 2131351028, %v6759
    %v6766 = vor.u32 %v6764, %v6765
    %v6767 = vshll.u32 2131351028, %v6758
    %v6768 = vshrl.u32 2102212464, %v6759
    %v6769 = vor.u32 %v6767, %v6768
    %v6770 = vshll.u32 2102212464, %v6758
    %v6771 = vshrl.u32 920167782, %v6759
    %v6772 = vor.u32 %v6770, %v6771
    %v6773 = vshll.u32 920167782, %v6758
    %v6774 = vshrl.u32 1326507024, %v6759
    %v6775 = vor.u32 %v6773, %v6774
    %vm6776 = vcmp.lt.s32.totalorder %v6757, 1
    %vm6777 = vcmp.lt.s32.totalorder %v6757, 2
    %vm6778 = vcmp.lt.s32.totalorder %v6757, 3
    %vm6779 = vcmp.lt.s32.totalorder %v6757, 4
    %v6780 = vsel %vm6776, %v6760, %v6763
    %v6781 = vsel %vm6779, %v6769, 2102212464
    %v6782 = vsel %vm6778, %v6766, %v6781
    %v6783 = vsel %vm6777, %v6780, %v6782
    %v6784 = vsel %vm6776, %v6763, %v6766
    %v6785 = vsel %vm6779, %v6772, 920167782
    %v6786 = vsel %vm6778, %v6769, %v6785
    %v6787 = vsel %vm6777, %v6784, %v6786
    %v6788 = vsel %vm6776, %v6766, %v6769
    %v6789 = vsel %vm6779, %v6775, 1326507024
    %v6790 = vsel %vm6778, %v6772, %v6789
    %v6791 = vsel %vm6777, %v6788, %v6790
    %v6792 = vshll.u32 %v6752, 8
    %v6793 = vmul.u32.u64.compose %v6792, %v6791
    %v6794 = vextract.low.u32 %v6793
    %v6795 = vextract.high.u32 %v6793
    %v6796 = vmul.u32.u64.compose %v6792, %v6787
    %v6797 = vextract.low.u32 %v6796
    %v6798 = vextract.high.u32 %v6796
    %v6799 = vmul.u32 %v6792, %v6783
    %v6800 = vadd.s32 %v6795, %v6797
    %vm6801 = vc.u32 %v6795, %v6797
    %v6802 = vadd.s32 %v6798, 1
    %v6803 = vsel %vm6801, %v6802, %v6798
    %v6804 = vadd.s32 %v6799, %v6803
    %v6805 = vadd.s32 %v6804, 536870912
    %v6806 = vshrl.u32 %v6805, 30
    %v6807 = vshll.u32 %v6806, 30
    %v6808 = vsub.s32 %v6804, %v6807
    %vm6809 = vcmp.lt.s32.totalorder %v6808, 0
    %v6810 = vsub.s32 0, %v6808
    %v6811 = vsel %vm6809, %v6810, %v6808
    %v6812 = vclz %v6811
    %v6813 = vsub.s32 %v6812, 2
    %vm6814 = vcmp.gt.s32.totalorder 0, %v6813
    %v6815 = vsel %vm6814, 0, %v6813
    %v6816 = vsub.s32 32, %v6815
    %v6817 = vshll.u32 %v6808, %v6815
    %v6818 = vshrl.u32 %v6800, %v6816
    %v6819 = vor.u32 %v6817, %v6818
    %v6820 = vsub.s32 4294967266, %v6815
    %v6821 = vadd.s32 %v6820, 127
    %v6822 = vshll.u32 %v6821, 23
    %v6823 = vor.u32 4788187, %v6822
    %v6824 = vand.u32 2147483647, %v6823
    %v6826 = vcvt.s32.f32 %v6819
    %v6827 = vmul.f32 %v6826, %v6824
    %v6828 = vxor.u32 %v6827, 2147483648
    %v6829 = vsel %vm6746, %v6828, %v6827
    %v6830 = vsub.s32 4, %v6806
    %v6831 = vsel %vm6746, %v6830, %v6806
    %v6832 = vsel %vm6745, %v4210, %v6829
    %v6833 = vsel %vm6745, 0, %v6831
    %v6834 = vcosq.f32.pop %v6832
    %v6835 = vsinq.f32.pop %v6832
    %vm6836 = vweird.f32 %v4210
    %v6837 = vadd.s32 %v6833, 3
    %v6838 = vand.u32 %v6837, 3
    %vm6839 = vcmp.lt.s32.totalorder %v6838, 2
    %vm6840 = vcmp.eq.s32.totalorder %v6838, 0
    %v6841 = vxor.u32 %v6835, 2147483648
    %v6842 = vsel %vm6840, %v6834, %v6841
    %vm6843 = vcmp.eq.s32.totalorder %v6838, 2
    %v6844 = vxor.u32 %v6834, 2147483648
    %v6845 = vsel %vm6843, %v6844, %v6835
    %v6846 = vsel %vm6839, %v6842, %v6845
    %v6847 = vsel %vm6836, nan, %v6846
    %v6848 = vand.u32 2147483647, %v4215
    %vm6849 = vcmp.le.f32.partialorder %v6848, 0.7853982
    %vm6850 = vcmp.lt.s32.totalorder %v4215, 0
    %v6851 = vand.u32 %v4215, 2139095040
    %v6852 = vshrl.u32 %v6851, 23
    %v6853 = vsub.s32 %v6852, 127
    %v6854 = vand.u32 2147483647, %v4215
    %v6855 = vand.u32 %v6854, 8388607
    %v6856 = vor.u32 %v6855, 8388608
    %v6857 = vsub.s32 0, %v6856
    %v6858 = vadd.s32 %v6853, 1
    %vm6859 = vcmp.gt.s32.totalorder %v6858, 0
    %v6860 = vsel %vm6859, %v6858, 0
    %v6861 = vshrl.u32 %v6860, 5
    %v6862 = vand.u32 %v6860, 31
    %v6863 = vsub.s32 32, %v6862
    %v6864 = vshrl.u32 683565275, %v6863
    %v6865 = vshll.u32 683565275, %v6862
    %v6866 = vshrl.u32 2475754826, %v6863
    %v6867 = vor.u32 %v6865, %v6866
    %v6868 = vshll.u32 2475754826, %v6862
    %v6869 = vshrl.u32 2131351028, %v6863
    %v6870 = vor.u32 %v6868, %v6869
    %v6871 = vshll.u32 2131351028, %v6862
    %v6872 = vshrl.u32 2102212464, %v6863
    %v6873 = vor.u32 %v6871, %v6872
    %v6874 = vshll.u32 2102212464, %v6862
    %v6875 = vshrl.u32 920167782, %v6863
    %v6876 = vor.u32 %v6874, %v6875
    %v6877 = vshll.u32 920167782, %v6862
    %v6878 = vshrl.u32 1326507024, %v6863
    %v6879 = vor.u32 %v6877, %v6878
    %vm6880 = vcmp.lt.s32.totalorder %v6861, 1
    %vm6881 = vcmp.lt.s32.totalorder %v6861, 2
    %vm6882 = vcmp.lt.s32.totalorder %v6861, 3
    %vm6883 = vcmp.lt.s32.totalorder %v6861, 4
    %v6884 = vsel %vm6880, %v6864, %v6867
    %v6885 = vsel %vm6883, %v6873, 2102212464
    %v6886 = vsel %vm6882, %v6870, %v6885
    %v6887 = vsel %vm6881, %v6884, %v6886
    %v6888 = vsel %vm6880, %v6867, %v6870
    %v6889 = vsel %vm6883, %v6876, 920167782
    %v6890 = vsel %vm6882, %v6873, %v6889
    %v6891 = vsel %vm6881, %v6888, %v6890
    %v6892 = vsel %vm6880, %v6870, %v6873
    %v6893 = vsel %vm6883, %v6879, 1326507024
    %v6894 = vsel %vm6882, %v6876, %v6893
    %v6895 = vsel %vm6881, %v6892, %v6894
    %v6896 = vshll.u32 %v6856, 8
    %v6897 = vmul.u32.u64.compose %v6896, %v6895
    %v6898 = vextract.low.u32 %v6897
    %v6899 = vextract.high.u32 %v6897
    %v6900 = vmul.u32.u64.compose %v6896, %v6891
    %v6901 = vextract.low.u32 %v6900
    %v6902 = vextract.high.u32 %v6900
    %v6903 = vmul.u32 %v6896, %v6887
    %v6904 = vadd.s32 %v6899, %v6901
    %vm6905 = vc.u32 %v6899, %v6901
    %v6906 = vadd.s32 %v6902, 1
    %v6907 = vsel %vm6905, %v6906, %v6902
    %v6908 = vadd.s32 %v6903, %v6907
    %v6909 = vadd.s32 %v6908, 536870912
    %v6910 = vshrl.u32 %v6909, 30
    %v6911 = vshll.u32 %v6910, 30
    %v6912 = vsub.s32 %v6908, %v6911
    %vm6913 = vcmp.lt.s32.totalorder %v6912, 0
    %v6914 = vsub.s32 0, %v6912
    %v6915 = vsel %vm6913, %v6914, %v6912
    %v6916 = vclz %v6915
    %v6917 = vsub.s32 %v6916, 2
    %vm6918 = vcmp.gt.s32.totalorder 0, %v6917
    %v6919 = vsel %vm6918, 0, %v6917
    %v6920 = vsub.s32 32, %v6919
    %v6921 = vshll.u32 %v6912, %v6919
    %v6922 = vshrl.u32 %v6904, %v6920
    %v6923 = vor.u32 %v6921, %v6922
    %v6924 = vsub.s32 4294967266, %v6919
    %v6925 = vadd.s32 %v6924, 127
    %v6926 = vshll.u32 %v6925, 23
    %v6927 = vor.u32 4788187, %v6926
    %v6928 = vand.u32 2147483647, %v6927
    %v6930 = vcvt.s32.f32 %v6923
    %v6931 = vmul.f32 %v6930, %v6928
    %v6932 = vxor.u32 %v6931, 2147483648
    %v6933 = vsel %vm6850, %v6932, %v6931
    %v6934 = vsub.s32 4, %v6910
    %v6935 = vsel %vm6850, %v6934, %v6910
    %v6936 = vsel %vm6849, %v4215, %v6933
    %v6937 = vsel %vm6849, 0, %v6935
    %v6938 = vcosq.f32.pop %v6936
    %v6939 = vsinq.f32.pop %v6936
    %vm6940 = vweird.f32 %v4215
    %v6941 = vadd.s32 %v6937, 3
    %v6942 = vand.u32 %v6941, 3
    %vm6943 = vcmp.lt.s32.totalorder %v6942, 2
    %vm6944 = vcmp.eq.s32.totalorder %v6942, 0
    %v6945 = vxor.u32 %v6939, 2147483648
    %v6946 = vsel %vm6944, %v6938, %v6945
    %vm6947 = vcmp.eq.s32.totalorder %v6942, 2
    %v6948 = vxor.u32 %v6938, 2147483648
    %v6949 = vsel %vm6947, %v6948, %v6939
    %v6950 = vsel %vm6943, %v6946, %v6949
    %v6951 = vsel %vm6940, nan, %v6950
    %v6952 = vand.u32 2147483647, %v4220
    %vm6953 = vcmp.le.f32.partialorder %v6952, 0.7853982
    %vm6954 = vcmp.lt.s32.totalorder %v4220, 0
    %v6955 = vand.u32 %v4220, 2139095040
    %v6956 = vshrl.u32 %v6955, 23
    %v6957 = vsub.s32 %v6956, 127
    %v6958 = vand.u32 2147483647, %v4220
    %v6959 = vand.u32 %v6958, 8388607
    %v6960 = vor.u32 %v6959, 8388608
    %v6961 = vsub.s32 0, %v6960
    %v6962 = vadd.s32 %v6957, 1
    %vm6963 = vcmp.gt.s32.totalorder %v6962, 0
    %v6964 = vsel %vm6963, %v6962, 0
    %v6965 = vshrl.u32 %v6964, 5
    %v6966 = vand.u32 %v6964, 31
    %v6967 = vsub.s32 32, %v6966
    %v6968 = vshrl.u32 683565275, %v6967
    %v6969 = vshll.u32 683565275, %v6966
    %v6970 = vshrl.u32 2475754826, %v6967
    %v6971 = vor.u32 %v6969, %v6970
    %v6972 = vshll.u32 2475754826, %v6966
    %v6973 = vshrl.u32 2131351028, %v6967
    %v6974 = vor.u32 %v6972, %v6973
    %v6975 = vshll.u32 2131351028, %v6966
    %v6976 = vshrl.u32 2102212464, %v6967
    %v6977 = vor.u32 %v6975, %v6976
    %v6978 = vshll.u32 2102212464, %v6966
    %v6979 = vshrl.u32 920167782, %v6967
    %v6980 = vor.u32 %v6978, %v6979
    %v6981 = vshll.u32 920167782, %v6966
    %v6982 = vshrl.u32 1326507024, %v6967
    %v6983 = vor.u32 %v6981, %v6982
    %vm6984 = vcmp.lt.s32.totalorder %v6965, 1
    %vm6985 = vcmp.lt.s32.totalorder %v6965, 2
    %vm6986 = vcmp.lt.s32.totalorder %v6965, 3
    %vm6987 = vcmp.lt.s32.totalorder %v6965, 4
    %v6988 = vsel %vm6984, %v6968, %v6971
    %v6989 = vsel %vm6987, %v6977, 2102212464
    %v6990 = vsel %vm6986, %v6974, %v6989
    %v6991 = vsel %vm6985, %v6988, %v6990
    %v6992 = vsel %vm6984, %v6971, %v6974
    %v6993 = vsel %vm6987, %v6980, 920167782
    %v6994 = vsel %vm6986, %v6977, %v6993
    %v6995 = vsel %vm6985, %v6992, %v6994
    %v6996 = vsel %vm6984, %v6974, %v6977
    %v6997 = vsel %vm6987, %v6983, 1326507024
    %v6998 = vsel %vm6986, %v6980, %v6997
    %v6999 = vsel %vm6985, %v6996, %v6998
    %v7000 = vshll.u32 %v6960, 8
    %v7001 = vmul.u32.u64.compose %v7000, %v6999
    %v7002 = vextract.low.u32 %v7001
    %v7003 = vextract.high.u32 %v7001
    %v7004 = vmul.u32.u64.compose %v7000, %v6995
    %v7005 = vextract.low.u32 %v7004
    %v7006 = vextract.high.u32 %v7004
    %v7007 = vmul.u32 %v7000, %v6991
    %v7008 = vadd.s32 %v7003, %v7005
    %vm7009 = vc.u32 %v7003, %v7005
    %v7010 = vadd.s32 %v7006, 1
    %v7011 = vsel %vm7009, %v7010, %v7006
    %v7012 = vadd.s32 %v7007, %v7011
    %v7013 = vadd.s32 %v7012, 536870912
    %v7014 = vshrl.u32 %v7013, 30
    %v7015 = vshll.u32 %v7014, 30
    %v7016 = vsub.s32 %v7012, %v7015
    %vm7017 = vcmp.lt.s32.totalorder %v7016, 0
    %v7018 = vsub.s32 0, %v7016
    %v7019 = vsel %vm7017, %v7018, %v7016
    %v7020 = vclz %v7019
    %v7021 = vsub.s32 %v7020, 2
    %vm7022 = vcmp.gt.s32.totalorder 0, %v7021
    %v7023 = vsel %vm7022, 0, %v7021
    %v7024 = vsub.s32 32, %v7023
    %v7025 = vshll.u32 %v7016, %v7023
    %v7026 = vshrl.u32 %v7008, %v7024
    %v7027 = vor.u32 %v7025, %v7026
    %v7028 = vsub.s32 4294967266, %v7023
    %v7029 = vadd.s32 %v7028, 127
    %v7030 = vshll.u32 %v7029, 23
    %v7031 = vor.u32 4788187, %v7030
    %v7032 = vand.u32 2147483647, %v7031
    %v7034 = vcvt.s32.f32 %v7027
    %v7035 = vmul.f32 %v7034, %v7032
    %v7036 = vxor.u32 %v7035, 2147483648
    %v7037 = vsel %vm6954, %v7036, %v7035
    %v7038 = vsub.s32 4, %v7014
    %v7039 = vsel %vm6954, %v7038, %v7014
    %v7040 = vsel %vm6953, %v4220, %v7037
    %v7041 = vsel %vm6953, 0, %v7039
    %v7042 = vcosq.f32.pop %v7040
    %v7043 = vsinq.f32.pop %v7040
    %vm7044 = vweird.f32 %v4220
    %v7045 = vadd.s32 %v7041, 3
    %v7046 = vand.u32 %v7045, 3
    %vm7047 = vcmp.lt.s32.totalorder %v7046, 2
    %vm7048 = vcmp.eq.s32.totalorder %v7046, 0
    %v7049 = vxor.u32 %v7043, 2147483648
    %v7050 = vsel %vm7048, %v7042, %v7049
    %vm7051 = vcmp.eq.s32.totalorder %v7046, 2
    %v7052 = vxor.u32 %v7042, 2147483648
    %v7053 = vsel %vm7051, %v7052, %v7043
    %v7054 = vsel %vm7047, %v7050, %v7053
    %v7055 = vsel %vm7044, nan, %v7054
    %v7056 = vand.u32 2147483647, %v4225
    %vm7057 = vcmp.le.f32.partialorder %v7056, 0.7853982
    %vm7058 = vcmp.lt.s32.totalorder %v4225, 0
    %v7059 = vand.u32 %v4225, 2139095040
    %v7060 = vshrl.u32 %v7059, 23
    %v7061 = vsub.s32 %v7060, 127
    %v7062 = vand.u32 2147483647, %v4225
    %v7063 = vand.u32 %v7062, 8388607
    %v7064 = vor.u32 %v7063, 8388608
    %v7065 = vsub.s32 0, %v7064
    %v7066 = vadd.s32 %v7061, 1
    %vm7067 = vcmp.gt.s32.totalorder %v7066, 0
    %v7068 = vsel %vm7067, %v7066, 0
    %v7069 = vshrl.u32 %v7068, 5
    %v7070 = vand.u32 %v7068, 31
    %v7071 = vsub.s32 32, %v7070
    %v7072 = vshrl.u32 683565275, %v7071
    %v7073 = vshll.u32 683565275, %v7070
    %v7074 = vshrl.u32 2475754826, %v7071
    %v7075 = vor.u32 %v7073, %v7074
    %v7076 = vshll.u32 2475754826, %v7070
    %v7077 = vshrl.u32 2131351028, %v7071
    %v7078 = vor.u32 %v7076, %v7077
    %v7079 = vshll.u32 2131351028, %v7070
    %v7080 = vshrl.u32 2102212464, %v7071
    %v7081 = vor.u32 %v7079, %v7080
    %v7082 = vshll.u32 2102212464, %v7070
    %v7083 = vshrl.u32 920167782, %v7071
    %v7084 = vor.u32 %v7082, %v7083
    %v7085 = vshll.u32 920167782, %v7070
    %v7086 = vshrl.u32 1326507024, %v7071
    %v7087 = vor.u32 %v7085, %v7086
    %vm7088 = vcmp.lt.s32.totalorder %v7069, 1
    %vm7089 = vcmp.lt.s32.totalorder %v7069, 2
    %vm7090 = vcmp.lt.s32.totalorder %v7069, 3
    %vm7091 = vcmp.lt.s32.totalorder %v7069, 4
    %v7092 = vsel %vm7088, %v7072, %v7075
    %v7093 = vsel %vm7091, %v7081, 2102212464
    %v7094 = vsel %vm7090, %v7078, %v7093
    %v7095 = vsel %vm7089, %v7092, %v7094
    %v7096 = vsel %vm7088, %v7075, %v7078
    %v7097 = vsel %vm7091, %v7084, 920167782
    %v7098 = vsel %vm7090, %v7081, %v7097
    %v7099 = vsel %vm7089, %v7096, %v7098
    %v7100 = vsel %vm7088, %v7078, %v7081
    %v7101 = vsel %vm7091, %v7087, 1326507024
    %v7102 = vsel %vm7090, %v7084, %v7101
    %v7103 = vsel %vm7089, %v7100, %v7102
    %v7104 = vshll.u32 %v7064, 8
    %v7105 = vmul.u32.u64.compose %v7104, %v7103
    %v7106 = vextract.low.u32 %v7105
    %v7107 = vextract.high.u32 %v7105
    %v7108 = vmul.u32.u64.compose %v7104, %v7099
    %v7109 = vextract.low.u32 %v7108
    %v7110 = vextract.high.u32 %v7108
    %v7111 = vmul.u32 %v7104, %v7095
    %v7112 = vadd.s32 %v7107, %v7109
    %vm7113 = vc.u32 %v7107, %v7109
    %v7114 = vadd.s32 %v7110, 1
    %v7115 = vsel %vm7113, %v7114, %v7110
    %v7116 = vadd.s32 %v7111, %v7115
    %v7117 = vadd.s32 %v7116, 536870912
    %v7118 = vshrl.u32 %v7117, 30
    %v7119 = vshll.u32 %v7118, 30
    %v7120 = vsub.s32 %v7116, %v7119
    %vm7121 = vcmp.lt.s32.totalorder %v7120, 0
    %v7122 = vsub.s32 0, %v7120
    %v7123 = vsel %vm7121, %v7122, %v7120
    %v7124 = vclz %v7123
    %v7125 = vsub.s32 %v7124, 2
    %vm7126 = vcmp.gt.s32.totalorder 0, %v7125
    %v7127 = vsel %vm7126, 0, %v7125
    %v7128 = vsub.s32 32, %v7127
    %v7129 = vshll.u32 %v7120, %v7127
    %v7130 = vshrl.u32 %v7112, %v7128
    %v7131 = vor.u32 %v7129, %v7130
    %v7132 = vsub.s32 4294967266, %v7127
    %v7133 = vadd.s32 %v7132, 127
    %v7134 = vshll.u32 %v7133, 23
    %v7135 = vor.u32 4788187, %v7134
    %v7136 = vand.u32 2147483647, %v7135
    %v7138 = vcvt.s32.f32 %v7131
    %v7139 = vmul.f32 %v7138, %v7136
    %v7140 = vxor.u32 %v7139, 2147483648
    %v7141 = vsel %vm7058, %v7140, %v7139
    %v7142 = vsub.s32 4, %v7118
    %v7143 = vsel %vm7058, %v7142, %v7118
    %v7144 = vsel %vm7057, %v4225, %v7141
    %v7145 = vsel %vm7057, 0, %v7143
    %v7146 = vcosq.f32.pop %v7144
    %v7147 = vsinq.f32.pop %v7144
    %vm7148 = vweird.f32 %v4225
    %v7149 = vadd.s32 %v7145, 3
    %v7150 = vand.u32 %v7149, 3
    %vm7151 = vcmp.lt.s32.totalorder %v7150, 2
    %vm7152 = vcmp.eq.s32.totalorder %v7150, 0
    %v7153 = vxor.u32 %v7147, 2147483648
    %v7154 = vsel %vm7152, %v7146, %v7153
    %vm7155 = vcmp.eq.s32.totalorder %v7150, 2
    %v7156 = vxor.u32 %v7146, 2147483648
    %v7157 = vsel %vm7155, %v7156, %v7147
    %v7158 = vsel %vm7151, %v7154, %v7157
    %v7159 = vsel %vm7148, nan, %v7158
    %v7160 = vand.u32 2147483647, %v4230
    %vm7161 = vcmp.le.f32.partialorder %v7160, 0.7853982
    %vm7162 = vcmp.lt.s32.totalorder %v4230, 0
    %v7163 = vand.u32 %v4230, 2139095040
    %v7164 = vshrl.u32 %v7163, 23
    %v7165 = vsub.s32 %v7164, 127
    %v7166 = vand.u32 2147483647, %v4230
    %v7167 = vand.u32 %v7166, 8388607
    %v7168 = vor.u32 %v7167, 8388608
    %v7169 = vsub.s32 0, %v7168
    %v7170 = vadd.s32 %v7165, 1
    %vm7171 = vcmp.gt.s32.totalorder %v7170, 0
    %v7172 = vsel %vm7171, %v7170, 0
    %v7173 = vshrl.u32 %v7172, 5
    %v7174 = vand.u32 %v7172, 31
    %v7175 = vsub.s32 32, %v7174
    %v7176 = vshrl.u32 683565275, %v7175
    %v7177 = vshll.u32 683565275, %v7174
    %v7178 = vshrl.u32 2475754826, %v7175
    %v7179 = vor.u32 %v7177, %v7178
    %v7180 = vshll.u32 2475754826, %v7174
    %v7181 = vshrl.u32 2131351028, %v7175
    %v7182 = vor.u32 %v7180, %v7181
    %v7183 = vshll.u32 2131351028, %v7174
    %v7184 = vshrl.u32 2102212464, %v7175
    %v7185 = vor.u32 %v7183, %v7184
    %v7186 = vshll.u32 2102212464, %v7174
    %v7187 = vshrl.u32 920167782, %v7175
    %v7188 = vor.u32 %v7186, %v7187
    %v7189 = vshll.u32 920167782, %v7174
    %v7190 = vshrl.u32 1326507024, %v7175
    %v7191 = vor.u32 %v7189, %v7190
    %vm7192 = vcmp.lt.s32.totalorder %v7173, 1
    %vm7193 = vcmp.lt.s32.totalorder %v7173, 2
    %vm7194 = vcmp.lt.s32.totalorder %v7173, 3
    %vm7195 = vcmp.lt.s32.totalorder %v7173, 4
    %v7196 = vsel %vm7192, %v7176, %v7179
    %v7197 = vsel %vm7195, %v7185, 2102212464
    %v7198 = vsel %vm7194, %v7182, %v7197
    %v7199 = vsel %vm7193, %v7196, %v7198
    %v7200 = vsel %vm7192, %v7179, %v7182
    %v7201 = vsel %vm7195, %v7188, 920167782
    %v7202 = vsel %vm7194, %v7185, %v7201
    %v7203 = vsel %vm7193, %v7200, %v7202
    %v7204 = vsel %vm7192, %v7182, %v7185
    %v7205 = vsel %vm7195, %v7191, 1326507024
    %v7206 = vsel %vm7194, %v7188, %v7205
    %v7207 = vsel %vm7193, %v7204, %v7206
    %v7208 = vshll.u32 %v7168, 8
    %v7209 = vmul.u32.u64.compose %v7208, %v7207
    %v7210 = vextract.low.u32 %v7209
    %v7211 = vextract.high.u32 %v7209
    %v7212 = vmul.u32.u64.compose %v7208, %v7203
    %v7213 = vextract.low.u32 %v7212
    %v7214 = vextract.high.u32 %v7212
    %v7215 = vmul.u32 %v7208, %v7199
    %v7216 = vadd.s32 %v7211, %v7213
    %vm7217 = vc.u32 %v7211, %v7213
    %v7218 = vadd.s32 %v7214, 1
    %v7219 = vsel %vm7217, %v7218, %v7214
    %v7220 = vadd.s32 %v7215, %v7219
    %v7221 = vadd.s32 %v7220, 536870912
    %v7222 = vshrl.u32 %v7221, 30
    %v7223 = vshll.u32 %v7222, 30
    %v7224 = vsub.s32 %v7220, %v7223
    %vm7225 = vcmp.lt.s32.totalorder %v7224, 0
    %v7226 = vsub.s32 0, %v7224
    %v7227 = vsel %vm7225, %v7226, %v7224
    %v7228 = vclz %v7227
    %v7229 = vsub.s32 %v7228, 2
    %vm7230 = vcmp.gt.s32.totalorder 0, %v7229
    %v7231 = vsel %vm7230, 0, %v7229
    %v7232 = vsub.s32 32, %v7231
    %v7233 = vshll.u32 %v7224, %v7231
    %v7234 = vshrl.u32 %v7216, %v7232
    %v7235 = vor.u32 %v7233, %v7234
    %v7236 = vsub.s32 4294967266, %v7231
    %v7237 = vadd.s32 %v7236, 127
    %v7238 = vshll.u32 %v7237, 23
    %v7239 = vor.u32 4788187, %v7238
    %v7240 = vand.u32 2147483647, %v7239
    %v7242 = vcvt.s32.f32 %v7235
    %v7243 = vmul.f32 %v7242, %v7240
    %v7244 = vxor.u32 %v7243, 2147483648
    %v7245 = vsel %vm7162, %v7244, %v7243
    %v7246 = vsub.s32 4, %v7222
    %v7247 = vsel %vm7162, %v7246, %v7222
    %v7248 = vsel %vm7161, %v4230, %v7245
    %v7249 = vsel %vm7161, 0, %v7247
    %v7250 = vcosq.f32.pop %v7248
    %v7251 = vsinq.f32.pop %v7248
    %vm7252 = vweird.f32 %v4230
    %v7253 = vadd.s32 %v7249, 3
    %v7254 = vand.u32 %v7253, 3
    %vm7255 = vcmp.lt.s32.totalorder %v7254, 2
    %vm7256 = vcmp.eq.s32.totalorder %v7254, 0
    %v7257 = vxor.u32 %v7251, 2147483648
    %v7258 = vsel %vm7256, %v7250, %v7257
    %vm7259 = vcmp.eq.s32.totalorder %v7254, 2
    %v7260 = vxor.u32 %v7250, 2147483648
    %v7261 = vsel %vm7259, %v7260, %v7251
    %v7262 = vsel %vm7255, %v7258, %v7261
    %v7263 = vsel %vm7252, nan, %v7262
    %v7264 = vand.u32 2147483647, %v4235
    %vm7265 = vcmp.le.f32.partialorder %v7264, 0.7853982
    %vm7266 = vcmp.lt.s32.totalorder %v4235, 0
    %v7267 = vand.u32 %v4235, 2139095040
    %v7268 = vshrl.u32 %v7267, 23
    %v7269 = vsub.s32 %v7268, 127
    %v7270 = vand.u32 2147483647, %v4235
    %v7271 = vand.u32 %v7270, 8388607
    %v7272 = vor.u32 %v7271, 8388608
    %v7273 = vsub.s32 0, %v7272
    %v7274 = vadd.s32 %v7269, 1
    %vm7275 = vcmp.gt.s32.totalorder %v7274, 0
    %v7276 = vsel %vm7275, %v7274, 0
    %v7277 = vshrl.u32 %v7276, 5
    %v7278 = vand.u32 %v7276, 31
    %v7279 = vsub.s32 32, %v7278
    %v7280 = vshrl.u32 683565275, %v7279
    %v7281 = vshll.u32 683565275, %v7278
    %v7282 = vshrl.u32 2475754826, %v7279
    %v7283 = vor.u32 %v7281, %v7282
    %v7284 = vshll.u32 2475754826, %v7278
    %v7285 = vshrl.u32 2131351028, %v7279
    %v7286 = vor.u32 %v7284, %v7285
    %v7287 = vshll.u32 2131351028, %v7278
    %v7288 = vshrl.u32 2102212464, %v7279
    %v7289 = vor.u32 %v7287, %v7288
    %v7290 = vshll.u32 2102212464, %v7278
    %v7291 = vshrl.u32 920167782, %v7279
    %v7292 = vor.u32 %v7290, %v7291
    %v7293 = vshll.u32 920167782, %v7278
    %v7294 = vshrl.u32 1326507024, %v7279
    %v7295 = vor.u32 %v7293, %v7294
    %vm7296 = vcmp.lt.s32.totalorder %v7277, 1
    %vm7297 = vcmp.lt.s32.totalorder %v7277, 2
    %vm7298 = vcmp.lt.s32.totalorder %v7277, 3
    %vm7299 = vcmp.lt.s32.totalorder %v7277, 4
    %v7300 = vsel %vm7296, %v7280, %v7283
    %v7301 = vsel %vm7299, %v7289, 2102212464
    %v7302 = vsel %vm7298, %v7286, %v7301
    %v7303 = vsel %vm7297, %v7300, %v7302
    %v7304 = vsel %vm7296, %v7283, %v7286
    %v7305 = vsel %vm7299, %v7292, 920167782
    %v7306 = vsel %vm7298, %v7289, %v7305
    %v7307 = vsel %vm7297, %v7304, %v7306
    %v7308 = vsel %vm7296, %v7286, %v7289
    %v7309 = vsel %vm7299, %v7295, 1326507024
    %v7310 = vsel %vm7298, %v7292, %v7309
    %v7311 = vsel %vm7297, %v7308, %v7310
    %v7312 = vshll.u32 %v7272, 8
    %v7313 = vmul.u32.u64.compose %v7312, %v7311
    %v7314 = vextract.low.u32 %v7313
    %v7315 = vextract.high.u32 %v7313
    %v7316 = vmul.u32.u64.compose %v7312, %v7307
    %v7317 = vextract.low.u32 %v7316
    %v7318 = vextract.high.u32 %v7316
    %v7319 = vmul.u32 %v7312, %v7303
    %v7320 = vadd.s32 %v7315, %v7317
    %vm7321 = vc.u32 %v7315, %v7317
    %v7322 = vadd.s32 %v7318, 1
    %v7323 = vsel %vm7321, %v7322, %v7318
    %v7324 = vadd.s32 %v7319, %v7323
    %v7325 = vadd.s32 %v7324, 536870912
    %v7326 = vshrl.u32 %v7325, 30
    %v7327 = vshll.u32 %v7326, 30
    %v7328 = vsub.s32 %v7324, %v7327
    %vm7329 = vcmp.lt.s32.totalorder %v7328, 0
    %v7330 = vsub.s32 0, %v7328
    %v7331 = vsel %vm7329, %v7330, %v7328
    %v7332 = vclz %v7331
    %v7333 = vsub.s32 %v7332, 2
    %vm7334 = vcmp.gt.s32.totalorder 0, %v7333
    %v7335 = vsel %vm7334, 0, %v7333
    %v7336 = vsub.s32 32, %v7335
    %v7337 = vshll.u32 %v7328, %v7335
    %v7338 = vshrl.u32 %v7320, %v7336
    %v7339 = vor.u32 %v7337, %v7338
    %v7340 = vsub.s32 4294967266, %v7335
    %v7341 = vadd.s32 %v7340, 127
    %v7342 = vshll.u32 %v7341, 23
    %v7343 = vor.u32 4788187, %v7342
    %v7344 = vand.u32 2147483647, %v7343
    %v7346 = vcvt.s32.f32 %v7339
    %v7347 = vmul.f32 %v7346, %v7344
    %v7348 = vxor.u32 %v7347, 2147483648
    %v7349 = vsel %vm7266, %v7348, %v7347
    %v7350 = vsub.s32 4, %v7326
    %v7351 = vsel %vm7266, %v7350, %v7326
    %v7352 = vsel %vm7265, %v4235, %v7349
    %v7353 = vsel %vm7265, 0, %v7351
    %v7354 = vcosq.f32.pop %v7352
    %v7355 = vsinq.f32.pop %v7352
    %vm7356 = vweird.f32 %v4235
    %v7357 = vadd.s32 %v7353, 3
    %v7358 = vand.u32 %v7357, 3
    %vm7359 = vcmp.lt.s32.totalorder %v7358, 2
    %vm7360 = vcmp.eq.s32.totalorder %v7358, 0
    %v7361 = vxor.u32 %v7355, 2147483648
    %v7362 = vsel %vm7360, %v7354, %v7361
    %vm7363 = vcmp.eq.s32.totalorder %v7358, 2
    %v7364 = vxor.u32 %v7354, 2147483648
    %v7365 = vsel %vm7363, %v7364, %v7355
    %v7366 = vsel %vm7359, %v7362, %v7365
    %v7367 = vsel %vm7356, nan, %v7366
    %v7368 = vand.u32 2147483647, %v4240
    %vm7369 = vcmp.le.f32.partialorder %v7368, 0.7853982
    %vm7370 = vcmp.lt.s32.totalorder %v4240, 0
    %v7371 = vand.u32 %v4240, 2139095040
    %v7372 = vshrl.u32 %v7371, 23
    %v7373 = vsub.s32 %v7372, 127
    %v7374 = vand.u32 2147483647, %v4240
    %v7375 = vand.u32 %v7374, 8388607
    %v7376 = vor.u32 %v7375, 8388608
    %v7377 = vsub.s32 0, %v7376
    %v7378 = vadd.s32 %v7373, 1
    %vm7379 = vcmp.gt.s32.totalorder %v7378, 0
    %v7380 = vsel %vm7379, %v7378, 0
    %v7381 = vshrl.u32 %v7380, 5
    %v7382 = vand.u32 %v7380, 31
    %v7383 = vsub.s32 32, %v7382
    %v7384 = vshrl.u32 683565275, %v7383
    %v7385 = vshll.u32 683565275, %v7382
    %v7386 = vshrl.u32 2475754826, %v7383
    %v7387 = vor.u32 %v7385, %v7386
    %v7388 = vshll.u32 2475754826, %v7382
    %v7389 = vshrl.u32 2131351028, %v7383
    %v7390 = vor.u32 %v7388, %v7389
    %v7391 = vshll.u32 2131351028, %v7382
    %v7392 = vshrl.u32 2102212464, %v7383
    %v7393 = vor.u32 %v7391, %v7392
    %v7394 = vshll.u32 2102212464, %v7382
    %v7395 = vshrl.u32 920167782, %v7383
    %v7396 = vor.u32 %v7394, %v7395
    %v7397 = vshll.u32 920167782, %v7382
    %v7398 = vshrl.u32 1326507024, %v7383
    %v7399 = vor.u32 %v7397, %v7398
    %vm7400 = vcmp.lt.s32.totalorder %v7381, 1
    %vm7401 = vcmp.lt.s32.totalorder %v7381, 2
    %vm7402 = vcmp.lt.s32.totalorder %v7381, 3
    %vm7403 = vcmp.lt.s32.totalorder %v7381, 4
    %v7404 = vsel %vm7400, %v7384, %v7387
    %v7405 = vsel %vm7403, %v7393, 2102212464
    %v7406 = vsel %vm7402, %v7390, %v7405
    %v7407 = vsel %vm7401, %v7404, %v7406
    %v7408 = vsel %vm7400, %v7387, %v7390
    %v7409 = vsel %vm7403, %v7396, 920167782
    %v7410 = vsel %vm7402, %v7393, %v7409
    %v7411 = vsel %vm7401, %v7408, %v7410
    %v7412 = vsel %vm7400, %v7390, %v7393
    %v7413 = vsel %vm7403, %v7399, 1326507024
    %v7414 = vsel %vm7402, %v7396, %v7413
    %v7415 = vsel %vm7401, %v7412, %v7414
    %v7416 = vshll.u32 %v7376, 8
    %v7417 = vmul.u32.u64.compose %v7416, %v7415
    %v7418 = vextract.low.u32 %v7417
    %v7419 = vextract.high.u32 %v7417
    %v7420 = vmul.u32.u64.compose %v7416, %v7411
    %v7421 = vextract.low.u32 %v7420
    %v7422 = vextract.high.u32 %v7420
    %v7423 = vmul.u32 %v7416, %v7407
    %v7424 = vadd.s32 %v7419, %v7421
    %vm7425 = vc.u32 %v7419, %v7421
    %v7426 = vadd.s32 %v7422, 1
    %v7427 = vsel %vm7425, %v7426, %v7422
    %v7428 = vadd.s32 %v7423, %v7427
    %v7429 = vadd.s32 %v7428, 536870912
    %v7430 = vshrl.u32 %v7429, 30
    %v7431 = vshll.u32 %v7430, 30
    %v7432 = vsub.s32 %v7428, %v7431
    %vm7433 = vcmp.lt.s32.totalorder %v7432, 0
    %v7434 = vsub.s32 0, %v7432
    %v7435 = vsel %vm7433, %v7434, %v7432
    %v7436 = vclz %v7435
    %v7437 = vsub.s32 %v7436, 2
    %vm7438 = vcmp.gt.s32.totalorder 0, %v7437
    %v7439 = vsel %vm7438, 0, %v7437
    %v7440 = vsub.s32 32, %v7439
    %v7441 = vshll.u32 %v7432, %v7439
    %v7442 = vshrl.u32 %v7424, %v7440
    %v7443 = vor.u32 %v7441, %v7442
    %v7444 = vsub.s32 4294967266, %v7439
    %v7445 = vadd.s32 %v7444, 127
    %v7446 = vshll.u32 %v7445, 23
    %v7447 = vor.u32 4788187, %v7446
    %v7448 = vand.u32 2147483647, %v7447
    %v7450 = vcvt.s32.f32 %v7443
    %v7451 = vmul.f32 %v7450, %v7448
    %v7452 = vxor.u32 %v7451, 2147483648
    %v7453 = vsel %vm7370, %v7452, %v7451
    %v7454 = vsub.s32 4, %v7430
    %v7455 = vsel %vm7370, %v7454, %v7430
    %v7456 = vsel %vm7369, %v4240, %v7453
    %v7457 = vsel %vm7369, 0, %v7455
    %v7458 = vcosq.f32.pop %v7456
    %v7459 = vsinq.f32.pop %v7456
    %vm7460 = vweird.f32 %v4240
    %v7461 = vadd.s32 %v7457, 3
    %v7462 = vand.u32 %v7461, 3
    %vm7463 = vcmp.lt.s32.totalorder %v7462, 2
    %vm7464 = vcmp.eq.s32.totalorder %v7462, 0
    %v7465 = vxor.u32 %v7459, 2147483648
    %v7466 = vsel %vm7464, %v7458, %v7465
    %vm7467 = vcmp.eq.s32.totalorder %v7462, 2
    %v7468 = vxor.u32 %v7458, 2147483648
    %v7469 = vsel %vm7467, %v7468, %v7459
    %v7470 = vsel %vm7463, %v7466, %v7469
    %v7471 = vsel %vm7460, nan, %v7470
    %v7472 = vand.u32 2147483647, %v4245
    %vm7473 = vcmp.le.f32.partialorder %v7472, 0.7853982
    %vm7474 = vcmp.lt.s32.totalorder %v4245, 0
    %v7475 = vand.u32 %v4245, 2139095040
    %v7476 = vshrl.u32 %v7475, 23
    %v7477 = vsub.s32 %v7476, 127
    %v7478 = vand.u32 2147483647, %v4245
    %v7479 = vand.u32 %v7478, 8388607
    %v7480 = vor.u32 %v7479, 8388608
    %v7481 = vsub.s32 0, %v7480
    %v7482 = vadd.s32 %v7477, 1
    %vm7483 = vcmp.gt.s32.totalorder %v7482, 0
    %v7484 = vsel %vm7483, %v7482, 0
    %v7485 = vshrl.u32 %v7484, 5
    %v7486 = vand.u32 %v7484, 31
    %v7487 = vsub.s32 32, %v7486
    %v7488 = vshrl.u32 683565275, %v7487
    %v7489 = vshll.u32 683565275, %v7486
    %v7490 = vshrl.u32 2475754826, %v7487
    %v7491 = vor.u32 %v7489, %v7490
    %v7492 = vshll.u32 2475754826, %v7486
    %v7493 = vshrl.u32 2131351028, %v7487
    %v7494 = vor.u32 %v7492, %v7493
    %v7495 = vshll.u32 2131351028, %v7486
    %v7496 = vshrl.u32 2102212464, %v7487
    %v7497 = vor.u32 %v7495, %v7496
    %v7498 = vshll.u32 2102212464, %v7486
    %v7499 = vshrl.u32 920167782, %v7487
    %v7500 = vor.u32 %v7498, %v7499
    %v7501 = vshll.u32 920167782, %v7486
    %v7502 = vshrl.u32 1326507024, %v7487
    %v7503 = vor.u32 %v7501, %v7502
    %vm7504 = vcmp.lt.s32.totalorder %v7485, 1
    %vm7505 = vcmp.lt.s32.totalorder %v7485, 2
    %vm7506 = vcmp.lt.s32.totalorder %v7485, 3
    %vm7507 = vcmp.lt.s32.totalorder %v7485, 4
    %v7508 = vsel %vm7504, %v7488, %v7491
    %v7509 = vsel %vm7507, %v7497, 2102212464
    %v7510 = vsel %vm7506, %v7494, %v7509
    %v7511 = vsel %vm7505, %v7508, %v7510
    %v7512 = vsel %vm7504, %v7491, %v7494
    %v7513 = vsel %vm7507, %v7500, 920167782
    %v7514 = vsel %vm7506, %v7497, %v7513
    %v7515 = vsel %vm7505, %v7512, %v7514
    %v7516 = vsel %vm7504, %v7494, %v7497
    %v7517 = vsel %vm7507, %v7503, 1326507024
    %v7518 = vsel %vm7506, %v7500, %v7517
    %v7519 = vsel %vm7505, %v7516, %v7518
    %v7520 = vshll.u32 %v7480, 8
    %v7521 = vmul.u32.u64.compose %v7520, %v7519
    %v7522 = vextract.low.u32 %v7521
    %v7523 = vextract.high.u32 %v7521
    %v7524 = vmul.u32.u64.compose %v7520, %v7515
    %v7525 = vextract.low.u32 %v7524
    %v7526 = vextract.high.u32 %v7524
    %v7527 = vmul.u32 %v7520, %v7511
    %v7528 = vadd.s32 %v7523, %v7525
    %vm7529 = vc.u32 %v7523, %v7525
    %v7530 = vadd.s32 %v7526, 1
    %v7531 = vsel %vm7529, %v7530, %v7526
    %v7532 = vadd.s32 %v7527, %v7531
    %v7533 = vadd.s32 %v7532, 536870912
    %v7534 = vshrl.u32 %v7533, 30
    %v7535 = vshll.u32 %v7534, 30
    %v7536 = vsub.s32 %v7532, %v7535
    %vm7537 = vcmp.lt.s32.totalorder %v7536, 0
    %v7538 = vsub.s32 0, %v7536
    %v7539 = vsel %vm7537, %v7538, %v7536
    %v7540 = vclz %v7539
    %v7541 = vsub.s32 %v7540, 2
    %vm7542 = vcmp.gt.s32.totalorder 0, %v7541
    %v7543 = vsel %vm7542, 0, %v7541
    %v7544 = vsub.s32 32, %v7543
    %v7545 = vshll.u32 %v7536, %v7543
    %v7546 = vshrl.u32 %v7528, %v7544
    %v7547 = vor.u32 %v7545, %v7546
    %v7548 = vsub.s32 4294967266, %v7543
    %v7549 = vadd.s32 %v7548, 127
    %v7550 = vshll.u32 %v7549, 23
    %v7551 = vor.u32 4788187, %v7550
    %v7552 = vand.u32 2147483647, %v7551
    %v7554 = vcvt.s32.f32 %v7547
    %v7555 = vmul.f32 %v7554, %v7552
    %v7556 = vxor.u32 %v7555, 2147483648
    %v7557 = vsel %vm7474, %v7556, %v7555
    %v7558 = vsub.s32 4, %v7534
    %v7559 = vsel %vm7474, %v7558, %v7534
    %v7560 = vsel %vm7473, %v4245, %v7557
    %v7561 = vsel %vm7473, 0, %v7559
    %v7562 = vcosq.f32.pop %v7560
    %v7563 = vsinq.f32.pop %v7560
    %vm7564 = vweird.f32 %v4245
    %v7565 = vadd.s32 %v7561, 3
    %v7566 = vand.u32 %v7565, 3
    %vm7567 = vcmp.lt.s32.totalorder %v7566, 2
    %vm7568 = vcmp.eq.s32.totalorder %v7566, 0
    %v7569 = vxor.u32 %v7563, 2147483648
    %v7570 = vsel %vm7568, %v7562, %v7569
    %vm7571 = vcmp.eq.s32.totalorder %v7566, 2
    %v7572 = vxor.u32 %v7562, 2147483648
    %v7573 = vsel %vm7571, %v7572, %v7563
    %v7574 = vsel %vm7567, %v7570, %v7573
    %v7575 = vsel %vm7564, nan, %v7574
    %v7576 = vadd.f32 %v3966, %v4351
    %v7577 = vadd.f32 %v3967, %v4455
    %v7578 = vadd.f32 %v3968, %v4559
    %v7579 = vadd.f32 %v3969, %v4663
    %v7580 = vadd.f32 %v3970, %v4767
    %v7581 = vadd.f32 %v3971, %v4871
    %v7582 = vadd.f32 %v3972, %v4975
    %v7583 = vadd.f32 %v3973, %v5079
    %v7584 = vadd.f32 %v3974, %v5183
    %v7585 = vadd.f32 %v3975, %v5287
    %v7586 = vadd.f32 %v3976, %v5391
    %v7587 = vadd.f32 %v3977, %v5495
    %v7588 = vadd.f32 %v3978, %v5599
    %v7589 = vadd.f32 %v3979, %v5703
    %v7590 = vadd.f32 %v3980, %v5807
    %v7591 = vadd.f32 %v3981, %v5911
    %v7592 = vadd.f32 %v3982, %v6015
    %v7593 = vadd.f32 %v3983, %v6119
    %v7594 = vadd.f32 %v3984, %v6223
    %v7595 = vadd.f32 %v3985, %v6327
    %v7596 = vadd.f32 %v3986, %v6431
    %v7597 = vadd.f32 %v3987, %v6535
    %v7598 = vadd.f32 %v3988, %v6639
    %v7599 = vadd.f32 %v3989, %v6743
    %v7600 = vadd.f32 %v3990, %v6847
    %v7601 = vadd.f32 %v3991, %v6951
    %v7602 = vadd.f32 %v3992, %v7055
    %v7603 = vadd.f32 %v3993, %v7159
    %v7604 = vadd.f32 %v3994, %v7263
    %v7605 = vadd.f32 %v3995, %v7367
    %v7606 = vadd.f32 %v3996, %v7471
    %v7607 = vadd.f32 %v3997, %v7575
    %s7608 = scalar_lea.vmem [#allocation2], 256
    %v7609 = vld [vmem:[%s7608] sm:$0xff]
    %v7610 = vld [vmem:[%s7608 + $0x8] sm:$0xff]
    %v7611 = vld [vmem:[%s7608 + $0x10] sm:$0xff]
    %v7612 = vld [vmem:[%s7608 + $0x18] sm:$0xff]
    %v7613 = vld [vmem:[%s7608 + $0x20] sm:$0xff]
    %v7614 = vld [vmem:[%s7608 + $0x28] sm:$0xff]
    %v7615 = vld [vmem:[%s7608 + $0x30] sm:$0xff]
    %v7616 = vld [vmem:[%s7608 + $0x38] sm:$0xff]
    %v7617 = vld [vmem:[%s7608 + $0x40] sm:$0xff]
    %v7618 = vld [vmem:[%s7608 + $0x48] sm:$0xff]
    %v7619 = vld [vmem:[%s7608 + $0x50] sm:$0xff]
    %v7620 = vld [vmem:[%s7608 + $0x58] sm:$0xff]
    %v7621 = vld [vmem:[%s7608 + $0x60] sm:$0xff]
    %v7622 = vld [vmem:[%s7608 + $0x68] sm:$0xff]
    %v7623 = vld [vmem:[%s7608 + $0x70] sm:$0xff]
    %v7624 = vld [vmem:[%s7608 + $0x78] sm:$0xff]
    %s7625 = scalar_lea.vmem %s3, 2
    %v7626 = vld [vmem:[%s7625] sm:$0x1]
    %v7628 = vlaneseq
    %v7629 = vshrl.u32 %v7628, 7
    %v7630 = vsub.s32 0, %v7629
    %v7631 = vrot.slane %v7626, %v7630
    %7633 = vmatprep.subr.mxu0 0.0
    %7634 = vmatpush1.msra.mxu0 %v7609
    %7635 = vmatprep.subr.mxu0 0.0
    %7636 = vmatpush1.msra.mxu0 %v7610
    %7637 = vmatprep.subr.mxu0 0.0
    %7638 = vmatpush1.msra.mxu0 %v7611
    %7639 = vmatprep.subr.mxu0 0.0
    %7640 = vmatpush1.msra.mxu0 %v7612
    %7641 = vmatprep.subr.mxu0 0.0
    %7642 = vmatpush1.msra.mxu0 %v7613
    %7643 = vmatprep.subr.mxu0 0.0
    %7644 = vmatpush1.msra.mxu0 %v7614
    %7645 = vmatprep.subr.mxu0 0.0
    %7646 = vmatpush1.msra.mxu0 %v7615
    %7647 = vmatprep.subr.mxu0 0.0
    %7648 = vmatpush1.msra.mxu0 %v7616
    %7649 = vmatprep.subr.mxu0 0.0
    %7650 = vmatpush1.msra.mxu0 %v7617
    %7651 = vmatprep.subr.mxu0 0.0
    %7652 = vmatpush1.msra.mxu0 %v7618
    %7653 = vmatprep.subr.mxu0 0.0
    %7654 = vmatpush1.msra.mxu0 %v7619
    %7655 = vmatprep.subr.mxu0 0.0
    %7656 = vmatpush1.msra.mxu0 %v7620
    %7657 = vmatprep.subr.mxu0 0.0
    %7658 = vmatpush1.msra.mxu0 %v7621
    %7659 = vmatprep.subr.mxu0 0.0
    %7660 = vmatpush1.msra.mxu0 %v7622
    %7661 = vmatprep.subr.mxu0 0.0
    %7662 = vmatpush1.msra.mxu0 %v7623
    %7663 = vmatprep.subr.mxu0 0.0
    %7664 = vmatpush1.msra.mxu0 %v7624
    %7665 = vmatprep.subr.mxu0 0.0
    %7666 = vmatpush1.msra.mxu0 0.0
    %7667 = vmatprep.subr.mxu0 0.0
    %7668 = vmatpush1.msra.mxu0 0.0
    %7669 = vmatprep.subr.mxu0 0.0
    %7670 = vmatpush1.msra.mxu0 0.0
    %7671 = vmatprep.subr.mxu0 0.0
    %7672 = vmatpush1.msra.mxu0 0.0
    %7673 = vmatprep.subr.mxu0 0.0
    %7674 = vmatpush1.msra.mxu0 0.0
    %7675 = vmatprep.subr.mxu0 0.0
    %7676 = vmatpush1.msra.mxu0 0.0
    %7677 = vmatprep.subr.mxu0 0.0
    %7678 = vmatpush1.msra.mxu0 0.0
    %7679 = vmatprep.subr.mxu0 0.0
    %7680 = vmatpush1.msra.mxu0 0.0
    %7681 = vmatprep.subr.mxu0 0.0
    %7682 = vmatpush1.msra.mxu0 0.0
    %7683 = vmatprep.subr.mxu0 0.0
    %7684 = vmatpush1.msra.mxu0 0.0
    %7685 = vmatprep.subr.mxu0 0.0
    %7686 = vmatpush1.msra.mxu0 0.0
    %7687 = vmatprep.subr.mxu0 0.0
    %7688 = vmatpush1.msra.mxu0 0.0
    %7689 = vmatprep.subr.mxu0 0.0
    %7690 = vmatpush1.msra.mxu0 0.0
    %7691 = vmatprep.subr.mxu0 0.0
    %7692 = vmatpush1.msra.mxu0 0.0
    %7693 = vmatprep.subr.mxu0 0.0
    %7694 = vmatpush1.msra.mxu0 0.0
    %7695 = vmatprep.subr.mxu0 0.0
    %7696 = vmatpush1.msra.mxu0 0.0
    %7697 = vmatprep.mubr.f32.mxu0 0.0
    %7698 = vmatmul.mubr.f32.gmra.mrb[0].mxu0 %v7576
    %v7699 = vpop.f32.mrb[0].mxu0
    %v7700 = vadd.f32 %v7631, %v7699
    %v7701 = vpop.f32.mrb[0].mxu0
    %7702 = vmatprep.mubr.f32.mxu0 0.0
    %7703 = vmatmul.mubr.f32.gmra.mrb[0].mxu0 %v7577
    %v7704 = vpop.f32.mrb[0].mxu0
    %v7705 = vadd.f32 %v7631, %v7704
    %v7706 = vpop.f32.mrb[0].mxu0
    %7707 = vmatprep.mubr.f32.mxu0 0.0
    %7708 = vmatmul.mubr.f32.gmra.mrb[0].mxu0 %v7578
    %v7709 = vpop.f32.mrb[0].mxu0
    %v7710 = vadd.f32 %v7631, %v7709
    %v7711 = vpop.f32.mrb[0].mxu0
    %7712 = vmatprep.mubr.f32.mxu0 0.0
    %7713 = vmatmul.mubr.f32.gmra.mrb[0].mxu0 %v7579
    %v7714 = vpop.f32.mrb[0].mxu0
    %v7715 = vadd.f32 %v7631, %v7714
    %v7716 = vpop.f32.mrb[0].mxu0
    %7717 = vmatprep.mubr.f32.mxu0 0.0
    %7718 = vmatmul.mubr.f32.gmra.mrb[0].mxu0 %v7580
    %v7719 = vpop.f32.mrb[0].mxu0
    %v7720 = vadd.f32 %v7631, %v7719
    %v7721 = vpop.f32.mrb[0].mxu0
    %7722 = vmatprep.mubr.f32.mxu0 0.0
    %7723 = vmatmul.mubr.f32.gmra.mrb[0].mxu0 %v7581
    %v7724 = vpop.f32.mrb[0].mxu0
    %v7725 = vadd.f32 %v7631, %v7724
    %v7726 = vpop.f32.mrb[0].mxu0
    %7727 = vmatprep.mubr.f32.mxu0 0.0
    %7728 = vmatmul.mubr.f32.gmra.mrb[0].mxu0 %v7582
    %v7729 = vpop.f32.mrb[0].mxu0
    %v7730 = vadd.f32 %v7631, %v7729
    %v7731 = vpop.f32.mrb[0].mxu0
    %7732 = vmatprep.mubr.f32.mxu0 0.0
    %7733 = vmatmul.mubr.f32.gmra.mrb[0].mxu0 %v7583
    %v7734 = vpop.f32.mrb[0].mxu0
    %v7735 = vadd.f32 %v7631, %v7734
    %v7736 = vpop.f32.mrb[0].mxu0
    %7737 = vmatprep.mubr.f32.mxu0 0.0
    %7738 = vmatmul.mubr.f32.gmra.mrb[0].mxu0 %v7584
    %v7739 = vpop.f32.mrb[0].mxu0
    %v7740 = vadd.f32 %v7631, %v7739
    %v7741 = vpop.f32.mrb[0].mxu0
    %7742 = vmatprep.mubr.f32.mxu0 0.0
    %7743 = vmatmul.mubr.f32.gmra.mrb[0].mxu0 %v7585
    %v7744 = vpop.f32.mrb[0].mxu0
    %v7745 = vadd.f32 %v7631, %v7744
    %v7746 = vpop.f32.mrb[0].mxu0
    %7747 = vmatprep.mubr.f32.mxu0 0.0
    %7748 = vmatmul.mubr.f32.gmra.mrb[0].mxu0 %v7586
    %v7749 = vpop.f32.mrb[0].mxu0
    %v7750 = vadd.f32 %v7631, %v7749
    %v7751 = vpop.f32.mrb[0].mxu0
    %7752 = vmatprep.mubr.f32.mxu0 0.0
    %7753 = vmatmul.mubr.f32.gmra.mrb[0].mxu0 %v7587
    %v7754 = vpop.f32.mrb[0].mxu0
    %v7755 = vadd.f32 %v7631, %v7754
    %v7756 = vpop.f32.mrb[0].mxu0
    %7757 = vmatprep.mubr.f32.mxu0 0.0
    %7758 = vmatmul.mubr.f32.gmra.mrb[0].mxu0 %v7588
    %v7759 = vpop.f32.mrb[0].mxu0
    %v7760 = vadd.f32 %v7631, %v7759
    %v7761 = vpop.f32.mrb[0].mxu0
    %7762 = vmatprep.mubr.f32.mxu0 0.0
    %7763 = vmatmul.mubr.f32.gmra.mrb[0].mxu0 %v7589
    %v7764 = vpop.f32.mrb[0].mxu0
    %v7765 = vadd.f32 %v7631, %v7764
    %v7766 = vpop.f32.mrb[0].mxu0
    %7767 = vmatprep.mubr.f32.mxu0 0.0
    %7768 = vmatmul.mubr.f32.gmra.mrb[0].mxu0 %v7590
    %v7769 = vpop.f32.mrb[0].mxu0
    %v7770 = vadd.f32 %v7631, %v7769
    %v7771 = vpop.f32.mrb[0].mxu0
    %7772 = vmatprep.mubr.f32.mxu0 0.0
    %7773 = vmatmul.mubr.f32.gmra.mrb[0].mxu0 %v7591
    %v7774 = vpop.f32.mrb[0].mxu0
    %v7775 = vadd.f32 %v7631, %v7774
    %v7776 = vpop.f32.mrb[0].mxu0
    %7777 = vmatprep.mubr.f32.mxu0 0.0
    %7778 = vmatmul.mubr.f32.gmra.mrb[0].mxu0 %v7592
    %v7779 = vpop.f32.mrb[0].mxu0
    %v7780 = vadd.f32 %v7631, %v7779
    %v7781 = vpop.f32.mrb[0].mxu0
    %7782 = vmatprep.mubr.f32.mxu0 0.0
    %7783 = vmatmul.mubr.f32.gmra.mrb[0].mxu0 %v7593
    %v7784 = vpop.f32.mrb[0].mxu0
    %v7785 = vadd.f32 %v7631, %v7784
    %v7786 = vpop.f32.mrb[0].mxu0
    %7787 = vmatprep.mubr.f32.mxu0 0.0
    %7788 = vmatmul.mubr.f32.gmra.mrb[0].mxu0 %v7594
    %v7789 = vpop.f32.mrb[0].mxu0
    %v7790 = vadd.f32 %v7631, %v7789
    %v7791 = vpop.f32.mrb[0].mxu0
    %7792 = vmatprep.mubr.f32.mxu0 0.0
    %7793 = vmatmul.mubr.f32.gmra.mrb[0].mxu0 %v7595
    %v7794 = vpop.f32.mrb[0].mxu0
    %v7795 = vadd.f32 %v7631, %v7794
    %v7796 = vpop.f32.mrb[0].mxu0
    %7797 = vmatprep.mubr.f32.mxu0 0.0
    %7798 = vmatmul.mubr.f32.gmra.mrb[0].mxu0 %v7596
    %v7799 = vpop.f32.mrb[0].mxu0
    %v7800 = vadd.f32 %v7631, %v7799
    %v7801 = vpop.f32.mrb[0].mxu0
    %7802 = vmatprep.mubr.f32.mxu0 0.0
    %7803 = vmatmul.mubr.f32.gmra.mrb[0].mxu0 %v7597
    %v7804 = vpop.f32.mrb[0].mxu0
    %v7805 = vadd.f32 %v7631, %v7804
    %v7806 = vpop.f32.mrb[0].mxu0
    %7807 = vmatprep.mubr.f32.mxu0 0.0
    %7808 = vmatmul.mubr.f32.gmra.mrb[0].mxu0 %v7598
    %v7809 = vpop.f32.mrb[0].mxu0
    %v7810 = vadd.f32 %v7631, %v7809
    %v7811 = vpop.f32.mrb[0].mxu0
    %7812 = vmatprep.mubr.f32.mxu0 0.0
    %7813 = vmatmul.mubr.f32.gmra.mrb[0].mxu0 %v7599
    %v7814 = vpop.f32.mrb[0].mxu0
    %v7815 = vadd.f32 %v7631, %v7814
    %v7816 = vpop.f32.mrb[0].mxu0
    %7817 = vmatprep.mubr.f32.mxu0 0.0
    %7818 = vmatmul.mubr.f32.gmra.mrb[0].mxu0 %v7600
    %v7819 = vpop.f32.mrb[0].mxu0
    %v7820 = vadd.f32 %v7631, %v7819
    %v7821 = vpop.f32.mrb[0].mxu0
    %7822 = vmatprep.mubr.f32.mxu0 0.0
    %7823 = vmatmul.mubr.f32.gmra.mrb[0].mxu0 %v7601
    %v7824 = vpop.f32.mrb[0].mxu0
    %v7825 = vadd.f32 %v7631, %v7824
    %v7826 = vpop.f32.mrb[0].mxu0
    %7827 = vmatprep.mubr.f32.mxu0 0.0
    %7828 = vmatmul.mubr.f32.gmra.mrb[0].mxu0 %v7602
    %v7829 = vpop.f32.mrb[0].mxu0
    %v7830 = vadd.f32 %v7631, %v7829
    %v7831 = vpop.f32.mrb[0].mxu0
    %7832 = vmatprep.mubr.f32.mxu0 0.0
    %7833 = vmatmul.mubr.f32.gmra.mrb[0].mxu0 %v7603
    %v7834 = vpop.f32.mrb[0].mxu0
    %v7835 = vadd.f32 %v7631, %v7834
    %v7836 = vpop.f32.mrb[0].mxu0
    %7837 = vmatprep.mubr.f32.mxu0 0.0
    %7838 = vmatmul.mubr.f32.gmra.mrb[0].mxu0 %v7604
    %v7839 = vpop.f32.mrb[0].mxu0
    %v7840 = vadd.f32 %v7631, %v7839
    %v7841 = vpop.f32.mrb[0].mxu0
    %7842 = vmatprep.mubr.f32.mxu0 0.0
    %7843 = vmatmul.mubr.f32.gmra.mrb[0].mxu0 %v7605
    %v7844 = vpop.f32.mrb[0].mxu0
    %v7845 = vadd.f32 %v7631, %v7844
    %v7846 = vpop.f32.mrb[0].mxu0
    %7847 = vmatprep.mubr.f32.mxu0 0.0
    %7848 = vmatmul.mubr.f32.gmra.mrb[0].mxu0 %v7606
    %v7849 = vpop.f32.mrb[0].mxu0
    %v7850 = vadd.f32 %v7631, %v7849
    %v7851 = vpop.f32.mrb[0].mxu0
    %7852 = vmatprep.mubr.f32.mxu0 0.0
    %7853 = vmatmul.mubr.f32.gmra.mrb[0].mxu0 %v7607
    %v7854 = vpop.f32.mrb[0].mxu0
    %v7855 = vadd.f32 %v7631, %v7854
    %v7856 = vpop.f32.mrb[0].mxu0
    %7857 = vdwg.mxu0
    %vm7858 = vcmask 15360
    %7859 = vst.msk [vmem:[%s4] sm:$0xff] %vm7858, %v7700
    %7860 = vst.msk [vmem:[%s4 + $0x8] sm:$0xff] %vm7858, %v7705
    %7861 = vst.msk [vmem:[%s4 + $0x10] sm:$0xff] %vm7858, %v7710
    %7862 = vst.msk [vmem:[%s4 + $0x18] sm:$0xff] %vm7858, %v7715
    %7863 = vst.msk [vmem:[%s4 + $0x20] sm:$0xff] %vm7858, %v7720
    %7864 = vst.msk [vmem:[%s4 + $0x28] sm:$0xff] %vm7858, %v7725
    %7865 = vst.msk [vmem:[%s4 + $0x30] sm:$0xff] %vm7858, %v7730
    %7866 = vst.msk [vmem:[%s4 + $0x38] sm:$0xff] %vm7858, %v7735
    %7867 = vst.msk [vmem:[%s4 + $0x40] sm:$0xff] %vm7858, %v7740
    %7868 = vst.msk [vmem:[%s4 + $0x48] sm:$0xff] %vm7858, %v7745
    %7869 = vst.msk [vmem:[%s4 + $0x50] sm:$0xff] %vm7858, %v7750
    %7870 = vst.msk [vmem:[%s4 + $0x58] sm:$0xff] %vm7858, %v7755
    %7871 = vst.msk [vmem:[%s4 + $0x60] sm:$0xff] %vm7858, %v7760
    %7872 = vst.msk [vmem:[%s4 + $0x68] sm:$0xff] %vm7858, %v7765
    %7873 = vst.msk [vmem:[%s4 + $0x70] sm:$0xff] %vm7858, %v7770
    %7874 = vst.msk [vmem:[%s4 + $0x78] sm:$0xff] %vm7858, %v7775
    %7875 = vst.msk [vmem:[%s4 + $0x80] sm:$0xff] %vm7858, %v7780
    %7876 = vst.msk [vmem:[%s4 + $0x88] sm:$0xff] %vm7858, %v7785
    %7877 = vst.msk [vmem:[%s4 + $0x90] sm:$0xff] %vm7858, %v7790
    %7878 = vst.msk [vmem:[%s4 + $0x98] sm:$0xff] %vm7858, %v7795
    %7879 = vst.msk [vmem:[%s4 + $0xa0] sm:$0xff] %vm7858, %v7800
    %7880 = vst.msk [vmem:[%s4 + $0xa8] sm:$0xff] %vm7858, %v7805
    %7881 = vst.msk [vmem:[%s4 + $0xb0] sm:$0xff] %vm7858, %v7810
    %7882 = vst.msk [vmem:[%s4 + $0xb8] sm:$0xff] %vm7858, %v7815
    %7883 = vst.msk [vmem:[%s4 + $0xc0] sm:$0xff] %vm7858, %v7820
    %7884 = vst.msk [vmem:[%s4 + $0xc8] sm:$0xff] %vm7858, %v7825
    %7885 = vst.msk [vmem:[%s4 + $0xd0] sm:$0xff] %vm7858, %v7830
    %7886 = vst.msk [vmem:[%s4 + $0xd8] sm:$0xff] %vm7858, %v7835
    %7887 = vst.msk [vmem:[%s4 + $0xe0] sm:$0xff] %vm7858, %v7840
    %7888 = vst.msk [vmem:[%s4 + $0xe8] sm:$0xff] %vm7858, %v7845
    %7889 = vst.msk [vmem:[%s4 + $0xf0] sm:$0xff] %vm7858, %v7850
    %7890 = vst.msk [vmem:[%s4 + $0xf8] sm:$0xff] %vm7858, %v7855
    // Predicated region
    $region22: #{tpu_custom_call.1} parent=1 // pred_check
      _
    $region23: #{tpu_custom_call.1} parent=1 // pred_check_branch
      %7892 = sbr.rel (0) target = $region25
    $region24: #{tpu_custom_call.1} parent=1 // pred_region
      _
    $region25: #{tpu_custom_call.1} parent=1 // pred_fallthru
      _
    // Predicated region
    $region26: #{tpu_custom_call.1} parent=1 // pred_check
      _
    $region27: #{tpu_custom_call.1} parent=1 // pred_check_branch
      %7894 = sbr.rel (0) target = $region29
    $region28: #{tpu_custom_call.1} parent=1 // pred_region
      _
    $region29: #{tpu_custom_call.1} parent=1 // pred_fallthru
      _
    %7895 = vsyncpa [#allocation3], 1

</llo_original>
